<compile_context>
chip_gen: v7x
topology: tpu7x:2x2x1
jax: 0.10.0
libtpu: 0.0.40
codegen_flags: <defaults>
</compile_context>

<pallas_src>
import math

import jax
import jax.numpy as jnp
from jax.experimental import pallas as pl
from jax.experimental.pallas import tpu as pltpu

# ---------------- small configuration consistent with TFDecoder -------------
MODEL_DIM = 32      # model_dim
FF_DIM    = 64      # ff_dim
N_HEADS   = 4       # n_heads
N_LAYERS  = 2       # n_layers
VOCAB     = 32      # num_embeddings
T_LEN     = 8       # target length
S_LEN     = 8       # source (encoder) length
BATCH     = 2
HEAD_DIM  = MODEL_DIM // N_HEADS
V_PAD     = 128     # lane-dense padded width for the output projection / decx
NEG_INF   = -1e9
LN_EPS    = 1e-6


# --------------------------- slab layouts ------------------------------------
def _build_w_layout():
    """bf16 weight slab: each matrix occupies [row:row+rows, 0:cols] (width 128).

    All row counts are multiples of 8, so every weight starts sublane-aligned
    and at lane 0 (prefix slices only -> no lane rotates)."""
    layout, row = {}, 0
    entries = []
    for l in range(N_LAYERS):
        entries += [(f'qkv{l}',  MODEL_DIM, 3 * MODEL_DIM),   # fused self Wq|Wk|Wv
                    (f'po_s{l}', MODEL_DIM, MODEL_DIM),       # self out-proj
                    (f'q_c{l}',  MODEL_DIM, MODEL_DIM),       # cross Wq
                    (f'po_c{l}', MODEL_DIM, MODEL_DIM),       # cross out-proj
                    (f'ff1{l}',  MODEL_DIM, FF_DIM),
                    (f'ff2{l}',  FF_DIM,    MODEL_DIM)]
    entries += [('ckv', MODEL_DIM, 2 * N_LAYERS * MODEL_DIM),  # all-layer cross Wk|Wv
                ('out', MODEL_DIM, V_PAD)]
    for name, rows, cols in entries:
        layout[name] = (row, rows, cols)
        row += rows
    return layout, row


def _build_p_layout():
    """f32 bias / LayerNorm slab: one 128-wide row per vector (leading-axis access)."""
    layout, entries = {}, []
    for l in range(N_LAYERS):
        entries += [(f'b_qkv{l}', 3 * MODEL_DIM), (f'b_po_s{l}', MODEL_DIM),
                    (f'b_q_c{l}', MODEL_DIM),     (f'b_po_c{l}', MODEL_DIM),
                    (f'b_ff1{l}', FF_DIM),        (f'b_ff2{l}', MODEL_DIM)]
        for k in range(3):
            entries += [(f'ln{l}_{k}_g', MODEL_DIM), (f'ln{l}_{k}_b', MODEL_DIM)]
    entries += [('b_ckv', 2 * N_LAYERS * MODEL_DIM),
                ('fin_g', MODEL_DIM), ('fin_b', MODEL_DIM),
                ('b_out', V_PAD)]
    for row, (name, cols) in enumerate(entries):
        layout[name] = (row, cols)
    return layout, len(entries)


W_LAYOUT, W_ROWS = _build_w_layout()
P_LAYOUT, P_ROWS = _build_p_layout()


# --------------------------- in-kernel helpers -------------------------------
def _layer_norm(h, g, b):
    mu = jnp.mean(h, axis=-1, keepdims=True)
    var = jnp.mean(jnp.square(h - mu), axis=-1, keepdims=True)
    return (h - mu) * jax.lax.rsqrt(var + LN_EPS) * g + b


def _gelu(x):
    # TODO(synk): PyTorch F.gelu defaults to the exact erf form; the tanh
    # approximation is used for a guaranteed Mosaic lowering (~1e-3 max abs diff).
    c = math.sqrt(2.0 / math.pi)
    return 0.5 * x * (1.0 + jnp.tanh(c * (x + 0.044715 * x * x * x)))


def _matmul(h_bf, w_bf):
    """(B, T, Din) @ (Din, Dout): bf16 MXU operands, f32 accumulation."""
    B, T, Din = h_bf.shape
    out = jnp.dot(h_bf.reshape(B * T, Din), w_bf,
                  preferred_element_type=jnp.float32)
    return out.reshape(B, T, w_bf.shape[-1])


def _mha(q_bf, k_bf, v_bf, mask_add):
    """Multi-head attention; q already carries the 1/sqrt(hs) scale (folded
    into the weights).  q: (B,Tq,D) bf16; k,v: (B,Tk,D) bf16; mask_add is
    additive f32 broadcastable to (B,H,Tq,Tk).  Single softmax over all heads."""
    hs = HEAD_DIM
    s = jnp.stack(
        [jnp.einsum('bqd,bkd->bqk',
                    q_bf[..., h * hs:(h + 1) * hs],
                    k_bf[..., h * hs:(h + 1) * hs],
                    preferred_element_type=jnp.float32)
         for h in range(N_HEADS)], axis=1)                     # (B,H,Tq,Tk) f32
    s = s + mask_add
    m = jnp.max(s, axis=-1, keepdims=True)
    e = jnp.exp(s - m)
    pr = (e * pl.reciprocal(jnp.sum(e, axis=-1, keepdims=True),
                            approx=True)).astype(jnp.bfloat16)
    return jnp.concatenate(
        [jnp.einsum('bqk,bkd->bqd', pr[:, h],
                    v_bf[..., h * hs:(h + 1) * hs],
                    preferred_element_type=jnp.float32)
         for h in range(N_HEADS)], axis=-1)                    # (B,Tq,D) f32


# ------------------------------- the kernel ----------------------------------
def _decoder_kernel(x0_ref, enc_ref, pads_ref, w_ref, p_ref, logp_ref, decx_ref):
    D = MODEL_DIM
    B, T, _ = x0_ref.shape
    S = enc_ref.shape[1]

    def ld_w(name):
        r0, rows, cols = W_LAYOUT[name]
        return w_ref[r0:r0 + rows, :cols]          # static sublane-range + lane-prefix

    def ld_p(name):
        r0, cols = P_LAYOUT[name]
        return p_ref[r0, :cols]                    # leading-axis row, lane-prefix

    x = x0_ref[...]                                # (B, T, D) f32 hidden state

    # Additive masks: causal from a 2D iota, pads from the packed (B, T+S) vector.
    r_i = jax.lax.broadcasted_iota(jnp.int32, (T, T), 0)
    c_i = jax.lax.broadcasted_iota(jnp.int32, (T, T), 1)
    causal = jnp.where(c_i > r_i, NEG_INF, 0.0).astype(jnp.float32)
    self_mask = causal[None, None] + pads_ref[:, :T][:, None, None, :]   # (B,1,T,T)
    cross_mask = pads_ref[:, T:T + S][:, None, None, :]                  # (B,1,1,S)

    # Hoisted cross-attention K/V for ALL layers: one lane-dense (D,128) matmul.
    ckv = _matmul(enc_ref[...].astype(jnp.bfloat16), ld_w('ckv')) + ld_p('b_ckv')
    ckv_bf = ckv.astype(jnp.bfloat16)              # (B, S, L*2*D)

    # Static unroll over layers: all weights resident in VMEM.
    for l in range(N_LAYERS):
        # --- sublayer 1 (pre-norm): masked self-attention, fused QKV matmul ---
        h = _layer_norm(x, ld_p(f'ln{l}_0_g'), ld_p(f'ln{l}_0_b')).astype(jnp.bfloat16)
        qkv = (_matmul(h, ld_w(f'qkv{l}')) + ld_p(f'b_qkv{l}')).astype(jnp.bfloat16)
        a = _mha(qkv[..., :D], qkv[..., D:2 * D], qkv[..., 2 * D:], self_mask)
        x = x + _matmul(a.astype(jnp.bfloat16), ld_w(f'po_s{l}')) + ld_p(f'b_po_s{l}')

        # --- sublayer 2 (pre-norm): cross-attention, K/V from hoisted ckv ---
        h = _layer_norm(x, ld_p(f'ln{l}_1_g'), ld_p(f'ln{l}_1_b')).astype(jnp.bfloat16)
        q = (_matmul(h, ld_w(f'q_c{l}')) + ld_p(f'b_q_c{l}')).astype(jnp.bfloat16)
        base = l * 2 * D
        a = _mha(q, ckv_bf[..., base:base + D], ckv_bf[..., base + D:base + 2 * D],
                 cross_mask)
        x = x + _matmul(a.astype(jnp.bfloat16), ld_w(f'po_c{l}')) + ld_p(f'b_po_c{l}')

        # --- sublayer 3 (pre-norm): position-wise feed-forward (gelu) ---
        h = _layer_norm(x, ld_p(f'ln{l}_2_g'), ld_p(f'ln{l}_2_b')).astype(jnp.bfloat16)
        ff = _gelu(_matmul(h, ld_w(f'ff1{l}')) + ld_p(f'b_ff1{l}')).astype(jnp.bfloat16)
        x = x + _matmul(ff, ld_w(f'ff2{l}')) + ld_p(f'b_ff2{l}')

    # --- final LayerNorm; lane-dense (128-wide) stores for both outputs ---
    xf = _layer_norm(x, ld_p('fin_g'), ld_p('fin_b'))
    decx_ref[...] = jnp.concatenate(
        [xf, jnp.zeros((B, T, V_PAD - D), jnp.float32)], axis=-1)
    logits = _matmul(xf.astype(jnp.bfloat16), ld_w('out')) + ld_p('b_out')
    m = jnp.max(logits, axis=-1, keepdims=True)
    z = logits - m
    logp_ref[...] = z - jnp.log(jnp.sum(jnp.exp(z), axis=-1, keepdims=True))


def _run_decoder(x0, enc, pads, w_slab, p_slab):
    B, T, _ = x0.shape
    # NOTE: for large B*T on v7x, add grid=(B,) with dimension_semantics=
    # ("parallel",) to use both TensorCores and re-derive tiling vs 64 MiB VMEM;
    # at B=2/T=8 the per-step grid overhead would exceed the gain.
    return pl.pallas_call(
        _decoder_kernel,
        out_shape=(jax.ShapeDtypeStruct((B, T, V_PAD), jnp.float32),
                   jax.ShapeDtypeStruct((B, T, V_PAD), jnp.float32)),
        compiler_params=pltpu.CompilerParams(
            vmem_limit_bytes=32 * 1024 * 1024),
    )(x0, enc, pads, w_slab, p_slab)


# ------------------------------ JAX-side glue --------------------------------
def sinusoidal_pe(max_len, dim):
    pos = jnp.arange(max_len, dtype=jnp.float32)[:, None]
    i = jnp.arange(0, dim, 2, dtype=jnp.float32)[None, :]
    div = jnp.exp(-math.log(10000.0) * i / dim)
    pe = jnp.zeros((max_len, dim), jnp.float32)
    pe = pe.at[:, 0::2].set(jnp.sin(pos * div))
    pe = pe.at[:, 1::2].set(jnp.cos(pos * div))
    return pe


def make_params(key):
    D, F, V, L = MODEL_DIM, FF_DIM, VOCAB, N_LAYERS
    scale = 1.0 / math.sqrt(HEAD_DIM)
    ks = iter(jax.random.split(key, 64))

    def norm(shape, s=0.02):
        return (s * jax.random.normal(next(ks), shape)).astype(jnp.float32)

    emb = norm((V, D), 1.0 / math.sqrt(D))
    emb = emb.at[0].set(0.0)          # nn.Embedding(padding_idx=0): pad row zeros

    w_slab = jnp.zeros((W_ROWS, 128), jnp.float32)
    p_slab = jnp.zeros((P_ROWS, 128), jnp.float32)

    def put_w(slab, name, mat):
        r0, rows, cols = W_LAYOUT[name]
        assert mat.shape == (rows, cols)
        return slab.at[r0:r0 + rows, :cols].set(mat)

    def put_p(slab, name, vec):
        r0, cols = P_LAYOUT[name]
        assert vec.shape == (cols,)
        return slab.at[r0, :cols].set(vec)

    ckv_w, ckv_b = [], []
    for l in range(L):
        # self-attention: fused [Wq|Wk|Wv]; 1/sqrt(hs) folded into Wq, bq.
        wq, wk, wv = norm((D, D)), norm((D, D)), norm((D, D))
        bq, bk, bv = norm((D,)), norm((D,)), norm((D,))
        w_slab = put_w(w_slab, f'qkv{l}', jnp.concatenate([wq * scale, wk, wv], axis=1))
        p_slab = put_p(p_slab, f'b_qkv{l}', jnp.concatenate([bq * scale, bk, bv]))
        w_slab = put_w(w_slab, f'po_s{l}', norm((D, D)))
        p_slab = put_p(p_slab, f'b_po_s{l}', norm((D,)))
        # cross-attention: Q per layer (scale folded); K/V packed into the shared slab.
        w_slab = put_w(w_slab, f'q_c{l}', norm((D, D)) * scale)
        p_slab = put_p(p_slab, f'b_q_c{l}', norm((D,)) * scale)
        ckv_w += [norm((D, D)), norm((D, D))]
        ckv_b += [norm((D,)), norm((D,))]
        w_slab = put_w(w_slab, f'po_c{l}', norm((D, D)))
        p_slab = put_p(p_slab, f'b_po_c{l}', norm((D,)))
        # feed-forward
        w_slab = put_w(w_slab, f'ff1{l}', norm((D, F)))
        p_slab = put_p(p_slab, f'b_ff1{l}', norm((F,)))
        w_slab = put_w(w_slab, f'ff2{l}', norm((F, D)))
        p_slab = put_p(p_slab, f'b_ff2{l}', norm((D,)))
        # layer norms (gamma=1, beta=0)
        for k in range(3):
            p_slab = put_p(p_slab, f'ln{l}_{k}_g', jnp.ones((D,), jnp.float32))
            p_slab = put_p(p_slab, f'ln{l}_{k}_b', jnp.zeros((D,), jnp.float32))

    w_slab = put_w(w_slab, 'ckv', jnp.concatenate(ckv_w, axis=1))   # (D, L*2*D)
    p_slab = put_p(p_slab, 'b_ckv', jnp.concatenate(ckv_b))
    p_slab = put_p(p_slab, 'fin_g', jnp.ones((D,), jnp.float32))
    p_slab = put_p(p_slab, 'fin_b', jnp.zeros((D,), jnp.float32))

    # output projection, lane-padded to 128 vocab columns: padded columns get
    # zero weight and -1e9 bias so they vanish from the softmax normalizer.
    w_out = jnp.zeros((D, V_PAD), jnp.float32).at[:, :V].set(norm((D, V)))
    b_out = jnp.full((V_PAD,), NEG_INF, jnp.float32).at[:V].set(norm((V,)))
    w_slab = put_w(w_slab, 'out', w_out)
    p_slab = put_p(p_slab, 'b_out', b_out)

    return {'emb': emb,
            'w_slab': w_slab.astype(jnp.bfloat16),
            'p_slab': p_slab}


@jax.jit
def tf_decoder_forward(params, encoder_states, encoder_mask, target_ids):
    """Mirrors TFDecoder.forward (inference mode).

    encoder_states: (s_len, bsize, model_dim) float32
    encoder_mask:   (bsize, s_len) bool, True = padded source position
    target_ids:     (t_len, bsize) int32 token ids (0 = pad)

    Returns (log_probs (t_len, bsize, vocab), decoder_x (t_len, bsize, model_dim)).
    """
    T, B = target_ids.shape
    D = MODEL_DIM

    # TFEmbedding (gather done batch-major so no activation transpose is needed):
    # scaled embedding lookup + sinusoidal positional encoding.
    ids_bt = target_ids.T                                              # (B, T)
    x0 = params['emb'][ids_bt] * math.sqrt(D) + sinusoidal_pe(T, D)[None, :, :]

    # Additive pad masks packed into one (B, T+S) vector; the causal part of
    # generate_combined_mask is built inside the kernel from an iota.
    tpad = jnp.where(ids_bt == 0, NEG_INF, 0.0).astype(jnp.float32)    # (B, T)
    epad = jnp.where(encoder_mask, NEG_INF, 0.0).astype(jnp.float32)   # (B, S)
    pads = jnp.concatenate([tpad, epad], axis=1)

    enc = jnp.transpose(encoder_states, (1, 0, 2)).astype(jnp.float32)  # (B, S, D)

    logp_bt, decx_bt = _run_decoder(x0.astype(jnp.float32), enc, pads,
                                    params['w_slab'], params['p_slab'])
    log_probs = jnp.transpose(logp_bt[..., :VOCAB], (1, 0, 2))          # (T, B, V)
    decoder_x = jnp.transpose(decx_bt[..., :D], (1, 0, 2))              # (T, B, D)
    return log_probs, decoder_x


if __name__ == "__main__":
    key = jax.random.PRNGKey(0)
    pkey, skey, tkey = jax.random.split(key, 3)
    params = make_params(pkey)

    # synthetic encoder output (s_len, bsize, model_dim) and source pad mask
    encoder_states = jax.random.normal(skey, (S_LEN, BATCH, MODEL_DIM),
                                       dtype=jnp.float32)
    encoder_mask = jnp.zeros((BATCH, S_LEN), dtype=bool)
    encoder_mask = encoder_mask.at[1, S_LEN - 1].set(True)   # one padded src pos

    # target token ids (t_len, bsize); 0 is the pad index
    target = jax.random.randint(tkey, (T_LEN, BATCH), 1, VOCAB, dtype=jnp.int32)
    target = target.at[T_LEN - 1, 1].set(0)                  # one padded tgt pos

    log_probs, decoder_x = tf_decoder_forward(params, encoder_states,
                                              encoder_mask, target)
    jax.block_until_ready((log_probs, decoder_x))

    assert log_probs.shape == (T_LEN, BATCH, VOCAB)
    assert decoder_x.shape == (T_LEN, BATCH, MODEL_DIM)
    assert bool(jnp.all(jnp.isfinite(log_probs)))
    assert bool(jnp.all(jnp.isfinite(decoder_x)))
    # log_softmax invariant: probabilities sum to 1 along the (unpadded) vocab
    prob_sums = jnp.sum(jnp.exp(log_probs), axis=-1)
    assert bool(jnp.all(jnp.abs(prob_sums - 1.0) < 1e-3))
    print("KERNEL_OK")
</pallas_src>

<mosaic_0001>
module attributes {stable_mosaic.version = 11 : i64} {
  func.func @_decoder_kernel(%arg0: memref<2x8x32xf32, #tpu.memory_space<vmem>>, %arg1: memref<2x8x32xf32, #tpu.memory_space<vmem>>, %arg2: memref<2x16xf32, #tpu.memory_space<vmem>>, %arg3: memref<512x128xbf16, #tpu.memory_space<vmem>>, %arg4: memref<28x128xf32, #tpu.memory_space<vmem>>, %arg5: memref<2x8x128xf32, #tpu.memory_space<vmem>>, %arg6: memref<2x8x128xf32, #tpu.memory_space<vmem>>) attributes {dimension_semantics = [], scalar_prefetch = 0 : i64, scratch_operands = 0 : i64, tpu.core_type = #tpu.core_type<tc>} {
    %c0 = arith.constant 0 : index
    %c0_0 = arith.constant 0 : index
    %c0_1 = arith.constant 0 : index
    %0 = vector.load %arg0[%c0, %c0_0, %c0_1] : memref<2x8x32xf32, #tpu.memory_space<vmem>>, vector<2x8x32xf32>
    %1 = tpu.iota {dimensions = array<i32: 0>} : vector<8x8xi32>
    %2 = tpu.iota {dimensions = array<i32: 1>} : vector<8x8xi32>
    %3 = arith.cmpi sgt, %2, %1 : vector<8x8xi32>
    %cst = arith.constant -1.000000e+09 : f32
    %cst_2 = arith.constant 0.000000e+00 : f32
    %4 = vector.broadcast %cst : f32 to vector<8x8xf32>
    %5 = vector.broadcast %cst_2 : f32 to vector<8x8xf32>
    %6 = arith.select %3, %4, %5 : vector<8x8xi1>, vector<8x8xf32>
    %7 = vector.shape_cast %6 : vector<8x8xf32> to vector<1x1x8x8xf32>
    %c0_3 = arith.constant 0 : index
    %c0_4 = arith.constant 0 : index
    %8 = vector.load %arg2[%c0_3, %c0_4] : memref<2x16xf32, #tpu.memory_space<vmem>>, vector<2x8xf32>
    %9 = vector.shape_cast %8 : vector<2x8xf32> to vector<2x1x1x8xf32>
    %10 = vector.broadcast %7 : vector<1x1x8x8xf32> to vector<2x1x8x8xf32>
    %11 = vector.broadcast %9 : vector<2x1x1x8xf32> to vector<2x1x8x8xf32>
    %12 = arith.addf %10, %11 : vector<2x1x8x8xf32>
    %c0_5 = arith.constant 0 : index
    %c8 = arith.constant 8 : index
    %13 = vector.load %arg2[%c0_5, %c8] : memref<2x16xf32, #tpu.memory_space<vmem>>, vector<2x8xf32>
    %14 = vector.shape_cast %13 : vector<2x8xf32> to vector<2x1x1x8xf32>
    %c0_6 = arith.constant 0 : index
    %c0_7 = arith.constant 0 : index
    %c0_8 = arith.constant 0 : index
    %15 = vector.load %arg1[%c0_6, %c0_7, %c0_8] : memref<2x8x32xf32, #tpu.memory_space<vmem>>, vector<2x8x32xf32>
    %16 = arith.truncf %15 : vector<2x8x32xf32> to vector<2x8x32xbf16>
    %c448 = arith.constant 448 : index
    %c0_9 = arith.constant 0 : index
    %17 = vector.load %arg3[%c448, %c0_9] : memref<512x128xbf16, #tpu.memory_space<vmem>>, vector<32x128xbf16>
    %18 = vector.shape_cast %16 : vector<2x8x32xbf16> to vector<16x32xbf16>
    %cst_10 = arith.constant dense<0.000000e+00> : vector<16x128xf32>
    %19 = tpu.matmul %18, %17, %cst_10 {dimension_numbers = #tpu.dot_dimension_numbers<[1], [0], [0], [1], [0, 0, 1, 1], [], []>} : vector<16x32xbf16>, vector<32x128xbf16>, vector<16x128xf32> -> vector<16x128xf32>
    %20 = vector.shape_cast %19 : vector<16x128xf32> to vector<2x8x128xf32>
    %c24 = arith.constant 24 : index
    %c0_11 = arith.constant 0 : index
    %21 = vector.load %arg4[%c24, %c0_11] : memref<28x128xf32, #tpu.memory_space<vmem>>, vector<1x128xf32>
    %22 = vector.shape_cast %21 : vector<1x128xf32> to vector<128xf32>
    %23 = vector.shape_cast %22 : vector<128xf32> to vector<1x1x128xf32>
    %24 = vector.broadcast %23 : vector<1x1x128xf32> to vector<2x8x128xf32>
    %25 = arith.addf %20, %24 : vector<2x8x128xf32>
    %26 = arith.truncf %25 : vector<2x8x128xf32> to vector<2x8x128xbf16>
    %c6 = arith.constant 6 : index
    %c0_12 = arith.constant 0 : index
    %27 = vector.load %arg4[%c6, %c0_12] : memref<28x128xf32, #tpu.memory_space<vmem>>, vector<1x32xf32>
    %28 = vector.shape_cast %27 : vector<1x32xf32> to vector<32xf32>
    %c7 = arith.constant 7 : index
    %c0_13 = arith.constant 0 : index
    %29 = vector.load %arg4[%c7, %c0_13] : memref<28x128xf32, #tpu.memory_space<vmem>>, vector<1x32xf32>
    %30 = vector.shape_cast %29 : vector<1x32xf32> to vector<32xf32>
    %cst_14 = arith.constant dense<0.000000e+00> : vector<2x8xf32>
    %31 = vector.multi_reduction <add>, %0, %cst_14 [2] : vector<2x8x32xf32> to vector<2x8xf32>
    %32 = vector.shape_cast %31 : vector<2x8xf32> to vector<2x8x1xf32>
    %cst_15 = arith.constant 3.200000e+01 : f32
    %33 = vector.broadcast %cst_15 : f32 to vector<2x8x1xf32>
    %34 = arith.divf %32, %33 : vector<2x8x1xf32>
    %35 = vector.broadcast %34 : vector<2x8x1xf32> to vector<2x8x32xf32>
    %36 = arith.subf %0, %35 : vector<2x8x32xf32>
    %37 = arith.mulf %36, %36 : vector<2x8x32xf32>
    %cst_16 = arith.constant dense<0.000000e+00> : vector<2x8xf32>
    %38 = vector.multi_reduction <add>, %37, %cst_16 [2] : vector<2x8x32xf32> to vector<2x8xf32>
    %39 = vector.shape_cast %38 : vector<2x8xf32> to vector<2x8x1xf32>
    %cst_17 = arith.constant 3.200000e+01 : f32
    %40 = vector.broadcast %cst_17 : f32 to vector<2x8x1xf32>
    %41 = arith.divf %39, %40 : vector<2x8x1xf32>
    %42 = vector.broadcast %34 : vector<2x8x1xf32> to vector<2x8x32xf32>
    %43 = arith.subf %0, %42 : vector<2x8x32xf32>
    %cst_18 = arith.constant 9.99999997E-7 : f32
    %44 = vector.broadcast %cst_18 : f32 to vector<2x8x1xf32>
    %45 = arith.addf %41, %44 : vector<2x8x1xf32>
    %46 = math.rsqrt %45 : vector<2x8x1xf32>
    %47 = vector.broadcast %46 : vector<2x8x1xf32> to vector<2x8x32xf32>
    %48 = arith.mulf %43, %47 : vector<2x8x32xf32>
    %49 = vector.shape_cast %28 : vector<32xf32> to vector<1x1x32xf32>
    %50 = vector.broadcast %49 : vector<1x1x32xf32> to vector<2x8x32xf32>
    %51 = arith.mulf %48, %50 : vector<2x8x32xf32>
    %52 = vector.shape_cast %30 : vector<32xf32> to vector<1x1x32xf32>
    %53 = vector.broadcast %52 : vector<1x1x32xf32> to vector<2x8x32xf32>
    %54 = arith.addf %51, %53 : vector<2x8x32xf32>
    %55 = arith.truncf %54 : vector<2x8x32xf32> to vector<2x8x32xbf16>
    %c0_19 = arith.constant 0 : index
    %c0_20 = arith.constant 0 : index
    %56 = vector.load %arg3[%c0_19, %c0_20] : memref<512x128xbf16, #tpu.memory_space<vmem>>, vector<32x96xbf16>
    %57 = vector.shape_cast %55 : vector<2x8x32xbf16> to vector<16x32xbf16>
    %cst_21 = arith.constant dense<0.000000e+00> : vector<16x96xf32>
    %58 = tpu.matmul %57, %56, %cst_21 {dimension_numbers = #tpu.dot_dimension_numbers<[1], [0], [0], [1], [0, 0, 1, 1], [], []>} : vector<16x32xbf16>, vector<32x96xbf16>, vector<16x96xf32> -> vector<16x96xf32>
    %59 = vector.shape_cast %58 : vector<16x96xf32> to vector<2x8x96xf32>
    %c0_22 = arith.constant 0 : index
    %c0_23 = arith.constant 0 : index
    %60 = vector.load %arg4[%c0_22, %c0_23] : memref<28x128xf32, #tpu.memory_space<vmem>>, vector<1x96xf32>
    %61 = vector.shape_cast %60 : vector<1x96xf32> to vector<96xf32>
    %62 = vector.shape_cast %61 : vector<96xf32> to vector<1x1x96xf32>
    %63 = vector.broadcast %62 : vector<1x1x96xf32> to vector<2x8x96xf32>
    %64 = arith.addf %59, %63 : vector<2x8x96xf32>
    %65 = arith.truncf %64 : vector<2x8x96xf32> to vector<2x8x96xbf16>
    %66 = vector.extract_strided_slice %65 {offsets = [0, 0, 0], sizes = [2, 8, 32], strides = [1, 1, 1]} : vector<2x8x96xbf16> to vector<2x8x32xbf16>
    %67 = vector.extract_strided_slice %65 {offsets = [0, 0, 32], sizes = [2, 8, 32], strides = [1, 1, 1]} : vector<2x8x96xbf16> to vector<2x8x32xbf16>
    %68 = vector.extract_strided_slice %65 {offsets = [0, 0, 64], sizes = [2, 8, 32], strides = [1, 1, 1]} : vector<2x8x96xbf16> to vector<2x8x32xbf16>
    %69 = vector.extract_strided_slice %66 {offsets = [0, 0, 0], sizes = [2, 8, 8], strides = [1, 1, 1]} : vector<2x8x32xbf16> to vector<2x8x8xbf16>
    %70 = vector.extract_strided_slice %67 {offsets = [0, 0, 0], sizes = [2, 8, 8], strides = [1, 1, 1]} : vector<2x8x32xbf16> to vector<2x8x8xbf16>
    "tpu.trace_start"() <{level = 10 : i32, message = "bqd,bkd->bqk"}> : () -> ()
    %cst_24 = arith.constant dense<0.000000e+00> : vector<2x8x8xf32>
    %71 = tpu.matmul %69, %70, %cst_24 {dimension_numbers = #tpu.dot_dimension_numbers<[2], [2], [1], [1], [0, 0, 0, 1, 1, 1], [0], [0]>} : vector<2x8x8xbf16>, vector<2x8x8xbf16>, vector<2x8x8xf32> -> vector<2x8x8xf32>
    "tpu.trace_stop"() : () -> ()
    %72 = vector.extract_strided_slice %66 {offsets = [0, 0, 8], sizes = [2, 8, 8], strides = [1, 1, 1]} : vector<2x8x32xbf16> to vector<2x8x8xbf16>
    %73 = vector.extract_strided_slice %67 {offsets = [0, 0, 8], sizes = [2, 8, 8], strides = [1, 1, 1]} : vector<2x8x32xbf16> to vector<2x8x8xbf16>
    "tpu.trace_start"() <{level = 10 : i32, message = "bqd,bkd->bqk"}> : () -> ()
    %cst_25 = arith.constant dense<0.000000e+00> : vector<2x8x8xf32>
    %74 = tpu.matmul %72, %73, %cst_25 {dimension_numbers = #tpu.dot_dimension_numbers<[2], [2], [1], [1], [0, 0, 0, 1, 1, 1], [0], [0]>} : vector<2x8x8xbf16>, vector<2x8x8xbf16>, vector<2x8x8xf32> -> vector<2x8x8xf32>
    "tpu.trace_stop"() : () -> ()
    %75 = vector.extract_strided_slice %66 {offsets = [0, 0, 16], sizes = [2, 8, 8], strides = [1, 1, 1]} : vector<2x8x32xbf16> to vector<2x8x8xbf16>
    %76 = vector.extract_strided_slice %67 {offsets = [0, 0, 16], sizes = [2, 8, 8], strides = [1, 1, 1]} : vector<2x8x32xbf16> to vector<2x8x8xbf16>
    "tpu.trace_start"() <{level = 10 : i32, message = "bqd,bkd->bqk"}> : () -> ()
    %cst_26 = arith.constant dense<0.000000e+00> : vector<2x8x8xf32>
    %77 = tpu.matmul %75, %76, %cst_26 {dimension_numbers = #tpu.dot_dimension_numbers<[2], [2], [1], [1], [0, 0, 0, 1, 1, 1], [0], [0]>} : vector<2x8x8xbf16>, vector<2x8x8xbf16>, vector<2x8x8xf32> -> vector<2x8x8xf32>
    "tpu.trace_stop"() : () -> ()
    %78 = vector.extract_strided_slice %66 {offsets = [0, 0, 24], sizes = [2, 8, 8], strides = [1, 1, 1]} : vector<2x8x32xbf16> to vector<2x8x8xbf16>
    %79 = vector.extract_strided_slice %67 {offsets = [0, 0, 24], sizes = [2, 8, 8], strides = [1, 1, 1]} : vector<2x8x32xbf16> to vector<2x8x8xbf16>
    "tpu.trace_start"() <{level = 10 : i32, message = "bqd,bkd->bqk"}> : () -> ()
    %cst_27 = arith.constant dense<0.000000e+00> : vector<2x8x8xf32>
    %80 = tpu.matmul %78, %79, %cst_27 {dimension_numbers = #tpu.dot_dimension_numbers<[2], [2], [1], [1], [0, 0, 0, 1, 1, 1], [0], [0]>} : vector<2x8x8xbf16>, vector<2x8x8xbf16>, vector<2x8x8xf32> -> vector<2x8x8xf32>
    "tpu.trace_stop"() : () -> ()
    %81 = vector.shape_cast %71 : vector<2x8x8xf32> to vector<2x1x8x8xf32>
    %82 = vector.shape_cast %74 : vector<2x8x8xf32> to vector<2x1x8x8xf32>
    %83 = vector.shape_cast %77 : vector<2x8x8xf32> to vector<2x1x8x8xf32>
    %84 = vector.shape_cast %80 : vector<2x8x8xf32> to vector<2x1x8x8xf32>
    %85 = tpu.concatenate %81, %82, %83, %84 in 1 : vector<2x1x8x8xf32>, vector<2x1x8x8xf32>, vector<2x1x8x8xf32>, vector<2x1x8x8xf32> -> vector<2x4x8x8xf32>
    %86 = vector.broadcast %12 : vector<2x1x8x8xf32> to vector<2x4x8x8xf32>
    %87 = arith.addf %85, %86 : vector<2x4x8x8xf32>
    %cst_28 = arith.constant dense<0xFF800000> : vector<2x4x8xf32>
    %88 = vector.multi_reduction <maximumf>, %87, %cst_28 [3] : vector<2x4x8x8xf32> to vector<2x4x8xf32>
    %89 = vector.shape_cast %88 : vector<2x4x8xf32> to vector<2x4x8x1xf32>
    %90 = vector.broadcast %89 : vector<2x4x8x1xf32> to vector<2x4x8x8xf32>
    %91 = arith.subf %87, %90 : vector<2x4x8x8xf32>
    %92 = math.exp %91 : vector<2x4x8x8xf32>
    %cst_29 = arith.constant dense<0.000000e+00> : vector<2x4x8xf32>
    %93 = vector.multi_reduction <add>, %92, %cst_29 [3] : vector<2x4x8x8xf32> to vector<2x4x8xf32>
    %94 = vector.shape_cast %93 : vector<2x4x8xf32> to vector<2x4x8x1xf32>
    %95 = tpu.reciprocal %94 {approx = true} : vector<2x4x8x1xf32> -> vector<2x4x8x1xf32>
    %96 = vector.broadcast %95 : vector<2x4x8x1xf32> to vector<2x4x8x8xf32>
    %97 = arith.mulf %92, %96 : vector<2x4x8x8xf32>
    %98 = arith.truncf %97 : vector<2x4x8x8xf32> to vector<2x4x8x8xbf16>
    %99 = vector.extract_strided_slice %98 {offsets = [0, 0, 0, 0], sizes = [2, 1, 8, 8], strides = [1, 1, 1, 1]} : vector<2x4x8x8xbf16> to vector<2x1x8x8xbf16>
    %100 = vector.shape_cast %99 : vector<2x1x8x8xbf16> to vector<2x8x8xbf16>
    %101 = vector.extract_strided_slice %68 {offsets = [0, 0, 0], sizes = [2, 8, 8], strides = [1, 1, 1]} : vector<2x8x32xbf16> to vector<2x8x8xbf16>
    "tpu.trace_start"() <{level = 10 : i32, message = "bqk,bkd->bqd"}> : () -> ()
    %cst_30 = arith.constant dense<0.000000e+00> : vector<2x8x8xf32>
    %102 = tpu.matmul %100, %101, %cst_30 {dimension_numbers = #tpu.dot_dimension_numbers<[2], [1], [1], [2], [0, 0, 0, 1, 1, 2], [0], [0]>} : vector<2x8x8xbf16>, vector<2x8x8xbf16>, vector<2x8x8xf32> -> vector<2x8x8xf32>
    "tpu.trace_stop"() : () -> ()
    %103 = vector.extract_strided_slice %98 {offsets = [0, 1, 0, 0], sizes = [2, 1, 8, 8], strides = [1, 1, 1, 1]} : vector<2x4x8x8xbf16> to vector<2x1x8x8xbf16>
    %104 = vector.shape_cast %103 : vector<2x1x8x8xbf16> to vector<2x8x8xbf16>
    %105 = vector.extract_strided_slice %68 {offsets = [0, 0, 8], sizes = [2, 8, 8], strides = [1, 1, 1]} : vector<2x8x32xbf16> to vector<2x8x8xbf16>
    "tpu.trace_start"() <{level = 10 : i32, message = "bqk,bkd->bqd"}> : () -> ()
    %cst_31 = arith.constant dense<0.000000e+00> : vector<2x8x8xf32>
    %106 = tpu.matmul %104, %105, %cst_31 {dimension_numbers = #tpu.dot_dimension_numbers<[2], [1], [1], [2], [0, 0, 0, 1, 1, 2], [0], [0]>} : vector<2x8x8xbf16>, vector<2x8x8xbf16>, vector<2x8x8xf32> -> vector<2x8x8xf32>
    "tpu.trace_stop"() : () -> ()
    %107 = vector.extract_strided_slice %98 {offsets = [0, 2, 0, 0], sizes = [2, 1, 8, 8], strides = [1, 1, 1, 1]} : vector<2x4x8x8xbf16> to vector<2x1x8x8xbf16>
    %108 = vector.shape_cast %107 : vector<2x1x8x8xbf16> to vector<2x8x8xbf16>
    %109 = vector.extract_strided_slice %68 {offsets = [0, 0, 16], sizes = [2, 8, 8], strides = [1, 1, 1]} : vector<2x8x32xbf16> to vector<2x8x8xbf16>
    "tpu.trace_start"() <{level = 10 : i32, message = "bqk,bkd->bqd"}> : () -> ()
    %cst_32 = arith.constant dense<0.000000e+00> : vector<2x8x8xf32>
    %110 = tpu.matmul %108, %109, %cst_32 {dimension_numbers = #tpu.dot_dimension_numbers<[2], [1], [1], [2], [0, 0, 0, 1, 1, 2], [0], [0]>} : vector<2x8x8xbf16>, vector<2x8x8xbf16>, vector<2x8x8xf32> -> vector<2x8x8xf32>
    "tpu.trace_stop"() : () -> ()
    %111 = vector.extract_strided_slice %98 {offsets = [0, 3, 0, 0], sizes = [2, 1, 8, 8], strides = [1, 1, 1, 1]} : vector<2x4x8x8xbf16> to vector<2x1x8x8xbf16>
    %112 = vector.shape_cast %111 : vector<2x1x8x8xbf16> to vector<2x8x8xbf16>
    %113 = vector.extract_strided_slice %68 {offsets = [0, 0, 24], sizes = [2, 8, 8], strides = [1, 1, 1]} : vector<2x8x32xbf16> to vector<2x8x8xbf16>
    "tpu.trace_start"() <{level = 10 : i32, message = "bqk,bkd->bqd"}> : () -> ()
    %cst_33 = arith.constant dense<0.000000e+00> : vector<2x8x8xf32>
    %114 = tpu.matmul %112, %113, %cst_33 {dimension_numbers = #tpu.dot_dimension_numbers<[2], [1], [1], [2], [0, 0, 0, 1, 1, 2], [0], [0]>} : vector<2x8x8xbf16>, vector<2x8x8xbf16>, vector<2x8x8xf32> -> vector<2x8x8xf32>
    "tpu.trace_stop"() : () -> ()
    %115 = tpu.concatenate %102, %106, %110, %114 in 2 : vector<2x8x8xf32>, vector<2x8x8xf32>, vector<2x8x8xf32>, vector<2x8x8xf32> -> vector<2x8x32xf32>
    %116 = arith.truncf %115 : vector<2x8x32xf32> to vector<2x8x32xbf16>
    %c32 = arith.constant 32 : index
    %c0_34 = arith.constant 0 : index
    %117 = vector.load %arg3[%c32, %c0_34] : memref<512x128xbf16, #tpu.memory_space<vmem>>, vector<32x32xbf16>
    %118 = vector.shape_cast %116 : vector<2x8x32xbf16> to vector<16x32xbf16>
    %cst_35 = arith.constant dense<0.000000e+00> : vector<16x32xf32>
    %119 = tpu.matmul %118, %117, %cst_35 {dimension_numbers = #tpu.dot_dimension_numbers<[1], [0], [0], [1], [0, 0, 1, 1], [], []>} : vector<16x32xbf16>, vector<32x32xbf16>, vector<16x32xf32> -> vector<16x32xf32>
    %120 = vector.shape_cast %119 : vector<16x32xf32> to vector<2x8x32xf32>
    %121 = arith.addf %0, %120 : vector<2x8x32xf32>
    %c1 = arith.constant 1 : index
    %c0_36 = arith.constant 0 : index
    %122 = vector.load %arg4[%c1, %c0_36] : memref<28x128xf32, #tpu.memory_space<vmem>>, vector<1x32xf32>
    %123 = vector.shape_cast %122 : vector<1x32xf32> to vector<32xf32>
    %124 = vector.shape_cast %123 : vector<32xf32> to vector<1x1x32xf32>
    %125 = vector.broadcast %124 : vector<1x1x32xf32> to vector<2x8x32xf32>
    %126 = arith.addf %121, %125 : vector<2x8x32xf32>
    %c8_37 = arith.constant 8 : index
    %c0_38 = arith.constant 0 : index
    %127 = vector.load %arg4[%c8_37, %c0_38] : memref<28x128xf32, #tpu.memory_space<vmem>>, vector<1x32xf32>
    %128 = vector.shape_cast %127 : vector<1x32xf32> to vector<32xf32>
    %c9 = arith.constant 9 : index
    %c0_39 = arith.constant 0 : index
    %129 = vector.load %arg4[%c9, %c0_39] : memref<28x128xf32, #tpu.memory_space<vmem>>, vector<1x32xf32>
    %130 = vector.shape_cast %129 : vector<1x32xf32> to vector<32xf32>
    %cst_40 = arith.constant dense<0.000000e+00> : vector<2x8xf32>
    %131 = vector.multi_reduction <add>, %126, %cst_40 [2] : vector<2x8x32xf32> to vector<2x8xf32>
    %132 = vector.shape_cast %131 : vector<2x8xf32> to vector<2x8x1xf32>
    %cst_41 = arith.constant 3.200000e+01 : f32
    %133 = vector.broadcast %cst_41 : f32 to vector<2x8x1xf32>
    %134 = arith.divf %132, %133 : vector<2x8x1xf32>
    %135 = vector.broadcast %134 : vector<2x8x1xf32> to vector<2x8x32xf32>
    %136 = arith.subf %126, %135 : vector<2x8x32xf32>
    %137 = arith.mulf %136, %136 : vector<2x8x32xf32>
    %cst_42 = arith.constant dense<0.000000e+00> : vector<2x8xf32>
    %138 = vector.multi_reduction <add>, %137, %cst_42 [2] : vector<2x8x32xf32> to vector<2x8xf32>
    %139 = vector.shape_cast %138 : vector<2x8xf32> to vector<2x8x1xf32>
    %cst_43 = arith.constant 3.200000e+01 : f32
    %140 = vector.broadcast %cst_43 : f32 to vector<2x8x1xf32>
    %141 = arith.divf %139, %140 : vector<2x8x1xf32>
    %142 = vector.broadcast %134 : vector<2x8x1xf32> to vector<2x8x32xf32>
    %143 = arith.subf %126, %142 : vector<2x8x32xf32>
    %cst_44 = arith.constant 9.99999997E-7 : f32
    %144 = vector.broadcast %cst_44 : f32 to vector<2x8x1xf32>
    %145 = arith.addf %141, %144 : vector<2x8x1xf32>
    %146 = math.rsqrt %145 : vector<2x8x1xf32>
    %147 = vector.broadcast %146 : vector<2x8x1xf32> to vector<2x8x32xf32>
    %148 = arith.mulf %143, %147 : vector<2x8x32xf32>
    %149 = vector.shape_cast %128 : vector<32xf32> to vector<1x1x32xf32>
    %150 = vector.broadcast %149 : vector<1x1x32xf32> to vector<2x8x32xf32>
    %151 = arith.mulf %148, %150 : vector<2x8x32xf32>
    %152 = vector.shape_cast %130 : vector<32xf32> to vector<1x1x32xf32>
    %153 = vector.broadcast %152 : vector<1x1x32xf32> to vector<2x8x32xf32>
    %154 = arith.addf %151, %153 : vector<2x8x32xf32>
    %155 = arith.truncf %154 : vector<2x8x32xf32> to vector<2x8x32xbf16>
    %c64 = arith.constant 64 : index
    %c0_45 = arith.constant 0 : index
    %156 = vector.load %arg3[%c64, %c0_45] : memref<512x128xbf16, #tpu.memory_space<vmem>>, vector<32x32xbf16>
    %157 = vector.shape_cast %155 : vector<2x8x32xbf16> to vector<16x32xbf16>
    %cst_46 = arith.constant dense<0.000000e+00> : vector<16x32xf32>
    %158 = tpu.matmul %157, %156, %cst_46 {dimension_numbers = #tpu.dot_dimension_numbers<[1], [0], [0], [1], [0, 0, 1, 1], [], []>} : vector<16x32xbf16>, vector<32x32xbf16>, vector<16x32xf32> -> vector<16x32xf32>
    %159 = vector.shape_cast %158 : vector<16x32xf32> to vector<2x8x32xf32>
    %c2 = arith.constant 2 : index
    %c0_47 = arith.constant 0 : index
    %160 = vector.load %arg4[%c2, %c0_47] : memref<28x128xf32, #tpu.memory_space<vmem>>, vector<1x32xf32>
    %161 = vector.shape_cast %160 : vector<1x32xf32> to vector<32xf32>
    %162 = vector.shape_cast %161 : vector<32xf32> to vector<1x1x32xf32>
    %163 = vector.broadcast %162 : vector<1x1x32xf32> to vector<2x8x32xf32>
    %164 = arith.addf %159, %163 : vector<2x8x32xf32>
    %165 = arith.truncf %164 : vector<2x8x32xf32> to vector<2x8x32xbf16>
    %166 = vector.extract_strided_slice %26 {offsets = [0, 0, 0], sizes = [2, 8, 32], strides = [1, 1, 1]} : vector<2x8x128xbf16> to vector<2x8x32xbf16>
    %167 = vector.extract_strided_slice %26 {offsets = [0, 0, 32], sizes = [2, 8, 32], strides = [1, 1, 1]} : vector<2x8x128xbf16> to vector<2x8x32xbf16>
    %168 = vector.extract_strided_slice %165 {offsets = [0, 0, 0], sizes = [2, 8, 8], strides = [1, 1, 1]} : vector<2x8x32xbf16> to vector<2x8x8xbf16>
    %169 = vector.extract_strided_slice %166 {offsets = [0, 0, 0], sizes = [2, 8, 8], strides = [1, 1, 1]} : vector<2x8x32xbf16> to vector<2x8x8xbf16>
    "tpu.trace_start"() <{level = 10 : i32, message = "bqd,bkd->bqk"}> : () -> ()
    %cst_48 = arith.constant dense<0.000000e+00> : vector<2x8x8xf32>
    %170 = tpu.matmul %168, %169, %cst_48 {dimension_numbers = #tpu.dot_dimension_numbers<[2], [2], [1], [1], [0, 0, 0, 1, 1, 1], [0], [0]>} : vector<2x8x8xbf16>, vector<2x8x8xbf16>, vector<2x8x8xf32> -> vector<2x8x8xf32>
    "tpu.trace_stop"() : () -> ()
    %171 = vector.extract_strided_slice %165 {offsets = [0, 0, 8], sizes = [2, 8, 8], strides = [1, 1, 1]} : vector<2x8x32xbf16> to vector<2x8x8xbf16>
    %172 = vector.extract_strided_slice %166 {offsets = [0, 0, 8], sizes = [2, 8, 8], strides = [1, 1, 1]} : vector<2x8x32xbf16> to vector<2x8x8xbf16>
    "tpu.trace_start"() <{level = 10 : i32, message = "bqd,bkd->bqk"}> : () -> ()
    %cst_49 = arith.constant dense<0.000000e+00> : vector<2x8x8xf32>
    %173 = tpu.matmul %171, %172, %cst_49 {dimension_numbers = #tpu.dot_dimension_numbers<[2], [2], [1], [1], [0, 0, 0, 1, 1, 1], [0], [0]>} : vector<2x8x8xbf16>, vector<2x8x8xbf16>, vector<2x8x8xf32> -> vector<2x8x8xf32>
    "tpu.trace_stop"() : () -> ()
    %174 = vector.extract_strided_slice %165 {offsets = [0, 0, 16], sizes = [2, 8, 8], strides = [1, 1, 1]} : vector<2x8x32xbf16> to vector<2x8x8xbf16>
    %175 = vector.extract_strided_slice %166 {offsets = [0, 0, 16], sizes = [2, 8, 8], strides = [1, 1, 1]} : vector<2x8x32xbf16> to vector<2x8x8xbf16>
    "tpu.trace_start"() <{level = 10 : i32, message = "bqd,bkd->bqk"}> : () -> ()
    %cst_50 = arith.constant dense<0.000000e+00> : vector<2x8x8xf32>
    %176 = tpu.matmul %174, %175, %cst_50 {dimension_numbers = #tpu.dot_dimension_numbers<[2], [2], [1], [1], [0, 0, 0, 1, 1, 1], [0], [0]>} : vector<2x8x8xbf16>, vector<2x8x8xbf16>, vector<2x8x8xf32> -> vector<2x8x8xf32>
    "tpu.trace_stop"() : () -> ()
    %177 = vector.extract_strided_slice %165 {offsets = [0, 0, 24], sizes = [2, 8, 8], strides = [1, 1, 1]} : vector<2x8x32xbf16> to vector<2x8x8xbf16>
    %178 = vector.extract_strided_slice %166 {offsets = [0, 0, 24], sizes = [2, 8, 8], strides = [1, 1, 1]} : vector<2x8x32xbf16> to vector<2x8x8xbf16>
    "tpu.trace_start"() <{level = 10 : i32, message = "bqd,bkd->bqk"}> : () -> ()
    %cst_51 = arith.constant dense<0.000000e+00> : vector<2x8x8xf32>
    %179 = tpu.matmul %177, %178, %cst_51 {dimension_numbers = #tpu.dot_dimension_numbers<[2], [2], [1], [1], [0, 0, 0, 1, 1, 1], [0], [0]>} : vector<2x8x8xbf16>, vector<2x8x8xbf16>, vector<2x8x8xf32> -> vector<2x8x8xf32>
    "tpu.trace_stop"() : () -> ()
    %180 = vector.shape_cast %170 : vector<2x8x8xf32> to vector<2x1x8x8xf32>
    %181 = vector.shape_cast %173 : vector<2x8x8xf32> to vector<2x1x8x8xf32>
    %182 = vector.shape_cast %176 : vector<2x8x8xf32> to vector<2x1x8x8xf32>
    %183 = vector.shape_cast %179 : vector<2x8x8xf32> to vector<2x1x8x8xf32>
    %184 = tpu.concatenate %180, %181, %182, %183 in 1 : vector<2x1x8x8xf32>, vector<2x1x8x8xf32>, vector<2x1x8x8xf32>, vector<2x1x8x8xf32> -> vector<2x4x8x8xf32>
    %185 = vector.broadcast %14 : vector<2x1x1x8xf32> to vector<2x4x8x8xf32>
    %186 = arith.addf %184, %185 : vector<2x4x8x8xf32>
    %cst_52 = arith.constant dense<0xFF800000> : vector<2x4x8xf32>
    %187 = vector.multi_reduction <maximumf>, %186, %cst_52 [3] : vector<2x4x8x8xf32> to vector<2x4x8xf32>
    %188 = vector.shape_cast %187 : vector<2x4x8xf32> to vector<2x4x8x1xf32>
    %189 = vector.broadcast %188 : vector<2x4x8x1xf32> to vector<2x4x8x8xf32>
    %190 = arith.subf %186, %189 : vector<2x4x8x8xf32>
    %191 = math.exp %190 : vector<2x4x8x8xf32>
    %cst_53 = arith.constant dense<0.000000e+00> : vector<2x4x8xf32>
    %192 = vector.multi_reduction <add>, %191, %cst_53 [3] : vector<2x4x8x8xf32> to vector<2x4x8xf32>
    %193 = vector.shape_cast %192 : vector<2x4x8xf32> to vector<2x4x8x1xf32>
    %194 = tpu.reciprocal %193 {approx = true} : vector<2x4x8x1xf32> -> vector<2x4x8x1xf32>
    %195 = vector.broadcast %194 : vector<2x4x8x1xf32> to vector<2x4x8x8xf32>
    %196 = arith.mulf %191, %195 : vector<2x4x8x8xf32>
    %197 = arith.truncf %196 : vector<2x4x8x8xf32> to vector<2x4x8x8xbf16>
    %198 = vector.extract_strided_slice %197 {offsets = [0, 0, 0, 0], sizes = [2, 1, 8, 8], strides = [1, 1, 1, 1]} : vector<2x4x8x8xbf16> to vector<2x1x8x8xbf16>
    %199 = vector.shape_cast %198 : vector<2x1x8x8xbf16> to vector<2x8x8xbf16>
    %200 = vector.extract_strided_slice %167 {offsets = [0, 0, 0], sizes = [2, 8, 8], strides = [1, 1, 1]} : vector<2x8x32xbf16> to vector<2x8x8xbf16>
    "tpu.trace_start"() <{level = 10 : i32, message = "bqk,bkd->bqd"}> : () -> ()
    %cst_54 = arith.constant dense<0.000000e+00> : vector<2x8x8xf32>
    %201 = tpu.matmul %199, %200, %cst_54 {dimension_numbers = #tpu.dot_dimension_numbers<[2], [1], [1], [2], [0, 0, 0, 1, 1, 2], [0], [0]>} : vector<2x8x8xbf16>, vector<2x8x8xbf16>, vector<2x8x8xf32> -> vector<2x8x8xf32>
    "tpu.trace_stop"() : () -> ()
    %202 = vector.extract_strided_slice %197 {offsets = [0, 1, 0, 0], sizes = [2, 1, 8, 8], strides = [1, 1, 1, 1]} : vector<2x4x8x8xbf16> to vector<2x1x8x8xbf16>
    %203 = vector.shape_cast %202 : vector<2x1x8x8xbf16> to vector<2x8x8xbf16>
    %204 = vector.extract_strided_slice %167 {offsets = [0, 0, 8], sizes = [2, 8, 8], strides = [1, 1, 1]} : vector<2x8x32xbf16> to vector<2x8x8xbf16>
    "tpu.trace_start"() <{level = 10 : i32, message = "bqk,bkd->bqd"}> : () -> ()
    %cst_55 = arith.constant dense<0.000000e+00> : vector<2x8x8xf32>
    %205 = tpu.matmul %203, %204, %cst_55 {dimension_numbers = #tpu.dot_dimension_numbers<[2], [1], [1], [2], [0, 0, 0, 1, 1, 2], [0], [0]>} : vector<2x8x8xbf16>, vector<2x8x8xbf16>, vector<2x8x8xf32> -> vector<2x8x8xf32>
    "tpu.trace_stop"() : () -> ()
    %206 = vector.extract_strided_slice %197 {offsets = [0, 2, 0, 0], sizes = [2, 1, 8, 8], strides = [1, 1, 1, 1]} : vector<2x4x8x8xbf16> to vector<2x1x8x8xbf16>
    %207 = vector.shape_cast %206 : vector<2x1x8x8xbf16> to vector<2x8x8xbf16>
    %208 = vector.extract_strided_slice %167 {offsets = [0, 0, 16], sizes = [2, 8, 8], strides = [1, 1, 1]} : vector<2x8x32xbf16> to vector<2x8x8xbf16>
    "tpu.trace_start"() <{level = 10 : i32, message = "bqk,bkd->bqd"}> : () -> ()
    %cst_56 = arith.constant dense<0.000000e+00> : vector<2x8x8xf32>
    %209 = tpu.matmul %207, %208, %cst_56 {dimension_numbers = #tpu.dot_dimension_numbers<[2], [1], [1], [2], [0, 0, 0, 1, 1, 2], [0], [0]>} : vector<2x8x8xbf16>, vector<2x8x8xbf16>, vector<2x8x8xf32> -> vector<2x8x8xf32>
    "tpu.trace_stop"() : () -> ()
    %210 = vector.extract_strided_slice %197 {offsets = [0, 3, 0, 0], sizes = [2, 1, 8, 8], strides = [1, 1, 1, 1]} : vector<2x4x8x8xbf16> to vector<2x1x8x8xbf16>
    %211 = vector.shape_cast %210 : vector<2x1x8x8xbf16> to vector<2x8x8xbf16>
    %212 = vector.extract_strided_slice %167 {offsets = [0, 0, 24], sizes = [2, 8, 8], strides = [1, 1, 1]} : vector<2x8x32xbf16> to vector<2x8x8xbf16>
    "tpu.trace_start"() <{level = 10 : i32, message = "bqk,bkd->bqd"}> : () -> ()
    %cst_57 = arith.constant dense<0.000000e+00> : vector<2x8x8xf32>
    %213 = tpu.matmul %211, %212, %cst_57 {dimension_numbers = #tpu.dot_dimension_numbers<[2], [1], [1], [2], [0, 0, 0, 1, 1, 2], [0], [0]>} : vector<2x8x8xbf16>, vector<2x8x8xbf16>, vector<2x8x8xf32> -> vector<2x8x8xf32>
    "tpu.trace_stop"() : () -> ()
    %214 = tpu.concatenate %201, %205, %209, %213 in 2 : vector<2x8x8xf32>, vector<2x8x8xf32>, vector<2x8x8xf32>, vector<2x8x8xf32> -> vector<2x8x32xf32>
    %215 = arith.truncf %214 : vector<2x8x32xf32> to vector<2x8x32xbf16>
    %c96 = arith.constant 96 : index
    %c0_58 = arith.constant 0 : index
    %216 = vector.load %arg3[%c96, %c0_58] : memref<512x128xbf16, #tpu.memory_space<vmem>>, vector<32x32xbf16>
    %217 = vector.shape_cast %215 : vector<2x8x32xbf16> to vector<16x32xbf16>
    %cst_59 = arith.constant dense<0.000000e+00> : vector<16x32xf32>
    %218 = tpu.matmul %217, %216, %cst_59 {dimension_numbers = #tpu.dot_dimension_numbers<[1], [0], [0], [1], [0, 0, 1, 1], [], []>} : vector<16x32xbf16>, vector<32x32xbf16>, vector<16x32xf32> -> vector<16x32xf32>
    %219 = vector.shape_cast %218 : vector<16x32xf32> to vector<2x8x32xf32>
    %220 = arith.addf %126, %219 : vector<2x8x32xf32>
    %c3 = arith.constant 3 : index
    %c0_60 = arith.constant 0 : index
    %221 = vector.load %arg4[%c3, %c0_60] : memref<28x128xf32, #tpu.memory_space<vmem>>, vector<1x32xf32>
    %222 = vector.shape_cast %221 : vector<1x32xf32> to vector<32xf32>
    %223 = vector.shape_cast %222 : vector<32xf32> to vector<1x1x32xf32>
    %224 = vector.broadcast %223 : vector<1x1x32xf32> to vector<2x8x32xf32>
    %225 = arith.addf %220, %224 : vector<2x8x32xf32>
    %c10 = arith.constant 10 : index
    %c0_61 = arith.constant 0 : index
    %226 = vector.load %arg4[%c10, %c0_61] : memref<28x128xf32, #tpu.memory_space<vmem>>, vector<1x32xf32>
    %227 = vector.shape_cast %226 : vector<1x32xf32> to vector<32xf32>
    %c11 = arith.constant 11 : index
    %c0_62 = arith.constant 0 : index
    %228 = vector.load %arg4[%c11, %c0_62] : memref<28x128xf32, #tpu.memory_space<vmem>>, vector<1x32xf32>
    %229 = vector.shape_cast %228 : vector<1x32xf32> to vector<32xf32>
    %cst_63 = arith.constant dense<0.000000e+00> : vector<2x8xf32>
    %230 = vector.multi_reduction <add>, %225, %cst_63 [2] : vector<2x8x32xf32> to vector<2x8xf32>
    %231 = vector.shape_cast %230 : vector<2x8xf32> to vector<2x8x1xf32>
    %cst_64 = arith.constant 3.200000e+01 : f32
    %232 = vector.broadcast %cst_64 : f32 to vector<2x8x1xf32>
    %233 = arith.divf %231, %232 : vector<2x8x1xf32>
    %234 = vector.broadcast %233 : vector<2x8x1xf32> to vector<2x8x32xf32>
    %235 = arith.subf %225, %234 : vector<2x8x32xf32>
    %236 = arith.mulf %235, %235 : vector<2x8x32xf32>
    %cst_65 = arith.constant dense<0.000000e+00> : vector<2x8xf32>
    %237 = vector.multi_reduction <add>, %236, %cst_65 [2] : vector<2x8x32xf32> to vector<2x8xf32>
    %238 = vector.shape_cast %237 : vector<2x8xf32> to vector<2x8x1xf32>
    %cst_66 = arith.constant 3.200000e+01 : f32
    %239 = vector.broadcast %cst_66 : f32 to vector<2x8x1xf32>
    %240 = arith.divf %238, %239 : vector<2x8x1xf32>
    %241 = vector.broadcast %233 : vector<2x8x1xf32> to vector<2x8x32xf32>
    %242 = arith.subf %225, %241 : vector<2x8x32xf32>
    %cst_67 = arith.constant 9.99999997E-7 : f32
    %243 = vector.broadcast %cst_67 : f32 to vector<2x8x1xf32>
    %244 = arith.addf %240, %243 : vector<2x8x1xf32>
    %245 = math.rsqrt %244 : vector<2x8x1xf32>
    %246 = vector.broadcast %245 : vector<2x8x1xf32> to vector<2x8x32xf32>
    %247 = arith.mulf %242, %246 : vector<2x8x32xf32>
    %248 = vector.shape_cast %227 : vector<32xf32> to vector<1x1x32xf32>
    %249 = vector.broadcast %248 : vector<1x1x32xf32> to vector<2x8x32xf32>
    %250 = arith.mulf %247, %249 : vector<2x8x32xf32>
    %251 = vector.shape_cast %229 : vector<32xf32> to vector<1x1x32xf32>
    %252 = vector.broadcast %251 : vector<1x1x32xf32> to vector<2x8x32xf32>
    %253 = arith.addf %250, %252 : vector<2x8x32xf32>
    %254 = arith.truncf %253 : vector<2x8x32xf32> to vector<2x8x32xbf16>
    %c128 = arith.constant 128 : index
    %c0_68 = arith.constant 0 : index
    %255 = vector.load %arg3[%c128, %c0_68] : memref<512x128xbf16, #tpu.memory_space<vmem>>, vector<32x64xbf16>
    %256 = vector.shape_cast %254 : vector<2x8x32xbf16> to vector<16x32xbf16>
    %cst_69 = arith.constant dense<0.000000e+00> : vector<16x64xf32>
    %257 = tpu.matmul %256, %255, %cst_69 {dimension_numbers = #tpu.dot_dimension_numbers<[1], [0], [0], [1], [0, 0, 1, 1], [], []>} : vector<16x32xbf16>, vector<32x64xbf16>, vector<16x64xf32> -> vector<16x64xf32>
    %258 = vector.shape_cast %257 : vector<16x64xf32> to vector<2x8x64xf32>
    %c4 = arith.constant 4 : index
    %c0_70 = arith.constant 0 : index
    %259 = vector.load %arg4[%c4, %c0_70] : memref<28x128xf32, #tpu.memory_space<vmem>>, vector<1x64xf32>
    %260 = vector.shape_cast %259 : vector<1x64xf32> to vector<64xf32>
    %261 = vector.shape_cast %260 : vector<64xf32> to vector<1x1x64xf32>
    %262 = vector.broadcast %261 : vector<1x1x64xf32> to vector<2x8x64xf32>
    %263 = arith.addf %258, %262 : vector<2x8x64xf32>
    %cst_71 = arith.constant 5.000000e-01 : f32
    %264 = vector.broadcast %cst_71 : f32 to vector<2x8x64xf32>
    %265 = arith.mulf %264, %263 : vector<2x8x64xf32>
    %cst_72 = arith.constant 4.471500e-02 : f32
    %266 = vector.broadcast %cst_72 : f32 to vector<2x8x64xf32>
    %267 = arith.mulf %266, %263 : vector<2x8x64xf32>
    %268 = arith.mulf %267, %263 : vector<2x8x64xf32>
    %269 = arith.mulf %268, %263 : vector<2x8x64xf32>
    %270 = arith.addf %263, %269 : vector<2x8x64xf32>
    %cst_73 = arith.constant 0.797884583 : f32
    %271 = vector.broadcast %cst_73 : f32 to vector<2x8x64xf32>
    %272 = arith.mulf %271, %270 : vector<2x8x64xf32>
    %273 = math.tanh %272 : vector<2x8x64xf32>
    %cst_74 = arith.constant 1.000000e+00 : f32
    %274 = vector.broadcast %cst_74 : f32 to vector<2x8x64xf32>
    %275 = arith.addf %274, %273 : vector<2x8x64xf32>
    %276 = arith.mulf %265, %275 : vector<2x8x64xf32>
    %277 = arith.truncf %276 : vector<2x8x64xf32> to vector<2x8x64xbf16>
    %c160 = arith.constant 160 : index
    %c0_75 = arith.constant 0 : index
    %278 = vector.load %arg3[%c160, %c0_75] : memref<512x128xbf16, #tpu.memory_space<vmem>>, vector<64x32xbf16>
    %279 = vector.shape_cast %277 : vector<2x8x64xbf16> to vector<16x64xbf16>
    %cst_76 = arith.constant dense<0.000000e+00> : vector<16x32xf32>
    %280 = tpu.matmul %279, %278, %cst_76 {dimension_numbers = #tpu.dot_dimension_numbers<[1], [0], [0], [1], [0, 0, 1, 1], [], []>} : vector<16x64xbf16>, vector<64x32xbf16>, vector<16x32xf32> -> vector<16x32xf32>
    %281 = vector.shape_cast %280 : vector<16x32xf32> to vector<2x8x32xf32>
    %282 = arith.addf %225, %281 : vector<2x8x32xf32>
    %c5 = arith.constant 5 : index
    %c0_77 = arith.constant 0 : index
    %283 = vector.load %arg4[%c5, %c0_77] : memref<28x128xf32, #tpu.memory_space<vmem>>, vector<1x32xf32>
    %284 = vector.shape_cast %283 : vector<1x32xf32> to vector<32xf32>
    %285 = vector.shape_cast %284 : vector<32xf32> to vector<1x1x32xf32>
    %286 = vector.broadcast %285 : vector<1x1x32xf32> to vector<2x8x32xf32>
    %287 = arith.addf %282, %286 : vector<2x8x32xf32>
    %c18 = arith.constant 18 : index
    %c0_78 = arith.constant 0 : index
    %288 = vector.load %arg4[%c18, %c0_78] : memref<28x128xf32, #tpu.memory_space<vmem>>, vector<1x32xf32>
    %289 = vector.shape_cast %288 : vector<1x32xf32> to vector<32xf32>
    %c19 = arith.constant 19 : index
    %c0_79 = arith.constant 0 : index
    %290 = vector.load %arg4[%c19, %c0_79] : memref<28x128xf32, #tpu.memory_space<vmem>>, vector<1x32xf32>
    %291 = vector.shape_cast %290 : vector<1x32xf32> to vector<32xf32>
    %cst_80 = arith.constant dense<0.000000e+00> : vector<2x8xf32>
    %292 = vector.multi_reduction <add>, %287, %cst_80 [2] : vector<2x8x32xf32> to vector<2x8xf32>
    %293 = vector.shape_cast %292 : vector<2x8xf32> to vector<2x8x1xf32>
    %cst_81 = arith.constant 3.200000e+01 : f32
    %294 = vector.broadcast %cst_81 : f32 to vector<2x8x1xf32>
    %295 = arith.divf %293, %294 : vector<2x8x1xf32>
    %296 = vector.broadcast %295 : vector<2x8x1xf32> to vector<2x8x32xf32>
    %297 = arith.subf %287, %296 : vector<2x8x32xf32>
    %298 = arith.mulf %297, %297 : vector<2x8x32xf32>
    %cst_82 = arith.constant dense<0.000000e+00> : vector<2x8xf32>
    %299 = vector.multi_reduction <add>, %298, %cst_82 [2] : vector<2x8x32xf32> to vector<2x8xf32>
    %300 = vector.shape_cast %299 : vector<2x8xf32> to vector<2x8x1xf32>
    %cst_83 = arith.constant 3.200000e+01 : f32
    %301 = vector.broadcast %cst_83 : f32 to vector<2x8x1xf32>
    %302 = arith.divf %300, %301 : vector<2x8x1xf32>
    %303 = vector.broadcast %295 : vector<2x8x1xf32> to vector<2x8x32xf32>
    %304 = arith.subf %287, %303 : vector<2x8x32xf32>
    %cst_84 = arith.constant 9.99999997E-7 : f32
    %305 = vector.broadcast %cst_84 : f32 to vector<2x8x1xf32>
    %306 = arith.addf %302, %305 : vector<2x8x1xf32>
    %307 = math.rsqrt %306 : vector<2x8x1xf32>
    %308 = vector.broadcast %307 : vector<2x8x1xf32> to vector<2x8x32xf32>
    %309 = arith.mulf %304, %308 : vector<2x8x32xf32>
    %310 = vector.shape_cast %289 : vector<32xf32> to vector<1x1x32xf32>
    %311 = vector.broadcast %310 : vector<1x1x32xf32> to vector<2x8x32xf32>
    %312 = arith.mulf %309, %311 : vector<2x8x32xf32>
    %313 = vector.shape_cast %291 : vector<32xf32> to vector<1x1x32xf32>
    %314 = vector.broadcast %313 : vector<1x1x32xf32> to vector<2x8x32xf32>
    %315 = arith.addf %312, %314 : vector<2x8x32xf32>
    %316 = arith.truncf %315 : vector<2x8x32xf32> to vector<2x8x32xbf16>
    %c224 = arith.constant 224 : index
    %c0_85 = arith.constant 0 : index
    %317 = vector.load %arg3[%c224, %c0_85] : memref<512x128xbf16, #tpu.memory_space<vmem>>, vector<32x96xbf16>
    %318 = vector.shape_cast %316 : vector<2x8x32xbf16> to vector<16x32xbf16>
    %cst_86 = arith.constant dense<0.000000e+00> : vector<16x96xf32>
    %319 = tpu.matmul %318, %317, %cst_86 {dimension_numbers = #tpu.dot_dimension_numbers<[1], [0], [0], [1], [0, 0, 1, 1], [], []>} : vector<16x32xbf16>, vector<32x96xbf16>, vector<16x96xf32> -> vector<16x96xf32>
    %320 = vector.shape_cast %319 : vector<16x96xf32> to vector<2x8x96xf32>
    %c12 = arith.constant 12 : index
    %c0_87 = arith.constant 0 : index
    %321 = vector.load %arg4[%c12, %c0_87] : memref<28x128xf32, #tpu.memory_space<vmem>>, vector<1x96xf32>
    %322 = vector.shape_cast %321 : vector<1x96xf32> to vector<96xf32>
    %323 = vector.shape_cast %322 : vector<96xf32> to vector<1x1x96xf32>
    %324 = vector.broadcast %323 : vector<1x1x96xf32> to vector<2x8x96xf32>
    %325 = arith.addf %320, %324 : vector<2x8x96xf32>
    %326 = arith.truncf %325 : vector<2x8x96xf32> to vector<2x8x96xbf16>
    %327 = vector.extract_strided_slice %326 {offsets = [0, 0, 0], sizes = [2, 8, 32], strides = [1, 1, 1]} : vector<2x8x96xbf16> to vector<2x8x32xbf16>
    %328 = vector.extract_strided_slice %326 {offsets = [0, 0, 32], sizes = [2, 8, 32], strides = [1, 1, 1]} : vector<2x8x96xbf16> to vector<2x8x32xbf16>
    %329 = vector.extract_strided_slice %326 {offsets = [0, 0, 64], sizes = [2, 8, 32], strides = [1, 1, 1]} : vector<2x8x96xbf16> to vector<2x8x32xbf16>
    %330 = vector.extract_strided_slice %327 {offsets = [0, 0, 0], sizes = [2, 8, 8], strides = [1, 1, 1]} : vector<2x8x32xbf16> to vector<2x8x8xbf16>
    %331 = vector.extract_strided_slice %328 {offsets = [0, 0, 0], sizes = [2, 8, 8], strides = [1, 1, 1]} : vector<2x8x32xbf16> to vector<2x8x8xbf16>
    "tpu.trace_start"() <{level = 10 : i32, message = "bqd,bkd->bqk"}> : () -> ()
    %cst_88 = arith.constant dense<0.000000e+00> : vector<2x8x8xf32>
    %332 = tpu.matmul %330, %331, %cst_88 {dimension_numbers = #tpu.dot_dimension_numbers<[2], [2], [1], [1], [0, 0, 0, 1, 1, 1], [0], [0]>} : vector<2x8x8xbf16>, vector<2x8x8xbf16>, vector<2x8x8xf32> -> vector<2x8x8xf32>
    "tpu.trace_stop"() : () -> ()
    %333 = vector.extract_strided_slice %327 {offsets = [0, 0, 8], sizes = [2, 8, 8], strides = [1, 1, 1]} : vector<2x8x32xbf16> to vector<2x8x8xbf16>
    %334 = vector.extract_strided_slice %328 {offsets = [0, 0, 8], sizes = [2, 8, 8], strides = [1, 1, 1]} : vector<2x8x32xbf16> to vector<2x8x8xbf16>
    "tpu.trace_start"() <{level = 10 : i32, message = "bqd,bkd->bqk"}> : () -> ()
    %cst_89 = arith.constant dense<0.000000e+00> : vector<2x8x8xf32>
    %335 = tpu.matmul %333, %334, %cst_89 {dimension_numbers = #tpu.dot_dimension_numbers<[2], [2], [1], [1], [0, 0, 0, 1, 1, 1], [0], [0]>} : vector<2x8x8xbf16>, vector<2x8x8xbf16>, vector<2x8x8xf32> -> vector<2x8x8xf32>
    "tpu.trace_stop"() : () -> ()
    %336 = vector.extract_strided_slice %327 {offsets = [0, 0, 16], sizes = [2, 8, 8], strides = [1, 1, 1]} : vector<2x8x32xbf16> to vector<2x8x8xbf16>
    %337 = vector.extract_strided_slice %328 {offsets = [0, 0, 16], sizes = [2, 8, 8], strides = [1, 1, 1]} : vector<2x8x32xbf16> to vector<2x8x8xbf16>
    "tpu.trace_start"() <{level = 10 : i32, message = "bqd,bkd->bqk"}> : () -> ()
    %cst_90 = arith.constant dense<0.000000e+00> : vector<2x8x8xf32>
    %338 = tpu.matmul %336, %337, %cst_90 {dimension_numbers = #tpu.dot_dimension_numbers<[2], [2], [1], [1], [0, 0, 0, 1, 1, 1], [0], [0]>} : vector<2x8x8xbf16>, vector<2x8x8xbf16>, vector<2x8x8xf32> -> vector<2x8x8xf32>
    "tpu.trace_stop"() : () -> ()
    %339 = vector.extract_strided_slice %327 {offsets = [0, 0, 24], sizes = [2, 8, 8], strides = [1, 1, 1]} : vector<2x8x32xbf16> to vector<2x8x8xbf16>
    %340 = vector.extract_strided_slice %328 {offsets = [0, 0, 24], sizes = [2, 8, 8], strides = [1, 1, 1]} : vector<2x8x32xbf16> to vector<2x8x8xbf16>
    "tpu.trace_start"() <{level = 10 : i32, message = "bqd,bkd->bqk"}> : () -> ()
    %cst_91 = arith.constant dense<0.000000e+00> : vector<2x8x8xf32>
    %341 = tpu.matmul %339, %340, %cst_91 {dimension_numbers = #tpu.dot_dimension_numbers<[2], [2], [1], [1], [0, 0, 0, 1, 1, 1], [0], [0]>} : vector<2x8x8xbf16>, vector<2x8x8xbf16>, vector<2x8x8xf32> -> vector<2x8x8xf32>
    "tpu.trace_stop"() : () -> ()
    %342 = vector.shape_cast %332 : vector<2x8x8xf32> to vector<2x1x8x8xf32>
    %343 = vector.shape_cast %335 : vector<2x8x8xf32> to vector<2x1x8x8xf32>
    %344 = vector.shape_cast %338 : vector<2x8x8xf32> to vector<2x1x8x8xf32>
    %345 = vector.shape_cast %341 : vector<2x8x8xf32> to vector<2x1x8x8xf32>
    %346 = tpu.concatenate %342, %343, %344, %345 in 1 : vector<2x1x8x8xf32>, vector<2x1x8x8xf32>, vector<2x1x8x8xf32>, vector<2x1x8x8xf32> -> vector<2x4x8x8xf32>
    %347 = vector.broadcast %12 : vector<2x1x8x8xf32> to vector<2x4x8x8xf32>
    %348 = arith.addf %346, %347 : vector<2x4x8x8xf32>
    %cst_92 = arith.constant dense<0xFF800000> : vector<2x4x8xf32>
    %349 = vector.multi_reduction <maximumf>, %348, %cst_92 [3] : vector<2x4x8x8xf32> to vector<2x4x8xf32>
    %350 = vector.shape_cast %349 : vector<2x4x8xf32> to vector<2x4x8x1xf32>
    %351 = vector.broadcast %350 : vector<2x4x8x1xf32> to vector<2x4x8x8xf32>
    %352 = arith.subf %348, %351 : vector<2x4x8x8xf32>
    %353 = math.exp %352 : vector<2x4x8x8xf32>
    %cst_93 = arith.constant dense<0.000000e+00> : vector<2x4x8xf32>
    %354 = vector.multi_reduction <add>, %353, %cst_93 [3] : vector<2x4x8x8xf32> to vector<2x4x8xf32>
    %355 = vector.shape_cast %354 : vector<2x4x8xf32> to vector<2x4x8x1xf32>
    %356 = tpu.reciprocal %355 {approx = true} : vector<2x4x8x1xf32> -> vector<2x4x8x1xf32>
    %357 = vector.broadcast %356 : vector<2x4x8x1xf32> to vector<2x4x8x8xf32>
    %358 = arith.mulf %353, %357 : vector<2x4x8x8xf32>
    %359 = arith.truncf %358 : vector<2x4x8x8xf32> to vector<2x4x8x8xbf16>
    %360 = vector.extract_strided_slice %359 {offsets = [0, 0, 0, 0], sizes = [2, 1, 8, 8], strides = [1, 1, 1, 1]} : vector<2x4x8x8xbf16> to vector<2x1x8x8xbf16>
    %361 = vector.shape_cast %360 : vector<2x1x8x8xbf16> to vector<2x8x8xbf16>
    %362 = vector.extract_strided_slice %329 {offsets = [0, 0, 0], sizes = [2, 8, 8], strides = [1, 1, 1]} : vector<2x8x32xbf16> to vector<2x8x8xbf16>
    "tpu.trace_start"() <{level = 10 : i32, message = "bqk,bkd->bqd"}> : () -> ()
    %cst_94 = arith.constant dense<0.000000e+00> : vector<2x8x8xf32>
    %363 = tpu.matmul %361, %362, %cst_94 {dimension_numbers = #tpu.dot_dimension_numbers<[2], [1], [1], [2], [0, 0, 0, 1, 1, 2], [0], [0]>} : vector<2x8x8xbf16>, vector<2x8x8xbf16>, vector<2x8x8xf32> -> vector<2x8x8xf32>
    "tpu.trace_stop"() : () -> ()
    %364 = vector.extract_strided_slice %359 {offsets = [0, 1, 0, 0], sizes = [2, 1, 8, 8], strides = [1, 1, 1, 1]} : vector<2x4x8x8xbf16> to vector<2x1x8x8xbf16>
    %365 = vector.shape_cast %364 : vector<2x1x8x8xbf16> to vector<2x8x8xbf16>
    %366 = vector.extract_strided_slice %329 {offsets = [0, 0, 8], sizes = [2, 8, 8], strides = [1, 1, 1]} : vector<2x8x32xbf16> to vector<2x8x8xbf16>
    "tpu.trace_start"() <{level = 10 : i32, message = "bqk,bkd->bqd"}> : () -> ()
    %cst_95 = arith.constant dense<0.000000e+00> : vector<2x8x8xf32>
    %367 = tpu.matmul %365, %366, %cst_95 {dimension_numbers = #tpu.dot_dimension_numbers<[2], [1], [1], [2], [0, 0, 0, 1, 1, 2], [0], [0]>} : vector<2x8x8xbf16>, vector<2x8x8xbf16>, vector<2x8x8xf32> -> vector<2x8x8xf32>
    "tpu.trace_stop"() : () -> ()
    %368 = vector.extract_strided_slice %359 {offsets = [0, 2, 0, 0], sizes = [2, 1, 8, 8], strides = [1, 1, 1, 1]} : vector<2x4x8x8xbf16> to vector<2x1x8x8xbf16>
    %369 = vector.shape_cast %368 : vector<2x1x8x8xbf16> to vector<2x8x8xbf16>
    %370 = vector.extract_strided_slice %329 {offsets = [0, 0, 16], sizes = [2, 8, 8], strides = [1, 1, 1]} : vector<2x8x32xbf16> to vector<2x8x8xbf16>
    "tpu.trace_start"() <{level = 10 : i32, message = "bqk,bkd->bqd"}> : () -> ()
    %cst_96 = arith.constant dense<0.000000e+00> : vector<2x8x8xf32>
    %371 = tpu.matmul %369, %370, %cst_96 {dimension_numbers = #tpu.dot_dimension_numbers<[2], [1], [1], [2], [0, 0, 0, 1, 1, 2], [0], [0]>} : vector<2x8x8xbf16>, vector<2x8x8xbf16>, vector<2x8x8xf32> -> vector<2x8x8xf32>
    "tpu.trace_stop"() : () -> ()
    %372 = vector.extract_strided_slice %359 {offsets = [0, 3, 0, 0], sizes = [2, 1, 8, 8], strides = [1, 1, 1, 1]} : vector<2x4x8x8xbf16> to vector<2x1x8x8xbf16>
    %373 = vector.shape_cast %372 : vector<2x1x8x8xbf16> to vector<2x8x8xbf16>
    %374 = vector.extract_strided_slice %329 {offsets = [0, 0, 24], sizes = [2, 8, 8], strides = [1, 1, 1]} : vector<2x8x32xbf16> to vector<2x8x8xbf16>
    "tpu.trace_start"() <{level = 10 : i32, message = "bqk,bkd->bqd"}> : () -> ()
    %cst_97 = arith.constant dense<0.000000e+00> : vector<2x8x8xf32>
    %375 = tpu.matmul %373, %374, %cst_97 {dimension_numbers = #tpu.dot_dimension_numbers<[2], [1], [1], [2], [0, 0, 0, 1, 1, 2], [0], [0]>} : vector<2x8x8xbf16>, vector<2x8x8xbf16>, vector<2x8x8xf32> -> vector<2x8x8xf32>
    "tpu.trace_stop"() : () -> ()
    %376 = tpu.concatenate %363, %367, %371, %375 in 2 : vector<2x8x8xf32>, vector<2x8x8xf32>, vector<2x8x8xf32>, vector<2x8x8xf32> -> vector<2x8x32xf32>
    %377 = arith.truncf %376 : vector<2x8x32xf32> to vector<2x8x32xbf16>
    %c256 = arith.constant 256 : index
    %c0_98 = arith.constant 0 : index
    %378 = vector.load %arg3[%c256, %c0_98] : memref<512x128xbf16, #tpu.memory_space<vmem>>, vector<32x32xbf16>
    %379 = vector.shape_cast %377 : vector<2x8x32xbf16> to vector<16x32xbf16>
    %cst_99 = arith.constant dense<0.000000e+00> : vector<16x32xf32>
    %380 = tpu.matmul %379, %378, %cst_99 {dimension_numbers = #tpu.dot_dimension_numbers<[1], [0], [0], [1], [0, 0, 1, 1], [], []>} : vector<16x32xbf16>, vector<32x32xbf16>, vector<16x32xf32> -> vector<16x32xf32>
    %381 = vector.shape_cast %380 : vector<16x32xf32> to vector<2x8x32xf32>
    %382 = arith.addf %287, %381 : vector<2x8x32xf32>
    %c13 = arith.constant 13 : index
    %c0_100 = arith.constant 0 : index
    %383 = vector.load %arg4[%c13, %c0_100] : memref<28x128xf32, #tpu.memory_space<vmem>>, vector<1x32xf32>
    %384 = vector.shape_cast %383 : vector<1x32xf32> to vector<32xf32>
    %385 = vector.shape_cast %384 : vector<32xf32> to vector<1x1x32xf32>
    %386 = vector.broadcast %385 : vector<1x1x32xf32> to vector<2x8x32xf32>
    %387 = arith.addf %382, %386 : vector<2x8x32xf32>
    %c20 = arith.constant 20 : index
    %c0_101 = arith.constant 0 : index
    %388 = vector.load %arg4[%c20, %c0_101] : memref<28x128xf32, #tpu.memory_space<vmem>>, vector<1x32xf32>
    %389 = vector.shape_cast %388 : vector<1x32xf32> to vector<32xf32>
    %c21 = arith.constant 21 : index
    %c0_102 = arith.constant 0 : index
    %390 = vector.load %arg4[%c21, %c0_102] : memref<28x128xf32, #tpu.memory_space<vmem>>, vector<1x32xf32>
    %391 = vector.shape_cast %390 : vector<1x32xf32> to vector<32xf32>
    %cst_103 = arith.constant dense<0.000000e+00> : vector<2x8xf32>
    %392 = vector.multi_reduction <add>, %387, %cst_103 [2] : vector<2x8x32xf32> to vector<2x8xf32>
    %393 = vector.shape_cast %392 : vector<2x8xf32> to vector<2x8x1xf32>
    %cst_104 = arith.constant 3.200000e+01 : f32
    %394 = vector.broadcast %cst_104 : f32 to vector<2x8x1xf32>
    %395 = arith.divf %393, %394 : vector<2x8x1xf32>
    %396 = vector.broadcast %395 : vector<2x8x1xf32> to vector<2x8x32xf32>
    %397 = arith.subf %387, %396 : vector<2x8x32xf32>
    %398 = arith.mulf %397, %397 : vector<2x8x32xf32>
    %cst_105 = arith.constant dense<0.000000e+00> : vector<2x8xf32>
    %399 = vector.multi_reduction <add>, %398, %cst_105 [2] : vector<2x8x32xf32> to vector<2x8xf32>
    %400 = vector.shape_cast %399 : vector<2x8xf32> to vector<2x8x1xf32>
    %cst_106 = arith.constant 3.200000e+01 : f32
    %401 = vector.broadcast %cst_106 : f32 to vector<2x8x1xf32>
    %402 = arith.divf %400, %401 : vector<2x8x1xf32>
    %403 = vector.broadcast %395 : vector<2x8x1xf32> to vector<2x8x32xf32>
    %404 = arith.subf %387, %403 : vector<2x8x32xf32>
    %cst_107 = arith.constant 9.99999997E-7 : f32
    %405 = vector.broadcast %cst_107 : f32 to vector<2x8x1xf32>
    %406 = arith.addf %402, %405 : vector<2x8x1xf32>
    %407 = math.rsqrt %406 : vector<2x8x1xf32>
    %408 = vector.broadcast %407 : vector<2x8x1xf32> to vector<2x8x32xf32>
    %409 = arith.mulf %404, %408 : vector<2x8x32xf32>
    %410 = vector.shape_cast %389 : vector<32xf32> to vector<1x1x32xf32>
    %411 = vector.broadcast %410 : vector<1x1x32xf32> to vector<2x8x32xf32>
    %412 = arith.mulf %409, %411 : vector<2x8x32xf32>
    %413 = vector.shape_cast %391 : vector<32xf32> to vector<1x1x32xf32>
    %414 = vector.broadcast %413 : vector<1x1x32xf32> to vector<2x8x32xf32>
    %415 = arith.addf %412, %414 : vector<2x8x32xf32>
    %416 = arith.truncf %415 : vector<2x8x32xf32> to vector<2x8x32xbf16>
    %c288 = arith.constant 288 : index
    %c0_108 = arith.constant 0 : index
    %417 = vector.load %arg3[%c288, %c0_108] : memref<512x128xbf16, #tpu.memory_space<vmem>>, vector<32x32xbf16>
    %418 = vector.shape_cast %416 : vector<2x8x32xbf16> to vector<16x32xbf16>
    %cst_109 = arith.constant dense<0.000000e+00> : vector<16x32xf32>
    %419 = tpu.matmul %418, %417, %cst_109 {dimension_numbers = #tpu.dot_dimension_numbers<[1], [0], [0], [1], [0, 0, 1, 1], [], []>} : vector<16x32xbf16>, vector<32x32xbf16>, vector<16x32xf32> -> vector<16x32xf32>
    %420 = vector.shape_cast %419 : vector<16x32xf32> to vector<2x8x32xf32>
    %c14 = arith.constant 14 : index
    %c0_110 = arith.constant 0 : index
    %421 = vector.load %arg4[%c14, %c0_110] : memref<28x128xf32, #tpu.memory_space<vmem>>, vector<1x32xf32>
    %422 = vector.shape_cast %421 : vector<1x32xf32> to vector<32xf32>
    %423 = vector.shape_cast %422 : vector<32xf32> to vector<1x1x32xf32>
    %424 = vector.broadcast %423 : vector<1x1x32xf32> to vector<2x8x32xf32>
    %425 = arith.addf %420, %424 : vector<2x8x32xf32>
    %426 = arith.truncf %425 : vector<2x8x32xf32> to vector<2x8x32xbf16>
    %427 = vector.extract_strided_slice %26 {offsets = [0, 0, 64], sizes = [2, 8, 32], strides = [1, 1, 1]} : vector<2x8x128xbf16> to vector<2x8x32xbf16>
    %428 = vector.extract_strided_slice %26 {offsets = [0, 0, 96], sizes = [2, 8, 32], strides = [1, 1, 1]} : vector<2x8x128xbf16> to vector<2x8x32xbf16>
    %429 = vector.extract_strided_slice %426 {offsets = [0, 0, 0], sizes = [2, 8, 8], strides = [1, 1, 1]} : vector<2x8x32xbf16> to vector<2x8x8xbf16>
    %430 = vector.extract_strided_slice %427 {offsets = [0, 0, 0], sizes = [2, 8, 8], strides = [1, 1, 1]} : vector<2x8x32xbf16> to vector<2x8x8xbf16>
    "tpu.trace_start"() <{level = 10 : i32, message = "bqd,bkd->bqk"}> : () -> ()
    %cst_111 = arith.constant dense<0.000000e+00> : vector<2x8x8xf32>
    %431 = tpu.matmul %429, %430, %cst_111 {dimension_numbers = #tpu.dot_dimension_numbers<[2], [2], [1], [1], [0, 0, 0, 1, 1, 1], [0], [0]>} : vector<2x8x8xbf16>, vector<2x8x8xbf16>, vector<2x8x8xf32> -> vector<2x8x8xf32>
    "tpu.trace_stop"() : () -> ()
    %432 = vector.extract_strided_slice %426 {offsets = [0, 0, 8], sizes = [2, 8, 8], strides = [1, 1, 1]} : vector<2x8x32xbf16> to vector<2x8x8xbf16>
    %433 = vector.extract_strided_slice %427 {offsets = [0, 0, 8], sizes = [2, 8, 8], strides = [1, 1, 1]} : vector<2x8x32xbf16> to vector<2x8x8xbf16>
    "tpu.trace_start"() <{level = 10 : i32, message = "bqd,bkd->bqk"}> : () -> ()
    %cst_112 = arith.constant dense<0.000000e+00> : vector<2x8x8xf32>
    %434 = tpu.matmul %432, %433, %cst_112 {dimension_numbers = #tpu.dot_dimension_numbers<[2], [2], [1], [1], [0, 0, 0, 1, 1, 1], [0], [0]>} : vector<2x8x8xbf16>, vector<2x8x8xbf16>, vector<2x8x8xf32> -> vector<2x8x8xf32>
    "tpu.trace_stop"() : () -> ()
    %435 = vector.extract_strided_slice %426 {offsets = [0, 0, 16], sizes = [2, 8, 8], strides = [1, 1, 1]} : vector<2x8x32xbf16> to vector<2x8x8xbf16>
    %436 = vector.extract_strided_slice %427 {offsets = [0, 0, 16], sizes = [2, 8, 8], strides = [1, 1, 1]} : vector<2x8x32xbf16> to vector<2x8x8xbf16>
    "tpu.trace_start"() <{level = 10 : i32, message = "bqd,bkd->bqk"}> : () -> ()
    %cst_113 = arith.constant dense<0.000000e+00> : vector<2x8x8xf32>
    %437 = tpu.matmul %435, %436, %cst_113 {dimension_numbers = #tpu.dot_dimension_numbers<[2], [2], [1], [1], [0, 0, 0, 1, 1, 1], [0], [0]>} : vector<2x8x8xbf16>, vector<2x8x8xbf16>, vector<2x8x8xf32> -> vector<2x8x8xf32>
    "tpu.trace_stop"() : () -> ()
    %438 = vector.extract_strided_slice %426 {offsets = [0, 0, 24], sizes = [2, 8, 8], strides = [1, 1, 1]} : vector<2x8x32xbf16> to vector<2x8x8xbf16>
    %439 = vector.extract_strided_slice %427 {offsets = [0, 0, 24], sizes = [2, 8, 8], strides = [1, 1, 1]} : vector<2x8x32xbf16> to vector<2x8x8xbf16>
    "tpu.trace_start"() <{level = 10 : i32, message = "bqd,bkd->bqk"}> : () -> ()
    %cst_114 = arith.constant dense<0.000000e+00> : vector<2x8x8xf32>
    %440 = tpu.matmul %438, %439, %cst_114 {dimension_numbers = #tpu.dot_dimension_numbers<[2], [2], [1], [1], [0, 0, 0, 1, 1, 1], [0], [0]>} : vector<2x8x8xbf16>, vector<2x8x8xbf16>, vector<2x8x8xf32> -> vector<2x8x8xf32>
    "tpu.trace_stop"() : () -> ()
    %441 = vector.shape_cast %431 : vector<2x8x8xf32> to vector<2x1x8x8xf32>
    %442 = vector.shape_cast %434 : vector<2x8x8xf32> to vector<2x1x8x8xf32>
    %443 = vector.shape_cast %437 : vector<2x8x8xf32> to vector<2x1x8x8xf32>
    %444 = vector.shape_cast %440 : vector<2x8x8xf32> to vector<2x1x8x8xf32>
    %445 = tpu.concatenate %441, %442, %443, %444 in 1 : vector<2x1x8x8xf32>, vector<2x1x8x8xf32>, vector<2x1x8x8xf32>, vector<2x1x8x8xf32> -> vector<2x4x8x8xf32>
    %446 = vector.broadcast %14 : vector<2x1x1x8xf32> to vector<2x4x8x8xf32>
    %447 = arith.addf %445, %446 : vector<2x4x8x8xf32>
    %cst_115 = arith.constant dense<0xFF800000> : vector<2x4x8xf32>
    %448 = vector.multi_reduction <maximumf>, %447, %cst_115 [3] : vector<2x4x8x8xf32> to vector<2x4x8xf32>
    %449 = vector.shape_cast %448 : vector<2x4x8xf32> to vector<2x4x8x1xf32>
    %450 = vector.broadcast %449 : vector<2x4x8x1xf32> to vector<2x4x8x8xf32>
    %451 = arith.subf %447, %450 : vector<2x4x8x8xf32>
    %452 = math.exp %451 : vector<2x4x8x8xf32>
    %cst_116 = arith.constant dense<0.000000e+00> : vector<2x4x8xf32>
    %453 = vector.multi_reduction <add>, %452, %cst_116 [3] : vector<2x4x8x8xf32> to vector<2x4x8xf32>
    %454 = vector.shape_cast %453 : vector<2x4x8xf32> to vector<2x4x8x1xf32>
    %455 = tpu.reciprocal %454 {approx = true} : vector<2x4x8x1xf32> -> vector<2x4x8x1xf32>
    %456 = vector.broadcast %455 : vector<2x4x8x1xf32> to vector<2x4x8x8xf32>
    %457 = arith.mulf %452, %456 : vector<2x4x8x8xf32>
    %458 = arith.truncf %457 : vector<2x4x8x8xf32> to vector<2x4x8x8xbf16>
    %459 = vector.extract_strided_slice %458 {offsets = [0, 0, 0, 0], sizes = [2, 1, 8, 8], strides = [1, 1, 1, 1]} : vector<2x4x8x8xbf16> to vector<2x1x8x8xbf16>
    %460 = vector.shape_cast %459 : vector<2x1x8x8xbf16> to vector<2x8x8xbf16>
    %461 = vector.extract_strided_slice %428 {offsets = [0, 0, 0], sizes = [2, 8, 8], strides = [1, 1, 1]} : vector<2x8x32xbf16> to vector<2x8x8xbf16>
    "tpu.trace_start"() <{level = 10 : i32, message = "bqk,bkd->bqd"}> : () -> ()
    %cst_117 = arith.constant dense<0.000000e+00> : vector<2x8x8xf32>
    %462 = tpu.matmul %460, %461, %cst_117 {dimension_numbers = #tpu.dot_dimension_numbers<[2], [1], [1], [2], [0, 0, 0, 1, 1, 2], [0], [0]>} : vector<2x8x8xbf16>, vector<2x8x8xbf16>, vector<2x8x8xf32> -> vector<2x8x8xf32>
    "tpu.trace_stop"() : () -> ()
    %463 = vector.extract_strided_slice %458 {offsets = [0, 1, 0, 0], sizes = [2, 1, 8, 8], strides = [1, 1, 1, 1]} : vector<2x4x8x8xbf16> to vector<2x1x8x8xbf16>
    %464 = vector.shape_cast %463 : vector<2x1x8x8xbf16> to vector<2x8x8xbf16>
    %465 = vector.extract_strided_slice %428 {offsets = [0, 0, 8], sizes = [2, 8, 8], strides = [1, 1, 1]} : vector<2x8x32xbf16> to vector<2x8x8xbf16>
    "tpu.trace_start"() <{level = 10 : i32, message = "bqk,bkd->bqd"}> : () -> ()
    %cst_118 = arith.constant dense<0.000000e+00> : vector<2x8x8xf32>
    %466 = tpu.matmul %464, %465, %cst_118 {dimension_numbers = #tpu.dot_dimension_numbers<[2], [1], [1], [2], [0, 0, 0, 1, 1, 2], [0], [0]>} : vector<2x8x8xbf16>, vector<2x8x8xbf16>, vector<2x8x8xf32> -> vector<2x8x8xf32>
    "tpu.trace_stop"() : () -> ()
    %467 = vector.extract_strided_slice %458 {offsets = [0, 2, 0, 0], sizes = [2, 1, 8, 8], strides = [1, 1, 1, 1]} : vector<2x4x8x8xbf16> to vector<2x1x8x8xbf16>
    %468 = vector.shape_cast %467 : vector<2x1x8x8xbf16> to vector<2x8x8xbf16>
    %469 = vector.extract_strided_slice %428 {offsets = [0, 0, 16], sizes = [2, 8, 8], strides = [1, 1, 1]} : vector<2x8x32xbf16> to vector<2x8x8xbf16>
    "tpu.trace_start"() <{level = 10 : i32, message = "bqk,bkd->bqd"}> : () -> ()
    %cst_119 = arith.constant dense<0.000000e+00> : vector<2x8x8xf32>
    %470 = tpu.matmul %468, %469, %cst_119 {dimension_numbers = #tpu.dot_dimension_numbers<[2], [1], [1], [2], [0, 0, 0, 1, 1, 2], [0], [0]>} : vector<2x8x8xbf16>, vector<2x8x8xbf16>, vector<2x8x8xf32> -> vector<2x8x8xf32>
    "tpu.trace_stop"() : () -> ()
    %471 = vector.extract_strided_slice %458 {offsets = [0, 3, 0, 0], sizes = [2, 1, 8, 8], strides = [1, 1, 1, 1]} : vector<2x4x8x8xbf16> to vector<2x1x8x8xbf16>
    %472 = vector.shape_cast %471 : vector<2x1x8x8xbf16> to vector<2x8x8xbf16>
    %473 = vector.extract_strided_slice %428 {offsets = [0, 0, 24], sizes = [2, 8, 8], strides = [1, 1, 1]} : vector<2x8x32xbf16> to vector<2x8x8xbf16>
    "tpu.trace_start"() <{level = 10 : i32, message = "bqk,bkd->bqd"}> : () -> ()
    %cst_120 = arith.constant dense<0.000000e+00> : vector<2x8x8xf32>
    %474 = tpu.matmul %472, %473, %cst_120 {dimension_numbers = #tpu.dot_dimension_numbers<[2], [1], [1], [2], [0, 0, 0, 1, 1, 2], [0], [0]>} : vector<2x8x8xbf16>, vector<2x8x8xbf16>, vector<2x8x8xf32> -> vector<2x8x8xf32>
    "tpu.trace_stop"() : () -> ()
    %475 = tpu.concatenate %462, %466, %470, %474 in 2 : vector<2x8x8xf32>, vector<2x8x8xf32>, vector<2x8x8xf32>, vector<2x8x8xf32> -> vector<2x8x32xf32>
    %476 = arith.truncf %475 : vector<2x8x32xf32> to vector<2x8x32xbf16>
    %c320 = arith.constant 320 : index
    %c0_121 = arith.constant 0 : index
    %477 = vector.load %arg3[%c320, %c0_121] : memref<512x128xbf16, #tpu.memory_space<vmem>>, vector<32x32xbf16>
    %478 = vector.shape_cast %476 : vector<2x8x32xbf16> to vector<16x32xbf16>
    %cst_122 = arith.constant dense<0.000000e+00> : vector<16x32xf32>
    %479 = tpu.matmul %478, %477, %cst_122 {dimension_numbers = #tpu.dot_dimension_numbers<[1], [0], [0], [1], [0, 0, 1, 1], [], []>} : vector<16x32xbf16>, vector<32x32xbf16>, vector<16x32xf32> -> vector<16x32xf32>
    %480 = vector.shape_cast %479 : vector<16x32xf32> to vector<2x8x32xf32>
    %481 = arith.addf %387, %480 : vector<2x8x32xf32>
    %c15 = arith.constant 15 : index
    %c0_123 = arith.constant 0 : index
    %482 = vector.load %arg4[%c15, %c0_123] : memref<28x128xf32, #tpu.memory_space<vmem>>, vector<1x32xf32>
    %483 = vector.shape_cast %482 : vector<1x32xf32> to vector<32xf32>
    %484 = vector.shape_cast %483 : vector<32xf32> to vector<1x1x32xf32>
    %485 = vector.broadcast %484 : vector<1x1x32xf32> to vector<2x8x32xf32>
    %486 = arith.addf %481, %485 : vector<2x8x32xf32>
    %c22 = arith.constant 22 : index
    %c0_124 = arith.constant 0 : index
    %487 = vector.load %arg4[%c22, %c0_124] : memref<28x128xf32, #tpu.memory_space<vmem>>, vector<1x32xf32>
    %488 = vector.shape_cast %487 : vector<1x32xf32> to vector<32xf32>
    %c23 = arith.constant 23 : index
    %c0_125 = arith.constant 0 : index
    %489 = vector.load %arg4[%c23, %c0_125] : memref<28x128xf32, #tpu.memory_space<vmem>>, vector<1x32xf32>
    %490 = vector.shape_cast %489 : vector<1x32xf32> to vector<32xf32>
    %cst_126 = arith.constant dense<0.000000e+00> : vector<2x8xf32>
    %491 = vector.multi_reduction <add>, %486, %cst_126 [2] : vector<2x8x32xf32> to vector<2x8xf32>
    %492 = vector.shape_cast %491 : vector<2x8xf32> to vector<2x8x1xf32>
    %cst_127 = arith.constant 3.200000e+01 : f32
    %493 = vector.broadcast %cst_127 : f32 to vector<2x8x1xf32>
    %494 = arith.divf %492, %493 : vector<2x8x1xf32>
    %495 = vector.broadcast %494 : vector<2x8x1xf32> to vector<2x8x32xf32>
    %496 = arith.subf %486, %495 : vector<2x8x32xf32>
    %497 = arith.mulf %496, %496 : vector<2x8x32xf32>
    %cst_128 = arith.constant dense<0.000000e+00> : vector<2x8xf32>
    %498 = vector.multi_reduction <add>, %497, %cst_128 [2] : vector<2x8x32xf32> to vector<2x8xf32>
    %499 = vector.shape_cast %498 : vector<2x8xf32> to vector<2x8x1xf32>
    %cst_129 = arith.constant 3.200000e+01 : f32
    %500 = vector.broadcast %cst_129 : f32 to vector<2x8x1xf32>
    %501 = arith.divf %499, %500 : vector<2x8x1xf32>
    %502 = vector.broadcast %494 : vector<2x8x1xf32> to vector<2x8x32xf32>
    %503 = arith.subf %486, %502 : vector<2x8x32xf32>
    %cst_130 = arith.constant 9.99999997E-7 : f32
    %504 = vector.broadcast %cst_130 : f32 to vector<2x8x1xf32>
    %505 = arith.addf %501, %504 : vector<2x8x1xf32>
    %506 = math.rsqrt %505 : vector<2x8x1xf32>
    %507 = vector.broadcast %506 : vector<2x8x1xf32> to vector<2x8x32xf32>
    %508 = arith.mulf %503, %507 : vector<2x8x32xf32>
    %509 = vector.shape_cast %488 : vector<32xf32> to vector<1x1x32xf32>
    %510 = vector.broadcast %509 : vector<1x1x32xf32> to vector<2x8x32xf32>
    %511 = arith.mulf %508, %510 : vector<2x8x32xf32>
    %512 = vector.shape_cast %490 : vector<32xf32> to vector<1x1x32xf32>
    %513 = vector.broadcast %512 : vector<1x1x32xf32> to vector<2x8x32xf32>
    %514 = arith.addf %511, %513 : vector<2x8x32xf32>
    %515 = arith.truncf %514 : vector<2x8x32xf32> to vector<2x8x32xbf16>
    %c352 = arith.constant 352 : index
    %c0_131 = arith.constant 0 : index
    %516 = vector.load %arg3[%c352, %c0_131] : memref<512x128xbf16, #tpu.memory_space<vmem>>, vector<32x64xbf16>
    %517 = vector.shape_cast %515 : vector<2x8x32xbf16> to vector<16x32xbf16>
    %cst_132 = arith.constant dense<0.000000e+00> : vector<16x64xf32>
    %518 = tpu.matmul %517, %516, %cst_132 {dimension_numbers = #tpu.dot_dimension_numbers<[1], [0], [0], [1], [0, 0, 1, 1], [], []>} : vector<16x32xbf16>, vector<32x64xbf16>, vector<16x64xf32> -> vector<16x64xf32>
    %519 = vector.shape_cast %518 : vector<16x64xf32> to vector<2x8x64xf32>
    %c16 = arith.constant 16 : index
    %c0_133 = arith.constant 0 : index
    %520 = vector.load %arg4[%c16, %c0_133] : memref<28x128xf32, #tpu.memory_space<vmem>>, vector<1x64xf32>
    %521 = vector.shape_cast %520 : vector<1x64xf32> to vector<64xf32>
    %522 = vector.shape_cast %521 : vector<64xf32> to vector<1x1x64xf32>
    %523 = vector.broadcast %522 : vector<1x1x64xf32> to vector<2x8x64xf32>
    %524 = arith.addf %519, %523 : vector<2x8x64xf32>
    %cst_134 = arith.constant 5.000000e-01 : f32
    %525 = vector.broadcast %cst_134 : f32 to vector<2x8x64xf32>
    %526 = arith.mulf %525, %524 : vector<2x8x64xf32>
    %cst_135 = arith.constant 4.471500e-02 : f32
    %527 = vector.broadcast %cst_135 : f32 to vector<2x8x64xf32>
    %528 = arith.mulf %527, %524 : vector<2x8x64xf32>
    %529 = arith.mulf %528, %524 : vector<2x8x64xf32>
    %530 = arith.mulf %529, %524 : vector<2x8x64xf32>
    %531 = arith.addf %524, %530 : vector<2x8x64xf32>
    %cst_136 = arith.constant 0.797884583 : f32
    %532 = vector.broadcast %cst_136 : f32 to vector<2x8x64xf32>
    %533 = arith.mulf %532, %531 : vector<2x8x64xf32>
    %534 = math.tanh %533 : vector<2x8x64xf32>
    %cst_137 = arith.constant 1.000000e+00 : f32
    %535 = vector.broadcast %cst_137 : f32 to vector<2x8x64xf32>
    %536 = arith.addf %535, %534 : vector<2x8x64xf32>
    %537 = arith.mulf %526, %536 : vector<2x8x64xf32>
    %538 = arith.truncf %537 : vector<2x8x64xf32> to vector<2x8x64xbf16>
    %c384 = arith.constant 384 : index
    %c0_138 = arith.constant 0 : index
    %539 = vector.load %arg3[%c384, %c0_138] : memref<512x128xbf16, #tpu.memory_space<vmem>>, vector<64x32xbf16>
    %540 = vector.shape_cast %538 : vector<2x8x64xbf16> to vector<16x64xbf16>
    %cst_139 = arith.constant dense<0.000000e+00> : vector<16x32xf32>
    %541 = tpu.matmul %540, %539, %cst_139 {dimension_numbers = #tpu.dot_dimension_numbers<[1], [0], [0], [1], [0, 0, 1, 1], [], []>} : vector<16x64xbf16>, vector<64x32xbf16>, vector<16x32xf32> -> vector<16x32xf32>
    %542 = vector.shape_cast %541 : vector<16x32xf32> to vector<2x8x32xf32>
    %543 = arith.addf %486, %542 : vector<2x8x32xf32>
    %c17 = arith.constant 17 : index
    %c0_140 = arith.constant 0 : index
    %544 = vector.load %arg4[%c17, %c0_140] : memref<28x128xf32, #tpu.memory_space<vmem>>, vector<1x32xf32>
    %545 = vector.shape_cast %544 : vector<1x32xf32> to vector<32xf32>
    %546 = vector.shape_cast %545 : vector<32xf32> to vector<1x1x32xf32>
    %547 = vector.broadcast %546 : vector<1x1x32xf32> to vector<2x8x32xf32>
    %548 = arith.addf %543, %547 : vector<2x8x32xf32>
    %c25 = arith.constant 25 : index
    %c0_141 = arith.constant 0 : index
    %549 = vector.load %arg4[%c25, %c0_141] : memref<28x128xf32, #tpu.memory_space<vmem>>, vector<1x32xf32>
    %550 = vector.shape_cast %549 : vector<1x32xf32> to vector<32xf32>
    %c26 = arith.constant 26 : index
    %c0_142 = arith.constant 0 : index
    %551 = vector.load %arg4[%c26, %c0_142] : memref<28x128xf32, #tpu.memory_space<vmem>>, vector<1x32xf32>
    %552 = vector.shape_cast %551 : vector<1x32xf32> to vector<32xf32>
    %cst_143 = arith.constant dense<0.000000e+00> : vector<2x8xf32>
    %553 = vector.multi_reduction <add>, %548, %cst_143 [2] : vector<2x8x32xf32> to vector<2x8xf32>
    %554 = vector.shape_cast %553 : vector<2x8xf32> to vector<2x8x1xf32>
    %cst_144 = arith.constant 3.200000e+01 : f32
    %555 = vector.broadcast %cst_144 : f32 to vector<2x8x1xf32>
    %556 = arith.divf %554, %555 : vector<2x8x1xf32>
    %557 = vector.broadcast %556 : vector<2x8x1xf32> to vector<2x8x32xf32>
    %558 = arith.subf %548, %557 : vector<2x8x32xf32>
    %559 = arith.mulf %558, %558 : vector<2x8x32xf32>
    %cst_145 = arith.constant dense<0.000000e+00> : vector<2x8xf32>
    %560 = vector.multi_reduction <add>, %559, %cst_145 [2] : vector<2x8x32xf32> to vector<2x8xf32>
    %561 = vector.shape_cast %560 : vector<2x8xf32> to vector<2x8x1xf32>
    %cst_146 = arith.constant 3.200000e+01 : f32
    %562 = vector.broadcast %cst_146 : f32 to vector<2x8x1xf32>
    %563 = arith.divf %561, %562 : vector<2x8x1xf32>
    %564 = vector.broadcast %556 : vector<2x8x1xf32> to vector<2x8x32xf32>
    %565 = arith.subf %548, %564 : vector<2x8x32xf32>
    %cst_147 = arith.constant 9.99999997E-7 : f32
    %566 = vector.broadcast %cst_147 : f32 to vector<2x8x1xf32>
    %567 = arith.addf %563, %566 : vector<2x8x1xf32>
    %568 = math.rsqrt %567 : vector<2x8x1xf32>
    %569 = vector.broadcast %568 : vector<2x8x1xf32> to vector<2x8x32xf32>
    %570 = arith.mulf %565, %569 : vector<2x8x32xf32>
    %571 = vector.shape_cast %550 : vector<32xf32> to vector<1x1x32xf32>
    %572 = vector.broadcast %571 : vector<1x1x32xf32> to vector<2x8x32xf32>
    %573 = arith.mulf %570, %572 : vector<2x8x32xf32>
    %574 = vector.shape_cast %552 : vector<32xf32> to vector<1x1x32xf32>
    %575 = vector.broadcast %574 : vector<1x1x32xf32> to vector<2x8x32xf32>
    %576 = arith.addf %573, %575 : vector<2x8x32xf32>
    %cst_148 = arith.constant 0.000000e+00 : f32
    %577 = vector.broadcast %cst_148 : f32 to vector<2x8x96xf32>
    %578 = tpu.concatenate %576, %577 in 2 : vector<2x8x32xf32>, vector<2x8x96xf32> -> vector<2x8x128xf32>
    %c0_149 = arith.constant 0 : index
    %c0_150 = arith.constant 0 : index
    %c0_151 = arith.constant 0 : index
    %579 = vector.load %arg6[%c0_149, %c0_150, %c0_151] : memref<2x8x128xf32, #tpu.memory_space<vmem>>, vector<2x8x128xf32>
    tpu.vector_store %arg6[%c0_149, %c0_150, %c0_151], %578 {strides = array<i32>} : memref<2x8x128xf32, #tpu.memory_space<vmem>>, vector<2x8x128xf32>,
    %580 = arith.truncf %576 : vector<2x8x32xf32> to vector<2x8x32xbf16>
    %c480 = arith.constant 480 : index
    %c0_152 = arith.constant 0 : index
    %581 = vector.load %arg3[%c480, %c0_152] : memref<512x128xbf16, #tpu.memory_space<vmem>>, vector<32x128xbf16>
    %582 = vector.shape_cast %580 : vector<2x8x32xbf16> to vector<16x32xbf16>
    %cst_153 = arith.constant dense<0.000000e+00> : vector<16x128xf32>
    %583 = tpu.matmul %582, %581, %cst_153 {dimension_numbers = #tpu.dot_dimension_numbers<[1], [0], [0], [1], [0, 0, 1, 1], [], []>} : vector<16x32xbf16>, vector<32x128xbf16>, vector<16x128xf32> -> vector<16x128xf32>
    %584 = vector.shape_cast %583 : vector<16x128xf32> to vector<2x8x128xf32>
    %c27 = arith.constant 27 : index
    %c0_154 = arith.constant 0 : index
    %585 = vector.load %arg4[%c27, %c0_154] : memref<28x128xf32, #tpu.memory_space<vmem>>, vector<1x128xf32>
    %586 = vector.shape_cast %585 : vector<1x128xf32> to vector<128xf32>
    %587 = vector.shape_cast %586 : vector<128xf32> to vector<1x1x128xf32>
    %588 = vector.broadcast %587 : vector<1x1x128xf32> to vector<2x8x128xf32>
    %589 = arith.addf %584, %588 : vector<2x8x128xf32>
    %cst_155 = arith.constant dense<0xFF800000> : vector<2x8xf32>
    %590 = vector.multi_reduction <maximumf>, %589, %cst_155 [2] : vector<2x8x128xf32> to vector<2x8xf32>
    %591 = vector.shape_cast %590 : vector<2x8xf32> to vector<2x8x1xf32>
    %592 = vector.broadcast %591 : vector<2x8x1xf32> to vector<2x8x128xf32>
    %593 = arith.subf %589, %592 : vector<2x8x128xf32>
    %594 = math.exp %593 : vector<2x8x128xf32>
    %cst_156 = arith.constant dense<0.000000e+00> : vector<2x8xf32>
    %595 = vector.multi_reduction <add>, %594, %cst_156 [2] : vector<2x8x128xf32> to vector<2x8xf32>
    %596 = vector.shape_cast %595 : vector<2x8xf32> to vector<2x8x1xf32>
    %597 = math.log %596 : vector<2x8x1xf32>
    %598 = vector.broadcast %597 : vector<2x8x1xf32> to vector<2x8x128xf32>
    %599 = arith.subf %593, %598 : vector<2x8x128xf32>
    %c0_157 = arith.constant 0 : index
    %c0_158 = arith.constant 0 : index
    %c0_159 = arith.constant 0 : index
    %600 = vector.load %arg5[%c0_157, %c0_158, %c0_159] : memref<2x8x128xf32, #tpu.memory_space<vmem>>, vector<2x8x128xf32>
    tpu.vector_store %arg5[%c0_157, %c0_158, %c0_159], %599 {strides = array<i32>} : memref<2x8x128xf32, #tpu.memory_space<vmem>>, vector<2x8x128xf32>,
    return
  }
}

</mosaic_0001>

<llo_original>
// kernel: tf_decoder_forward.1
$region0: #{tf_decoder_forward.1}
  #allocation0 [shape = 'u32[]', space=smem, size = 0x4, offset = 0x4, fixed_abs, tag = 'smem constant byte address 0x4 - core index']
  #allocation1 [shape = 'u32[144,128]{1,0:T(1,128)}', space=vmem, size = 0x12000, scoped, tag = 'internal scratch']
  %s0 = inlined_call_operand.vmem [shape: f32[2,8,32], index: 0, kind: input, shape index: {}]
  %s1 = inlined_call_operand.vmem [shape: f32[2,8,32], index: 1, kind: input, shape index: {}]
  %s2 = inlined_call_operand.vmem [shape: f32[2,16], index: 2, kind: input, shape index: {}]
  %s3 = inlined_call_operand.vmem [shape: bf16[512,128], index: 3, kind: input, shape index: {}]
  %s4 = inlined_call_operand.vmem [shape: f32[28,128], index: 4, kind: input, shape index: {}]
  %s5 = inlined_call_operand.vmem [shape: f32[2,8,128], index: 5, kind: output, shape index: {0}]
  %s6 = inlined_call_operand.vmem [shape: f32[2,8,128], index: 6, kind: output, shape index: {1}]
  %7 = xla_tuple %s5, %s6
  %s8 = sld [smem:[#allocation0]]
  $region38: #{tf_decoder_forward.1} parent=0
    _
  %s10 = ssub.s32 1, %s8
  %s11 = scalar_select 0, %s10, %s8
  // Predicated region
  $region2: #{tf_decoder_forward.1} parent=0 // pred_check
    _
  $region3: #{tf_decoder_forward.1} parent=0 // pred_check_branch
    %13 = sbr.rel (0) target = $region5
  $region4: #{tf_decoder_forward.1} parent=0 // pred_region
    _
  $region5: #{tf_decoder_forward.1} parent=0 // pred_fallthru
    _
  // Predicated region
  $region6: #{tf_decoder_forward.1} parent=0 // pred_check
    _
  $region7: #{tf_decoder_forward.1} parent=0 // pred_check_branch
    %15 = sbr.rel (0) target = $region9
  $region8: #{tf_decoder_forward.1} parent=0 // pred_region
    _
  $region9: #{tf_decoder_forward.1} parent=0 // pred_fallthru
    _
  // Predicated region
  $region10: #{tf_decoder_forward.1} parent=0 // pred_check
    _
  $region11: #{tf_decoder_forward.1} parent=0 // pred_check_branch
    %17 = sbr.rel (0) target = $region13
  $region12: #{tf_decoder_forward.1} parent=0 // pred_region
    _
  $region13: #{tf_decoder_forward.1} parent=0 // pred_fallthru
    _
  // Predicated region
  $region14: #{tf_decoder_forward.1} parent=0 // pred_check
    _
  $region15: #{tf_decoder_forward.1} parent=0 // pred_check_branch
    %19 = sbr.rel (0) target = $region17
  $region16: #{tf_decoder_forward.1} parent=0 // pred_region
    _
  $region17: #{tf_decoder_forward.1} parent=0 // pred_fallthru
    _
  // Predicated region
  $region18: #{tf_decoder_forward.1} parent=0 // pred_check
    _
  $region19: #{tf_decoder_forward.1} parent=0 // pred_check_branch
    %21 = sbr.rel (0) target = $region21
  $region20: #{tf_decoder_forward.1} parent=0 // pred_region
    _
  $region21: #{tf_decoder_forward.1} parent=0 // pred_fallthru
    _
  %v23 = vld [vmem:[%s0] sm:$0xff]
  %v24 = vld [vmem:[%s0 + $0x8] sm:$0xff]
  %v25 = vlaneseq
  %v26 = vshrl.u32 %v25, 7
  %v27 = vlaneseq
  %v28 = vand.u32 %v27, 127
  %vm29 = vcmp.gt.s32.totalorder %v28, %v26
  %v30 = vsel %vm29, -1e+09, 0.0
  %v31 = vld [vmem:[%s2] sm:$0x3]
  %v34 = vunpack.c.l.s4 1966171168
  %v35 = vunpack.c.0.s8 %v34
  %v36 = vlaneseq
  %v37 = vshrl.u32 %v36, 7
  %v38 = vsub.s32 %v35, %v37
  %v39 = vrot.slane %v31, %v38
  %v40 = vcombine.high %v39, %v39
  %v42 = vunpack.c.l.s4 1966171168
  %v43 = vunpack.c.0.s8 %v42
  %v44 = vlaneseq
  %v45 = vshrl.u32 %v44, 7
  %v46 = vsub.s32 %v43, %v45
  %v47 = vrot.slane %v39, %v46
  %v49 = vunpack.c.l.s4 1966171168
  %v50 = vunpack.c.0.s8 %v49
  %v51 = vlaneseq
  %v52 = vshrl.u32 %v51, 7
  %v53 = vsub.s32 %v50, %v52
  %v54 = vrot.slane %v40, %v53
  %v55 = vlaneseq
  %v56 = vshrl.u32 %v55, 7
  %v57 = vsub.s32 0, %v56
  %v58 = vrot.slane %v47, %v57
  %v59 = vlaneseq
  %v60 = vshrl.u32 %v59, 7
  %v61 = vsub.s32 0, %v60
  %v62 = vrot.slane %v54, %v61
  %v65 = vadd.f32 %v30, %v58
  %v66 = vadd.f32 %v30, %v62
  %v67 = vld [vmem:[%s1] sm:$0xff]
  %v68 = vld [vmem:[%s1 + $0x8] sm:$0xff]
  %v69 = vpack.c.bf16 %v67, %v67
  %v70 = vpack.c.bf16 %v68, %v68
  %v71 = vld [vmem:[%s3 + $0xe0] sm:$0xf]
  %v72 = vld [vmem:[%s3 + $0xe4] sm:$0xf]
  %v73 = vld [vmem:[%s3 + $0xe8] sm:$0xf]
  %v74 = vld [vmem:[%s3 + $0xec] sm:$0xf]
  %v77 = vunpack.c.l.b16 %v69
  %v78 = vunpack.c.l.b16 %v70
  %v79 = vpack.c.b16 %v78, %v77
  %v84 = vunpack.c.l.b16 %v71
  %v85 = vunpack.c.l.b16 %v72
  %v86 = vunpack.c.l.b16 %v73
  %v87 = vunpack.c.l.b16 %v74
  %v88 = vpack.c.b16 %v85, %v84
  %v89 = vpack.c.b16 %v87, %v86
  %vm92 = vcmask 261120
  %v94 = vsel %vm92, %v79, 0
  %96 = vmatprep.subr.bf16.mxu0 0
  %97 = vmatpush1.bf16.msra.mxu0 %v88
  %98 = vmatprep.subr.bf16.mxu0 0
  %99 = vmatpush1.bf16.msra.mxu0 %v89
  %100 = vmatprep.subr.bf16.mxu0 0
  %101 = vmatpush1.bf16.msra.mxu0 0
  %102 = vmatprep.subr.bf16.mxu0 0
  %103 = vmatpush1.bf16.msra.mxu0 0
  %104 = vmatprep.subr.bf16.mxu0 0
  %105 = vmatpush1.bf16.msra.mxu0 0
  %106 = vmatprep.subr.bf16.mxu0 0
  %107 = vmatpush1.bf16.msra.mxu0 0
  %108 = vmatprep.subr.bf16.mxu0 0
  %109 = vmatpush1.bf16.msra.mxu0 0
  %110 = vmatprep.subr.bf16.mxu0 0
  %111 = vmatpush1.bf16.msra.mxu0 0
  %112 = vmatprep.subr.bf16.mxu0 0
  %113 = vmatpush1.bf16.msra.mxu0 0
  %114 = vmatprep.subr.bf16.mxu0 0
  %115 = vmatpush1.bf16.msra.mxu0 0
  %116 = vmatprep.subr.bf16.mxu0 0
  %117 = vmatpush1.bf16.msra.mxu0 0
  %118 = vmatprep.subr.bf16.mxu0 0
  %119 = vmatpush1.bf16.msra.mxu0 0
  %120 = vmatprep.subr.bf16.mxu0 0
  %121 = vmatpush1.bf16.msra.mxu0 0
  %122 = vmatprep.subr.bf16.mxu0 0
  %123 = vmatpush1.bf16.msra.mxu0 0
  %124 = vmatprep.subr.bf16.mxu0 0
  %125 = vmatpush1.bf16.msra.mxu0 0
  %126 = vmatprep.subr.bf16.mxu0 0
  %127 = vmatpush1.bf16.msra.mxu0 0
  %128 = vmatprep.mubr.bf16.mxu0 0
  %129 = vmatmul.mubr.bf16.gmra.mrb[0].mxu0 %v94
  %v130 = vpop.f32.mrb[0].mxu0
  %v131 = vadd.f32 0.0, %v130
  %v132 = vpop.f32.mrb[0].mxu0
  %v133 = vpop.f32.mrb[0].mxu0
  %v134 = vadd.f32 0.0, %v133
  %v135 = vpop.f32.mrb[0].mxu0
  %136 = vdwg.mxu0
  %v137 = vld [vmem:[%s4 + $0x18] sm:$0x1]
  %v138 = vlaneseq
  %v139 = vshrl.u32 %v138, 7
  %v140 = vsub.s32 0, %v139
  %v141 = vrot.slane %v137, %v140
  %v142 = vadd.f32 %v131, %v141
  %v143 = vadd.f32 %v134, %v141
  %v144 = vpack.c.bf16 %v142, %v142
  %v145 = vpack.c.bf16 %v143, %v143
  %v146 = vld [vmem:[%s4 + $0x6] sm:$0x1]
  %v147 = vld [vmem:[%s4 + $0x7] sm:$0x1]
  %v148 = vsel %vm92, %v23, 0.0
  %149 = vadd.xlane.f32.xlu0 %v148
  %v150 = vpop.xlane.xlu0 %149
  %v151 = vsel %vm92, %v24, 0.0
  %152 = vadd.xlane.f32.xlu0 %v151
  %v153 = vpop.xlane.xlu0 %152
  %v154 = vrcp.pop 32.0
  %v155 = vmul.f32 %v150, %v154
  %v156 = vmul.f32 %v153, %v154
  %v157 = vsub.f32 %v23, %v155
  %v158 = vsub.f32 %v24, %v156
  %v159 = vmul.f32 %v157, %v157
  %v160 = vmul.f32 %v158, %v158
  %v161 = vsel %vm92, %v159, 0.0
  %162 = vadd.xlane.f32.xlu0 %v161
  %v163 = vpop.xlane.xlu0 %162
  %v164 = vsel %vm92, %v160, 0.0
  %165 = vadd.xlane.f32.xlu0 %v164
  %v166 = vpop.xlane.xlu0 %165
  %v167 = vmul.f32 %v163, %v154
  %v168 = vmul.f32 %v166, %v154
  %v169 = vadd.f32 %v167, 1e-06
  %v170 = vadd.f32 %v168, 1e-06
  %v171 = vrsqrt.pop %v169
  %v172 = vrsqrt.pop %v170
  %v173 = vmul.f32 %v157, %v171
  %v174 = vmul.f32 %v158, %v172
  %v175 = vlaneseq
  %v176 = vshrl.u32 %v175, 7
  %v177 = vsub.s32 0, %v176
  %v178 = vrot.slane %v146, %v177
  %v179 = vmul.f32 %v173, %v178
  %v180 = vmul.f32 %v174, %v178
  %v181 = vlaneseq
  %v182 = vshrl.u32 %v181, 7
  %v183 = vsub.s32 0, %v182
  %v184 = vrot.slane %v147, %v183
  %v185 = vadd.f32 %v179, %v184
  %v186 = vadd.f32 %v180, %v184
  %v187 = vpack.c.bf16 %v185, %v185
  %v188 = vpack.c.bf16 %v186, %v186
  %v189 = vld [vmem:[%s3] sm:$0xf]
  %v190 = vld [vmem:[%s3 + $0x4] sm:$0xf]
  %v191 = vld [vmem:[%s3 + $0x8] sm:$0xf]
  %v192 = vld [vmem:[%s3 + $0xc] sm:$0xf]
  %v195 = vunpack.c.l.b16 %v187
  %v196 = vunpack.c.l.b16 %v188
  %v197 = vpack.c.b16 %v196, %v195
  %v202 = vunpack.c.l.b16 %v189
  %v203 = vunpack.c.l.b16 %v190
  %v204 = vunpack.c.l.b16 %v191
  %v205 = vunpack.c.l.b16 %v192
  %v206 = vpack.c.b16 %v203, %v202
  %v207 = vpack.c.b16 %v205, %v204
  %v211 = vsel %vm92, %v197, 0
  %213 = vmatprep.subr.bf16.mxu0 0
  %214 = vmatpush1.bf16.msra.mxu0 %v206
  %215 = vmatprep.subr.bf16.mxu0 0
  %216 = vmatpush1.bf16.msra.mxu0 %v207
  %217 = vmatprep.subr.bf16.mxu0 0
  %218 = vmatpush1.bf16.msra.mxu0 0
  %219 = vmatprep.subr.bf16.mxu0 0
  %220 = vmatpush1.bf16.msra.mxu0 0
  %221 = vmatprep.subr.bf16.mxu0 0
  %222 = vmatpush1.bf16.msra.mxu0 0
  %223 = vmatprep.subr.bf16.mxu0 0
  %224 = vmatpush1.bf16.msra.mxu0 0
  %225 = vmatprep.subr.bf16.mxu0 0
  %226 = vmatpush1.bf16.msra.mxu0 0
  %227 = vmatprep.subr.bf16.mxu0 0
  %228 = vmatpush1.bf16.msra.mxu0 0
  %229 = vmatprep.subr.bf16.mxu0 0
  %230 = vmatpush1.bf16.msra.mxu0 0
  %231 = vmatprep.subr.bf16.mxu0 0
  %232 = vmatpush1.bf16.msra.mxu0 0
  %233 = vmatprep.subr.bf16.mxu0 0
  %234 = vmatpush1.bf16.msra.mxu0 0
  %235 = vmatprep.subr.bf16.mxu0 0
  %236 = vmatpush1.bf16.msra.mxu0 0
  %237 = vmatprep.subr.bf16.mxu0 0
  %238 = vmatpush1.bf16.msra.mxu0 0
  %239 = vmatprep.subr.bf16.mxu0 0
  %240 = vmatpush1.bf16.msra.mxu0 0
  %241 = vmatprep.subr.bf16.mxu0 0
  %242 = vmatpush1.bf16.msra.mxu0 0
  %243 = vmatprep.subr.bf16.mxu0 0
  %244 = vmatpush1.bf16.msra.mxu0 0
  %245 = vmatprep.mubr.bf16.mxu0 0
  %246 = vmatmul.mubr.bf16.gmra.mrb[0].mxu0 %v211
  %v247 = vpop.f32.mrb[0].mxu0
  %v248 = vadd.f32 0.0, %v247
  %v249 = vpop.f32.mrb[0].mxu0
  %v250 = vpop.f32.mrb[0].mxu0
  %v251 = vadd.f32 0.0, %v250
  %v252 = vpop.f32.mrb[0].mxu0
  %253 = vdwg.mxu0
  %v254 = vld [vmem:[%s4] sm:$0x1]
  %v255 = vlaneseq
  %v256 = vshrl.u32 %v255, 7
  %v257 = vsub.s32 0, %v256
  %v258 = vrot.slane %v254, %v257
  %v259 = vadd.f32 %v248, %v258
  %v260 = vadd.f32 %v251, %v258
  %v261 = vpack.c.bf16 %v259, %v259
  %v262 = vpack.c.bf16 %v260, %v260
  %264 = vrot.lane.b32.xlu0 %v261, 96
  %v265 = vpop.permute.xlu0 %264
  %vm266 = vcmask 64512
  %v268 = vsel %vm266, %v261, 0
  %v271 = vsel %vm266, %v265, 0
  %273 = vmatprep.subr.bf16.mxu0 0
  %274 = vmatpush1.bf16.xpose.msra.mxu0 %v271
  %275 = vmatprep.subr.bf16.mxu0 0
  %276 = vmatpush1.bf16.xpose.msra.mxu0 0
  %277 = vmatprep.subr.bf16.mxu0 0
  %278 = vmatpush1.bf16.xpose.msra.mxu0 0
  %279 = vmatprep.subr.bf16.mxu0 0
  %280 = vmatpush1.bf16.xpose.msra.mxu0 0
  %281 = vmatprep.subr.bf16.mxu0 0
  %282 = vmatpush1.bf16.xpose.msra.mxu0 0
  %283 = vmatprep.subr.bf16.mxu0 0
  %284 = vmatpush1.bf16.xpose.msra.mxu0 0
  %285 = vmatprep.subr.bf16.mxu0 0
  %286 = vmatpush1.bf16.xpose.msra.mxu0 0
  %287 = vmatprep.subr.bf16.mxu0 0
  %288 = vmatpush1.bf16.xpose.msra.mxu0 0
  %289 = vmatprep.subr.bf16.mxu0 0
  %290 = vmatpush1.bf16.xpose.msra.mxu0 0
  %291 = vmatprep.subr.bf16.mxu0 0
  %292 = vmatpush1.bf16.xpose.msra.mxu0 0
  %293 = vmatprep.subr.bf16.mxu0 0
  %294 = vmatpush1.bf16.xpose.msra.mxu0 0
  %295 = vmatprep.subr.bf16.mxu0 0
  %296 = vmatpush1.bf16.xpose.msra.mxu0 0
  %297 = vmatprep.subr.bf16.mxu0 0
  %298 = vmatpush1.bf16.xpose.msra.mxu0 0
  %299 = vmatprep.subr.bf16.mxu0 0
  %300 = vmatpush1.bf16.xpose.msra.mxu0 0
  %301 = vmatprep.subr.bf16.mxu0 0
  %302 = vmatpush1.bf16.xpose.msra.mxu0 0
  %303 = vmatprep.subr.bf16.mxu0 0
  %304 = vmatpush1.bf16.xpose.msra.mxu0 0
  %305 = vmatprep.mubr.bf16.mxu0 0
  %306 = vmatmul.mubr.bf16.gmra.mrb[0].mxu0 %v268
  %v307 = vpop.f32.mrb[0].mxu0
  %v308 = vadd.f32 0.0, %v307
  %v309 = vpop.f32.mrb[0].mxu0
  %v310 = vpop.f32.mrb[0].mxu0
  %v311 = vpop.f32.mrb[0].mxu0
  %312 = vdwg.mxu0
  %314 = vrot.lane.b32.xlu0 %v262, 96
  %v315 = vpop.permute.xlu0 %314
  %v317 = vsel %vm266, %v262, 0
  %v320 = vsel %vm266, %v315, 0
  %322 = vmatprep.subr.bf16.mxu0 0
  %323 = vmatpush1.bf16.xpose.msra.mxu0 %v320
  %324 = vmatprep.subr.bf16.mxu0 0
  %325 = vmatpush1.bf16.xpose.msra.mxu0 0
  %326 = vmatprep.subr.bf16.mxu0 0
  %327 = vmatpush1.bf16.xpose.msra.mxu0 0
  %328 = vmatprep.subr.bf16.mxu0 0
  %329 = vmatpush1.bf16.xpose.msra.mxu0 0
  %330 = vmatprep.subr.bf16.mxu0 0
  %331 = vmatpush1.bf16.xpose.msra.mxu0 0
  %332 = vmatprep.subr.bf16.mxu0 0
  %333 = vmatpush1.bf16.xpose.msra.mxu0 0
  %334 = vmatprep.subr.bf16.mxu0 0
  %335 = vmatpush1.bf16.xpose.msra.mxu0 0
  %336 = vmatprep.subr.bf16.mxu0 0
  %337 = vmatpush1.bf16.xpose.msra.mxu0 0
  %338 = vmatprep.subr.bf16.mxu0 0
  %339 = vmatpush1.bf16.xpose.msra.mxu0 0
  %340 = vmatprep.subr.bf16.mxu0 0
  %341 = vmatpush1.bf16.xpose.msra.mxu0 0
  %342 = vmatprep.subr.bf16.mxu0 0
  %343 = vmatpush1.bf16.xpose.msra.mxu0 0
  %344 = vmatprep.subr.bf16.mxu0 0
  %345 = vmatpush1.bf16.xpose.msra.mxu0 0
  %346 = vmatprep.subr.bf16.mxu0 0
  %347 = vmatpush1.bf16.xpose.msra.mxu0 0
  %348 = vmatprep.subr.bf16.mxu0 0
  %349 = vmatpush1.bf16.xpose.msra.mxu0 0
  %350 = vmatprep.subr.bf16.mxu0 0
  %351 = vmatpush1.bf16.xpose.msra.mxu0 0
  %352 = vmatprep.subr.bf16.mxu0 0
  %353 = vmatpush1.bf16.xpose.msra.mxu0 0
  %354 = vmatprep.mubr.bf16.mxu0 0
  %355 = vmatmul.mubr.bf16.gmra.mrb[0].mxu0 %v317
  %v356 = vpop.f32.mrb[0].mxu0
  %v357 = vadd.f32 0.0, %v356
  %v358 = vpop.f32.mrb[0].mxu0
  %v359 = vpop.f32.mrb[0].mxu0
  %v360 = vpop.f32.mrb[0].mxu0
  %361 = vdwg.mxu0
  %362 = vrot.lane.b32.xlu0 %v261, 120
  %v363 = vpop.permute.xlu0 %362
  %364 = vrot.lane.b32.xlu0 %v261, 88
  %v365 = vpop.permute.xlu0 %364
  %v367 = vsel %vm266, %v363, 0
  %v370 = vsel %vm266, %v365, 0
  %372 = vmatprep.subr.bf16.mxu0 0
  %373 = vmatpush1.bf16.xpose.msra.mxu0 %v370
  %374 = vmatprep.subr.bf16.mxu0 0
  %375 = vmatpush1.bf16.xpose.msra.mxu0 0
  %376 = vmatprep.subr.bf16.mxu0 0
  %377 = vmatpush1.bf16.xpose.msra.mxu0 0
  %378 = vmatprep.subr.bf16.mxu0 0
  %379 = vmatpush1.bf16.xpose.msra.mxu0 0
  %380 = vmatprep.subr.bf16.mxu0 0
  %381 = vmatpush1.bf16.xpose.msra.mxu0 0
  %382 = vmatprep.subr.bf16.mxu0 0
  %383 = vmatpush1.bf16.xpose.msra.mxu0 0
  %384 = vmatprep.subr.bf16.mxu0 0
  %385 = vmatpush1.bf16.xpose.msra.mxu0 0
  %386 = vmatprep.subr.bf16.mxu0 0
  %387 = vmatpush1.bf16.xpose.msra.mxu0 0
  %388 = vmatprep.subr.bf16.mxu0 0
  %389 = vmatpush1.bf16.xpose.msra.mxu0 0
  %390 = vmatprep.subr.bf16.mxu0 0
  %391 = vmatpush1.bf16.xpose.msra.mxu0 0
  %392 = vmatprep.subr.bf16.mxu0 0
  %393 = vmatpush1.bf16.xpose.msra.mxu0 0
  %394 = vmatprep.subr.bf16.mxu0 0
  %395 = vmatpush1.bf16.xpose.msra.mxu0 0
  %396 = vmatprep.subr.bf16.mxu0 0
  %397 = vmatpush1.bf16.xpose.msra.mxu0 0
  %398 = vmatprep.subr.bf16.mxu0 0
  %399 = vmatpush1.bf16.xpose.msra.mxu0 0
  %400 = vmatprep.subr.bf16.mxu0 0
  %401 = vmatpush1.bf16.xpose.msra.mxu0 0
  %402 = vmatprep.subr.bf16.mxu0 0
  %403 = vmatpush1.bf16.xpose.msra.mxu0 0
  %404 = vmatprep.mubr.bf16.mxu0 0
  %405 = vmatmul.mubr.bf16.gmra.mrb[0].mxu0 %v367
  %v406 = vpop.f32.mrb[0].mxu0
  %v407 = vadd.f32 0.0, %v406
  %v408 = vpop.f32.mrb[0].mxu0
  %v409 = vpop.f32.mrb[0].mxu0
  %v410 = vpop.f32.mrb[0].mxu0
  %411 = vdwg.mxu0
  %412 = vrot.lane.b32.xlu0 %v262, 120
  %v413 = vpop.permute.xlu0 %412
  %414 = vrot.lane.b32.xlu0 %v262, 88
  %v415 = vpop.permute.xlu0 %414
  %v417 = vsel %vm266, %v413, 0
  %v420 = vsel %vm266, %v415, 0
  %422 = vmatprep.subr.bf16.mxu0 0
  %423 = vmatpush1.bf16.xpose.msra.mxu0 %v420
  %424 = vmatprep.subr.bf16.mxu0 0
  %425 = vmatpush1.bf16.xpose.msra.mxu0 0
  %426 = vmatprep.subr.bf16.mxu0 0
  %427 = vmatpush1.bf16.xpose.msra.mxu0 0
  %428 = vmatprep.subr.bf16.mxu0 0
  %429 = vmatpush1.bf16.xpose.msra.mxu0 0
  %430 = vmatprep.subr.bf16.mxu0 0
  %431 = vmatpush1.bf16.xpose.msra.mxu0 0
  %432 = vmatprep.subr.bf16.mxu0 0
  %433 = vmatpush1.bf16.xpose.msra.mxu0 0
  %434 = vmatprep.subr.bf16.mxu0 0
  %435 = vmatpush1.bf16.xpose.msra.mxu0 0
  %436 = vmatprep.subr.bf16.mxu0 0
  %437 = vmatpush1.bf16.xpose.msra.mxu0 0
  %438 = vmatprep.subr.bf16.mxu0 0
  %439 = vmatpush1.bf16.xpose.msra.mxu0 0
  %440 = vmatprep.subr.bf16.mxu0 0
  %441 = vmatpush1.bf16.xpose.msra.mxu0 0
  %442 = vmatprep.subr.bf16.mxu0 0
  %443 = vmatpush1.bf16.xpose.msra.mxu0 0
  %444 = vmatprep.subr.bf16.mxu0 0
  %445 = vmatpush1.bf16.xpose.msra.mxu0 0
  %446 = vmatprep.subr.bf16.mxu0 0
  %447 = vmatpush1.bf16.xpose.msra.mxu0 0
  %448 = vmatprep.subr.bf16.mxu0 0
  %449 = vmatpush1.bf16.xpose.msra.mxu0 0
  %450 = vmatprep.subr.bf16.mxu0 0
  %451 = vmatpush1.bf16.xpose.msra.mxu0 0
  %452 = vmatprep.subr.bf16.mxu0 0
  %453 = vmatpush1.bf16.xpose.msra.mxu0 0
  %454 = vmatprep.mubr.bf16.mxu0 0
  %455 = vmatmul.mubr.bf16.gmra.mrb[0].mxu0 %v417
  %v456 = vpop.f32.mrb[0].mxu0
  %v457 = vadd.f32 0.0, %v456
  %v458 = vpop.f32.mrb[0].mxu0
  %v459 = vpop.f32.mrb[0].mxu0
  %v460 = vpop.f32.mrb[0].mxu0
  %461 = vdwg.mxu0
  %462 = vrot.lane.b32.xlu0 %v261, 112
  %v463 = vpop.permute.xlu0 %462
  %464 = vrot.lane.b32.xlu0 %v261, 80
  %v465 = vpop.permute.xlu0 %464
  %v467 = vsel %vm266, %v463, 0
  %v470 = vsel %vm266, %v465, 0
  %472 = vmatprep.subr.bf16.mxu0 0
  %473 = vmatpush1.bf16.xpose.msra.mxu0 %v470
  %474 = vmatprep.subr.bf16.mxu0 0
  %475 = vmatpush1.bf16.xpose.msra.mxu0 0
  %476 = vmatprep.subr.bf16.mxu0 0
  %477 = vmatpush1.bf16.xpose.msra.mxu0 0
  %478 = vmatprep.subr.bf16.mxu0 0
  %479 = vmatpush1.bf16.xpose.msra.mxu0 0
  %480 = vmatprep.subr.bf16.mxu0 0
  %481 = vmatpush1.bf16.xpose.msra.mxu0 0
  %482 = vmatprep.subr.bf16.mxu0 0
  %483 = vmatpush1.bf16.xpose.msra.mxu0 0
  %484 = vmatprep.subr.bf16.mxu0 0
  %485 = vmatpush1.bf16.xpose.msra.mxu0 0
  %486 = vmatprep.subr.bf16.mxu0 0
  %487 = vmatpush1.bf16.xpose.msra.mxu0 0
  %488 = vmatprep.subr.bf16.mxu0 0
  %489 = vmatpush1.bf16.xpose.msra.mxu0 0
  %490 = vmatprep.subr.bf16.mxu0 0
  %491 = vmatpush1.bf16.xpose.msra.mxu0 0
  %492 = vmatprep.subr.bf16.mxu0 0
  %493 = vmatpush1.bf16.xpose.msra.mxu0 0
  %494 = vmatprep.subr.bf16.mxu0 0
  %495 = vmatpush1.bf16.xpose.msra.mxu0 0
  %496 = vmatprep.subr.bf16.mxu0 0
  %497 = vmatpush1.bf16.xpose.msra.mxu0 0
  %498 = vmatprep.subr.bf16.mxu0 0
  %499 = vmatpush1.bf16.xpose.msra.mxu0 0
  %500 = vmatprep.subr.bf16.mxu0 0
  %501 = vmatpush1.bf16.xpose.msra.mxu0 0
  %502 = vmatprep.subr.bf16.mxu0 0
  %503 = vmatpush1.bf16.xpose.msra.mxu0 0
  %504 = vmatprep.mubr.bf16.mxu0 0
  %505 = vmatmul.mubr.bf16.gmra.mrb[0].mxu0 %v467
  %v506 = vpop.f32.mrb[0].mxu0
  %v507 = vadd.f32 0.0, %v506
  %v508 = vpop.f32.mrb[0].mxu0
  %v509 = vpop.f32.mrb[0].mxu0
  %v510 = vpop.f32.mrb[0].mxu0
  %511 = vdwg.mxu0
  %512 = vrot.lane.b32.xlu0 %v262, 112
  %v513 = vpop.permute.xlu0 %512
  %514 = vrot.lane.b32.xlu0 %v262, 80
  %v515 = vpop.permute.xlu0 %514
  %v517 = vsel %vm266, %v513, 0
  %v520 = vsel %vm266, %v515, 0
  %522 = vmatprep.subr.bf16.mxu0 0
  %523 = vmatpush1.bf16.xpose.msra.mxu0 %v520
  %524 = vmatprep.subr.bf16.mxu0 0
  %525 = vmatpush1.bf16.xpose.msra.mxu0 0
  %526 = vmatprep.subr.bf16.mxu0 0
  %527 = vmatpush1.bf16.xpose.msra.mxu0 0
  %528 = vmatprep.subr.bf16.mxu0 0
  %529 = vmatpush1.bf16.xpose.msra.mxu0 0
  %530 = vmatprep.subr.bf16.mxu0 0
  %531 = vmatpush1.bf16.xpose.msra.mxu0 0
  %532 = vmatprep.subr.bf16.mxu0 0
  %533 = vmatpush1.bf16.xpose.msra.mxu0 0
  %534 = vmatprep.subr.bf16.mxu0 0
  %535 = vmatpush1.bf16.xpose.msra.mxu0 0
  %536 = vmatprep.subr.bf16.mxu0 0
  %537 = vmatpush1.bf16.xpose.msra.mxu0 0
  %538 = vmatprep.subr.bf16.mxu0 0
  %539 = vmatpush1.bf16.xpose.msra.mxu0 0
  %540 = vmatprep.subr.bf16.mxu0 0
  %541 = vmatpush1.bf16.xpose.msra.mxu0 0
  %542 = vmatprep.subr.bf16.mxu0 0
  %543 = vmatpush1.bf16.xpose.msra.mxu0 0
  %544 = vmatprep.subr.bf16.mxu0 0
  %545 = vmatpush1.bf16.xpose.msra.mxu0 0
  %546 = vmatprep.subr.bf16.mxu0 0
  %547 = vmatpush1.bf16.xpose.msra.mxu0 0
  %548 = vmatprep.subr.bf16.mxu0 0
  %549 = vmatpush1.bf16.xpose.msra.mxu0 0
  %550 = vmatprep.subr.bf16.mxu0 0
  %551 = vmatpush1.bf16.xpose.msra.mxu0 0
  %552 = vmatprep.subr.bf16.mxu0 0
  %553 = vmatpush1.bf16.xpose.msra.mxu0 0
  %554 = vmatprep.mubr.bf16.mxu0 0
  %555 = vmatmul.mubr.bf16.gmra.mrb[0].mxu0 %v517
  %v556 = vpop.f32.mrb[0].mxu0
  %v557 = vadd.f32 0.0, %v556
  %v558 = vpop.f32.mrb[0].mxu0
  %v559 = vpop.f32.mrb[0].mxu0
  %v560 = vpop.f32.mrb[0].mxu0
  %561 = vdwg.mxu0
  %562 = vrot.lane.b32.xlu0 %v261, 104
  %v563 = vpop.permute.xlu0 %562
  %564 = vrot.lane.b32.xlu0 %v261, 72
  %v565 = vpop.permute.xlu0 %564
  %v567 = vsel %vm266, %v563, 0
  %v570 = vsel %vm266, %v565, 0
  %572 = vmatprep.subr.bf16.mxu0 0
  %573 = vmatpush1.bf16.xpose.msra.mxu0 %v570
  %574 = vmatprep.subr.bf16.mxu0 0
  %575 = vmatpush1.bf16.xpose.msra.mxu0 0
  %576 = vmatprep.subr.bf16.mxu0 0
  %577 = vmatpush1.bf16.xpose.msra.mxu0 0
  %578 = vmatprep.subr.bf16.mxu0 0
  %579 = vmatpush1.bf16.xpose.msra.mxu0 0
  %580 = vmatprep.subr.bf16.mxu0 0
  %581 = vmatpush1.bf16.xpose.msra.mxu0 0
  %582 = vmatprep.subr.bf16.mxu0 0
  %583 = vmatpush1.bf16.xpose.msra.mxu0 0
  %584 = vmatprep.subr.bf16.mxu0 0
  %585 = vmatpush1.bf16.xpose.msra.mxu0 0
  %586 = vmatprep.subr.bf16.mxu0 0
  %587 = vmatpush1.bf16.xpose.msra.mxu0 0
  %588 = vmatprep.subr.bf16.mxu0 0
  %589 = vmatpush1.bf16.xpose.msra.mxu0 0
  %590 = vmatprep.subr.bf16.mxu0 0
  %591 = vmatpush1.bf16.xpose.msra.mxu0 0
  %592 = vmatprep.subr.bf16.mxu0 0
  %593 = vmatpush1.bf16.xpose.msra.mxu0 0
  %594 = vmatprep.subr.bf16.mxu0 0
  %595 = vmatpush1.bf16.xpose.msra.mxu0 0
  %596 = vmatprep.subr.bf16.mxu0 0
  %597 = vmatpush1.bf16.xpose.msra.mxu0 0
  %598 = vmatprep.subr.bf16.mxu0 0
  %599 = vmatpush1.bf16.xpose.msra.mxu0 0
  %600 = vmatprep.subr.bf16.mxu0 0
  %601 = vmatpush1.bf16.xpose.msra.mxu0 0
  %602 = vmatprep.subr.bf16.mxu0 0
  %603 = vmatpush1.bf16.xpose.msra.mxu0 0
  %604 = vmatprep.mubr.bf16.mxu0 0
  %605 = vmatmul.mubr.bf16.gmra.mrb[0].mxu0 %v567
  %v606 = vpop.f32.mrb[0].mxu0
  %v607 = vadd.f32 0.0, %v606
  %v608 = vpop.f32.mrb[0].mxu0
  %v609 = vpop.f32.mrb[0].mxu0
  %v610 = vpop.f32.mrb[0].mxu0
  %611 = vdwg.mxu0
  %612 = vrot.lane.b32.xlu0 %v262, 104
  %v613 = vpop.permute.xlu0 %612
  %614 = vrot.lane.b32.xlu0 %v262, 72
  %v615 = vpop.permute.xlu0 %614
  %v617 = vsel %vm266, %v613, 0
  %v620 = vsel %vm266, %v615, 0
  %622 = vmatprep.subr.bf16.mxu0 0
  %623 = vmatpush1.bf16.xpose.msra.mxu0 %v620
  %624 = vmatprep.subr.bf16.mxu0 0
  %625 = vmatpush1.bf16.xpose.msra.mxu0 0
  %626 = vmatprep.subr.bf16.mxu0 0
  %627 = vmatpush1.bf16.xpose.msra.mxu0 0
  %628 = vmatprep.subr.bf16.mxu0 0
  %629 = vmatpush1.bf16.xpose.msra.mxu0 0
  %630 = vmatprep.subr.bf16.mxu0 0
  %631 = vmatpush1.bf16.xpose.msra.mxu0 0
  %632 = vmatprep.subr.bf16.mxu0 0
  %633 = vmatpush1.bf16.xpose.msra.mxu0 0
  %634 = vmatprep.subr.bf16.mxu0 0
  %635 = vmatpush1.bf16.xpose.msra.mxu0 0
  %636 = vmatprep.subr.bf16.mxu0 0
  %637 = vmatpush1.bf16.xpose.msra.mxu0 0
  %638 = vmatprep.subr.bf16.mxu0 0
  %639 = vmatpush1.bf16.xpose.msra.mxu0 0
  %640 = vmatprep.subr.bf16.mxu0 0
  %641 = vmatpush1.bf16.xpose.msra.mxu0 0
  %642 = vmatprep.subr.bf16.mxu0 0
  %643 = vmatpush1.bf16.xpose.msra.mxu0 0
  %644 = vmatprep.subr.bf16.mxu0 0
  %645 = vmatpush1.bf16.xpose.msra.mxu0 0
  %646 = vmatprep.subr.bf16.mxu0 0
  %647 = vmatpush1.bf16.xpose.msra.mxu0 0
  %648 = vmatprep.subr.bf16.mxu0 0
  %649 = vmatpush1.bf16.xpose.msra.mxu0 0
  %650 = vmatprep.subr.bf16.mxu0 0
  %651 = vmatpush1.bf16.xpose.msra.mxu0 0
  %652 = vmatprep.subr.bf16.mxu0 0
  %653 = vmatpush1.bf16.xpose.msra.mxu0 0
  %654 = vmatprep.mubr.bf16.mxu0 0
  %655 = vmatmul.mubr.bf16.gmra.mrb[0].mxu0 %v617
  %v656 = vpop.f32.mrb[0].mxu0
  %v657 = vadd.f32 0.0, %v656
  %v658 = vpop.f32.mrb[0].mxu0
  %v659 = vpop.f32.mrb[0].mxu0
  %v660 = vpop.f32.mrb[0].mxu0
  %661 = vdwg.mxu0
  %v662 = vadd.f32 %v308, %v65
  %v663 = vadd.f32 %v407, %v65
  %v664 = vadd.f32 %v507, %v65
  %v665 = vadd.f32 %v607, %v65
  %v666 = vadd.f32 %v357, %v66
  %v667 = vadd.f32 %v457, %v66
  %v668 = vadd.f32 %v557, %v66
  %v669 = vadd.f32 %v657, %v66
  %v670 = vsel %vm266, %v662, -inf
  %671 = vmax.xlane.f32.xlu0 %v670
  %v672 = vpop.xlane.xlu0 %671
  %v673 = vsel %vm266, %v663, -inf
  %674 = vmax.xlane.f32.xlu0 %v673
  %v675 = vpop.xlane.xlu0 %674
  %v676 = vsel %vm266, %v664, -inf
  %677 = vmax.xlane.f32.xlu0 %v676
  %v678 = vpop.xlane.xlu0 %677
  %v679 = vsel %vm266, %v665, -inf
  %680 = vmax.xlane.f32.xlu0 %v679
  %v681 = vpop.xlane.xlu0 %680
  %v682 = vsel %vm266, %v666, -inf
  %683 = vmax.xlane.f32.xlu0 %v682
  %v684 = vpop.xlane.xlu0 %683
  %v685 = vsel %vm266, %v667, -inf
  %686 = vmax.xlane.f32.xlu0 %v685
  %v687 = vpop.xlane.xlu0 %686
  %v688 = vsel %vm266, %v668, -inf
  %689 = vmax.xlane.f32.xlu0 %v688
  %v690 = vpop.xlane.xlu0 %689
  %v691 = vsel %vm266, %v669, -inf
  %692 = vmax.xlane.f32.xlu0 %v691
  %v693 = vpop.xlane.xlu0 %692
  %v694 = vsub.f32 %v662, %v672
  %v695 = vsub.f32 %v663, %v675
  %v696 = vsub.f32 %v664, %v678
  %v697 = vsub.f32 %v665, %v681
  %v698 = vsub.f32 %v666, %v684
  %v699 = vsub.f32 %v667, %v687
  %v700 = vsub.f32 %v668, %v690
  %v701 = vsub.f32 %v669, %v693
  %v702 = vmul.f32 %v694, 1.442695
  %v703 = vpow.pop %v702
  %v704 = vmul.f32 %v695, 1.442695
  %v705 = vpow.pop %v704
  %v706 = vmul.f32 %v696, 1.442695
  %v707 = vpow.pop %v706
  %v708 = vmul.f32 %v697, 1.442695
  %v709 = vpow.pop %v708
  %v710 = vmul.f32 %v698, 1.442695
  %v711 = vpow.pop %v710
  %v712 = vmul.f32 %v699, 1.442695
  %v713 = vpow.pop %v712
  %v714 = vmul.f32 %v700, 1.442695
  %v715 = vpow.pop %v714
  %v716 = vmul.f32 %v701, 1.442695
  %v717 = vpow.pop %v716
  %v718 = vsel %vm266, %v703, 0.0
  %719 = vadd.xlane.f32.xlu0 %v718
  %v720 = vpop.xlane.xlu0 %719
  %v721 = vsel %vm266, %v705, 0.0
  %722 = vadd.xlane.f32.xlu0 %v721
  %v723 = vpop.xlane.xlu0 %722
  %v724 = vsel %vm266, %v707, 0.0
  %725 = vadd.xlane.f32.xlu0 %v724
  %v726 = vpop.xlane.xlu0 %725
  %v727 = vsel %vm266, %v709, 0.0
  %728 = vadd.xlane.f32.xlu0 %v727
  %v729 = vpop.xlane.xlu0 %728
  %v730 = vsel %vm266, %v711, 0.0
  %731 = vadd.xlane.f32.xlu0 %v730
  %v732 = vpop.xlane.xlu0 %731
  %v733 = vsel %vm266, %v713, 0.0
  %734 = vadd.xlane.f32.xlu0 %v733
  %v735 = vpop.xlane.xlu0 %734
  %v736 = vsel %vm266, %v715, 0.0
  %737 = vadd.xlane.f32.xlu0 %v736
  %v738 = vpop.xlane.xlu0 %737
  %v739 = vsel %vm266, %v717, 0.0
  %740 = vadd.xlane.f32.xlu0 %v739
  %v741 = vpop.xlane.xlu0 %740
  %v742 = vrcp.pop %v720
  %v743 = vrcp.pop %v723
  %v744 = vrcp.pop %v726
  %v745 = vrcp.pop %v729
  %v746 = vrcp.pop %v732
  %v747 = vrcp.pop %v735
  %v748 = vrcp.pop %v738
  %v749 = vrcp.pop %v741
  %v750 = vmul.f32 %v703, %v742
  %v751 = vmul.f32 %v705, %v743
  %v752 = vmul.f32 %v707, %v744
  %v753 = vmul.f32 %v709, %v745
  %v754 = vmul.f32 %v711, %v746
  %v755 = vmul.f32 %v713, %v747
  %v756 = vmul.f32 %v715, %v748
  %v757 = vmul.f32 %v717, %v749
  %v758 = vpack.c.bf16 %v750, %v750
  %v759 = vpack.c.bf16 %v751, %v751
  %v760 = vpack.c.bf16 %v752, %v752
  %v761 = vpack.c.bf16 %v753, %v753
  %v762 = vpack.c.bf16 %v754, %v754
  %v763 = vpack.c.bf16 %v755, %v755
  %v764 = vpack.c.bf16 %v756, %v756
  %v765 = vpack.c.bf16 %v757, %v757
  %766 = vrot.lane.b32.xlu0 %v261, 64
  %v767 = vpop.permute.xlu0 %766
  %v769 = vsel %vm266, %v758, 0
  %vm771 = vcmask 1043456
  %v773 = vsel %vm771, %v767, 0
  %775 = vmatprep.subr.bf16.mxu0 0
  %776 = vmatpush1.bf16.msra.mxu0 %v773
  %777 = vmatprep.subr.bf16.mxu0 0
  %778 = vmatpush1.bf16.msra.mxu0 0
  %779 = vmatprep.subr.bf16.mxu0 0
  %780 = vmatpush1.bf16.msra.mxu0 0
  %781 = vmatprep.subr.bf16.mxu0 0
  %782 = vmatpush1.bf16.msra.mxu0 0
  %783 = vmatprep.subr.bf16.mxu0 0
  %784 = vmatpush1.bf16.msra.mxu0 0
  %785 = vmatprep.subr.bf16.mxu0 0
  %786 = vmatpush1.bf16.msra.mxu0 0
  %787 = vmatprep.subr.bf16.mxu0 0
  %788 = vmatpush1.bf16.msra.mxu0 0
  %789 = vmatprep.subr.bf16.mxu0 0
  %790 = vmatpush1.bf16.msra.mxu0 0
  %791 = vmatprep.subr.bf16.mxu0 0
  %792 = vmatpush1.bf16.msra.mxu0 0
  %793 = vmatprep.subr.bf16.mxu0 0
  %794 = vmatpush1.bf16.msra.mxu0 0
  %795 = vmatprep.subr.bf16.mxu0 0
  %796 = vmatpush1.bf16.msra.mxu0 0
  %797 = vmatprep.subr.bf16.mxu0 0
  %798 = vmatpush1.bf16.msra.mxu0 0
  %799 = vmatprep.subr.bf16.mxu0 0
  %800 = vmatpush1.bf16.msra.mxu0 0
  %801 = vmatprep.subr.bf16.mxu0 0
  %802 = vmatpush1.bf16.msra.mxu0 0
  %803 = vmatprep.subr.bf16.mxu0 0
  %804 = vmatpush1.bf16.msra.mxu0 0
  %805 = vmatprep.subr.bf16.mxu0 0
  %806 = vmatpush1.bf16.msra.mxu0 0
  %807 = vmatprep.mubr.bf16.mxu0 0
  %808 = vmatmul.mubr.bf16.gmra.mrb[0].mxu0 %v769
  %v809 = vpop.f32.mrb[0].mxu0
  %v810 = vadd.f32 0.0, %v809
  %v811 = vpop.f32.mrb[0].mxu0
  %v812 = vpop.f32.mrb[0].mxu0
  %v813 = vpop.f32.mrb[0].mxu0
  %814 = vdwg.mxu0
  %815 = vrot.lane.b32.xlu0 %v262, 64
  %v816 = vpop.permute.xlu0 %815
  %v818 = vsel %vm266, %v762, 0
  %v821 = vsel %vm771, %v816, 0
  %823 = vmatprep.subr.bf16.mxu0 0
  %824 = vmatpush1.bf16.msra.mxu0 %v821
  %825 = vmatprep.subr.bf16.mxu0 0
  %826 = vmatpush1.bf16.msra.mxu0 0
  %827 = vmatprep.subr.bf16.mxu0 0
  %828 = vmatpush1.bf16.msra.mxu0 0
  %829 = vmatprep.subr.bf16.mxu0 0
  %830 = vmatpush1.bf16.msra.mxu0 0
  %831 = vmatprep.subr.bf16.mxu0 0
  %832 = vmatpush1.bf16.msra.mxu0 0
  %833 = vmatprep.subr.bf16.mxu0 0
  %834 = vmatpush1.bf16.msra.mxu0 0
  %835 = vmatprep.subr.bf16.mxu0 0
  %836 = vmatpush1.bf16.msra.mxu0 0
  %837 = vmatprep.subr.bf16.mxu0 0
  %838 = vmatpush1.bf16.msra.mxu0 0
  %839 = vmatprep.subr.bf16.mxu0 0
  %840 = vmatpush1.bf16.msra.mxu0 0
  %841 = vmatprep.subr.bf16.mxu0 0
  %842 = vmatpush1.bf16.msra.mxu0 0
  %843 = vmatprep.subr.bf16.mxu0 0
  %844 = vmatpush1.bf16.msra.mxu0 0
  %845 = vmatprep.subr.bf16.mxu0 0
  %846 = vmatpush1.bf16.msra.mxu0 0
  %847 = vmatprep.subr.bf16.mxu0 0
  %848 = vmatpush1.bf16.msra.mxu0 0
  %849 = vmatprep.subr.bf16.mxu0 0
  %850 = vmatpush1.bf16.msra.mxu0 0
  %851 = vmatprep.subr.bf16.mxu0 0
  %852 = vmatpush1.bf16.msra.mxu0 0
  %853 = vmatprep.subr.bf16.mxu0 0
  %854 = vmatpush1.bf16.msra.mxu0 0
  %855 = vmatprep.mubr.bf16.mxu0 0
  %856 = vmatmul.mubr.bf16.gmra.mrb[0].mxu0 %v818
  %v857 = vpop.f32.mrb[0].mxu0
  %v858 = vadd.f32 0.0, %v857
  %v859 = vpop.f32.mrb[0].mxu0
  %v860 = vpop.f32.mrb[0].mxu0
  %v861 = vpop.f32.mrb[0].mxu0
  %862 = vdwg.mxu0
  %863 = vrot.lane.b32.xlu0 %v261, 56
  %v864 = vpop.permute.xlu0 %863
  %v866 = vsel %vm266, %v759, 0
  %v869 = vsel %vm771, %v864, 0
  %871 = vmatprep.subr.bf16.mxu0 0
  %872 = vmatpush1.bf16.msra.mxu0 %v869
  %873 = vmatprep.subr.bf16.mxu0 0
  %874 = vmatpush1.bf16.msra.mxu0 0
  %875 = vmatprep.subr.bf16.mxu0 0
  %876 = vmatpush1.bf16.msra.mxu0 0
  %877 = vmatprep.subr.bf16.mxu0 0
  %878 = vmatpush1.bf16.msra.mxu0 0
  %879 = vmatprep.subr.bf16.mxu0 0
  %880 = vmatpush1.bf16.msra.mxu0 0
  %881 = vmatprep.subr.bf16.mxu0 0
  %882 = vmatpush1.bf16.msra.mxu0 0
  %883 = vmatprep.subr.bf16.mxu0 0
  %884 = vmatpush1.bf16.msra.mxu0 0
  %885 = vmatprep.subr.bf16.mxu0 0
  %886 = vmatpush1.bf16.msra.mxu0 0
  %887 = vmatprep.subr.bf16.mxu0 0
  %888 = vmatpush1.bf16.msra.mxu0 0
  %889 = vmatprep.subr.bf16.mxu0 0
  %890 = vmatpush1.bf16.msra.mxu0 0
  %891 = vmatprep.subr.bf16.mxu0 0
  %892 = vmatpush1.bf16.msra.mxu0 0
  %893 = vmatprep.subr.bf16.mxu0 0
  %894 = vmatpush1.bf16.msra.mxu0 0
  %895 = vmatprep.subr.bf16.mxu0 0
  %896 = vmatpush1.bf16.msra.mxu0 0
  %897 = vmatprep.subr.bf16.mxu0 0
  %898 = vmatpush1.bf16.msra.mxu0 0
  %899 = vmatprep.subr.bf16.mxu0 0
  %900 = vmatpush1.bf16.msra.mxu0 0
  %901 = vmatprep.subr.bf16.mxu0 0
  %902 = vmatpush1.bf16.msra.mxu0 0
  %903 = vmatprep.mubr.bf16.mxu0 0
  %904 = vmatmul.mubr.bf16.gmra.mrb[0].mxu0 %v866
  %v905 = vpop.f32.mrb[0].mxu0
  %v906 = vadd.f32 0.0, %v905
  %v907 = vpop.f32.mrb[0].mxu0
  %v908 = vpop.f32.mrb[0].mxu0
  %v909 = vpop.f32.mrb[0].mxu0
  %910 = vdwg.mxu0
  %911 = vrot.lane.b32.xlu0 %v262, 56
  %v912 = vpop.permute.xlu0 %911
  %v914 = vsel %vm266, %v763, 0
  %v917 = vsel %vm771, %v912, 0
  %919 = vmatprep.subr.bf16.mxu0 0
  %920 = vmatpush1.bf16.msra.mxu0 %v917
  %921 = vmatprep.subr.bf16.mxu0 0
  %922 = vmatpush1.bf16.msra.mxu0 0
  %923 = vmatprep.subr.bf16.mxu0 0
  %924 = vmatpush1.bf16.msra.mxu0 0
  %925 = vmatprep.subr.bf16.mxu0 0
  %926 = vmatpush1.bf16.msra.mxu0 0
  %927 = vmatprep.subr.bf16.mxu0 0
  %928 = vmatpush1.bf16.msra.mxu0 0
  %929 = vmatprep.subr.bf16.mxu0 0
  %930 = vmatpush1.bf16.msra.mxu0 0
  %931 = vmatprep.subr.bf16.mxu0 0
  %932 = vmatpush1.bf16.msra.mxu0 0
  %933 = vmatprep.subr.bf16.mxu0 0
  %934 = vmatpush1.bf16.msra.mxu0 0
  %935 = vmatprep.subr.bf16.mxu0 0
  %936 = vmatpush1.bf16.msra.mxu0 0
  %937 = vmatprep.subr.bf16.mxu0 0
  %938 = vmatpush1.bf16.msra.mxu0 0
  %939 = vmatprep.subr.bf16.mxu0 0
  %940 = vmatpush1.bf16.msra.mxu0 0
  %941 = vmatprep.subr.bf16.mxu0 0
  %942 = vmatpush1.bf16.msra.mxu0 0
  %943 = vmatprep.subr.bf16.mxu0 0
  %944 = vmatpush1.bf16.msra.mxu0 0
  %945 = vmatprep.subr.bf16.mxu0 0
  %946 = vmatpush1.bf16.msra.mxu0 0
  %947 = vmatprep.subr.bf16.mxu0 0
  %948 = vmatpush1.bf16.msra.mxu0 0
  %949 = vmatprep.subr.bf16.mxu0 0
  %950 = vmatpush1.bf16.msra.mxu0 0
  %951 = vmatprep.mubr.bf16.mxu0 0
  %952 = vmatmul.mubr.bf16.gmra.mrb[0].mxu0 %v914
  %v953 = vpop.f32.mrb[0].mxu0
  %v954 = vadd.f32 0.0, %v953
  %v955 = vpop.f32.mrb[0].mxu0
  %v956 = vpop.f32.mrb[0].mxu0
  %v957 = vpop.f32.mrb[0].mxu0
  %958 = vdwg.mxu0
  %959 = vrot.lane.b32.xlu0 %v261, 48
  %v960 = vpop.permute.xlu0 %959
  %v962 = vsel %vm266, %v760, 0
  %v965 = vsel %vm771, %v960, 0
  %967 = vmatprep.subr.bf16.mxu0 0
  %968 = vmatpush1.bf16.msra.mxu0 %v965
  %969 = vmatprep.subr.bf16.mxu0 0
  %970 = vmatpush1.bf16.msra.mxu0 0
  %971 = vmatprep.subr.bf16.mxu0 0
  %972 = vmatpush1.bf16.msra.mxu0 0
  %973 = vmatprep.subr.bf16.mxu0 0
  %974 = vmatpush1.bf16.msra.mxu0 0
  %975 = vmatprep.subr.bf16.mxu0 0
  %976 = vmatpush1.bf16.msra.mxu0 0
  %977 = vmatprep.subr.bf16.mxu0 0
  %978 = vmatpush1.bf16.msra.mxu0 0
  %979 = vmatprep.subr.bf16.mxu0 0
  %980 = vmatpush1.bf16.msra.mxu0 0
  %981 = vmatprep.subr.bf16.mxu0 0
  %982 = vmatpush1.bf16.msra.mxu0 0
  %983 = vmatprep.subr.bf16.mxu0 0
  %984 = vmatpush1.bf16.msra.mxu0 0
  %985 = vmatprep.subr.bf16.mxu0 0
  %986 = vmatpush1.bf16.msra.mxu0 0
  %987 = vmatprep.subr.bf16.mxu0 0
  %988 = vmatpush1.bf16.msra.mxu0 0
  %989 = vmatprep.subr.bf16.mxu0 0
  %990 = vmatpush1.bf16.msra.mxu0 0
  %991 = vmatprep.subr.bf16.mxu0 0
  %992 = vmatpush1.bf16.msra.mxu0 0
  %993 = vmatprep.subr.bf16.mxu0 0
  %994 = vmatpush1.bf16.msra.mxu0 0
  %995 = vmatprep.subr.bf16.mxu0 0
  %996 = vmatpush1.bf16.msra.mxu0 0
  %997 = vmatprep.subr.bf16.mxu0 0
  %998 = vmatpush1.bf16.msra.mxu0 0
  %999 = vmatprep.mubr.bf16.mxu0 0
  %1000 = vmatmul.mubr.bf16.gmra.mrb[0].mxu0 %v962
  %v1001 = vpop.f32.mrb[0].mxu0
  %v1002 = vadd.f32 0.0, %v1001
  %v1003 = vpop.f32.mrb[0].mxu0
  %v1004 = vpop.f32.mrb[0].mxu0
  %v1005 = vpop.f32.mrb[0].mxu0
  %1006 = vdwg.mxu0
  %1007 = vrot.lane.b32.xlu0 %v262, 48
  %v1008 = vpop.permute.xlu0 %1007
  %v1010 = vsel %vm266, %v764, 0
  %v1013 = vsel %vm771, %v1008, 0
  %1015 = vmatprep.subr.bf16.mxu0 0
  %1016 = vmatpush1.bf16.msra.mxu0 %v1013
  %1017 = vmatprep.subr.bf16.mxu0 0
  %1018 = vmatpush1.bf16.msra.mxu0 0
  %1019 = vmatprep.subr.bf16.mxu0 0
  %1020 = vmatpush1.bf16.msra.mxu0 0
  %1021 = vmatprep.subr.bf16.mxu0 0
  %1022 = vmatpush1.bf16.msra.mxu0 0
  %1023 = vmatprep.subr.bf16.mxu0 0
  %1024 = vmatpush1.bf16.msra.mxu0 0
  %1025 = vmatprep.subr.bf16.mxu0 0
  %1026 = vmatpush1.bf16.msra.mxu0 0
  %1027 = vmatprep.subr.bf16.mxu0 0
  %1028 = vmatpush1.bf16.msra.mxu0 0
  %1029 = vmatprep.subr.bf16.mxu0 0
  %1030 = vmatpush1.bf16.msra.mxu0 0
  %1031 = vmatprep.subr.bf16.mxu0 0
  %1032 = vmatpush1.bf16.msra.mxu0 0
  %1033 = vmatprep.subr.bf16.mxu0 0
  %1034 = vmatpush1.bf16.msra.mxu0 0
  %1035 = vmatprep.subr.bf16.mxu0 0
  %1036 = vmatpush1.bf16.msra.mxu0 0
  %1037 = vmatprep.subr.bf16.mxu0 0
  %1038 = vmatpush1.bf16.msra.mxu0 0
  %1039 = vmatprep.subr.bf16.mxu0 0
  %1040 = vmatpush1.bf16.msra.mxu0 0
  %1041 = vmatprep.subr.bf16.mxu0 0
  %1042 = vmatpush1.bf16.msra.mxu0 0
  %1043 = vmatprep.subr.bf16.mxu0 0
  %1044 = vmatpush1.bf16.msra.mxu0 0
  %1045 = vmatprep.subr.bf16.mxu0 0
  %1046 = vmatpush1.bf16.msra.mxu0 0
  %1047 = vmatprep.mubr.bf16.mxu0 0
  %1048 = vmatmul.mubr.bf16.gmra.mrb[0].mxu0 %v1010
  %v1049 = vpop.f32.mrb[0].mxu0
  %v1050 = vadd.f32 0.0, %v1049
  %v1051 = vpop.f32.mrb[0].mxu0
  %v1052 = vpop.f32.mrb[0].mxu0
  %v1053 = vpop.f32.mrb[0].mxu0
  %1054 = vdwg.mxu0
  %1055 = vrot.lane.b32.xlu0 %v261, 40
  %v1056 = vpop.permute.xlu0 %1055
  %v1058 = vsel %vm266, %v761, 0
  %v1061 = vsel %vm771, %v1056, 0
  %1063 = vmatprep.subr.bf16.mxu0 0
  %1064 = vmatpush1.bf16.msra.mxu0 %v1061
  %1065 = vmatprep.subr.bf16.mxu0 0
  %1066 = vmatpush1.bf16.msra.mxu0 0
  %1067 = vmatprep.subr.bf16.mxu0 0
  %1068 = vmatpush1.bf16.msra.mxu0 0
  %1069 = vmatprep.subr.bf16.mxu0 0
  %1070 = vmatpush1.bf16.msra.mxu0 0
  %1071 = vmatprep.subr.bf16.mxu0 0
  %1072 = vmatpush1.bf16.msra.mxu0 0
  %1073 = vmatprep.subr.bf16.mxu0 0
  %1074 = vmatpush1.bf16.msra.mxu0 0
  %1075 = vmatprep.subr.bf16.mxu0 0
  %1076 = vmatpush1.bf16.msra.mxu0 0
  %1077 = vmatprep.subr.bf16.mxu0 0
  %1078 = vmatpush1.bf16.msra.mxu0 0
  %1079 = vmatprep.subr.bf16.mxu0 0
  %1080 = vmatpush1.bf16.msra.mxu0 0
  %1081 = vmatprep.subr.bf16.mxu0 0
  %1082 = vmatpush1.bf16.msra.mxu0 0
  %1083 = vmatprep.subr.bf16.mxu0 0
  %1084 = vmatpush1.bf16.msra.mxu0 0
  %1085 = vmatprep.subr.bf16.mxu0 0
  %1086 = vmatpush1.bf16.msra.mxu0 0
  %1087 = vmatprep.subr.bf16.mxu0 0
  %1088 = vmatpush1.bf16.msra.mxu0 0
  %1089 = vmatprep.subr.bf16.mxu0 0
  %1090 = vmatpush1.bf16.msra.mxu0 0
  %1091 = vmatprep.subr.bf16.mxu0 0
  %1092 = vmatpush1.bf16.msra.mxu0 0
  %1093 = vmatprep.subr.bf16.mxu0 0
  %1094 = vmatpush1.bf16.msra.mxu0 0
  %1095 = vmatprep.mubr.bf16.mxu0 0
  %1096 = vmatmul.mubr.bf16.gmra.mrb[0].mxu0 %v1058
  %v1097 = vpop.f32.mrb[0].mxu0
  %v1098 = vadd.f32 0.0, %v1097
  %v1099 = vpop.f32.mrb[0].mxu0
  %v1100 = vpop.f32.mrb[0].mxu0
  %v1101 = vpop.f32.mrb[0].mxu0
  %1102 = vdwg.mxu0
  %1103 = vrot.lane.b32.xlu0 %v262, 40
  %v1104 = vpop.permute.xlu0 %1103
  %v1106 = vsel %vm266, %v765, 0
  %v1109 = vsel %vm771, %v1104, 0
  %1111 = vmatprep.subr.bf16.mxu0 0
  %1112 = vmatpush1.bf16.msra.mxu0 %v1109
  %1113 = vmatprep.subr.bf16.mxu0 0
  %1114 = vmatpush1.bf16.msra.mxu0 0
  %1115 = vmatprep.subr.bf16.mxu0 0
  %1116 = vmatpush1.bf16.msra.mxu0 0
  %1117 = vmatprep.subr.bf16.mxu0 0
  %1118 = vmatpush1.bf16.msra.mxu0 0
  %1119 = vmatprep.subr.bf16.mxu0 0
  %1120 = vmatpush1.bf16.msra.mxu0 0
  %1121 = vmatprep.subr.bf16.mxu0 0
  %1122 = vmatpush1.bf16.msra.mxu0 0
  %1123 = vmatprep.subr.bf16.mxu0 0
  %1124 = vmatpush1.bf16.msra.mxu0 0
  %1125 = vmatprep.subr.bf16.mxu0 0
  %1126 = vmatpush1.bf16.msra.mxu0 0
  %1127 = vmatprep.subr.bf16.mxu0 0
  %1128 = vmatpush1.bf16.msra.mxu0 0
  %1129 = vmatprep.subr.bf16.mxu0 0
  %1130 = vmatpush1.bf16.msra.mxu0 0
  %1131 = vmatprep.subr.bf16.mxu0 0
  %1132 = vmatpush1.bf16.msra.mxu0 0
  %1133 = vmatprep.subr.bf16.mxu0 0
  %1134 = vmatpush1.bf16.msra.mxu0 0
  %1135 = vmatprep.subr.bf16.mxu0 0
  %1136 = vmatpush1.bf16.msra.mxu0 0
  %1137 = vmatprep.subr.bf16.mxu0 0
  %1138 = vmatpush1.bf16.msra.mxu0 0
  %1139 = vmatprep.subr.bf16.mxu0 0
  %1140 = vmatpush1.bf16.msra.mxu0 0
  %1141 = vmatprep.subr.bf16.mxu0 0
  %1142 = vmatpush1.bf16.msra.mxu0 0
  %1143 = vmatprep.mubr.bf16.mxu0 0
  %1144 = vmatmul.mubr.bf16.gmra.mrb[0].mxu0 %v1106
  %v1145 = vpop.f32.mrb[0].mxu0
  %v1146 = vadd.f32 0.0, %v1145
  %v1147 = vpop.f32.mrb[0].mxu0
  %v1148 = vpop.f32.mrb[0].mxu0
  %v1149 = vpop.f32.mrb[0].mxu0
  %1150 = vdwg.mxu0
  %1153 = vrot.lane.b32.xlu0 %v906, 8
  %v1154 = vpop.permute.xlu0 %1153
  %1155 = vrot.lane.b32.xlu0 %v954, 8
  %v1156 = vpop.permute.xlu0 %1155
  %1161 = vrot.lane.b32.xlu0 %v1002, 16
  %v1162 = vpop.permute.xlu0 %1161
  %1163 = vrot.lane.b32.xlu0 %v1050, 16
  %v1164 = vpop.permute.xlu0 %1163
  %1169 = vrot.lane.b32.xlu0 %v1098, 24
  %v1170 = vpop.permute.xlu0 %1169
  %1171 = vrot.lane.b32.xlu0 %v1146, 24
  %v1172 = vpop.permute.xlu0 %1171
  %v1175 = vsel %vm266, %v810, %v1154
  %v1176 = vsel %vm266, %v858, %v1156
  %vm1177 = vcmask 130048
  %v1178 = vsel %vm1177, %v1175, %v1162
  %v1179 = vsel %vm1177, %v1176, %v1164
  %vm1180 = vcmask 195584
  %v1181 = vsel %vm1180, %v1178, %v1170
  %v1182 = vsel %vm1180, %v1179, %v1172
  %v1183 = vpack.c.bf16 %v1181, %v1181
  %v1184 = vpack.c.bf16 %v1182, %v1182
  %v1185 = vld [vmem:[%s3 + $0x10] sm:$0xf]
  %v1186 = vld [vmem:[%s3 + $0x14] sm:$0xf]
  %v1187 = vld [vmem:[%s3 + $0x18] sm:$0xf]
  %v1188 = vld [vmem:[%s3 + $0x1c] sm:$0xf]
  %v1191 = vunpack.c.l.b16 %v1183
  %v1192 = vunpack.c.l.b16 %v1184
  %v1193 = vpack.c.b16 %v1192, %v1191
  %v1198 = vunpack.c.l.b16 %v1185
  %v1199 = vunpack.c.l.b16 %v1186
  %v1200 = vunpack.c.l.b16 %v1187
  %v1201 = vunpack.c.l.b16 %v1188
  %v1202 = vpack.c.b16 %v1199, %v1198
  %v1203 = vpack.c.b16 %v1201, %v1200
  %v1207 = vsel %vm92, %v1193, 0
  %1209 = vmatprep.subr.bf16.mxu0 0
  %1210 = vmatpush1.bf16.msra.mxu0 %v1202
  %1211 = vmatprep.subr.bf16.mxu0 0
  %1212 = vmatpush1.bf16.msra.mxu0 %v1203
  %1213 = vmatprep.subr.bf16.mxu0 0
  %1214 = vmatpush1.bf16.msra.mxu0 0
  %1215 = vmatprep.subr.bf16.mxu0 0
  %1216 = vmatpush1.bf16.msra.mxu0 0
  %1217 = vmatprep.subr.bf16.mxu0 0
  %1218 = vmatpush1.bf16.msra.mxu0 0
  %1219 = vmatprep.subr.bf16.mxu0 0
  %1220 = vmatpush1.bf16.msra.mxu0 0
  %1221 = vmatprep.subr.bf16.mxu0 0
  %1222 = vmatpush1.bf16.msra.mxu0 0
  %1223 = vmatprep.subr.bf16.mxu0 0
  %1224 = vmatpush1.bf16.msra.mxu0 0
  %1225 = vmatprep.subr.bf16.mxu0 0
  %1226 = vmatpush1.bf16.msra.mxu0 0
  %1227 = vmatprep.subr.bf16.mxu0 0
  %1228 = vmatpush1.bf16.msra.mxu0 0
  %1229 = vmatprep.subr.bf16.mxu0 0
  %1230 = vmatpush1.bf16.msra.mxu0 0
  %1231 = vmatprep.subr.bf16.mxu0 0
  %1232 = vmatpush1.bf16.msra.mxu0 0
  %1233 = vmatprep.subr.bf16.mxu0 0
  %1234 = vmatpush1.bf16.msra.mxu0 0
  %1235 = vmatprep.subr.bf16.mxu0 0
  %1236 = vmatpush1.bf16.msra.mxu0 0
  %1237 = vmatprep.subr.bf16.mxu0 0
  %1238 = vmatpush1.bf16.msra.mxu0 0
  %1239 = vmatprep.subr.bf16.mxu0 0
  %1240 = vmatpush1.bf16.msra.mxu0 0
  %1241 = vmatprep.mubr.bf16.mxu0 0
  %1242 = vmatmul.mubr.bf16.gmra.mrb[0].mxu0 %v1207
  %v1243 = vpop.f32.mrb[0].mxu0
  %v1244 = vadd.f32 0.0, %v1243
  %v1245 = vpop.f32.mrb[0].mxu0
  %v1246 = vpop.f32.mrb[0].mxu0
  %v1247 = vadd.f32 0.0, %v1246
  %v1248 = vpop.f32.mrb[0].mxu0
  %1249 = vdwg.mxu0
  %v1250 = vadd.f32 %v23, %v1244
  %v1251 = vadd.f32 %v24, %v1247
  %v1252 = vld [vmem:[%s4 + $0x1] sm:$0x1]
  %v1253 = vlaneseq
  %v1254 = vshrl.u32 %v1253, 7
  %v1255 = vsub.s32 0, %v1254
  %v1256 = vrot.slane %v1252, %v1255
  %v1257 = vadd.f32 %v1250, %v1256
  %v1258 = vadd.f32 %v1251, %v1256
  %v1259 = vld [vmem:[%s4 + $0x8] sm:$0x1]
  %v1260 = vld [vmem:[%s4 + $0x9] sm:$0x1]
  %v1261 = vsel %vm92, %v1257, 0.0
  %1262 = vadd.xlane.f32.xlu0 %v1261
  %v1263 = vpop.xlane.xlu0 %1262
  %v1264 = vsel %vm92, %v1258, 0.0
  %1265 = vadd.xlane.f32.xlu0 %v1264
  %v1266 = vpop.xlane.xlu0 %1265
  %v1267 = vmul.f32 %v1263, %v154
  %v1268 = vmul.f32 %v1266, %v154
  %v1269 = vsub.f32 %v1257, %v1267
  %v1270 = vsub.f32 %v1258, %v1268
  %v1271 = vmul.f32 %v1269, %v1269
  %v1272 = vmul.f32 %v1270, %v1270
  %v1273 = vsel %vm92, %v1271, 0.0
  %1274 = vadd.xlane.f32.xlu0 %v1273
  %v1275 = vpop.xlane.xlu0 %1274
  %v1276 = vsel %vm92, %v1272, 0.0
  %1277 = vadd.xlane.f32.xlu0 %v1276
  %v1278 = vpop.xlane.xlu0 %1277
  %v1279 = vmul.f32 %v1275, %v154
  %v1280 = vmul.f32 %v1278, %v154
  %v1281 = vadd.f32 %v1279, 1e-06
  %v1282 = vadd.f32 %v1280, 1e-06
  %v1283 = vrsqrt.pop %v1281
  %v1284 = vrsqrt.pop %v1282
  %v1285 = vmul.f32 %v1269, %v1283
  %v1286 = vmul.f32 %v1270, %v1284
  %v1287 = vlaneseq
  %v1288 = vshrl.u32 %v1287, 7
  %v1289 = vsub.s32 0, %v1288
  %v1290 = vrot.slane %v1259, %v1289
  %v1291 = vmul.f32 %v1285, %v1290
  %v1292 = vmul.f32 %v1286, %v1290
  %v1293 = vlaneseq
  %v1294 = vshrl.u32 %v1293, 7
  %v1295 = vsub.s32 0, %v1294
  %v1296 = vrot.slane %v1260, %v1295
  %v1297 = vadd.f32 %v1291, %v1296
  %v1298 = vadd.f32 %v1292, %v1296
  %v1299 = vpack.c.bf16 %v1297, %v1297
  %v1300 = vpack.c.bf16 %v1298, %v1298
  %v1301 = vld [vmem:[%s3 + $0x20] sm:$0xf]
  %v1302 = vld [vmem:[%s3 + $0x24] sm:$0xf]
  %v1303 = vld [vmem:[%s3 + $0x28] sm:$0xf]
  %v1304 = vld [vmem:[%s3 + $0x2c] sm:$0xf]
  %v1307 = vunpack.c.l.b16 %v1299
  %v1308 = vunpack.c.l.b16 %v1300
  %v1309 = vpack.c.b16 %v1308, %v1307
  %v1314 = vunpack.c.l.b16 %v1301
  %v1315 = vunpack.c.l.b16 %v1302
  %v1316 = vunpack.c.l.b16 %v1303
  %v1317 = vunpack.c.l.b16 %v1304
  %v1318 = vpack.c.b16 %v1315, %v1314
  %v1319 = vpack.c.b16 %v1317, %v1316
  %v1323 = vsel %vm92, %v1309, 0
  %1325 = vmatprep.subr.bf16.mxu0 0
  %1326 = vmatpush1.bf16.msra.mxu0 %v1318
  %1327 = vmatprep.subr.bf16.mxu0 0
  %1328 = vmatpush1.bf16.msra.mxu0 %v1319
  %1329 = vmatprep.subr.bf16.mxu0 0
  %1330 = vmatpush1.bf16.msra.mxu0 0
  %1331 = vmatprep.subr.bf16.mxu0 0
  %1332 = vmatpush1.bf16.msra.mxu0 0
  %1333 = vmatprep.subr.bf16.mxu0 0
  %1334 = vmatpush1.bf16.msra.mxu0 0
  %1335 = vmatprep.subr.bf16.mxu0 0
  %1336 = vmatpush1.bf16.msra.mxu0 0
  %1337 = vmatprep.subr.bf16.mxu0 0
  %1338 = vmatpush1.bf16.msra.mxu0 0
  %1339 = vmatprep.subr.bf16.mxu0 0
  %1340 = vmatpush1.bf16.msra.mxu0 0
  %1341 = vmatprep.subr.bf16.mxu0 0
  %1342 = vmatpush1.bf16.msra.mxu0 0
  %1343 = vmatprep.subr.bf16.mxu0 0
  %1344 = vmatpush1.bf16.msra.mxu0 0
  %1345 = vmatprep.subr.bf16.mxu0 0
  %1346 = vmatpush1.bf16.msra.mxu0 0
  %1347 = vmatprep.subr.bf16.mxu0 0
  %1348 = vmatpush1.bf16.msra.mxu0 0
  %1349 = vmatprep.subr.bf16.mxu0 0
  %1350 = vmatpush1.bf16.msra.mxu0 0
  %1351 = vmatprep.subr.bf16.mxu0 0
  %1352 = vmatpush1.bf16.msra.mxu0 0
  %1353 = vmatprep.subr.bf16.mxu0 0
  %1354 = vmatpush1.bf16.msra.mxu0 0
  %1355 = vmatprep.subr.bf16.mxu0 0
  %1356 = vmatpush1.bf16.msra.mxu0 0
  %1357 = vmatprep.mubr.bf16.mxu0 0
  %1358 = vmatmul.mubr.bf16.gmra.mrb[0].mxu0 %v1323
  %v1359 = vpop.f32.mrb[0].mxu0
  %v1360 = vadd.f32 0.0, %v1359
  %v1361 = vpop.f32.mrb[0].mxu0
  %v1362 = vpop.f32.mrb[0].mxu0
  %v1363 = vadd.f32 0.0, %v1362
  %v1364 = vpop.f32.mrb[0].mxu0
  %1365 = vdwg.mxu0
  %v1366 = vld [vmem:[%s4 + $0x2] sm:$0x1]
  %v1367 = vlaneseq
  %v1368 = vshrl.u32 %v1367, 7
  %v1369 = vsub.s32 0, %v1368
  %v1370 = vrot.slane %v1366, %v1369
  %v1371 = vadd.f32 %v1360, %v1370
  %v1372 = vadd.f32 %v1363, %v1370
  %v1373 = vpack.c.bf16 %v1371, %v1371
  %v1374 = vpack.c.bf16 %v1372, %v1372
  %v1376 = vsel %vm266, %v1373, 0
  %v1379 = vsel %vm266, %v144, 0
  %1381 = vmatprep.subr.bf16.mxu0 0
  %1382 = vmatpush1.bf16.xpose.msra.mxu0 %v1379
  %1383 = vmatprep.subr.bf16.mxu0 0
  %1384 = vmatpush1.bf16.xpose.msra.mxu0 0
  %1385 = vmatprep.subr.bf16.mxu0 0
  %1386 = vmatpush1.bf16.xpose.msra.mxu0 0
  %1387 = vmatprep.subr.bf16.mxu0 0
  %1388 = vmatpush1.bf16.xpose.msra.mxu0 0
  %1389 = vmatprep.subr.bf16.mxu0 0
  %1390 = vmatpush1.bf16.xpose.msra.mxu0 0
  %1391 = vmatprep.subr.bf16.mxu0 0
  %1392 = vmatpush1.bf16.xpose.msra.mxu0 0
  %1393 = vmatprep.subr.bf16.mxu0 0
  %1394 = vmatpush1.bf16.xpose.msra.mxu0 0
  %1395 = vmatprep.subr.bf16.mxu0 0
  %1396 = vmatpush1.bf16.xpose.msra.mxu0 0
  %1397 = vmatprep.subr.bf16.mxu0 0
  %1398 = vmatpush1.bf16.xpose.msra.mxu0 0
  %1399 = vmatprep.subr.bf16.mxu0 0
  %1400 = vmatpush1.bf16.xpose.msra.mxu0 0
  %1401 = vmatprep.subr.bf16.mxu0 0
  %1402 = vmatpush1.bf16.xpose.msra.mxu0 0
  %1403 = vmatprep.subr.bf16.mxu0 0
  %1404 = vmatpush1.bf16.xpose.msra.mxu0 0
  %1405 = vmatprep.subr.bf16.mxu0 0
  %1406 = vmatpush1.bf16.xpose.msra.mxu0 0
  %1407 = vmatprep.subr.bf16.mxu0 0
  %1408 = vmatpush1.bf16.xpose.msra.mxu0 0
  %1409 = vmatprep.subr.bf16.mxu0 0
  %1410 = vmatpush1.bf16.xpose.msra.mxu0 0
  %1411 = vmatprep.subr.bf16.mxu0 0
  %1412 = vmatpush1.bf16.xpose.msra.mxu0 0
  %1413 = vmatprep.mubr.bf16.mxu0 0
  %1414 = vmatmul.mubr.bf16.gmra.mrb[0].mxu0 %v1376
  %v1415 = vpop.f32.mrb[0].mxu0
  %v1416 = vadd.f32 0.0, %v1415
  %v1417 = vpop.f32.mrb[0].mxu0
  %v1418 = vpop.f32.mrb[0].mxu0
  %v1419 = vpop.f32.mrb[0].mxu0
  %1420 = vdwg.mxu0
  %v1422 = vsel %vm266, %v1374, 0
  %v1425 = vsel %vm266, %v145, 0
  %1427 = vmatprep.subr.bf16.mxu0 0
  %1428 = vmatpush1.bf16.xpose.msra.mxu0 %v1425
  %1429 = vmatprep.subr.bf16.mxu0 0
  %1430 = vmatpush1.bf16.xpose.msra.mxu0 0
  %1431 = vmatprep.subr.bf16.mxu0 0
  %1432 = vmatpush1.bf16.xpose.msra.mxu0 0
  %1433 = vmatprep.subr.bf16.mxu0 0
  %1434 = vmatpush1.bf16.xpose.msra.mxu0 0
  %1435 = vmatprep.subr.bf16.mxu0 0
  %1436 = vmatpush1.bf16.xpose.msra.mxu0 0
  %1437 = vmatprep.subr.bf16.mxu0 0
  %1438 = vmatpush1.bf16.xpose.msra.mxu0 0
  %1439 = vmatprep.subr.bf16.mxu0 0
  %1440 = vmatpush1.bf16.xpose.msra.mxu0 0
  %1441 = vmatprep.subr.bf16.mxu0 0
  %1442 = vmatpush1.bf16.xpose.msra.mxu0 0
  %1443 = vmatprep.subr.bf16.mxu0 0
  %1444 = vmatpush1.bf16.xpose.msra.mxu0 0
  %1445 = vmatprep.subr.bf16.mxu0 0
  %1446 = vmatpush1.bf16.xpose.msra.mxu0 0
  %1447 = vmatprep.subr.bf16.mxu0 0
  %1448 = vmatpush1.bf16.xpose.msra.mxu0 0
  %1449 = vmatprep.subr.bf16.mxu0 0
  %1450 = vmatpush1.bf16.xpose.msra.mxu0 0
  %1451 = vmatprep.subr.bf16.mxu0 0
  %1452 = vmatpush1.bf16.xpose.msra.mxu0 0
  %1453 = vmatprep.subr.bf16.mxu0 0
  %1454 = vmatpush1.bf16.xpose.msra.mxu0 0
  %1455 = vmatprep.subr.bf16.mxu0 0
  %1456 = vmatpush1.bf16.xpose.msra.mxu0 0
  %1457 = vmatprep.subr.bf16.mxu0 0
  %1458 = vmatpush1.bf16.xpose.msra.mxu0 0
  %1459 = vmatprep.mubr.bf16.mxu0 0
  %1460 = vmatmul.mubr.bf16.gmra.mrb[0].mxu0 %v1422
  %v1461 = vpop.f32.mrb[0].mxu0
  %v1462 = vadd.f32 0.0, %v1461
  %v1463 = vpop.f32.mrb[0].mxu0
  %v1464 = vpop.f32.mrb[0].mxu0
  %v1465 = vpop.f32.mrb[0].mxu0
  %1466 = vdwg.mxu0
  %1468 = vrot.lane.b32.xlu0 %v1373, 120
  %v1469 = vpop.permute.xlu0 %1468
  %1471 = vrot.lane.b32.xlu0 %v144, 120
  %v1472 = vpop.permute.xlu0 %1471
  %v1474 = vsel %vm266, %v1469, 0
  %v1477 = vsel %vm266, %v1472, 0
  %1479 = vmatprep.subr.bf16.mxu0 0
  %1480 = vmatpush1.bf16.xpose.msra.mxu0 %v1477
  %1481 = vmatprep.subr.bf16.mxu0 0
  %1482 = vmatpush1.bf16.xpose.msra.mxu0 0
  %1483 = vmatprep.subr.bf16.mxu0 0
  %1484 = vmatpush1.bf16.xpose.msra.mxu0 0
  %1485 = vmatprep.subr.bf16.mxu0 0
  %1486 = vmatpush1.bf16.xpose.msra.mxu0 0
  %1487 = vmatprep.subr.bf16.mxu0 0
  %1488 = vmatpush1.bf16.xpose.msra.mxu0 0
  %1489 = vmatprep.subr.bf16.mxu0 0
  %1490 = vmatpush1.bf16.xpose.msra.mxu0 0
  %1491 = vmatprep.subr.bf16.mxu0 0
  %1492 = vmatpush1.bf16.xpose.msra.mxu0 0
  %1493 = vmatprep.subr.bf16.mxu0 0
  %1494 = vmatpush1.bf16.xpose.msra.mxu0 0
  %1495 = vmatprep.subr.bf16.mxu0 0
  %1496 = vmatpush1.bf16.xpose.msra.mxu0 0
  %1497 = vmatprep.subr.bf16.mxu0 0
  %1498 = vmatpush1.bf16.xpose.msra.mxu0 0
  %1499 = vmatprep.subr.bf16.mxu0 0
  %1500 = vmatpush1.bf16.xpose.msra.mxu0 0
  %1501 = vmatprep.subr.bf16.mxu0 0
  %1502 = vmatpush1.bf16.xpose.msra.mxu0 0
  %1503 = vmatprep.subr.bf16.mxu0 0
  %1504 = vmatpush1.bf16.xpose.msra.mxu0 0
  %1505 = vmatprep.subr.bf16.mxu0 0
  %1506 = vmatpush1.bf16.xpose.msra.mxu0 0
  %1507 = vmatprep.subr.bf16.mxu0 0
  %1508 = vmatpush1.bf16.xpose.msra.mxu0 0
  %1509 = vmatprep.subr.bf16.mxu0 0
  %1510 = vmatpush1.bf16.xpose.msra.mxu0 0
  %1511 = vmatprep.mubr.bf16.mxu0 0
  %1512 = vmatmul.mubr.bf16.gmra.mrb[0].mxu0 %v1474
  %v1513 = vpop.f32.mrb[0].mxu0
  %v1514 = vadd.f32 0.0, %v1513
  %v1515 = vpop.f32.mrb[0].mxu0
  %v1516 = vpop.f32.mrb[0].mxu0
  %v1517 = vpop.f32.mrb[0].mxu0
  %1518 = vdwg.mxu0
  %1520 = vrot.lane.b32.xlu0 %v1374, 120
  %v1521 = vpop.permute.xlu0 %1520
  %1523 = vrot.lane.b32.xlu0 %v145, 120
  %v1524 = vpop.permute.xlu0 %1523
  %v1526 = vsel %vm266, %v1521, 0
  %v1529 = vsel %vm266, %v1524, 0
  %1531 = vmatprep.subr.bf16.mxu0 0
  %1532 = vmatpush1.bf16.xpose.msra.mxu0 %v1529
  %1533 = vmatprep.subr.bf16.mxu0 0
  %1534 = vmatpush1.bf16.xpose.msra.mxu0 0
  %1535 = vmatprep.subr.bf16.mxu0 0
  %1536 = vmatpush1.bf16.xpose.msra.mxu0 0
  %1537 = vmatprep.subr.bf16.mxu0 0
  %1538 = vmatpush1.bf16.xpose.msra.mxu0 0
  %1539 = vmatprep.subr.bf16.mxu0 0
  %1540 = vmatpush1.bf16.xpose.msra.mxu0 0
  %1541 = vmatprep.subr.bf16.mxu0 0
  %1542 = vmatpush1.bf16.xpose.msra.mxu0 0
  %1543 = vmatprep.subr.bf16.mxu0 0
  %1544 = vmatpush1.bf16.xpose.msra.mxu0 0
  %1545 = vmatprep.subr.bf16.mxu0 0
  %1546 = vmatpush1.bf16.xpose.msra.mxu0 0
  %1547 = vmatprep.subr.bf16.mxu0 0
  %1548 = vmatpush1.bf16.xpose.msra.mxu0 0
  %1549 = vmatprep.subr.bf16.mxu0 0
  %1550 = vmatpush1.bf16.xpose.msra.mxu0 0
  %1551 = vmatprep.subr.bf16.mxu0 0
  %1552 = vmatpush1.bf16.xpose.msra.mxu0 0
  %1553 = vmatprep.subr.bf16.mxu0 0
  %1554 = vmatpush1.bf16.xpose.msra.mxu0 0
  %1555 = vmatprep.subr.bf16.mxu0 0
  %1556 = vmatpush1.bf16.xpose.msra.mxu0 0
  %1557 = vmatprep.subr.bf16.mxu0 0
  %1558 = vmatpush1.bf16.xpose.msra.mxu0 0
  %1559 = vmatprep.subr.bf16.mxu0 0
  %1560 = vmatpush1.bf16.xpose.msra.mxu0 0
  %1561 = vmatprep.subr.bf16.mxu0 0
  %1562 = vmatpush1.bf16.xpose.msra.mxu0 0
  %1563 = vmatprep.mubr.bf16.mxu0 0
  %1564 = vmatmul.mubr.bf16.gmra.mrb[0].mxu0 %v1526
  %v1565 = vpop.f32.mrb[0].mxu0
  %v1566 = vadd.f32 0.0, %v1565
  %v1567 = vpop.f32.mrb[0].mxu0
  %v1568 = vpop.f32.mrb[0].mxu0
  %v1569 = vpop.f32.mrb[0].mxu0
  %1570 = vdwg.mxu0
  %1571 = vrot.lane.b32.xlu0 %v1373, 112
  %v1572 = vpop.permute.xlu0 %1571
  %1573 = vrot.lane.b32.xlu0 %v144, 112
  %v1574 = vpop.permute.xlu0 %1573
  %v1576 = vsel %vm266, %v1572, 0
  %v1579 = vsel %vm266, %v1574, 0
  %1581 = vmatprep.subr.bf16.mxu0 0
  %1582 = vmatpush1.bf16.xpose.msra.mxu0 %v1579
  %1583 = vmatprep.subr.bf16.mxu0 0
  %1584 = vmatpush1.bf16.xpose.msra.mxu0 0
  %1585 = vmatprep.subr.bf16.mxu0 0
  %1586 = vmatpush1.bf16.xpose.msra.mxu0 0
  %1587 = vmatprep.subr.bf16.mxu0 0
  %1588 = vmatpush1.bf16.xpose.msra.mxu0 0
  %1589 = vmatprep.subr.bf16.mxu0 0
  %1590 = vmatpush1.bf16.xpose.msra.mxu0 0
  %1591 = vmatprep.subr.bf16.mxu0 0
  %1592 = vmatpush1.bf16.xpose.msra.mxu0 0
  %1593 = vmatprep.subr.bf16.mxu0 0
  %1594 = vmatpush1.bf16.xpose.msra.mxu0 0
  %1595 = vmatprep.subr.bf16.mxu0 0
  %1596 = vmatpush1.bf16.xpose.msra.mxu0 0
  %1597 = vmatprep.subr.bf16.mxu0 0
  %1598 = vmatpush1.bf16.xpose.msra.mxu0 0
  %1599 = vmatprep.subr.bf16.mxu0 0
  %1600 = vmatpush1.bf16.xpose.msra.mxu0 0
  %1601 = vmatprep.subr.bf16.mxu0 0
  %1602 = vmatpush1.bf16.xpose.msra.mxu0 0
  %1603 = vmatprep.subr.bf16.mxu0 0
  %1604 = vmatpush1.bf16.xpose.msra.mxu0 0
  %1605 = vmatprep.subr.bf16.mxu0 0
  %1606 = vmatpush1.bf16.xpose.msra.mxu0 0
  %1607 = vmatprep.subr.bf16.mxu0 0
  %1608 = vmatpush1.bf16.xpose.msra.mxu0 0
  %1609 = vmatprep.subr.bf16.mxu0 0
  %1610 = vmatpush1.bf16.xpose.msra.mxu0 0
  %1611 = vmatprep.subr.bf16.mxu0 0
  %1612 = vmatpush1.bf16.xpose.msra.mxu0 0
  %1613 = vmatprep.mubr.bf16.mxu0 0
  %1614 = vmatmul.mubr.bf16.gmra.mrb[0].mxu0 %v1576
  %v1615 = vpop.f32.mrb[0].mxu0
  %v1616 = vadd.f32 0.0, %v1615
  %v1617 = vpop.f32.mrb[0].mxu0
  %v1618 = vpop.f32.mrb[0].mxu0
  %v1619 = vpop.f32.mrb[0].mxu0
  %1620 = vdwg.mxu0
  %1621 = vrot.lane.b32.xlu0 %v1374, 112
  %v1622 = vpop.permute.xlu0 %1621
  %1623 = vrot.lane.b32.xlu0 %v145, 112
  %v1624 = vpop.permute.xlu0 %1623
  %v1626 = vsel %vm266, %v1622, 0
  %v1629 = vsel %vm266, %v1624, 0
  %1631 = vmatprep.subr.bf16.mxu0 0
  %1632 = vmatpush1.bf16.xpose.msra.mxu0 %v1629
  %1633 = vmatprep.subr.bf16.mxu0 0
  %1634 = vmatpush1.bf16.xpose.msra.mxu0 0
  %1635 = vmatprep.subr.bf16.mxu0 0
  %1636 = vmatpush1.bf16.xpose.msra.mxu0 0
  %1637 = vmatprep.subr.bf16.mxu0 0
  %1638 = vmatpush1.bf16.xpose.msra.mxu0 0
  %1639 = vmatprep.subr.bf16.mxu0 0
  %1640 = vmatpush1.bf16.xpose.msra.mxu0 0
  %1641 = vmatprep.subr.bf16.mxu0 0
  %1642 = vmatpush1.bf16.xpose.msra.mxu0 0
  %1643 = vmatprep.subr.bf16.mxu0 0
  %1644 = vmatpush1.bf16.xpose.msra.mxu0 0
  %1645 = vmatprep.subr.bf16.mxu0 0
  %1646 = vmatpush1.bf16.xpose.msra.mxu0 0
  %1647 = vmatprep.subr.bf16.mxu0 0
  %1648 = vmatpush1.bf16.xpose.msra.mxu0 0
  %1649 = vmatprep.subr.bf16.mxu0 0
  %1650 = vmatpush1.bf16.xpose.msra.mxu0 0
  %1651 = vmatprep.subr.bf16.mxu0 0
  %1652 = vmatpush1.bf16.xpose.msra.mxu0 0
  %1653 = vmatprep.subr.bf16.mxu0 0
  %1654 = vmatpush1.bf16.xpose.msra.mxu0 0
  %1655 = vmatprep.subr.bf16.mxu0 0
  %1656 = vmatpush1.bf16.xpose.msra.mxu0 0
  %1657 = vmatprep.subr.bf16.mxu0 0
  %1658 = vmatpush1.bf16.xpose.msra.mxu0 0
  %1659 = vmatprep.subr.bf16.mxu0 0
  %1660 = vmatpush1.bf16.xpose.msra.mxu0 0
  %1661 = vmatprep.subr.bf16.mxu0 0
  %1662 = vmatpush1.bf16.xpose.msra.mxu0 0
  %1663 = vmatprep.mubr.bf16.mxu0 0
  %1664 = vmatmul.mubr.bf16.gmra.mrb[0].mxu0 %v1626
  %v1665 = vpop.f32.mrb[0].mxu0
  %v1666 = vadd.f32 0.0, %v1665
  %v1667 = vpop.f32.mrb[0].mxu0
  %v1668 = vpop.f32.mrb[0].mxu0
  %v1669 = vpop.f32.mrb[0].mxu0
  %1670 = vdwg.mxu0
  %1671 = vrot.lane.b32.xlu0 %v1373, 104
  %v1672 = vpop.permute.xlu0 %1671
  %1673 = vrot.lane.b32.xlu0 %v144, 104
  %v1674 = vpop.permute.xlu0 %1673
  %v1676 = vsel %vm266, %v1672, 0
  %v1679 = vsel %vm266, %v1674, 0
  %1681 = vmatprep.subr.bf16.mxu0 0
  %1682 = vmatpush1.bf16.xpose.msra.mxu0 %v1679
  %1683 = vmatprep.subr.bf16.mxu0 0
  %1684 = vmatpush1.bf16.xpose.msra.mxu0 0
  %1685 = vmatprep.subr.bf16.mxu0 0
  %1686 = vmatpush1.bf16.xpose.msra.mxu0 0
  %1687 = vmatprep.subr.bf16.mxu0 0
  %1688 = vmatpush1.bf16.xpose.msra.mxu0 0
  %1689 = vmatprep.subr.bf16.mxu0 0
  %1690 = vmatpush1.bf16.xpose.msra.mxu0 0
  %1691 = vmatprep.subr.bf16.mxu0 0
  %1692 = vmatpush1.bf16.xpose.msra.mxu0 0
  %1693 = vmatprep.subr.bf16.mxu0 0
  %1694 = vmatpush1.bf16.xpose.msra.mxu0 0
  %1695 = vmatprep.subr.bf16.mxu0 0
  %1696 = vmatpush1.bf16.xpose.msra.mxu0 0
  %1697 = vmatprep.subr.bf16.mxu0 0
  %1698 = vmatpush1.bf16.xpose.msra.mxu0 0
  %1699 = vmatprep.subr.bf16.mxu0 0
  %1700 = vmatpush1.bf16.xpose.msra.mxu0 0
  %1701 = vmatprep.subr.bf16.mxu0 0
  %1702 = vmatpush1.bf16.xpose.msra.mxu0 0
  %1703 = vmatprep.subr.bf16.mxu0 0
  %1704 = vmatpush1.bf16.xpose.msra.mxu0 0
  %1705 = vmatprep.subr.bf16.mxu0 0
  %1706 = vmatpush1.bf16.xpose.msra.mxu0 0
  %1707 = vmatprep.subr.bf16.mxu0 0
  %1708 = vmatpush1.bf16.xpose.msra.mxu0 0
  %1709 = vmatprep.subr.bf16.mxu0 0
  %1710 = vmatpush1.bf16.xpose.msra.mxu0 0
  %1711 = vmatprep.subr.bf16.mxu0 0
  %1712 = vmatpush1.bf16.xpose.msra.mxu0 0
  %1713 = vmatprep.mubr.bf16.mxu0 0
  %1714 = vmatmul.mubr.bf16.gmra.mrb[0].mxu0 %v1676
  %v1715 = vpop.f32.mrb[0].mxu0
  %v1716 = vadd.f32 0.0, %v1715
  %v1717 = vpop.f32.mrb[0].mxu0
  %v1718 = vpop.f32.mrb[0].mxu0
  %v1719 = vpop.f32.mrb[0].mxu0
  %1720 = vdwg.mxu0
  %1721 = vrot.lane.b32.xlu0 %v1374, 104
  %v1722 = vpop.permute.xlu0 %1721
  %1723 = vrot.lane.b32.xlu0 %v145, 104
  %v1724 = vpop.permute.xlu0 %1723
  %v1726 = vsel %vm266, %v1722, 0
  %v1729 = vsel %vm266, %v1724, 0
  %1731 = vmatprep.subr.bf16.mxu0 0
  %1732 = vmatpush1.bf16.xpose.msra.mxu0 %v1729
  %1733 = vmatprep.subr.bf16.mxu0 0
  %1734 = vmatpush1.bf16.xpose.msra.mxu0 0
  %1735 = vmatprep.subr.bf16.mxu0 0
  %1736 = vmatpush1.bf16.xpose.msra.mxu0 0
  %1737 = vmatprep.subr.bf16.mxu0 0
  %1738 = vmatpush1.bf16.xpose.msra.mxu0 0
  %1739 = vmatprep.subr.bf16.mxu0 0
  %1740 = vmatpush1.bf16.xpose.msra.mxu0 0
  %1741 = vmatprep.subr.bf16.mxu0 0
  %1742 = vmatpush1.bf16.xpose.msra.mxu0 0
  %1743 = vmatprep.subr.bf16.mxu0 0
  %1744 = vmatpush1.bf16.xpose.msra.mxu0 0
  %1745 = vmatprep.subr.bf16.mxu0 0
  %1746 = vmatpush1.bf16.xpose.msra.mxu0 0
  %1747 = vmatprep.subr.bf16.mxu0 0
  %1748 = vmatpush1.bf16.xpose.msra.mxu0 0
  %1749 = vmatprep.subr.bf16.mxu0 0
  %1750 = vmatpush1.bf16.xpose.msra.mxu0 0
  %1751 = vmatprep.subr.bf16.mxu0 0
  %1752 = vmatpush1.bf16.xpose.msra.mxu0 0
  %1753 = vmatprep.subr.bf16.mxu0 0
  %1754 = vmatpush1.bf16.xpose.msra.mxu0 0
  %1755 = vmatprep.subr.bf16.mxu0 0
  %1756 = vmatpush1.bf16.xpose.msra.mxu0 0
  %1757 = vmatprep.subr.bf16.mxu0 0
  %1758 = vmatpush1.bf16.xpose.msra.mxu0 0
  %1759 = vmatprep.subr.bf16.mxu0 0
  %1760 = vmatpush1.bf16.xpose.msra.mxu0 0
  %1761 = vmatprep.subr.bf16.mxu0 0
  %1762 = vmatpush1.bf16.xpose.msra.mxu0 0
  %1763 = vmatprep.mubr.bf16.mxu0 0
  %1764 = vmatmul.mubr.bf16.gmra.mrb[0].mxu0 %v1726
  %v1765 = vpop.f32.mrb[0].mxu0
  %v1766 = vadd.f32 0.0, %v1765
  %v1767 = vpop.f32.mrb[0].mxu0
  %v1768 = vpop.f32.mrb[0].mxu0
  %v1769 = vpop.f32.mrb[0].mxu0
  %1770 = vdwg.mxu0
  %1771 = vrot.lane.b32.xlu0 %v58, 120
  %v1772 = vpop.permute.xlu0 %1771
  %1773 = vrot.lane.b32.xlu0 %v62, 120
  %v1774 = vpop.permute.xlu0 %1773
  %v1777 = vadd.f32 %v1416, %v1772
  %v1778 = vadd.f32 %v1514, %v1772
  %v1779 = vadd.f32 %v1616, %v1772
  %v1780 = vadd.f32 %v1716, %v1772
  %v1781 = vadd.f32 %v1462, %v1774
  %v1782 = vadd.f32 %v1566, %v1774
  %v1783 = vadd.f32 %v1666, %v1774
  %v1784 = vadd.f32 %v1766, %v1774
  %v1785 = vsel %vm266, %v1777, -inf
  %1786 = vmax.xlane.f32.xlu0 %v1785
  %v1787 = vpop.xlane.xlu0 %1786
  %v1788 = vsel %vm266, %v1778, -inf
  %1789 = vmax.xlane.f32.xlu0 %v1788
  %v1790 = vpop.xlane.xlu0 %1789
  %v1791 = vsel %vm266, %v1779, -inf
  %1792 = vmax.xlane.f32.xlu0 %v1791
  %v1793 = vpop.xlane.xlu0 %1792
  %v1794 = vsel %vm266, %v1780, -inf
  %1795 = vmax.xlane.f32.xlu0 %v1794
  %v1796 = vpop.xlane.xlu0 %1795
  %v1797 = vsel %vm266, %v1781, -inf
  %1798 = vmax.xlane.f32.xlu0 %v1797
  %v1799 = vpop.xlane.xlu0 %1798
  %v1800 = vsel %vm266, %v1782, -inf
  %1801 = vmax.xlane.f32.xlu0 %v1800
  %v1802 = vpop.xlane.xlu0 %1801
  %v1803 = vsel %vm266, %v1783, -inf
  %1804 = vmax.xlane.f32.xlu0 %v1803
  %v1805 = vpop.xlane.xlu0 %1804
  %v1806 = vsel %vm266, %v1784, -inf
  %1807 = vmax.xlane.f32.xlu0 %v1806
  %v1808 = vpop.xlane.xlu0 %1807
  %v1809 = vsub.f32 %v1777, %v1787
  %v1810 = vsub.f32 %v1778, %v1790
  %v1811 = vsub.f32 %v1779, %v1793
  %v1812 = vsub.f32 %v1780, %v1796
  %v1813 = vsub.f32 %v1781, %v1799
  %v1814 = vsub.f32 %v1782, %v1802
  %v1815 = vsub.f32 %v1783, %v1805
  %v1816 = vsub.f32 %v1784, %v1808
  %v1817 = vmul.f32 %v1809, 1.442695
  %v1818 = vpow.pop %v1817
  %v1819 = vmul.f32 %v1810, 1.442695
  %v1820 = vpow.pop %v1819
  %v1821 = vmul.f32 %v1811, 1.442695
  %v1822 = vpow.pop %v1821
  %v1823 = vmul.f32 %v1812, 1.442695
  %v1824 = vpow.pop %v1823
  %v1825 = vmul.f32 %v1813, 1.442695
  %v1826 = vpow.pop %v1825
  %v1827 = vmul.f32 %v1814, 1.442695
  %v1828 = vpow.pop %v1827
  %v1829 = vmul.f32 %v1815, 1.442695
  %v1830 = vpow.pop %v1829
  %v1831 = vmul.f32 %v1816, 1.442695
  %v1832 = vpow.pop %v1831
  %v1833 = vsel %vm266, %v1818, 0.0
  %1834 = vadd.xlane.f32.xlu0 %v1833
  %v1835 = vpop.xlane.xlu0 %1834
  %v1836 = vsel %vm266, %v1820, 0.0
  %1837 = vadd.xlane.f32.xlu0 %v1836
  %v1838 = vpop.xlane.xlu0 %1837
  %v1839 = vsel %vm266, %v1822, 0.0
  %1840 = vadd.xlane.f32.xlu0 %v1839
  %v1841 = vpop.xlane.xlu0 %1840
  %v1842 = vsel %vm266, %v1824, 0.0
  %1843 = vadd.xlane.f32.xlu0 %v1842
  %v1844 = vpop.xlane.xlu0 %1843
  %v1845 = vsel %vm266, %v1826, 0.0
  %1846 = vadd.xlane.f32.xlu0 %v1845
  %v1847 = vpop.xlane.xlu0 %1846
  %v1848 = vsel %vm266, %v1828, 0.0
  %1849 = vadd.xlane.f32.xlu0 %v1848
  %v1850 = vpop.xlane.xlu0 %1849
  %v1851 = vsel %vm266, %v1830, 0.0
  %1852 = vadd.xlane.f32.xlu0 %v1851
  %v1853 = vpop.xlane.xlu0 %1852
  %v1854 = vsel %vm266, %v1832, 0.0
  %1855 = vadd.xlane.f32.xlu0 %v1854
  %v1856 = vpop.xlane.xlu0 %1855
  %v1857 = vrcp.pop %v1835
  %v1858 = vrcp.pop %v1838
  %v1859 = vrcp.pop %v1841
  %v1860 = vrcp.pop %v1844
  %v1861 = vrcp.pop %v1847
  %v1862 = vrcp.pop %v1850
  %v1863 = vrcp.pop %v1853
  %v1864 = vrcp.pop %v1856
  %v1865 = vmul.f32 %v1818, %v1857
  %v1866 = vmul.f32 %v1820, %v1858
  %v1867 = vmul.f32 %v1822, %v1859
  %v1868 = vmul.f32 %v1824, %v1860
  %v1869 = vmul.f32 %v1826, %v1861
  %v1870 = vmul.f32 %v1828, %v1862
  %v1871 = vmul.f32 %v1830, %v1863
  %v1872 = vmul.f32 %v1832, %v1864
  %v1873 = vpack.c.bf16 %v1865, %v1865
  %v1874 = vpack.c.bf16 %v1866, %v1866
  %v1875 = vpack.c.bf16 %v1867, %v1867
  %v1876 = vpack.c.bf16 %v1868, %v1868
  %v1877 = vpack.c.bf16 %v1869, %v1869
  %v1878 = vpack.c.bf16 %v1870, %v1870
  %v1879 = vpack.c.bf16 %v1871, %v1871
  %v1880 = vpack.c.bf16 %v1872, %v1872
  %1881 = vrot.lane.b32.xlu0 %v144, 96
  %v1882 = vpop.permute.xlu0 %1881
  %v1884 = vsel %vm266, %v1873, 0
  %v1887 = vsel %vm771, %v1882, 0
  %1889 = vmatprep.subr.bf16.mxu0 0
  %1890 = vmatpush1.bf16.msra.mxu0 %v1887
  %1891 = vmatprep.subr.bf16.mxu0 0
  %1892 = vmatpush1.bf16.msra.mxu0 0
  %1893 = vmatprep.subr.bf16.mxu0 0
  %1894 = vmatpush1.bf16.msra.mxu0 0
  %1895 = vmatprep.subr.bf16.mxu0 0
  %1896 = vmatpush1.bf16.msra.mxu0 0
  %1897 = vmatprep.subr.bf16.mxu0 0
  %1898 = vmatpush1.bf16.msra.mxu0 0
  %1899 = vmatprep.subr.bf16.mxu0 0
  %1900 = vmatpush1.bf16.msra.mxu0 0
  %1901 = vmatprep.subr.bf16.mxu0 0
  %1902 = vmatpush1.bf16.msra.mxu0 0
  %1903 = vmatprep.subr.bf16.mxu0 0
  %1904 = vmatpush1.bf16.msra.mxu0 0
  %1905 = vmatprep.subr.bf16.mxu0 0
  %1906 = vmatpush1.bf16.msra.mxu0 0
  %1907 = vmatprep.subr.bf16.mxu0 0
  %1908 = vmatpush1.bf16.msra.mxu0 0
  %1909 = vmatprep.subr.bf16.mxu0 0
  %1910 = vmatpush1.bf16.msra.mxu0 0
  %1911 = vmatprep.subr.bf16.mxu0 0
  %1912 = vmatpush1.bf16.msra.mxu0 0
  %1913 = vmatprep.subr.bf16.mxu0 0
  %1914 = vmatpush1.bf16.msra.mxu0 0
  %1915 = vmatprep.subr.bf16.mxu0 0
  %1916 = vmatpush1.bf16.msra.mxu0 0
  %1917 = vmatprep.subr.bf16.mxu0 0
  %1918 = vmatpush1.bf16.msra.mxu0 0
  %1919 = vmatprep.subr.bf16.mxu0 0
  %1920 = vmatpush1.bf16.msra.mxu0 0
  %1921 = vmatprep.mubr.bf16.mxu0 0
  %1922 = vmatmul.mubr.bf16.gmra.mrb[0].mxu0 %v1884
  %v1923 = vpop.f32.mrb[0].mxu0
  %v1924 = vadd.f32 0.0, %v1923
  %v1925 = vpop.f32.mrb[0].mxu0
  %v1926 = vpop.f32.mrb[0].mxu0
  %v1927 = vpop.f32.mrb[0].mxu0
  %1928 = vdwg.mxu0
  %1929 = vrot.lane.b32.xlu0 %v145, 96
  %v1930 = vpop.permute.xlu0 %1929
  %v1932 = vsel %vm266, %v1877, 0
  %v1935 = vsel %vm771, %v1930, 0
  %1937 = vmatprep.subr.bf16.mxu0 0
  %1938 = vmatpush1.bf16.msra.mxu0 %v1935
  %1939 = vmatprep.subr.bf16.mxu0 0
  %1940 = vmatpush1.bf16.msra.mxu0 0
  %1941 = vmatprep.subr.bf16.mxu0 0
  %1942 = vmatpush1.bf16.msra.mxu0 0
  %1943 = vmatprep.subr.bf16.mxu0 0
  %1944 = vmatpush1.bf16.msra.mxu0 0
  %1945 = vmatprep.subr.bf16.mxu0 0
  %1946 = vmatpush1.bf16.msra.mxu0 0
  %1947 = vmatprep.subr.bf16.mxu0 0
  %1948 = vmatpush1.bf16.msra.mxu0 0
  %1949 = vmatprep.subr.bf16.mxu0 0
  %1950 = vmatpush1.bf16.msra.mxu0 0
  %1951 = vmatprep.subr.bf16.mxu0 0
  %1952 = vmatpush1.bf16.msra.mxu0 0
  %1953 = vmatprep.subr.bf16.mxu0 0
  %1954 = vmatpush1.bf16.msra.mxu0 0
  %1955 = vmatprep.subr.bf16.mxu0 0
  %1956 = vmatpush1.bf16.msra.mxu0 0
  %1957 = vmatprep.subr.bf16.mxu0 0
  %1958 = vmatpush1.bf16.msra.mxu0 0
  %1959 = vmatprep.subr.bf16.mxu0 0
  %1960 = vmatpush1.bf16.msra.mxu0 0
  %1961 = vmatprep.subr.bf16.mxu0 0
  %1962 = vmatpush1.bf16.msra.mxu0 0
  %1963 = vmatprep.subr.bf16.mxu0 0
  %1964 = vmatpush1.bf16.msra.mxu0 0
  %1965 = vmatprep.subr.bf16.mxu0 0
  %1966 = vmatpush1.bf16.msra.mxu0 0
  %1967 = vmatprep.subr.bf16.mxu0 0
  %1968 = vmatpush1.bf16.msra.mxu0 0
  %1969 = vmatprep.mubr.bf16.mxu0 0
  %1970 = vmatmul.mubr.bf16.gmra.mrb[0].mxu0 %v1932
  %v1971 = vpop.f32.mrb[0].mxu0
  %v1972 = vadd.f32 0.0, %v1971
  %v1973 = vpop.f32.mrb[0].mxu0
  %v1974 = vpop.f32.mrb[0].mxu0
  %v1975 = vpop.f32.mrb[0].mxu0
  %1976 = vdwg.mxu0
  %1977 = vrot.lane.b32.xlu0 %v144, 88
  %v1978 = vpop.permute.xlu0 %1977
  %v1980 = vsel %vm266, %v1874, 0
  %v1983 = vsel %vm771, %v1978, 0
  %1985 = vmatprep.subr.bf16.mxu0 0
  %1986 = vmatpush1.bf16.msra.mxu0 %v1983
  %1987 = vmatprep.subr.bf16.mxu0 0
  %1988 = vmatpush1.bf16.msra.mxu0 0
  %1989 = vmatprep.subr.bf16.mxu0 0
  %1990 = vmatpush1.bf16.msra.mxu0 0
  %1991 = vmatprep.subr.bf16.mxu0 0
  %1992 = vmatpush1.bf16.msra.mxu0 0
  %1993 = vmatprep.subr.bf16.mxu0 0
  %1994 = vmatpush1.bf16.msra.mxu0 0
  %1995 = vmatprep.subr.bf16.mxu0 0
  %1996 = vmatpush1.bf16.msra.mxu0 0
  %1997 = vmatprep.subr.bf16.mxu0 0
  %1998 = vmatpush1.bf16.msra.mxu0 0
  %1999 = vmatprep.subr.bf16.mxu0 0
  %2000 = vmatpush1.bf16.msra.mxu0 0
  %2001 = vmatprep.subr.bf16.mxu0 0
  %2002 = vmatpush1.bf16.msra.mxu0 0
  %2003 = vmatprep.subr.bf16.mxu0 0
  %2004 = vmatpush1.bf16.msra.mxu0 0
  %2005 = vmatprep.subr.bf16.mxu0 0
  %2006 = vmatpush1.bf16.msra.mxu0 0
  %2007 = vmatprep.subr.bf16.mxu0 0
  %2008 = vmatpush1.bf16.msra.mxu0 0
  %2009 = vmatprep.subr.bf16.mxu0 0
  %2010 = vmatpush1.bf16.msra.mxu0 0
  %2011 = vmatprep.subr.bf16.mxu0 0
  %2012 = vmatpush1.bf16.msra.mxu0 0
  %2013 = vmatprep.subr.bf16.mxu0 0
  %2014 = vmatpush1.bf16.msra.mxu0 0
  %2015 = vmatprep.subr.bf16.mxu0 0
  %2016 = vmatpush1.bf16.msra.mxu0 0
  %2017 = vmatprep.mubr.bf16.mxu0 0
  %2018 = vmatmul.mubr.bf16.gmra.mrb[0].mxu0 %v1980
  %v2019 = vpop.f32.mrb[0].mxu0
  %v2020 = vadd.f32 0.0, %v2019
  %v2021 = vpop.f32.mrb[0].mxu0
  %v2022 = vpop.f32.mrb[0].mxu0
  %v2023 = vpop.f32.mrb[0].mxu0
  %2024 = vdwg.mxu0
  %2025 = vrot.lane.b32.xlu0 %v145, 88
  %v2026 = vpop.permute.xlu0 %2025
  %v2028 = vsel %vm266, %v1878, 0
  %v2031 = vsel %vm771, %v2026, 0
  %2033 = vmatprep.subr.bf16.mxu0 0
  %2034 = vmatpush1.bf16.msra.mxu0 %v2031
  %2035 = vmatprep.subr.bf16.mxu0 0
  %2036 = vmatpush1.bf16.msra.mxu0 0
  %2037 = vmatprep.subr.bf16.mxu0 0
  %2038 = vmatpush1.bf16.msra.mxu0 0
  %2039 = vmatprep.subr.bf16.mxu0 0
  %2040 = vmatpush1.bf16.msra.mxu0 0
  %2041 = vmatprep.subr.bf16.mxu0 0
  %2042 = vmatpush1.bf16.msra.mxu0 0
  %2043 = vmatprep.subr.bf16.mxu0 0
  %2044 = vmatpush1.bf16.msra.mxu0 0
  %2045 = vmatprep.subr.bf16.mxu0 0
  %2046 = vmatpush1.bf16.msra.mxu0 0
  %2047 = vmatprep.subr.bf16.mxu0 0
  %2048 = vmatpush1.bf16.msra.mxu0 0
  %2049 = vmatprep.subr.bf16.mxu0 0
  %2050 = vmatpush1.bf16.msra.mxu0 0
  %2051 = vmatprep.subr.bf16.mxu0 0
  %2052 = vmatpush1.bf16.msra.mxu0 0
  %2053 = vmatprep.subr.bf16.mxu0 0
  %2054 = vmatpush1.bf16.msra.mxu0 0
  %2055 = vmatprep.subr.bf16.mxu0 0
  %2056 = vmatpush1.bf16.msra.mxu0 0
  %2057 = vmatprep.subr.bf16.mxu0 0
  %2058 = vmatpush1.bf16.msra.mxu0 0
  %2059 = vmatprep.subr.bf16.mxu0 0
  %2060 = vmatpush1.bf16.msra.mxu0 0
  %2061 = vmatprep.subr.bf16.mxu0 0
  %2062 = vmatpush1.bf16.msra.mxu0 0
  %2063 = vmatprep.subr.bf16.mxu0 0
  %2064 = vmatpush1.bf16.msra.mxu0 0
  %2065 = vmatprep.mubr.bf16.mxu0 0
  %2066 = vmatmul.mubr.bf16.gmra.mrb[0].mxu0 %v2028
  %v2067 = vpop.f32.mrb[0].mxu0
  %v2068 = vadd.f32 0.0, %v2067
  %v2069 = vpop.f32.mrb[0].mxu0
  %v2070 = vpop.f32.mrb[0].mxu0
  %v2071 = vpop.f32.mrb[0].mxu0
  %2072 = vdwg.mxu0
  %2073 = vrot.lane.b32.xlu0 %v144, 80
  %v2074 = vpop.permute.xlu0 %2073
  %v2076 = vsel %vm266, %v1875, 0
  %v2079 = vsel %vm771, %v2074, 0
  %2081 = vmatprep.subr.bf16.mxu0 0
  %2082 = vmatpush1.bf16.msra.mxu0 %v2079
  %2083 = vmatprep.subr.bf16.mxu0 0
  %2084 = vmatpush1.bf16.msra.mxu0 0
  %2085 = vmatprep.subr.bf16.mxu0 0
  %2086 = vmatpush1.bf16.msra.mxu0 0
  %2087 = vmatprep.subr.bf16.mxu0 0
  %2088 = vmatpush1.bf16.msra.mxu0 0
  %2089 = vmatprep.subr.bf16.mxu0 0
  %2090 = vmatpush1.bf16.msra.mxu0 0
  %2091 = vmatprep.subr.bf16.mxu0 0
  %2092 = vmatpush1.bf16.msra.mxu0 0
  %2093 = vmatprep.subr.bf16.mxu0 0
  %2094 = vmatpush1.bf16.msra.mxu0 0
  %2095 = vmatprep.subr.bf16.mxu0 0
  %2096 = vmatpush1.bf16.msra.mxu0 0
  %2097 = vmatprep.subr.bf16.mxu0 0
  %2098 = vmatpush1.bf16.msra.mxu0 0
  %2099 = vmatprep.subr.bf16.mxu0 0
  %2100 = vmatpush1.bf16.msra.mxu0 0
  %2101 = vmatprep.subr.bf16.mxu0 0
  %2102 = vmatpush1.bf16.msra.mxu0 0
  %2103 = vmatprep.subr.bf16.mxu0 0
  %2104 = vmatpush1.bf16.msra.mxu0 0
  %2105 = vmatprep.subr.bf16.mxu0 0
  %2106 = vmatpush1.bf16.msra.mxu0 0
  %2107 = vmatprep.subr.bf16.mxu0 0
  %2108 = vmatpush1.bf16.msra.mxu0 0
  %2109 = vmatprep.subr.bf16.mxu0 0
  %2110 = vmatpush1.bf16.msra.mxu0 0
  %2111 = vmatprep.subr.bf16.mxu0 0
  %2112 = vmatpush1.bf16.msra.mxu0 0
  %2113 = vmatprep.mubr.bf16.mxu0 0
  %2114 = vmatmul.mubr.bf16.gmra.mrb[0].mxu0 %v2076
  %v2115 = vpop.f32.mrb[0].mxu0
  %v2116 = vadd.f32 0.0, %v2115
  %v2117 = vpop.f32.mrb[0].mxu0
  %v2118 = vpop.f32.mrb[0].mxu0
  %v2119 = vpop.f32.mrb[0].mxu0
  %2120 = vdwg.mxu0
  %2121 = vrot.lane.b32.xlu0 %v145, 80
  %v2122 = vpop.permute.xlu0 %2121
  %v2124 = vsel %vm266, %v1879, 0
  %v2127 = vsel %vm771, %v2122, 0
  %2129 = vmatprep.subr.bf16.mxu0 0
  %2130 = vmatpush1.bf16.msra.mxu0 %v2127
  %2131 = vmatprep.subr.bf16.mxu0 0
  %2132 = vmatpush1.bf16.msra.mxu0 0
  %2133 = vmatprep.subr.bf16.mxu0 0
  %2134 = vmatpush1.bf16.msra.mxu0 0
  %2135 = vmatprep.subr.bf16.mxu0 0
  %2136 = vmatpush1.bf16.msra.mxu0 0
  %2137 = vmatprep.subr.bf16.mxu0 0
  %2138 = vmatpush1.bf16.msra.mxu0 0
  %2139 = vmatprep.subr.bf16.mxu0 0
  %2140 = vmatpush1.bf16.msra.mxu0 0
  %2141 = vmatprep.subr.bf16.mxu0 0
  %2142 = vmatpush1.bf16.msra.mxu0 0
  %2143 = vmatprep.subr.bf16.mxu0 0
  %2144 = vmatpush1.bf16.msra.mxu0 0
  %2145 = vmatprep.subr.bf16.mxu0 0
  %2146 = vmatpush1.bf16.msra.mxu0 0
  %2147 = vmatprep.subr.bf16.mxu0 0
  %2148 = vmatpush1.bf16.msra.mxu0 0
  %2149 = vmatprep.subr.bf16.mxu0 0
  %2150 = vmatpush1.bf16.msra.mxu0 0
  %2151 = vmatprep.subr.bf16.mxu0 0
  %2152 = vmatpush1.bf16.msra.mxu0 0
  %2153 = vmatprep.subr.bf16.mxu0 0
  %2154 = vmatpush1.bf16.msra.mxu0 0
  %2155 = vmatprep.subr.bf16.mxu0 0
  %2156 = vmatpush1.bf16.msra.mxu0 0
  %2157 = vmatprep.subr.bf16.mxu0 0
  %2158 = vmatpush1.bf16.msra.mxu0 0
  %2159 = vmatprep.subr.bf16.mxu0 0
  %2160 = vmatpush1.bf16.msra.mxu0 0
  %2161 = vmatprep.mubr.bf16.mxu0 0
  %2162 = vmatmul.mubr.bf16.gmra.mrb[0].mxu0 %v2124
  %v2163 = vpop.f32.mrb[0].mxu0
  %v2164 = vadd.f32 0.0, %v2163
  %v2165 = vpop.f32.mrb[0].mxu0
  %v2166 = vpop.f32.mrb[0].mxu0
  %v2167 = vpop.f32.mrb[0].mxu0
  %2168 = vdwg.mxu0
  %2169 = vrot.lane.b32.xlu0 %v144, 72
  %v2170 = vpop.permute.xlu0 %2169
  %v2172 = vsel %vm266, %v1876, 0
  %v2175 = vsel %vm771, %v2170, 0
  %2177 = vmatprep.subr.bf16.mxu0 0
  %2178 = vmatpush1.bf16.msra.mxu0 %v2175
  %2179 = vmatprep.subr.bf16.mxu0 0
  %2180 = vmatpush1.bf16.msra.mxu0 0
  %2181 = vmatprep.subr.bf16.mxu0 0
  %2182 = vmatpush1.bf16.msra.mxu0 0
  %2183 = vmatprep.subr.bf16.mxu0 0
  %2184 = vmatpush1.bf16.msra.mxu0 0
  %2185 = vmatprep.subr.bf16.mxu0 0
  %2186 = vmatpush1.bf16.msra.mxu0 0
  %2187 = vmatprep.subr.bf16.mxu0 0
  %2188 = vmatpush1.bf16.msra.mxu0 0
  %2189 = vmatprep.subr.bf16.mxu0 0
  %2190 = vmatpush1.bf16.msra.mxu0 0
  %2191 = vmatprep.subr.bf16.mxu0 0
  %2192 = vmatpush1.bf16.msra.mxu0 0
  %2193 = vmatprep.subr.bf16.mxu0 0
  %2194 = vmatpush1.bf16.msra.mxu0 0
  %2195 = vmatprep.subr.bf16.mxu0 0
  %2196 = vmatpush1.bf16.msra.mxu0 0
  %2197 = vmatprep.subr.bf16.mxu0 0
  %2198 = vmatpush1.bf16.msra.mxu0 0
  %2199 = vmatprep.subr.bf16.mxu0 0
  %2200 = vmatpush1.bf16.msra.mxu0 0
  %2201 = vmatprep.subr.bf16.mxu0 0
  %2202 = vmatpush1.bf16.msra.mxu0 0
  %2203 = vmatprep.subr.bf16.mxu0 0
  %2204 = vmatpush1.bf16.msra.mxu0 0
  %2205 = vmatprep.subr.bf16.mxu0 0
  %2206 = vmatpush1.bf16.msra.mxu0 0
  %2207 = vmatprep.subr.bf16.mxu0 0
  %2208 = vmatpush1.bf16.msra.mxu0 0
  %2209 = vmatprep.mubr.bf16.mxu0 0
  %2210 = vmatmul.mubr.bf16.gmra.mrb[0].mxu0 %v2172
  %v2211 = vpop.f32.mrb[0].mxu0
  %v2212 = vadd.f32 0.0, %v2211
  %v2213 = vpop.f32.mrb[0].mxu0
  %v2214 = vpop.f32.mrb[0].mxu0
  %v2215 = vpop.f32.mrb[0].mxu0
  %2216 = vdwg.mxu0
  %2217 = vrot.lane.b32.xlu0 %v145, 72
  %v2218 = vpop.permute.xlu0 %2217
  %v2220 = vsel %vm266, %v1880, 0
  %v2223 = vsel %vm771, %v2218, 0
  %2225 = vmatprep.subr.bf16.mxu0 0
  %2226 = vmatpush1.bf16.msra.mxu0 %v2223
  %2227 = vmatprep.subr.bf16.mxu0 0
  %2228 = vmatpush1.bf16.msra.mxu0 0
  %2229 = vmatprep.subr.bf16.mxu0 0
  %2230 = vmatpush1.bf16.msra.mxu0 0
  %2231 = vmatprep.subr.bf16.mxu0 0
  %2232 = vmatpush1.bf16.msra.mxu0 0
  %2233 = vmatprep.subr.bf16.mxu0 0
  %2234 = vmatpush1.bf16.msra.mxu0 0
  %2235 = vmatprep.subr.bf16.mxu0 0
  %2236 = vmatpush1.bf16.msra.mxu0 0
  %2237 = vmatprep.subr.bf16.mxu0 0
  %2238 = vmatpush1.bf16.msra.mxu0 0
  %2239 = vmatprep.subr.bf16.mxu0 0
  %2240 = vmatpush1.bf16.msra.mxu0 0
  %2241 = vmatprep.subr.bf16.mxu0 0
  %2242 = vmatpush1.bf16.msra.mxu0 0
  %2243 = vmatprep.subr.bf16.mxu0 0
  %2244 = vmatpush1.bf16.msra.mxu0 0
  %2245 = vmatprep.subr.bf16.mxu0 0
  %2246 = vmatpush1.bf16.msra.mxu0 0
  %2247 = vmatprep.subr.bf16.mxu0 0
  %2248 = vmatpush1.bf16.msra.mxu0 0
  %2249 = vmatprep.subr.bf16.mxu0 0
  %2250 = vmatpush1.bf16.msra.mxu0 0
  %2251 = vmatprep.subr.bf16.mxu0 0
  %2252 = vmatpush1.bf16.msra.mxu0 0
  %2253 = vmatprep.subr.bf16.mxu0 0
  %2254 = vmatpush1.bf16.msra.mxu0 0
  %2255 = vmatprep.subr.bf16.mxu0 0
  %2256 = vmatpush1.bf16.msra.mxu0 0
  %2257 = vmatprep.mubr.bf16.mxu0 0
  %2258 = vmatmul.mubr.bf16.gmra.mrb[0].mxu0 %v2220
  %v2259 = vpop.f32.mrb[0].mxu0
  %v2260 = vadd.f32 0.0, %v2259
  %v2261 = vpop.f32.mrb[0].mxu0
  %v2262 = vpop.f32.mrb[0].mxu0
  %v2263 = vpop.f32.mrb[0].mxu0
  %2264 = vdwg.mxu0
  %2267 = vrot.lane.b32.xlu0 %v2020, 8
  %v2268 = vpop.permute.xlu0 %2267
  %2269 = vrot.lane.b32.xlu0 %v2068, 8
  %v2270 = vpop.permute.xlu0 %2269
  %2275 = vrot.lane.b32.xlu0 %v2116, 16
  %v2276 = vpop.permute.xlu0 %2275
  %2277 = vrot.lane.b32.xlu0 %v2164, 16
  %v2278 = vpop.permute.xlu0 %2277
  %2283 = vrot.lane.b32.xlu0 %v2212, 24
  %v2284 = vpop.permute.xlu0 %2283
  %2285 = vrot.lane.b32.xlu0 %v2260, 24
  %v2286 = vpop.permute.xlu0 %2285
  %v2289 = vsel %vm266, %v1924, %v2268
  %v2290 = vsel %vm266, %v1972, %v2270
  %v2291 = vsel %vm1177, %v2289, %v2276
  %v2292 = vsel %vm1177, %v2290, %v2278
  %v2293 = vsel %vm1180, %v2291, %v2284
  %v2294 = vsel %vm1180, %v2292, %v2286
  %v2295 = vpack.c.bf16 %v2293, %v2293
  %v2296 = vpack.c.bf16 %v2294, %v2294
  %v2297 = vld [vmem:[%s3 + $0x30] sm:$0xf]
  %v2298 = vld [vmem:[%s3 + $0x34] sm:$0xf]
  %v2299 = vld [vmem:[%s3 + $0x38] sm:$0xf]
  %v2300 = vld [vmem:[%s3 + $0x3c] sm:$0xf]
  %v2303 = vunpack.c.l.b16 %v2295
  %v2304 = vunpack.c.l.b16 %v2296
  %v2305 = vpack.c.b16 %v2304, %v2303
  %v2310 = vunpack.c.l.b16 %v2297
  %v2311 = vunpack.c.l.b16 %v2298
  %v2312 = vunpack.c.l.b16 %v2299
  %v2313 = vunpack.c.l.b16 %v2300
  %v2314 = vpack.c.b16 %v2311, %v2310
  %v2315 = vpack.c.b16 %v2313, %v2312
  %v2319 = vsel %vm92, %v2305, 0
  %2321 = vmatprep.subr.bf16.mxu0 0
  %2322 = vmatpush1.bf16.msra.mxu0 %v2314
  %2323 = vmatprep.subr.bf16.mxu0 0
  %2324 = vmatpush1.bf16.msra.mxu0 %v2315
  %2325 = vmatprep.subr.bf16.mxu0 0
  %2326 = vmatpush1.bf16.msra.mxu0 0
  %2327 = vmatprep.subr.bf16.mxu0 0
  %2328 = vmatpush1.bf16.msra.mxu0 0
  %2329 = vmatprep.subr.bf16.mxu0 0
  %2330 = vmatpush1.bf16.msra.mxu0 0
  %2331 = vmatprep.subr.bf16.mxu0 0
  %2332 = vmatpush1.bf16.msra.mxu0 0
  %2333 = vmatprep.subr.bf16.mxu0 0
  %2334 = vmatpush1.bf16.msra.mxu0 0
  %2335 = vmatprep.subr.bf16.mxu0 0
  %2336 = vmatpush1.bf16.msra.mxu0 0
  %2337 = vmatprep.subr.bf16.mxu0 0
  %2338 = vmatpush1.bf16.msra.mxu0 0
  %2339 = vmatprep.subr.bf16.mxu0 0
  %2340 = vmatpush1.bf16.msra.mxu0 0
  %2341 = vmatprep.subr.bf16.mxu0 0
  %2342 = vmatpush1.bf16.msra.mxu0 0
  %2343 = vmatprep.subr.bf16.mxu0 0
  %2344 = vmatpush1.bf16.msra.mxu0 0
  %2345 = vmatprep.subr.bf16.mxu0 0
  %2346 = vmatpush1.bf16.msra.mxu0 0
  %2347 = vmatprep.subr.bf16.mxu0 0
  %2348 = vmatpush1.bf16.msra.mxu0 0
  %2349 = vmatprep.subr.bf16.mxu0 0
  %2350 = vmatpush1.bf16.msra.mxu0 0
  %2351 = vmatprep.subr.bf16.mxu0 0
  %2352 = vmatpush1.bf16.msra.mxu0 0
  %2353 = vmatprep.mubr.bf16.mxu0 0
  %2354 = vmatmul.mubr.bf16.gmra.mrb[0].mxu0 %v2319
  %v2355 = vpop.f32.mrb[0].mxu0
  %v2356 = vadd.f32 0.0, %v2355
  %v2357 = vpop.f32.mrb[0].mxu0
  %v2358 = vpop.f32.mrb[0].mxu0
  %v2359 = vadd.f32 0.0, %v2358
  %v2360 = vpop.f32.mrb[0].mxu0
  %2361 = vdwg.mxu0
  %v2362 = vadd.f32 %v1257, %v2356
  %v2363 = vadd.f32 %v1258, %v2359
  %v2364 = vld [vmem:[%s4 + $0x3] sm:$0x1]
  %v2365 = vlaneseq
  %v2366 = vshrl.u32 %v2365, 7
  %v2367 = vsub.s32 0, %v2366
  %v2368 = vrot.slane %v2364, %v2367
  %v2369 = vadd.f32 %v2362, %v2368
  %v2370 = vadd.f32 %v2363, %v2368
  %v2371 = vld [vmem:[%s4 + $0xa] sm:$0x1]
  %v2372 = vld [vmem:[%s4 + $0xb] sm:$0x1]
  %v2373 = vsel %vm92, %v2369, 0.0
  %2374 = vadd.xlane.f32.xlu0 %v2373
  %v2375 = vpop.xlane.xlu0 %2374
  %v2376 = vsel %vm92, %v2370, 0.0
  %2377 = vadd.xlane.f32.xlu0 %v2376
  %v2378 = vpop.xlane.xlu0 %2377
  %v2379 = vmul.f32 %v2375, %v154
  %v2380 = vmul.f32 %v2378, %v154
  %v2381 = vsub.f32 %v2369, %v2379
  %v2382 = vsub.f32 %v2370, %v2380
  %v2383 = vmul.f32 %v2381, %v2381
  %v2384 = vmul.f32 %v2382, %v2382
  %v2385 = vsel %vm92, %v2383, 0.0
  %2386 = vadd.xlane.f32.xlu0 %v2385
  %v2387 = vpop.xlane.xlu0 %2386
  %v2388 = vsel %vm92, %v2384, 0.0
  %2389 = vadd.xlane.f32.xlu0 %v2388
  %v2390 = vpop.xlane.xlu0 %2389
  %v2391 = vmul.f32 %v2387, %v154
  %v2392 = vmul.f32 %v2390, %v154
  %v2393 = vadd.f32 %v2391, 1e-06
  %v2394 = vadd.f32 %v2392, 1e-06
  %v2395 = vrsqrt.pop %v2393
  %v2396 = vrsqrt.pop %v2394
  %v2397 = vmul.f32 %v2381, %v2395
  %v2398 = vmul.f32 %v2382, %v2396
  %v2399 = vlaneseq
  %v2400 = vshrl.u32 %v2399, 7
  %v2401 = vsub.s32 0, %v2400
  %v2402 = vrot.slane %v2371, %v2401
  %v2403 = vmul.f32 %v2397, %v2402
  %v2404 = vmul.f32 %v2398, %v2402
  %v2405 = vlaneseq
  %v2406 = vshrl.u32 %v2405, 7
  %v2407 = vsub.s32 0, %v2406
  %v2408 = vrot.slane %v2372, %v2407
  %v2409 = vadd.f32 %v2403, %v2408
  %v2410 = vadd.f32 %v2404, %v2408
  %v2411 = vpack.c.bf16 %v2409, %v2409
  %v2412 = vpack.c.bf16 %v2410, %v2410
  %v2413 = vld [vmem:[%s3 + $0x40] sm:$0xf]
  %v2414 = vld [vmem:[%s3 + $0x44] sm:$0xf]
  %v2415 = vld [vmem:[%s3 + $0x48] sm:$0xf]
  %v2416 = vld [vmem:[%s3 + $0x4c] sm:$0xf]
  %v2419 = vunpack.c.l.b16 %v2411
  %v2420 = vunpack.c.l.b16 %v2412
  %v2421 = vpack.c.b16 %v2420, %v2419
  %v2426 = vunpack.c.l.b16 %v2413
  %v2427 = vunpack.c.l.b16 %v2414
  %v2428 = vunpack.c.l.b16 %v2415
  %v2429 = vunpack.c.l.b16 %v2416
  %v2430 = vpack.c.b16 %v2427, %v2426
  %v2431 = vpack.c.b16 %v2429, %v2428
  %v2435 = vsel %vm92, %v2421, 0
  %2437 = vmatprep.subr.bf16.mxu0 0
  %2438 = vmatpush1.bf16.msra.mxu0 %v2430
  %2439 = vmatprep.subr.bf16.mxu0 0
  %2440 = vmatpush1.bf16.msra.mxu0 %v2431
  %2441 = vmatprep.subr.bf16.mxu0 0
  %2442 = vmatpush1.bf16.msra.mxu0 0
  %2443 = vmatprep.subr.bf16.mxu0 0
  %2444 = vmatpush1.bf16.msra.mxu0 0
  %2445 = vmatprep.subr.bf16.mxu0 0
  %2446 = vmatpush1.bf16.msra.mxu0 0
  %2447 = vmatprep.subr.bf16.mxu0 0
  %2448 = vmatpush1.bf16.msra.mxu0 0
  %2449 = vmatprep.subr.bf16.mxu0 0
  %2450 = vmatpush1.bf16.msra.mxu0 0
  %2451 = vmatprep.subr.bf16.mxu0 0
  %2452 = vmatpush1.bf16.msra.mxu0 0
  %2453 = vmatprep.subr.bf16.mxu0 0
  %2454 = vmatpush1.bf16.msra.mxu0 0
  %2455 = vmatprep.subr.bf16.mxu0 0
  %2456 = vmatpush1.bf16.msra.mxu0 0
  %2457 = vmatprep.subr.bf16.mxu0 0
  %2458 = vmatpush1.bf16.msra.mxu0 0
  %2459 = vmatprep.subr.bf16.mxu0 0
  %2460 = vmatpush1.bf16.msra.mxu0 0
  %2461 = vmatprep.subr.bf16.mxu0 0
  %2462 = vmatpush1.bf16.msra.mxu0 0
  %2463 = vmatprep.subr.bf16.mxu0 0
  %2464 = vmatpush1.bf16.msra.mxu0 0
  %2465 = vmatprep.subr.bf16.mxu0 0
  %2466 = vmatpush1.bf16.msra.mxu0 0
  %2467 = vmatprep.subr.bf16.mxu0 0
  %2468 = vmatpush1.bf16.msra.mxu0 0
  %2469 = vmatprep.mubr.bf16.mxu0 0
  %2470 = vmatmul.mubr.bf16.gmra.mrb[0].mxu0 %v2435
  %v2471 = vpop.f32.mrb[0].mxu0
  %v2472 = vadd.f32 0.0, %v2471
  %v2473 = vpop.f32.mrb[0].mxu0
  %v2474 = vpop.f32.mrb[0].mxu0
  %v2475 = vadd.f32 0.0, %v2474
  %v2476 = vpop.f32.mrb[0].mxu0
  %2477 = vdwg.mxu0
  %v2478 = vld [vmem:[%s4 + $0x4] sm:$0x1]
  %v2479 = vlaneseq
  %v2480 = vshrl.u32 %v2479, 7
  %v2481 = vsub.s32 0, %v2480
  %v2482 = vrot.slane %v2478, %v2481
  %v2483 = vadd.f32 %v2472, %v2482
  %v2484 = vadd.f32 %v2475, %v2482
  %v2485 = vmul.f32 %v2483, 0.5
  %v2486 = vmul.f32 %v2484, 0.5
  %v2487 = vmul.f32 %v2483, 0.044715
  %v2488 = vmul.f32 %v2484, 0.044715
  %v2489 = vmul.f32 %v2487, %v2483
  %v2490 = vmul.f32 %v2488, %v2484
  %v2491 = vmul.f32 %v2489, %v2483
  %v2492 = vmul.f32 %v2490, %v2484
  %v2493 = vadd.f32 %v2483, %v2491
  %v2494 = vadd.f32 %v2484, %v2492
  %v2495 = vmul.f32 %v2493, 0.7978846
  %v2496 = vmul.f32 %v2494, 0.7978846
  %v2497 = vtanh.pop %v2495
  %v2498 = vtanh.pop %v2496
  %v2499 = vadd.f32 %v2497, 1.0
  %v2500 = vadd.f32 %v2498, 1.0
  %v2501 = vmul.f32 %v2485, %v2499
  %v2502 = vmul.f32 %v2486, %v2500
  %v2503 = vpack.c.bf16 %v2501, %v2501
  %v2504 = vpack.c.bf16 %v2502, %v2502
  %v2505 = vld [vmem:[%s3 + $0x50] sm:$0xf]
  %v2506 = vld [vmem:[%s3 + $0x54] sm:$0xf]
  %v2507 = vld [vmem:[%s3 + $0x58] sm:$0xf]
  %v2508 = vld [vmem:[%s3 + $0x5c] sm:$0xf]
  %v2509 = vld [vmem:[%s3 + $0x60] sm:$0xf]
  %v2510 = vld [vmem:[%s3 + $0x64] sm:$0xf]
  %v2511 = vld [vmem:[%s3 + $0x68] sm:$0xf]
  %v2512 = vld [vmem:[%s3 + $0x6c] sm:$0xf]
  %v2515 = vunpack.c.l.b16 %v2503
  %v2516 = vunpack.c.l.b16 %v2504
  %v2517 = vpack.c.b16 %v2516, %v2515
  %v2526 = vunpack.c.l.b16 %v2505
  %v2527 = vunpack.c.l.b16 %v2506
  %v2528 = vunpack.c.l.b16 %v2507
  %v2529 = vunpack.c.l.b16 %v2508
  %v2530 = vunpack.c.l.b16 %v2509
  %v2531 = vunpack.c.l.b16 %v2510
  %v2532 = vunpack.c.l.b16 %v2511
  %v2533 = vunpack.c.l.b16 %v2512
  %v2534 = vpack.c.b16 %v2527, %v2526
  %v2535 = vpack.c.b16 %v2529, %v2528
  %v2536 = vpack.c.b16 %v2531, %v2530
  %v2537 = vpack.c.b16 %v2533, %v2532
  %vm2542 = vcmask 523264
  %v2544 = vsel %vm2542, %v2517, 0
  %2546 = vmatprep.subr.bf16.mxu0 0
  %2547 = vmatpush1.bf16.msra.mxu0 %v2534
  %2548 = vmatprep.subr.bf16.mxu0 0
  %2549 = vmatpush1.bf16.msra.mxu0 %v2535
  %2550 = vmatprep.subr.bf16.mxu0 0
  %2551 = vmatpush1.bf16.msra.mxu0 %v2536
  %2552 = vmatprep.subr.bf16.mxu0 0
  %2553 = vmatpush1.bf16.msra.mxu0 %v2537
  %2554 = vmatprep.subr.bf16.mxu0 0
  %2555 = vmatpush1.bf16.msra.mxu0 0
  %2556 = vmatprep.subr.bf16.mxu0 0
  %2557 = vmatpush1.bf16.msra.mxu0 0
  %2558 = vmatprep.subr.bf16.mxu0 0
  %2559 = vmatpush1.bf16.msra.mxu0 0
  %2560 = vmatprep.subr.bf16.mxu0 0
  %2561 = vmatpush1.bf16.msra.mxu0 0
  %2562 = vmatprep.subr.bf16.mxu0 0
  %2563 = vmatpush1.bf16.msra.mxu0 0
  %2564 = vmatprep.subr.bf16.mxu0 0
  %2565 = vmatpush1.bf16.msra.mxu0 0
  %2566 = vmatprep.subr.bf16.mxu0 0
  %2567 = vmatpush1.bf16.msra.mxu0 0
  %2568 = vmatprep.subr.bf16.mxu0 0
  %2569 = vmatpush1.bf16.msra.mxu0 0
  %2570 = vmatprep.subr.bf16.mxu0 0
  %2571 = vmatpush1.bf16.msra.mxu0 0
  %2572 = vmatprep.subr.bf16.mxu0 0
  %2573 = vmatpush1.bf16.msra.mxu0 0
  %2574 = vmatprep.subr.bf16.mxu0 0
  %2575 = vmatpush1.bf16.msra.mxu0 0
  %2576 = vmatprep.subr.bf16.mxu0 0
  %2577 = vmatpush1.bf16.msra.mxu0 0
  %2578 = vmatprep.mubr.bf16.mxu0 0
  %2579 = vmatmul.mubr.bf16.gmra.mrb[0].mxu0 %v2544
  %v2580 = vpop.f32.mrb[0].mxu0
  %v2581 = vadd.f32 0.0, %v2580
  %v2582 = vpop.f32.mrb[0].mxu0
  %v2583 = vpop.f32.mrb[0].mxu0
  %v2584 = vadd.f32 0.0, %v2583
  %v2585 = vpop.f32.mrb[0].mxu0
  %2586 = vdwg.mxu0
  %v2587 = vadd.f32 %v2369, %v2581
  %v2588 = vadd.f32 %v2370, %v2584
  %v2589 = vld [vmem:[%s4 + $0x5] sm:$0x1]
  %v2590 = vlaneseq
  %v2591 = vshrl.u32 %v2590, 7
  %v2592 = vsub.s32 0, %v2591
  %v2593 = vrot.slane %v2589, %v2592
  %v2594 = vadd.f32 %v2587, %v2593
  %v2595 = vadd.f32 %v2588, %v2593
  %v2596 = vld [vmem:[%s4 + $0x12] sm:$0x1]
  %v2597 = vld [vmem:[%s4 + $0x13] sm:$0x1]
  %v2598 = vsel %vm92, %v2594, 0.0
  %2599 = vadd.xlane.f32.xlu0 %v2598
  %v2600 = vpop.xlane.xlu0 %2599
  %v2601 = vsel %vm92, %v2595, 0.0
  %2602 = vadd.xlane.f32.xlu0 %v2601
  %v2603 = vpop.xlane.xlu0 %2602
  %v2604 = vmul.f32 %v2600, %v154
  %v2605 = vmul.f32 %v2603, %v154
  %v2606 = vsub.f32 %v2594, %v2604
  %v2607 = vsub.f32 %v2595, %v2605
  %v2608 = vmul.f32 %v2606, %v2606
  %v2609 = vmul.f32 %v2607, %v2607
  %v2610 = vsel %vm92, %v2608, 0.0
  %2611 = vadd.xlane.f32.xlu0 %v2610
  %v2612 = vpop.xlane.xlu0 %2611
  %v2613 = vsel %vm92, %v2609, 0.0
  %2614 = vadd.xlane.f32.xlu0 %v2613
  %v2615 = vpop.xlane.xlu0 %2614
  %v2616 = vmul.f32 %v2612, %v154
  %v2617 = vmul.f32 %v2615, %v154
  %v2618 = vadd.f32 %v2616, 1e-06
  %v2619 = vadd.f32 %v2617, 1e-06
  %v2620 = vrsqrt.pop %v2618
  %v2621 = vrsqrt.pop %v2619
  %v2622 = vmul.f32 %v2606, %v2620
  %v2623 = vmul.f32 %v2607, %v2621
  %v2624 = vlaneseq
  %v2625 = vshrl.u32 %v2624, 7
  %v2626 = vsub.s32 0, %v2625
  %v2627 = vrot.slane %v2596, %v2626
  %v2628 = vmul.f32 %v2622, %v2627
  %v2629 = vmul.f32 %v2623, %v2627
  %v2630 = vlaneseq
  %v2631 = vshrl.u32 %v2630, 7
  %v2632 = vsub.s32 0, %v2631
  %v2633 = vrot.slane %v2597, %v2632
  %v2634 = vadd.f32 %v2628, %v2633
  %v2635 = vadd.f32 %v2629, %v2633
  %v2636 = vpack.c.bf16 %v2634, %v2634
  %v2637 = vpack.c.bf16 %v2635, %v2635
  %v2638 = vld [vmem:[%s3 + $0x70] sm:$0xf]
  %v2639 = vld [vmem:[%s3 + $0x74] sm:$0xf]
  %v2640 = vld [vmem:[%s3 + $0x78] sm:$0xf]
  %v2641 = vld [vmem:[%s3 + $0x7c] sm:$0xf]
  %v2644 = vunpack.c.l.b16 %v2636
  %v2645 = vunpack.c.l.b16 %v2637
  %v2646 = vpack.c.b16 %v2645, %v2644
  %v2651 = vunpack.c.l.b16 %v2638
  %v2652 = vunpack.c.l.b16 %v2639
  %v2653 = vunpack.c.l.b16 %v2640
  %v2654 = vunpack.c.l.b16 %v2641
  %v2655 = vpack.c.b16 %v2652, %v2651
  %v2656 = vpack.c.b16 %v2654, %v2653
  %v2660 = vsel %vm92, %v2646, 0
  %2662 = vmatprep.subr.bf16.mxu0 0
  %2663 = vmatpush1.bf16.msra.mxu0 %v2655
  %2664 = vmatprep.subr.bf16.mxu0 0
  %2665 = vmatpush1.bf16.msra.mxu0 %v2656
  %2666 = vmatprep.subr.bf16.mxu0 0
  %2667 = vmatpush1.bf16.msra.mxu0 0
  %2668 = vmatprep.subr.bf16.mxu0 0
  %2669 = vmatpush1.bf16.msra.mxu0 0
  %2670 = vmatprep.subr.bf16.mxu0 0
  %2671 = vmatpush1.bf16.msra.mxu0 0
  %2672 = vmatprep.subr.bf16.mxu0 0
  %2673 = vmatpush1.bf16.msra.mxu0 0
  %2674 = vmatprep.subr.bf16.mxu0 0
  %2675 = vmatpush1.bf16.msra.mxu0 0
  %2676 = vmatprep.subr.bf16.mxu0 0
  %2677 = vmatpush1.bf16.msra.mxu0 0
  %2678 = vmatprep.subr.bf16.mxu0 0
  %2679 = vmatpush1.bf16.msra.mxu0 0
  %2680 = vmatprep.subr.bf16.mxu0 0
  %2681 = vmatpush1.bf16.msra.mxu0 0
  %2682 = vmatprep.subr.bf16.mxu0 0
  %2683 = vmatpush1.bf16.msra.mxu0 0
  %2684 = vmatprep.subr.bf16.mxu0 0
  %2685 = vmatpush1.bf16.msra.mxu0 0
  %2686 = vmatprep.subr.bf16.mxu0 0
  %2687 = vmatpush1.bf16.msra.mxu0 0
  %2688 = vmatprep.subr.bf16.mxu0 0
  %2689 = vmatpush1.bf16.msra.mxu0 0
  %2690 = vmatprep.subr.bf16.mxu0 0
  %2691 = vmatpush1.bf16.msra.mxu0 0
  %2692 = vmatprep.subr.bf16.mxu0 0
  %2693 = vmatpush1.bf16.msra.mxu0 0
  %2694 = vmatprep.mubr.bf16.mxu0 0
  %2695 = vmatmul.mubr.bf16.gmra.mrb[0].mxu0 %v2660
  %v2696 = vpop.f32.mrb[0].mxu0
  %v2697 = vadd.f32 0.0, %v2696
  %v2698 = vpop.f32.mrb[0].mxu0
  %v2699 = vpop.f32.mrb[0].mxu0
  %v2700 = vadd.f32 0.0, %v2699
  %v2701 = vpop.f32.mrb[0].mxu0
  %2702 = vdwg.mxu0
  %v2703 = vld [vmem:[%s4 + $0xc] sm:$0x1]
  %v2704 = vlaneseq
  %v2705 = vshrl.u32 %v2704, 7
  %v2706 = vsub.s32 0, %v2705
  %v2707 = vrot.slane %v2703, %v2706
  %v2708 = vadd.f32 %v2697, %v2707
  %v2709 = vadd.f32 %v2700, %v2707
  %v2710 = vpack.c.bf16 %v2708, %v2708
  %v2711 = vpack.c.bf16 %v2709, %v2709
  %2713 = vrot.lane.b32.xlu0 %v2710, 96
  %v2714 = vpop.permute.xlu0 %2713
  %v2716 = vsel %vm266, %v2710, 0
  %v2719 = vsel %vm266, %v2714, 0
  %2721 = vmatprep.subr.bf16.mxu0 0
  %2722 = vmatpush1.bf16.xpose.msra.mxu0 %v2719
  %2723 = vmatprep.subr.bf16.mxu0 0
  %2724 = vmatpush1.bf16.xpose.msra.mxu0 0
  %2725 = vmatprep.subr.bf16.mxu0 0
  %2726 = vmatpush1.bf16.xpose.msra.mxu0 0
  %2727 = vmatprep.subr.bf16.mxu0 0
  %2728 = vmatpush1.bf16.xpose.msra.mxu0 0
  %2729 = vmatprep.subr.bf16.mxu0 0
  %2730 = vmatpush1.bf16.xpose.msra.mxu0 0
  %2731 = vmatprep.subr.bf16.mxu0 0
  %2732 = vmatpush1.bf16.xpose.msra.mxu0 0
  %2733 = vmatprep.subr.bf16.mxu0 0
  %2734 = vmatpush1.bf16.xpose.msra.mxu0 0
  %2735 = vmatprep.subr.bf16.mxu0 0
  %2736 = vmatpush1.bf16.xpose.msra.mxu0 0
  %2737 = vmatprep.subr.bf16.mxu0 0
  %2738 = vmatpush1.bf16.xpose.msra.mxu0 0
  %2739 = vmatprep.subr.bf16.mxu0 0
  %2740 = vmatpush1.bf16.xpose.msra.mxu0 0
  %2741 = vmatprep.subr.bf16.mxu0 0
  %2742 = vmatpush1.bf16.xpose.msra.mxu0 0
  %2743 = vmatprep.subr.bf16.mxu0 0
  %2744 = vmatpush1.bf16.xpose.msra.mxu0 0
  %2745 = vmatprep.subr.bf16.mxu0 0
  %2746 = vmatpush1.bf16.xpose.msra.mxu0 0
  %2747 = vmatprep.subr.bf16.mxu0 0
  %2748 = vmatpush1.bf16.xpose.msra.mxu0 0
  %2749 = vmatprep.subr.bf16.mxu0 0
  %2750 = vmatpush1.bf16.xpose.msra.mxu0 0
  %2751 = vmatprep.subr.bf16.mxu0 0
  %2752 = vmatpush1.bf16.xpose.msra.mxu0 0
  %2753 = vmatprep.mubr.bf16.mxu0 0
  %2754 = vmatmul.mubr.bf16.gmra.mrb[0].mxu0 %v2716
  %v2755 = vpop.f32.mrb[0].mxu0
  %v2756 = vadd.f32 0.0, %v2755
  %v2757 = vpop.f32.mrb[0].mxu0
  %v2758 = vpop.f32.mrb[0].mxu0
  %v2759 = vpop.f32.mrb[0].mxu0
  %2760 = vdwg.mxu0
  %2762 = vrot.lane.b32.xlu0 %v2711, 96
  %v2763 = vpop.permute.xlu0 %2762
  %v2765 = vsel %vm266, %v2711, 0
  %v2768 = vsel %vm266, %v2763, 0
  %2770 = vmatprep.subr.bf16.mxu0 0
  %2771 = vmatpush1.bf16.xpose.msra.mxu0 %v2768
  %2772 = vmatprep.subr.bf16.mxu0 0
  %2773 = vmatpush1.bf16.xpose.msra.mxu0 0
  %2774 = vmatprep.subr.bf16.mxu0 0
  %2775 = vmatpush1.bf16.xpose.msra.mxu0 0
  %2776 = vmatprep.subr.bf16.mxu0 0
  %2777 = vmatpush1.bf16.xpose.msra.mxu0 0
  %2778 = vmatprep.subr.bf16.mxu0 0
  %2779 = vmatpush1.bf16.xpose.msra.mxu0 0
  %2780 = vmatprep.subr.bf16.mxu0 0
  %2781 = vmatpush1.bf16.xpose.msra.mxu0 0
  %2782 = vmatprep.subr.bf16.mxu0 0
  %2783 = vmatpush1.bf16.xpose.msra.mxu0 0
  %2784 = vmatprep.subr.bf16.mxu0 0
  %2785 = vmatpush1.bf16.xpose.msra.mxu0 0
  %2786 = vmatprep.subr.bf16.mxu0 0
  %2787 = vmatpush1.bf16.xpose.msra.mxu0 0
  %2788 = vmatprep.subr.bf16.mxu0 0
  %2789 = vmatpush1.bf16.xpose.msra.mxu0 0
  %2790 = vmatprep.subr.bf16.mxu0 0
  %2791 = vmatpush1.bf16.xpose.msra.mxu0 0
  %2792 = vmatprep.subr.bf16.mxu0 0
  %2793 = vmatpush1.bf16.xpose.msra.mxu0 0
  %2794 = vmatprep.subr.bf16.mxu0 0
  %2795 = vmatpush1.bf16.xpose.msra.mxu0 0
  %2796 = vmatprep.subr.bf16.mxu0 0
  %2797 = vmatpush1.bf16.xpose.msra.mxu0 0
  %2798 = vmatprep.subr.bf16.mxu0 0
  %2799 = vmatpush1.bf16.xpose.msra.mxu0 0
  %2800 = vmatprep.subr.bf16.mxu0 0
  %2801 = vmatpush1.bf16.xpose.msra.mxu0 0
  %2802 = vmatprep.mubr.bf16.mxu0 0
  %2803 = vmatmul.mubr.bf16.gmra.mrb[0].mxu0 %v2765
  %v2804 = vpop.f32.mrb[0].mxu0
  %v2805 = vadd.f32 0.0, %v2804
  %v2806 = vpop.f32.mrb[0].mxu0
  %v2807 = vpop.f32.mrb[0].mxu0
  %v2808 = vpop.f32.mrb[0].mxu0
  %2809 = vdwg.mxu0
  %2810 = vrot.lane.b32.xlu0 %v2710, 120
  %v2811 = vpop.permute.xlu0 %2810
  %2812 = vrot.lane.b32.xlu0 %v2710, 88
  %v2813 = vpop.permute.xlu0 %2812
  %v2815 = vsel %vm266, %v2811, 0
  %v2818 = vsel %vm266, %v2813, 0
  %2820 = vmatprep.subr.bf16.mxu0 0
  %2821 = vmatpush1.bf16.xpose.msra.mxu0 %v2818
  %2822 = vmatprep.subr.bf16.mxu0 0
  %2823 = vmatpush1.bf16.xpose.msra.mxu0 0
  %2824 = vmatprep.subr.bf16.mxu0 0
  %2825 = vmatpush1.bf16.xpose.msra.mxu0 0
  %2826 = vmatprep.subr.bf16.mxu0 0
  %2827 = vmatpush1.bf16.xpose.msra.mxu0 0
  %2828 = vmatprep.subr.bf16.mxu0 0
  %2829 = vmatpush1.bf16.xpose.msra.mxu0 0
  %2830 = vmatprep.subr.bf16.mxu0 0
  %2831 = vmatpush1.bf16.xpose.msra.mxu0 0
  %2832 = vmatprep.subr.bf16.mxu0 0
  %2833 = vmatpush1.bf16.xpose.msra.mxu0 0
  %2834 = vmatprep.subr.bf16.mxu0 0
  %2835 = vmatpush1.bf16.xpose.msra.mxu0 0
  %2836 = vmatprep.subr.bf16.mxu0 0
  %2837 = vmatpush1.bf16.xpose.msra.mxu0 0
  %2838 = vmatprep.subr.bf16.mxu0 0
  %2839 = vmatpush1.bf16.xpose.msra.mxu0 0
  %2840 = vmatprep.subr.bf16.mxu0 0
  %2841 = vmatpush1.bf16.xpose.msra.mxu0 0
  %2842 = vmatprep.subr.bf16.mxu0 0
  %2843 = vmatpush1.bf16.xpose.msra.mxu0 0
  %2844 = vmatprep.subr.bf16.mxu0 0
  %2845 = vmatpush1.bf16.xpose.msra.mxu0 0
  %2846 = vmatprep.subr.bf16.mxu0 0
  %2847 = vmatpush1.bf16.xpose.msra.mxu0 0
  %2848 = vmatprep.subr.bf16.mxu0 0
  %2849 = vmatpush1.bf16.xpose.msra.mxu0 0
  %2850 = vmatprep.subr.bf16.mxu0 0
  %2851 = vmatpush1.bf16.xpose.msra.mxu0 0
  %2852 = vmatprep.mubr.bf16.mxu0 0
  %2853 = vmatmul.mubr.bf16.gmra.mrb[0].mxu0 %v2815
  %v2854 = vpop.f32.mrb[0].mxu0
  %v2855 = vadd.f32 0.0, %v2854
  %v2856 = vpop.f32.mrb[0].mxu0
  %v2857 = vpop.f32.mrb[0].mxu0
  %v2858 = vpop.f32.mrb[0].mxu0
  %2859 = vdwg.mxu0
  %2860 = vrot.lane.b32.xlu0 %v2711, 120
  %v2861 = vpop.permute.xlu0 %2860
  %2862 = vrot.lane.b32.xlu0 %v2711, 88
  %v2863 = vpop.permute.xlu0 %2862
  %v2865 = vsel %vm266, %v2861, 0
  %v2868 = vsel %vm266, %v2863, 0
  %2870 = vmatprep.subr.bf16.mxu0 0
  %2871 = vmatpush1.bf16.xpose.msra.mxu0 %v2868
  %2872 = vmatprep.subr.bf16.mxu0 0
  %2873 = vmatpush1.bf16.xpose.msra.mxu0 0
  %2874 = vmatprep.subr.bf16.mxu0 0
  %2875 = vmatpush1.bf16.xpose.msra.mxu0 0
  %2876 = vmatprep.subr.bf16.mxu0 0
  %2877 = vmatpush1.bf16.xpose.msra.mxu0 0
  %2878 = vmatprep.subr.bf16.mxu0 0
  %2879 = vmatpush1.bf16.xpose.msra.mxu0 0
  %2880 = vmatprep.subr.bf16.mxu0 0
  %2881 = vmatpush1.bf16.xpose.msra.mxu0 0
  %2882 = vmatprep.subr.bf16.mxu0 0
  %2883 = vmatpush1.bf16.xpose.msra.mxu0 0
  %2884 = vmatprep.subr.bf16.mxu0 0
  %2885 = vmatpush1.bf16.xpose.msra.mxu0 0
  %2886 = vmatprep.subr.bf16.mxu0 0
  %2887 = vmatpush1.bf16.xpose.msra.mxu0 0
  %2888 = vmatprep.subr.bf16.mxu0 0
  %2889 = vmatpush1.bf16.xpose.msra.mxu0 0
  %2890 = vmatprep.subr.bf16.mxu0 0
  %2891 = vmatpush1.bf16.xpose.msra.mxu0 0
  %2892 = vmatprep.subr.bf16.mxu0 0
  %2893 = vmatpush1.bf16.xpose.msra.mxu0 0
  %2894 = vmatprep.subr.bf16.mxu0 0
  %2895 = vmatpush1.bf16.xpose.msra.mxu0 0
  %2896 = vmatprep.subr.bf16.mxu0 0
  %2897 = vmatpush1.bf16.xpose.msra.mxu0 0
  %2898 = vmatprep.subr.bf16.mxu0 0
  %2899 = vmatpush1.bf16.xpose.msra.mxu0 0
  %2900 = vmatprep.subr.bf16.mxu0 0
  %2901 = vmatpush1.bf16.xpose.msra.mxu0 0
  %2902 = vmatprep.mubr.bf16.mxu0 0
  %2903 = vmatmul.mubr.bf16.gmra.mrb[0].mxu0 %v2865
  %v2904 = vpop.f32.mrb[0].mxu0
  %v2905 = vadd.f32 0.0, %v2904
  %v2906 = vpop.f32.mrb[0].mxu0
  %v2907 = vpop.f32.mrb[0].mxu0
  %v2908 = vpop.f32.mrb[0].mxu0
  %2909 = vdwg.mxu0
  %2910 = vrot.lane.b32.xlu0 %v2710, 112
  %v2911 = vpop.permute.xlu0 %2910
  %2912 = vrot.lane.b32.xlu0 %v2710, 80
  %v2913 = vpop.permute.xlu0 %2912
  %v2915 = vsel %vm266, %v2911, 0
  %v2918 = vsel %vm266, %v2913, 0
  %2920 = vmatprep.subr.bf16.mxu0 0
  %2921 = vmatpush1.bf16.xpose.msra.mxu0 %v2918
  %2922 = vmatprep.subr.bf16.mxu0 0
  %2923 = vmatpush1.bf16.xpose.msra.mxu0 0
  %2924 = vmatprep.subr.bf16.mxu0 0
  %2925 = vmatpush1.bf16.xpose.msra.mxu0 0
  %2926 = vmatprep.subr.bf16.mxu0 0
  %2927 = vmatpush1.bf16.xpose.msra.mxu0 0
  %2928 = vmatprep.subr.bf16.mxu0 0
  %2929 = vmatpush1.bf16.xpose.msra.mxu0 0
  %2930 = vmatprep.subr.bf16.mxu0 0
  %2931 = vmatpush1.bf16.xpose.msra.mxu0 0
  %2932 = vmatprep.subr.bf16.mxu0 0
  %2933 = vmatpush1.bf16.xpose.msra.mxu0 0
  %2934 = vmatprep.subr.bf16.mxu0 0
  %2935 = vmatpush1.bf16.xpose.msra.mxu0 0
  %2936 = vmatprep.subr.bf16.mxu0 0
  %2937 = vmatpush1.bf16.xpose.msra.mxu0 0
  %2938 = vmatprep.subr.bf16.mxu0 0
  %2939 = vmatpush1.bf16.xpose.msra.mxu0 0
  %2940 = vmatprep.subr.bf16.mxu0 0
  %2941 = vmatpush1.bf16.xpose.msra.mxu0 0
  %2942 = vmatprep.subr.bf16.mxu0 0
  %2943 = vmatpush1.bf16.xpose.msra.mxu0 0
  %2944 = vmatprep.subr.bf16.mxu0 0
  %2945 = vmatpush1.bf16.xpose.msra.mxu0 0
  %2946 = vmatprep.subr.bf16.mxu0 0
  %2947 = vmatpush1.bf16.xpose.msra.mxu0 0
  %2948 = vmatprep.subr.bf16.mxu0 0
  %2949 = vmatpush1.bf16.xpose.msra.mxu0 0
  %2950 = vmatprep.subr.bf16.mxu0 0
  %2951 = vmatpush1.bf16.xpose.msra.mxu0 0
  %2952 = vmatprep.mubr.bf16.mxu0 0
  %2953 = vmatmul.mubr.bf16.gmra.mrb[0].mxu0 %v2915
  %v2954 = vpop.f32.mrb[0].mxu0
  %v2955 = vadd.f32 0.0, %v2954
  %v2956 = vpop.f32.mrb[0].mxu0
  %v2957 = vpop.f32.mrb[0].mxu0
  %v2958 = vpop.f32.mrb[0].mxu0
  %2959 = vdwg.mxu0
  %2960 = vrot.lane.b32.xlu0 %v2711, 112
  %v2961 = vpop.permute.xlu0 %2960
  %2962 = vrot.lane.b32.xlu0 %v2711, 80
  %v2963 = vpop.permute.xlu0 %2962
  %v2965 = vsel %vm266, %v2961, 0
  %v2968 = vsel %vm266, %v2963, 0
  %2970 = vmatprep.subr.bf16.mxu0 0
  %2971 = vmatpush1.bf16.xpose.msra.mxu0 %v2968
  %2972 = vmatprep.subr.bf16.mxu0 0
  %2973 = vmatpush1.bf16.xpose.msra.mxu0 0
  %2974 = vmatprep.subr.bf16.mxu0 0
  %2975 = vmatpush1.bf16.xpose.msra.mxu0 0
  %2976 = vmatprep.subr.bf16.mxu0 0
  %2977 = vmatpush1.bf16.xpose.msra.mxu0 0
  %2978 = vmatprep.subr.bf16.mxu0 0
  %2979 = vmatpush1.bf16.xpose.msra.mxu0 0
  %2980 = vmatprep.subr.bf16.mxu0 0
  %2981 = vmatpush1.bf16.xpose.msra.mxu0 0
  %2982 = vmatprep.subr.bf16.mxu0 0
  %2983 = vmatpush1.bf16.xpose.msra.mxu0 0
  %2984 = vmatprep.subr.bf16.mxu0 0
  %2985 = vmatpush1.bf16.xpose.msra.mxu0 0
  %2986 = vmatprep.subr.bf16.mxu0 0
  %2987 = vmatpush1.bf16.xpose.msra.mxu0 0
  %2988 = vmatprep.subr.bf16.mxu0 0
  %2989 = vmatpush1.bf16.xpose.msra.mxu0 0
  %2990 = vmatprep.subr.bf16.mxu0 0
  %2991 = vmatpush1.bf16.xpose.msra.mxu0 0
  %2992 = vmatprep.subr.bf16.mxu0 0
  %2993 = vmatpush1.bf16.xpose.msra.mxu0 0
  %2994 = vmatprep.subr.bf16.mxu0 0
  %2995 = vmatpush1.bf16.xpose.msra.mxu0 0
  %2996 = vmatprep.subr.bf16.mxu0 0
  %2997 = vmatpush1.bf16.xpose.msra.mxu0 0
  %2998 = vmatprep.subr.bf16.mxu0 0
  %2999 = vmatpush1.bf16.xpose.msra.mxu0 0
  %3000 = vmatprep.subr.bf16.mxu0 0
  %3001 = vmatpush1.bf16.xpose.msra.mxu0 0
  %3002 = vmatprep.mubr.bf16.mxu0 0
  %3003 = vmatmul.mubr.bf16.gmra.mrb[0].mxu0 %v2965
  %v3004 = vpop.f32.mrb[0].mxu0
  %v3005 = vadd.f32 0.0, %v3004
  %v3006 = vpop.f32.mrb[0].mxu0
  %v3007 = vpop.f32.mrb[0].mxu0
  %v3008 = vpop.f32.mrb[0].mxu0
  %3009 = vdwg.mxu0
  %3010 = vrot.lane.b32.xlu0 %v2710, 104
  %v3011 = vpop.permute.xlu0 %3010
  %3012 = vrot.lane.b32.xlu0 %v2710, 72
  %v3013 = vpop.permute.xlu0 %3012
  %v3015 = vsel %vm266, %v3011, 0
  %v3018 = vsel %vm266, %v3013, 0
  %3020 = vmatprep.subr.bf16.mxu0 0
  %3021 = vmatpush1.bf16.xpose.msra.mxu0 %v3018
  %3022 = vmatprep.subr.bf16.mxu0 0
  %3023 = vmatpush1.bf16.xpose.msra.mxu0 0
  %3024 = vmatprep.subr.bf16.mxu0 0
  %3025 = vmatpush1.bf16.xpose.msra.mxu0 0
  %3026 = vmatprep.subr.bf16.mxu0 0
  %3027 = vmatpush1.bf16.xpose.msra.mxu0 0
  %3028 = vmatprep.subr.bf16.mxu0 0
  %3029 = vmatpush1.bf16.xpose.msra.mxu0 0
  %3030 = vmatprep.subr.bf16.mxu0 0
  %3031 = vmatpush1.bf16.xpose.msra.mxu0 0
  %3032 = vmatprep.subr.bf16.mxu0 0
  %3033 = vmatpush1.bf16.xpose.msra.mxu0 0
  %3034 = vmatprep.subr.bf16.mxu0 0
  %3035 = vmatpush1.bf16.xpose.msra.mxu0 0
  %3036 = vmatprep.subr.bf16.mxu0 0
  %3037 = vmatpush1.bf16.xpose.msra.mxu0 0
  %3038 = vmatprep.subr.bf16.mxu0 0
  %3039 = vmatpush1.bf16.xpose.msra.mxu0 0
  %3040 = vmatprep.subr.bf16.mxu0 0
  %3041 = vmatpush1.bf16.xpose.msra.mxu0 0
  %3042 = vmatprep.subr.bf16.mxu0 0
  %3043 = vmatpush1.bf16.xpose.msra.mxu0 0
  %3044 = vmatprep.subr.bf16.mxu0 0
  %3045 = vmatpush1.bf16.xpose.msra.mxu0 0
  %3046 = vmatprep.subr.bf16.mxu0 0
  %3047 = vmatpush1.bf16.xpose.msra.mxu0 0
  %3048 = vmatprep.subr.bf16.mxu0 0
  %3049 = vmatpush1.bf16.xpose.msra.mxu0 0
  %3050 = vmatprep.subr.bf16.mxu0 0
  %3051 = vmatpush1.bf16.xpose.msra.mxu0 0
  %3052 = vmatprep.mubr.bf16.mxu0 0
  %3053 = vmatmul.mubr.bf16.gmra.mrb[0].mxu0 %v3015
  %v3054 = vpop.f32.mrb[0].mxu0
  %v3055 = vadd.f32 0.0, %v3054
  %v3056 = vpop.f32.mrb[0].mxu0
  %v3057 = vpop.f32.mrb[0].mxu0
  %v3058 = vpop.f32.mrb[0].mxu0
  %3059 = vdwg.mxu0
  %3060 = vrot.lane.b32.xlu0 %v2711, 104
  %v3061 = vpop.permute.xlu0 %3060
  %3062 = vrot.lane.b32.xlu0 %v2711, 72
  %v3063 = vpop.permute.xlu0 %3062
  %v3065 = vsel %vm266, %v3061, 0
  %v3068 = vsel %vm266, %v3063, 0
  %3070 = vmatprep.subr.bf16.mxu0 0
  %3071 = vmatpush1.bf16.xpose.msra.mxu0 %v3068
  %3072 = vmatprep.subr.bf16.mxu0 0
  %3073 = vmatpush1.bf16.xpose.msra.mxu0 0
  %3074 = vmatprep.subr.bf16.mxu0 0
  %3075 = vmatpush1.bf16.xpose.msra.mxu0 0
  %3076 = vmatprep.subr.bf16.mxu0 0
  %3077 = vmatpush1.bf16.xpose.msra.mxu0 0
  %3078 = vmatprep.subr.bf16.mxu0 0
  %3079 = vmatpush1.bf16.xpose.msra.mxu0 0
  %3080 = vmatprep.subr.bf16.mxu0 0
  %3081 = vmatpush1.bf16.xpose.msra.mxu0 0
  %3082 = vmatprep.subr.bf16.mxu0 0
  %3083 = vmatpush1.bf16.xpose.msra.mxu0 0
  %3084 = vmatprep.subr.bf16.mxu0 0
  %3085 = vmatpush1.bf16.xpose.msra.mxu0 0
  %3086 = vmatprep.subr.bf16.mxu0 0
  %3087 = vmatpush1.bf16.xpose.msra.mxu0 0
  %3088 = vmatprep.subr.bf16.mxu0 0
  %3089 = vmatpush1.bf16.xpose.msra.mxu0 0
  %3090 = vmatprep.subr.bf16.mxu0 0
  %3091 = vmatpush1.bf16.xpose.msra.mxu0 0
  %3092 = vmatprep.subr.bf16.mxu0 0
  %3093 = vmatpush1.bf16.xpose.msra.mxu0 0
  %3094 = vmatprep.subr.bf16.mxu0 0
  %3095 = vmatpush1.bf16.xpose.msra.mxu0 0
  %3096 = vmatprep.subr.bf16.mxu0 0
  %3097 = vmatpush1.bf16.xpose.msra.mxu0 0
  %3098 = vmatprep.subr.bf16.mxu0 0
  %3099 = vmatpush1.bf16.xpose.msra.mxu0 0
  %3100 = vmatprep.subr.bf16.mxu0 0
  %3101 = vmatpush1.bf16.xpose.msra.mxu0 0
  %3102 = vmatprep.mubr.bf16.mxu0 0
  %3103 = vmatmul.mubr.bf16.gmra.mrb[0].mxu0 %v3065
  %v3104 = vpop.f32.mrb[0].mxu0
  %v3105 = vadd.f32 0.0, %v3104
  %v3106 = vpop.f32.mrb[0].mxu0
  %v3107 = vpop.f32.mrb[0].mxu0
  %v3108 = vpop.f32.mrb[0].mxu0
  %3109 = vdwg.mxu0
  %v3110 = vadd.f32 %v2756, %v65
  %v3111 = vadd.f32 %v2855, %v65
  %v3112 = vadd.f32 %v2955, %v65
  %v3113 = vadd.f32 %v3055, %v65
  %v3114 = vadd.f32 %v2805, %v66
  %v3115 = vadd.f32 %v2905, %v66
  %v3116 = vadd.f32 %v3005, %v66
  %v3117 = vadd.f32 %v3105, %v66
  %v3118 = vsel %vm266, %v3110, -inf
  %3119 = vmax.xlane.f32.xlu0 %v3118
  %v3120 = vpop.xlane.xlu0 %3119
  %v3121 = vsel %vm266, %v3111, -inf
  %3122 = vmax.xlane.f32.xlu0 %v3121
  %v3123 = vpop.xlane.xlu0 %3122
  %v3124 = vsel %vm266, %v3112, -inf
  %3125 = vmax.xlane.f32.xlu0 %v3124
  %v3126 = vpop.xlane.xlu0 %3125
  %v3127 = vsel %vm266, %v3113, -inf
  %3128 = vmax.xlane.f32.xlu0 %v3127
  %v3129 = vpop.xlane.xlu0 %3128
  %v3130 = vsel %vm266, %v3114, -inf
  %3131 = vmax.xlane.f32.xlu0 %v3130
  %v3132 = vpop.xlane.xlu0 %3131
  %v3133 = vsel %vm266, %v3115, -inf
  %3134 = vmax.xlane.f32.xlu0 %v3133
  %v3135 = vpop.xlane.xlu0 %3134
  %v3136 = vsel %vm266, %v3116, -inf
  %3137 = vmax.xlane.f32.xlu0 %v3136
  %v3138 = vpop.xlane.xlu0 %3137
  %v3139 = vsel %vm266, %v3117, -inf
  %3140 = vmax.xlane.f32.xlu0 %v3139
  %v3141 = vpop.xlane.xlu0 %3140
  %v3142 = vsub.f32 %v3110, %v3120
  %v3143 = vsub.f32 %v3111, %v3123
  %v3144 = vsub.f32 %v3112, %v3126
  %v3145 = vsub.f32 %v3113, %v3129
  %v3146 = vsub.f32 %v3114, %v3132
  %v3147 = vsub.f32 %v3115, %v3135
  %v3148 = vsub.f32 %v3116, %v3138
  %v3149 = vsub.f32 %v3117, %v3141
  %v3150 = vmul.f32 %v3142, 1.442695
  %v3151 = vpow.pop %v3150
  %v3152 = vmul.f32 %v3143, 1.442695
  %v3153 = vpow.pop %v3152
  %v3154 = vmul.f32 %v3144, 1.442695
  %v3155 = vpow.pop %v3154
  %v3156 = vmul.f32 %v3145, 1.442695
  %v3157 = vpow.pop %v3156
  %v3158 = vmul.f32 %v3146, 1.442695
  %v3159 = vpow.pop %v3158
  %v3160 = vmul.f32 %v3147, 1.442695
  %v3161 = vpow.pop %v3160
  %v3162 = vmul.f32 %v3148, 1.442695
  %v3163 = vpow.pop %v3162
  %v3164 = vmul.f32 %v3149, 1.442695
  %v3165 = vpow.pop %v3164
  %v3166 = vsel %vm266, %v3151, 0.0
  %3167 = vadd.xlane.f32.xlu0 %v3166
  %v3168 = vpop.xlane.xlu0 %3167
  %v3169 = vsel %vm266, %v3153, 0.0
  %3170 = vadd.xlane.f32.xlu0 %v3169
  %v3171 = vpop.xlane.xlu0 %3170
  %v3172 = vsel %vm266, %v3155, 0.0
  %3173 = vadd.xlane.f32.xlu0 %v3172
  %v3174 = vpop.xlane.xlu0 %3173
  %v3175 = vsel %vm266, %v3157, 0.0
  %3176 = vadd.xlane.f32.xlu0 %v3175
  %v3177 = vpop.xlane.xlu0 %3176
  %v3178 = vsel %vm266, %v3159, 0.0
  %3179 = vadd.xlane.f32.xlu0 %v3178
  %v3180 = vpop.xlane.xlu0 %3179
  %v3181 = vsel %vm266, %v3161, 0.0
  %3182 = vadd.xlane.f32.xlu0 %v3181
  %v3183 = vpop.xlane.xlu0 %3182
  %v3184 = vsel %vm266, %v3163, 0.0
  %3185 = vadd.xlane.f32.xlu0 %v3184
  %v3186 = vpop.xlane.xlu0 %3185
  %v3187 = vsel %vm266, %v3165, 0.0
  %3188 = vadd.xlane.f32.xlu0 %v3187
  %v3189 = vpop.xlane.xlu0 %3188
  %v3190 = vrcp.pop %v3168
  %v3191 = vrcp.pop %v3171
  %v3192 = vrcp.pop %v3174
  %v3193 = vrcp.pop %v3177
  %v3194 = vrcp.pop %v3180
  %v3195 = vrcp.pop %v3183
  %v3196 = vrcp.pop %v3186
  %v3197 = vrcp.pop %v3189
  %v3198 = vmul.f32 %v3151, %v3190
  %v3199 = vmul.f32 %v3153, %v3191
  %v3200 = vmul.f32 %v3155, %v3192
  %v3201 = vmul.f32 %v3157, %v3193
  %v3202 = vmul.f32 %v3159, %v3194
  %v3203 = vmul.f32 %v3161, %v3195
  %v3204 = vmul.f32 %v3163, %v3196
  %v3205 = vmul.f32 %v3165, %v3197
  %v3206 = vpack.c.bf16 %v3198, %v3198
  %v3207 = vpack.c.bf16 %v3199, %v3199
  %v3208 = vpack.c.bf16 %v3200, %v3200
  %v3209 = vpack.c.bf16 %v3201, %v3201
  %v3210 = vpack.c.bf16 %v3202, %v3202
  %v3211 = vpack.c.bf16 %v3203, %v3203
  %v3212 = vpack.c.bf16 %v3204, %v3204
  %v3213 = vpack.c.bf16 %v3205, %v3205
  %3214 = vrot.lane.b32.xlu0 %v2710, 64
  %v3215 = vpop.permute.xlu0 %3214
  %v3217 = vsel %vm266, %v3206, 0
  %v3220 = vsel %vm771, %v3215, 0
  %3222 = vmatprep.subr.bf16.mxu0 0
  %3223 = vmatpush1.bf16.msra.mxu0 %v3220
  %3224 = vmatprep.subr.bf16.mxu0 0
  %3225 = vmatpush1.bf16.msra.mxu0 0
  %3226 = vmatprep.subr.bf16.mxu0 0
  %3227 = vmatpush1.bf16.msra.mxu0 0
  %3228 = vmatprep.subr.bf16.mxu0 0
  %3229 = vmatpush1.bf16.msra.mxu0 0
  %3230 = vmatprep.subr.bf16.mxu0 0
  %3231 = vmatpush1.bf16.msra.mxu0 0
  %3232 = vmatprep.subr.bf16.mxu0 0
  %3233 = vmatpush1.bf16.msra.mxu0 0
  %3234 = vmatprep.subr.bf16.mxu0 0
  %3235 = vmatpush1.bf16.msra.mxu0 0
  %3236 = vmatprep.subr.bf16.mxu0 0
  %3237 = vmatpush1.bf16.msra.mxu0 0
  %3238 = vmatprep.subr.bf16.mxu0 0
  %3239 = vmatpush1.bf16.msra.mxu0 0
  %3240 = vmatprep.subr.bf16.mxu0 0
  %3241 = vmatpush1.bf16.msra.mxu0 0
  %3242 = vmatprep.subr.bf16.mxu0 0
  %3243 = vmatpush1.bf16.msra.mxu0 0
  %3244 = vmatprep.subr.bf16.mxu0 0
  %3245 = vmatpush1.bf16.msra.mxu0 0
  %3246 = vmatprep.subr.bf16.mxu0 0
  %3247 = vmatpush1.bf16.msra.mxu0 0
  %3248 = vmatprep.subr.bf16.mxu0 0
  %3249 = vmatpush1.bf16.msra.mxu0 0
  %3250 = vmatprep.subr.bf16.mxu0 0
  %3251 = vmatpush1.bf16.msra.mxu0 0
  %3252 = vmatprep.subr.bf16.mxu0 0
  %3253 = vmatpush1.bf16.msra.mxu0 0
  %3254 = vmatprep.mubr.bf16.mxu0 0
  %3255 = vmatmul.mubr.bf16.gmra.mrb[0].mxu0 %v3217
  %v3256 = vpop.f32.mrb[0].mxu0
  %v3257 = vadd.f32 0.0, %v3256
  %v3258 = vpop.f32.mrb[0].mxu0
  %v3259 = vpop.f32.mrb[0].mxu0
  %v3260 = vpop.f32.mrb[0].mxu0
  %3261 = vdwg.mxu0
  %3262 = vrot.lane.b32.xlu0 %v2711, 64
  %v3263 = vpop.permute.xlu0 %3262
  %v3265 = vsel %vm266, %v3210, 0
  %v3268 = vsel %vm771, %v3263, 0
  %3270 = vmatprep.subr.bf16.mxu0 0
  %3271 = vmatpush1.bf16.msra.mxu0 %v3268
  %3272 = vmatprep.subr.bf16.mxu0 0
  %3273 = vmatpush1.bf16.msra.mxu0 0
  %3274 = vmatprep.subr.bf16.mxu0 0
  %3275 = vmatpush1.bf16.msra.mxu0 0
  %3276 = vmatprep.subr.bf16.mxu0 0
  %3277 = vmatpush1.bf16.msra.mxu0 0
  %3278 = vmatprep.subr.bf16.mxu0 0
  %3279 = vmatpush1.bf16.msra.mxu0 0
  %3280 = vmatprep.subr.bf16.mxu0 0
  %3281 = vmatpush1.bf16.msra.mxu0 0
  %3282 = vmatprep.subr.bf16.mxu0 0
  %3283 = vmatpush1.bf16.msra.mxu0 0
  %3284 = vmatprep.subr.bf16.mxu0 0
  %3285 = vmatpush1.bf16.msra.mxu0 0
  %3286 = vmatprep.subr.bf16.mxu0 0
  %3287 = vmatpush1.bf16.msra.mxu0 0
  %3288 = vmatprep.subr.bf16.mxu0 0
  %3289 = vmatpush1.bf16.msra.mxu0 0
  %3290 = vmatprep.subr.bf16.mxu0 0
  %3291 = vmatpush1.bf16.msra.mxu0 0
  %3292 = vmatprep.subr.bf16.mxu0 0
  %3293 = vmatpush1.bf16.msra.mxu0 0
  %3294 = vmatprep.subr.bf16.mxu0 0
  %3295 = vmatpush1.bf16.msra.mxu0 0
  %3296 = vmatprep.subr.bf16.mxu0 0
  %3297 = vmatpush1.bf16.msra.mxu0 0
  %3298 = vmatprep.subr.bf16.mxu0 0
  %3299 = vmatpush1.bf16.msra.mxu0 0
  %3300 = vmatprep.subr.bf16.mxu0 0
  %3301 = vmatpush1.bf16.msra.mxu0 0
  %3302 = vmatprep.mubr.bf16.mxu0 0
  %3303 = vmatmul.mubr.bf16.gmra.mrb[0].mxu0 %v3265
  %v3304 = vpop.f32.mrb[0].mxu0
  %v3305 = vadd.f32 0.0, %v3304
  %v3306 = vpop.f32.mrb[0].mxu0
  %v3307 = vpop.f32.mrb[0].mxu0
  %v3308 = vpop.f32.mrb[0].mxu0
  %3309 = vdwg.mxu0
  %3310 = vrot.lane.b32.xlu0 %v2710, 56
  %v3311 = vpop.permute.xlu0 %3310
  %v3313 = vsel %vm266, %v3207, 0
  %v3316 = vsel %vm771, %v3311, 0
  %3318 = vmatprep.subr.bf16.mxu0 0
  %3319 = vmatpush1.bf16.msra.mxu0 %v3316
  %3320 = vmatprep.subr.bf16.mxu0 0
  %3321 = vmatpush1.bf16.msra.mxu0 0
  %3322 = vmatprep.subr.bf16.mxu0 0
  %3323 = vmatpush1.bf16.msra.mxu0 0
  %3324 = vmatprep.subr.bf16.mxu0 0
  %3325 = vmatpush1.bf16.msra.mxu0 0
  %3326 = vmatprep.subr.bf16.mxu0 0
  %3327 = vmatpush1.bf16.msra.mxu0 0
  %3328 = vmatprep.subr.bf16.mxu0 0
  %3329 = vmatpush1.bf16.msra.mxu0 0
  %3330 = vmatprep.subr.bf16.mxu0 0
  %3331 = vmatpush1.bf16.msra.mxu0 0
  %3332 = vmatprep.subr.bf16.mxu0 0
  %3333 = vmatpush1.bf16.msra.mxu0 0
  %3334 = vmatprep.subr.bf16.mxu0 0
  %3335 = vmatpush1.bf16.msra.mxu0 0
  %3336 = vmatprep.subr.bf16.mxu0 0
  %3337 = vmatpush1.bf16.msra.mxu0 0
  %3338 = vmatprep.subr.bf16.mxu0 0
  %3339 = vmatpush1.bf16.msra.mxu0 0
  %3340 = vmatprep.subr.bf16.mxu0 0
  %3341 = vmatpush1.bf16.msra.mxu0 0
  %3342 = vmatprep.subr.bf16.mxu0 0
  %3343 = vmatpush1.bf16.msra.mxu0 0
  %3344 = vmatprep.subr.bf16.mxu0 0
  %3345 = vmatpush1.bf16.msra.mxu0 0
  %3346 = vmatprep.subr.bf16.mxu0 0
  %3347 = vmatpush1.bf16.msra.mxu0 0
  %3348 = vmatprep.subr.bf16.mxu0 0
  %3349 = vmatpush1.bf16.msra.mxu0 0
  %3350 = vmatprep.mubr.bf16.mxu0 0
  %3351 = vmatmul.mubr.bf16.gmra.mrb[0].mxu0 %v3313
  %v3352 = vpop.f32.mrb[0].mxu0
  %v3353 = vadd.f32 0.0, %v3352
  %v3354 = vpop.f32.mrb[0].mxu0
  %v3355 = vpop.f32.mrb[0].mxu0
  %v3356 = vpop.f32.mrb[0].mxu0
  %3357 = vdwg.mxu0
  %3358 = vrot.lane.b32.xlu0 %v2711, 56
  %v3359 = vpop.permute.xlu0 %3358
  %v3361 = vsel %vm266, %v3211, 0
  %v3364 = vsel %vm771, %v3359, 0
  %3366 = vmatprep.subr.bf16.mxu0 0
  %3367 = vmatpush1.bf16.msra.mxu0 %v3364
  %3368 = vmatprep.subr.bf16.mxu0 0
  %3369 = vmatpush1.bf16.msra.mxu0 0
  %3370 = vmatprep.subr.bf16.mxu0 0
  %3371 = vmatpush1.bf16.msra.mxu0 0
  %3372 = vmatprep.subr.bf16.mxu0 0
  %3373 = vmatpush1.bf16.msra.mxu0 0
  %3374 = vmatprep.subr.bf16.mxu0 0
  %3375 = vmatpush1.bf16.msra.mxu0 0
  %3376 = vmatprep.subr.bf16.mxu0 0
  %3377 = vmatpush1.bf16.msra.mxu0 0
  %3378 = vmatprep.subr.bf16.mxu0 0
  %3379 = vmatpush1.bf16.msra.mxu0 0
  %3380 = vmatprep.subr.bf16.mxu0 0
  %3381 = vmatpush1.bf16.msra.mxu0 0
  %3382 = vmatprep.subr.bf16.mxu0 0
  %3383 = vmatpush1.bf16.msra.mxu0 0
  %3384 = vmatprep.subr.bf16.mxu0 0
  %3385 = vmatpush1.bf16.msra.mxu0 0
  %3386 = vmatprep.subr.bf16.mxu0 0
  %3387 = vmatpush1.bf16.msra.mxu0 0
  %3388 = vmatprep.subr.bf16.mxu0 0
  %3389 = vmatpush1.bf16.msra.mxu0 0
  %3390 = vmatprep.subr.bf16.mxu0 0
  %3391 = vmatpush1.bf16.msra.mxu0 0
  %3392 = vmatprep.subr.bf16.mxu0 0
  %3393 = vmatpush1.bf16.msra.mxu0 0
  %3394 = vmatprep.subr.bf16.mxu0 0
  %3395 = vmatpush1.bf16.msra.mxu0 0
  %3396 = vmatprep.subr.bf16.mxu0 0
  %3397 = vmatpush1.bf16.msra.mxu0 0
  %3398 = vmatprep.mubr.bf16.mxu0 0
  %3399 = vmatmul.mubr.bf16.gmra.mrb[0].mxu0 %v3361
  %v3400 = vpop.f32.mrb[0].mxu0
  %v3401 = vadd.f32 0.0, %v3400
  %v3402 = vpop.f32.mrb[0].mxu0
  %v3403 = vpop.f32.mrb[0].mxu0
  %v3404 = vpop.f32.mrb[0].mxu0
  %3405 = vdwg.mxu0
  %3406 = vrot.lane.b32.xlu0 %v2710, 48
  %v3407 = vpop.permute.xlu0 %3406
  %v3409 = vsel %vm266, %v3208, 0
  %v3412 = vsel %vm771, %v3407, 0
  %3414 = vmatprep.subr.bf16.mxu0 0
  %3415 = vmatpush1.bf16.msra.mxu0 %v3412
  %3416 = vmatprep.subr.bf16.mxu0 0
  %3417 = vmatpush1.bf16.msra.mxu0 0
  %3418 = vmatprep.subr.bf16.mxu0 0
  %3419 = vmatpush1.bf16.msra.mxu0 0
  %3420 = vmatprep.subr.bf16.mxu0 0
  %3421 = vmatpush1.bf16.msra.mxu0 0
  %3422 = vmatprep.subr.bf16.mxu0 0
  %3423 = vmatpush1.bf16.msra.mxu0 0
  %3424 = vmatprep.subr.bf16.mxu0 0
  %3425 = vmatpush1.bf16.msra.mxu0 0
  %3426 = vmatprep.subr.bf16.mxu0 0
  %3427 = vmatpush1.bf16.msra.mxu0 0
  %3428 = vmatprep.subr.bf16.mxu0 0
  %3429 = vmatpush1.bf16.msra.mxu0 0
  %3430 = vmatprep.subr.bf16.mxu0 0
  %3431 = vmatpush1.bf16.msra.mxu0 0
  %3432 = vmatprep.subr.bf16.mxu0 0
  %3433 = vmatpush1.bf16.msra.mxu0 0
  %3434 = vmatprep.subr.bf16.mxu0 0
  %3435 = vmatpush1.bf16.msra.mxu0 0
  %3436 = vmatprep.subr.bf16.mxu0 0
  %3437 = vmatpush1.bf16.msra.mxu0 0
  %3438 = vmatprep.subr.bf16.mxu0 0
  %3439 = vmatpush1.bf16.msra.mxu0 0
  %3440 = vmatprep.subr.bf16.mxu0 0
  %3441 = vmatpush1.bf16.msra.mxu0 0
  %3442 = vmatprep.subr.bf16.mxu0 0
  %3443 = vmatpush1.bf16.msra.mxu0 0
  %3444 = vmatprep.subr.bf16.mxu0 0
  %3445 = vmatpush1.bf16.msra.mxu0 0
  %3446 = vmatprep.mubr.bf16.mxu0 0
  %3447 = vmatmul.mubr.bf16.gmra.mrb[0].mxu0 %v3409
  %v3448 = vpop.f32.mrb[0].mxu0
  %v3449 = vadd.f32 0.0, %v3448
  %v3450 = vpop.f32.mrb[0].mxu0
  %v3451 = vpop.f32.mrb[0].mxu0
  %v3452 = vpop.f32.mrb[0].mxu0
  %3453 = vdwg.mxu0
  %3454 = vrot.lane.b32.xlu0 %v2711, 48
  %v3455 = vpop.permute.xlu0 %3454
  %v3457 = vsel %vm266, %v3212, 0
  %v3460 = vsel %vm771, %v3455, 0
  %3462 = vmatprep.subr.bf16.mxu0 0
  %3463 = vmatpush1.bf16.msra.mxu0 %v3460
  %3464 = vmatprep.subr.bf16.mxu0 0
  %3465 = vmatpush1.bf16.msra.mxu0 0
  %3466 = vmatprep.subr.bf16.mxu0 0
  %3467 = vmatpush1.bf16.msra.mxu0 0
  %3468 = vmatprep.subr.bf16.mxu0 0
  %3469 = vmatpush1.bf16.msra.mxu0 0
  %3470 = vmatprep.subr.bf16.mxu0 0
  %3471 = vmatpush1.bf16.msra.mxu0 0
  %3472 = vmatprep.subr.bf16.mxu0 0
  %3473 = vmatpush1.bf16.msra.mxu0 0
  %3474 = vmatprep.subr.bf16.mxu0 0
  %3475 = vmatpush1.bf16.msra.mxu0 0
  %3476 = vmatprep.subr.bf16.mxu0 0
  %3477 = vmatpush1.bf16.msra.mxu0 0
  %3478 = vmatprep.subr.bf16.mxu0 0
  %3479 = vmatpush1.bf16.msra.mxu0 0
  %3480 = vmatprep.subr.bf16.mxu0 0
  %3481 = vmatpush1.bf16.msra.mxu0 0
  %3482 = vmatprep.subr.bf16.mxu0 0
  %3483 = vmatpush1.bf16.msra.mxu0 0
  %3484 = vmatprep.subr.bf16.mxu0 0
  %3485 = vmatpush1.bf16.msra.mxu0 0
  %3486 = vmatprep.subr.bf16.mxu0 0
  %3487 = vmatpush1.bf16.msra.mxu0 0
  %3488 = vmatprep.subr.bf16.mxu0 0
  %3489 = vmatpush1.bf16.msra.mxu0 0
  %3490 = vmatprep.subr.bf16.mxu0 0
  %3491 = vmatpush1.bf16.msra.mxu0 0
  %3492 = vmatprep.subr.bf16.mxu0 0
  %3493 = vmatpush1.bf16.msra.mxu0 0
  %3494 = vmatprep.mubr.bf16.mxu0 0
  %3495 = vmatmul.mubr.bf16.gmra.mrb[0].mxu0 %v3457
  %v3496 = vpop.f32.mrb[0].mxu0
  %v3497 = vadd.f32 0.0, %v3496
  %v3498 = vpop.f32.mrb[0].mxu0
  %v3499 = vpop.f32.mrb[0].mxu0
  %v3500 = vpop.f32.mrb[0].mxu0
  %3501 = vdwg.mxu0
  %3502 = vrot.lane.b32.xlu0 %v2710, 40
  %v3503 = vpop.permute.xlu0 %3502
  %v3505 = vsel %vm266, %v3209, 0
  %v3508 = vsel %vm771, %v3503, 0
  %3510 = vmatprep.subr.bf16.mxu0 0
  %3511 = vmatpush1.bf16.msra.mxu0 %v3508
  %3512 = vmatprep.subr.bf16.mxu0 0
  %3513 = vmatpush1.bf16.msra.mxu0 0
  %3514 = vmatprep.subr.bf16.mxu0 0
  %3515 = vmatpush1.bf16.msra.mxu0 0
  %3516 = vmatprep.subr.bf16.mxu0 0
  %3517 = vmatpush1.bf16.msra.mxu0 0
  %3518 = vmatprep.subr.bf16.mxu0 0
  %3519 = vmatpush1.bf16.msra.mxu0 0
  %3520 = vmatprep.subr.bf16.mxu0 0
  %3521 = vmatpush1.bf16.msra.mxu0 0
  %3522 = vmatprep.subr.bf16.mxu0 0
  %3523 = vmatpush1.bf16.msra.mxu0 0
  %3524 = vmatprep.subr.bf16.mxu0 0
  %3525 = vmatpush1.bf16.msra.mxu0 0
  %3526 = vmatprep.subr.bf16.mxu0 0
  %3527 = vmatpush1.bf16.msra.mxu0 0
  %3528 = vmatprep.subr.bf16.mxu0 0
  %3529 = vmatpush1.bf16.msra.mxu0 0
  %3530 = vmatprep.subr.bf16.mxu0 0
  %3531 = vmatpush1.bf16.msra.mxu0 0
  %3532 = vmatprep.subr.bf16.mxu0 0
  %3533 = vmatpush1.bf16.msra.mxu0 0
  %3534 = vmatprep.subr.bf16.mxu0 0
  %3535 = vmatpush1.bf16.msra.mxu0 0
  %3536 = vmatprep.subr.bf16.mxu0 0
  %3537 = vmatpush1.bf16.msra.mxu0 0
  %3538 = vmatprep.subr.bf16.mxu0 0
  %3539 = vmatpush1.bf16.msra.mxu0 0
  %3540 = vmatprep.subr.bf16.mxu0 0
  %3541 = vmatpush1.bf16.msra.mxu0 0
  %3542 = vmatprep.mubr.bf16.mxu0 0
  %3543 = vmatmul.mubr.bf16.gmra.mrb[0].mxu0 %v3505
  %v3544 = vpop.f32.mrb[0].mxu0
  %v3545 = vadd.f32 0.0, %v3544
  %v3546 = vpop.f32.mrb[0].mxu0
  %v3547 = vpop.f32.mrb[0].mxu0
  %v3548 = vpop.f32.mrb[0].mxu0
  %3549 = vdwg.mxu0
  %3550 = vrot.lane.b32.xlu0 %v2711, 40
  %v3551 = vpop.permute.xlu0 %3550
  %v3553 = vsel %vm266, %v3213, 0
  %v3556 = vsel %vm771, %v3551, 0
  %3558 = vmatprep.subr.bf16.mxu0 0
  %3559 = vmatpush1.bf16.msra.mxu0 %v3556
  %3560 = vmatprep.subr.bf16.mxu0 0
  %3561 = vmatpush1.bf16.msra.mxu0 0
  %3562 = vmatprep.subr.bf16.mxu0 0
  %3563 = vmatpush1.bf16.msra.mxu0 0
  %3564 = vmatprep.subr.bf16.mxu0 0
  %3565 = vmatpush1.bf16.msra.mxu0 0
  %3566 = vmatprep.subr.bf16.mxu0 0
  %3567 = vmatpush1.bf16.msra.mxu0 0
  %3568 = vmatprep.subr.bf16.mxu0 0
  %3569 = vmatpush1.bf16.msra.mxu0 0
  %3570 = vmatprep.subr.bf16.mxu0 0
  %3571 = vmatpush1.bf16.msra.mxu0 0
  %3572 = vmatprep.subr.bf16.mxu0 0
  %3573 = vmatpush1.bf16.msra.mxu0 0
  %3574 = vmatprep.subr.bf16.mxu0 0
  %3575 = vmatpush1.bf16.msra.mxu0 0
  %3576 = vmatprep.subr.bf16.mxu0 0
  %3577 = vmatpush1.bf16.msra.mxu0 0
  %3578 = vmatprep.subr.bf16.mxu0 0
  %3579 = vmatpush1.bf16.msra.mxu0 0
  %3580 = vmatprep.subr.bf16.mxu0 0
  %3581 = vmatpush1.bf16.msra.mxu0 0
  %3582 = vmatprep.subr.bf16.mxu0 0
  %3583 = vmatpush1.bf16.msra.mxu0 0
  %3584 = vmatprep.subr.bf16.mxu0 0
  %3585 = vmatpush1.bf16.msra.mxu0 0
  %3586 = vmatprep.subr.bf16.mxu0 0
  %3587 = vmatpush1.bf16.msra.mxu0 0
  %3588 = vmatprep.subr.bf16.mxu0 0
  %3589 = vmatpush1.bf16.msra.mxu0 0
  %3590 = vmatprep.mubr.bf16.mxu0 0
  %3591 = vmatmul.mubr.bf16.gmra.mrb[0].mxu0 %v3553
  %v3592 = vpop.f32.mrb[0].mxu0
  %v3593 = vadd.f32 0.0, %v3592
  %v3594 = vpop.f32.mrb[0].mxu0
  %v3595 = vpop.f32.mrb[0].mxu0
  %v3596 = vpop.f32.mrb[0].mxu0
  %3597 = vdwg.mxu0
  %3600 = vrot.lane.b32.xlu0 %v3353, 8
  %v3601 = vpop.permute.xlu0 %3600
  %3602 = vrot.lane.b32.xlu0 %v3401, 8
  %v3603 = vpop.permute.xlu0 %3602
  %3608 = vrot.lane.b32.xlu0 %v3449, 16
  %v3609 = vpop.permute.xlu0 %3608
  %3610 = vrot.lane.b32.xlu0 %v3497, 16
  %v3611 = vpop.permute.xlu0 %3610
  %3616 = vrot.lane.b32.xlu0 %v3545, 24
  %v3617 = vpop.permute.xlu0 %3616
  %3618 = vrot.lane.b32.xlu0 %v3593, 24
  %v3619 = vpop.permute.xlu0 %3618
  %v3622 = vsel %vm266, %v3257, %v3601
  %v3623 = vsel %vm266, %v3305, %v3603
  %v3624 = vsel %vm1177, %v3622, %v3609
  %v3625 = vsel %vm1177, %v3623, %v3611
  %v3626 = vsel %vm1180, %v3624, %v3617
  %v3627 = vsel %vm1180, %v3625, %v3619
  %v3628 = vpack.c.bf16 %v3626, %v3626
  %v3629 = vpack.c.bf16 %v3627, %v3627
  %v3630 = vld [vmem:[%s3 + $0x80] sm:$0xf]
  %v3631 = vld [vmem:[%s3 + $0x84] sm:$0xf]
  %v3632 = vld [vmem:[%s3 + $0x88] sm:$0xf]
  %v3633 = vld [vmem:[%s3 + $0x8c] sm:$0xf]
  %v3636 = vunpack.c.l.b16 %v3628
  %v3637 = vunpack.c.l.b16 %v3629
  %v3638 = vpack.c.b16 %v3637, %v3636
  %v3643 = vunpack.c.l.b16 %v3630
  %v3644 = vunpack.c.l.b16 %v3631
  %v3645 = vunpack.c.l.b16 %v3632
  %v3646 = vunpack.c.l.b16 %v3633
  %v3647 = vpack.c.b16 %v3644, %v3643
  %v3648 = vpack.c.b16 %v3646, %v3645
  %v3652 = vsel %vm92, %v3638, 0
  %3654 = vmatprep.subr.bf16.mxu0 0
  %3655 = vmatpush1.bf16.msra.mxu0 %v3647
  %3656 = vmatprep.subr.bf16.mxu0 0
  %3657 = vmatpush1.bf16.msra.mxu0 %v3648
  %3658 = vmatprep.subr.bf16.mxu0 0
  %3659 = vmatpush1.bf16.msra.mxu0 0
  %3660 = vmatprep.subr.bf16.mxu0 0
  %3661 = vmatpush1.bf16.msra.mxu0 0
  %3662 = vmatprep.subr.bf16.mxu0 0
  %3663 = vmatpush1.bf16.msra.mxu0 0
  %3664 = vmatprep.subr.bf16.mxu0 0
  %3665 = vmatpush1.bf16.msra.mxu0 0
  %3666 = vmatprep.subr.bf16.mxu0 0
  %3667 = vmatpush1.bf16.msra.mxu0 0
  %3668 = vmatprep.subr.bf16.mxu0 0
  %3669 = vmatpush1.bf16.msra.mxu0 0
  %3670 = vmatprep.subr.bf16.mxu0 0
  %3671 = vmatpush1.bf16.msra.mxu0 0
  %3672 = vmatprep.subr.bf16.mxu0 0
  %3673 = vmatpush1.bf16.msra.mxu0 0
  %3674 = vmatprep.subr.bf16.mxu0 0
  %3675 = vmatpush1.bf16.msra.mxu0 0
  %3676 = vmatprep.subr.bf16.mxu0 0
  %3677 = vmatpush1.bf16.msra.mxu0 0
  %3678 = vmatprep.subr.bf16.mxu0 0
  %3679 = vmatpush1.bf16.msra.mxu0 0
  %3680 = vmatprep.subr.bf16.mxu0 0
  %3681 = vmatpush1.bf16.msra.mxu0 0
  %3682 = vmatprep.subr.bf16.mxu0 0
  %3683 = vmatpush1.bf16.msra.mxu0 0
  %3684 = vmatprep.subr.bf16.mxu0 0
  %3685 = vmatpush1.bf16.msra.mxu0 0
  %3686 = vmatprep.mubr.bf16.mxu0 0
  %3687 = vmatmul.mubr.bf16.gmra.mrb[0].mxu0 %v3652
  %v3688 = vpop.f32.mrb[0].mxu0
  %v3689 = vadd.f32 0.0, %v3688
  %v3690 = vpop.f32.mrb[0].mxu0
  %v3691 = vpop.f32.mrb[0].mxu0
  %v3692 = vadd.f32 0.0, %v3691
  %v3693 = vpop.f32.mrb[0].mxu0
  %3694 = vdwg.mxu0
  %v3695 = vadd.f32 %v2594, %v3689
  %v3696 = vadd.f32 %v2595, %v3692
  %v3697 = vld [vmem:[%s4 + $0xd] sm:$0x1]
  %v3698 = vlaneseq
  %v3699 = vshrl.u32 %v3698, 7
  %v3700 = vsub.s32 0, %v3699
  %v3701 = vrot.slane %v3697, %v3700
  %v3702 = vadd.f32 %v3695, %v3701
  %v3703 = vadd.f32 %v3696, %v3701
  %v3704 = vld [vmem:[%s4 + $0x14] sm:$0x1]
  %v3705 = vld [vmem:[%s4 + $0x15] sm:$0x1]
  %v3706 = vsel %vm92, %v3702, 0.0
  %3707 = vadd.xlane.f32.xlu0 %v3706
  %v3708 = vpop.xlane.xlu0 %3707
  %v3709 = vsel %vm92, %v3703, 0.0
  %3710 = vadd.xlane.f32.xlu0 %v3709
  %v3711 = vpop.xlane.xlu0 %3710
  %v3712 = vmul.f32 %v3708, %v154
  %v3713 = vmul.f32 %v3711, %v154
  %v3714 = vsub.f32 %v3702, %v3712
  %v3715 = vsub.f32 %v3703, %v3713
  %v3716 = vmul.f32 %v3714, %v3714
  %v3717 = vmul.f32 %v3715, %v3715
  %v3718 = vsel %vm92, %v3716, 0.0
  %3719 = vadd.xlane.f32.xlu0 %v3718
  %v3720 = vpop.xlane.xlu0 %3719
  %v3721 = vsel %vm92, %v3717, 0.0
  %3722 = vadd.xlane.f32.xlu0 %v3721
  %v3723 = vpop.xlane.xlu0 %3722
  %v3724 = vmul.f32 %v3720, %v154
  %v3725 = vmul.f32 %v3723, %v154
  %v3726 = vadd.f32 %v3724, 1e-06
  %v3727 = vadd.f32 %v3725, 1e-06
  %v3728 = vrsqrt.pop %v3726
  %v3729 = vrsqrt.pop %v3727
  %v3730 = vmul.f32 %v3714, %v3728
  %v3731 = vmul.f32 %v3715, %v3729
  %v3732 = vlaneseq
  %v3733 = vshrl.u32 %v3732, 7
  %v3734 = vsub.s32 0, %v3733
  %v3735 = vrot.slane %v3704, %v3734
  %v3736 = vmul.f32 %v3730, %v3735
  %v3737 = vmul.f32 %v3731, %v3735
  %v3738 = vlaneseq
  %v3739 = vshrl.u32 %v3738, 7
  %v3740 = vsub.s32 0, %v3739
  %v3741 = vrot.slane %v3705, %v3740
  %v3742 = vadd.f32 %v3736, %v3741
  %v3743 = vadd.f32 %v3737, %v3741
  %v3744 = vpack.c.bf16 %v3742, %v3742
  %v3745 = vpack.c.bf16 %v3743, %v3743
  %v3746 = vld [vmem:[%s3 + $0x90] sm:$0xf]
  %v3747 = vld [vmem:[%s3 + $0x94] sm:$0xf]
  %v3748 = vld [vmem:[%s3 + $0x98] sm:$0xf]
  %v3749 = vld [vmem:[%s3 + $0x9c] sm:$0xf]
  %v3752 = vunpack.c.l.b16 %v3744
  %v3753 = vunpack.c.l.b16 %v3745
  %v3754 = vpack.c.b16 %v3753, %v3752
  %v3759 = vunpack.c.l.b16 %v3746
  %v3760 = vunpack.c.l.b16 %v3747
  %v3761 = vunpack.c.l.b16 %v3748
  %v3762 = vunpack.c.l.b16 %v3749
  %v3763 = vpack.c.b16 %v3760, %v3759
  %v3764 = vpack.c.b16 %v3762, %v3761
  %v3768 = vsel %vm92, %v3754, 0
  %3770 = vmatprep.subr.bf16.mxu0 0
  %3771 = vmatpush1.bf16.msra.mxu0 %v3763
  %3772 = vmatprep.subr.bf16.mxu0 0
  %3773 = vmatpush1.bf16.msra.mxu0 %v3764
  %3774 = vmatprep.subr.bf16.mxu0 0
  %3775 = vmatpush1.bf16.msra.mxu0 0
  %3776 = vmatprep.subr.bf16.mxu0 0
  %3777 = vmatpush1.bf16.msra.mxu0 0
  %3778 = vmatprep.subr.bf16.mxu0 0
  %3779 = vmatpush1.bf16.msra.mxu0 0
  %3780 = vmatprep.subr.bf16.mxu0 0
  %3781 = vmatpush1.bf16.msra.mxu0 0
  %3782 = vmatprep.subr.bf16.mxu0 0
  %3783 = vmatpush1.bf16.msra.mxu0 0
  %3784 = vmatprep.subr.bf16.mxu0 0
  %3785 = vmatpush1.bf16.msra.mxu0 0
  %3786 = vmatprep.subr.bf16.mxu0 0
  %3787 = vmatpush1.bf16.msra.mxu0 0
  %3788 = vmatprep.subr.bf16.mxu0 0
  %3789 = vmatpush1.bf16.msra.mxu0 0
  %3790 = vmatprep.subr.bf16.mxu0 0
  %3791 = vmatpush1.bf16.msra.mxu0 0
  %3792 = vmatprep.subr.bf16.mxu0 0
  %3793 = vmatpush1.bf16.msra.mxu0 0
  %3794 = vmatprep.subr.bf16.mxu0 0
  %3795 = vmatpush1.bf16.msra.mxu0 0
  %3796 = vmatprep.subr.bf16.mxu0 0
  %3797 = vmatpush1.bf16.msra.mxu0 0
  %3798 = vmatprep.subr.bf16.mxu0 0
  %3799 = vmatpush1.bf16.msra.mxu0 0
  %3800 = vmatprep.subr.bf16.mxu0 0
  %3801 = vmatpush1.bf16.msra.mxu0 0
  %3802 = vmatprep.mubr.bf16.mxu0 0
  %3803 = vmatmul.mubr.bf16.gmra.mrb[0].mxu0 %v3768
  %v3804 = vpop.f32.mrb[0].mxu0
  %v3805 = vadd.f32 0.0, %v3804
  %v3806 = vpop.f32.mrb[0].mxu0
  %v3807 = vpop.f32.mrb[0].mxu0
  %v3808 = vadd.f32 0.0, %v3807
  %v3809 = vpop.f32.mrb[0].mxu0
  %3810 = vdwg.mxu0
  %v3811 = vld [vmem:[%s4 + $0xe] sm:$0x1]
  %v3812 = vlaneseq
  %v3813 = vshrl.u32 %v3812, 7
  %v3814 = vsub.s32 0, %v3813
  %v3815 = vrot.slane %v3811, %v3814
  %v3816 = vadd.f32 %v3805, %v3815
  %v3817 = vadd.f32 %v3808, %v3815
  %v3818 = vpack.c.bf16 %v3816, %v3816
  %v3819 = vpack.c.bf16 %v3817, %v3817
  %3820 = vrot.lane.b32.xlu0 %v144, 64
  %v3821 = vpop.permute.xlu0 %3820
  %v3823 = vsel %vm266, %v3818, 0
  %v3826 = vsel %vm266, %v3821, 0
  %3828 = vmatprep.subr.bf16.mxu0 0
  %3829 = vmatpush1.bf16.xpose.msra.mxu0 %v3826
  %3830 = vmatprep.subr.bf16.mxu0 0
  %3831 = vmatpush1.bf16.xpose.msra.mxu0 0
  %3832 = vmatprep.subr.bf16.mxu0 0
  %3833 = vmatpush1.bf16.xpose.msra.mxu0 0
  %3834 = vmatprep.subr.bf16.mxu0 0
  %3835 = vmatpush1.bf16.xpose.msra.mxu0 0
  %3836 = vmatprep.subr.bf16.mxu0 0
  %3837 = vmatpush1.bf16.xpose.msra.mxu0 0
  %3838 = vmatprep.subr.bf16.mxu0 0
  %3839 = vmatpush1.bf16.xpose.msra.mxu0 0
  %3840 = vmatprep.subr.bf16.mxu0 0
  %3841 = vmatpush1.bf16.xpose.msra.mxu0 0
  %3842 = vmatprep.subr.bf16.mxu0 0
  %3843 = vmatpush1.bf16.xpose.msra.mxu0 0
  %3844 = vmatprep.subr.bf16.mxu0 0
  %3845 = vmatpush1.bf16.xpose.msra.mxu0 0
  %3846 = vmatprep.subr.bf16.mxu0 0
  %3847 = vmatpush1.bf16.xpose.msra.mxu0 0
  %3848 = vmatprep.subr.bf16.mxu0 0
  %3849 = vmatpush1.bf16.xpose.msra.mxu0 0
  %3850 = vmatprep.subr.bf16.mxu0 0
  %3851 = vmatpush1.bf16.xpose.msra.mxu0 0
  %3852 = vmatprep.subr.bf16.mxu0 0
  %3853 = vmatpush1.bf16.xpose.msra.mxu0 0
  %3854 = vmatprep.subr.bf16.mxu0 0
  %3855 = vmatpush1.bf16.xpose.msra.mxu0 0
  %3856 = vmatprep.subr.bf16.mxu0 0
  %3857 = vmatpush1.bf16.xpose.msra.mxu0 0
  %3858 = vmatprep.subr.bf16.mxu0 0
  %3859 = vmatpush1.bf16.xpose.msra.mxu0 0
  %3860 = vmatprep.mubr.bf16.mxu0 0
  %3861 = vmatmul.mubr.bf16.gmra.mrb[0].mxu0 %v3823
  %v3862 = vpop.f32.mrb[0].mxu0
  %v3863 = vadd.f32 0.0, %v3862
  %v3864 = vpop.f32.mrb[0].mxu0
  %v3865 = vpop.f32.mrb[0].mxu0
  %v3866 = vpop.f32.mrb[0].mxu0
  %3867 = vdwg.mxu0
  %3868 = vrot.lane.b32.xlu0 %v145, 64
  %v3869 = vpop.permute.xlu0 %3868
  %v3871 = vsel %vm266, %v3819, 0
  %v3874 = vsel %vm266, %v3869, 0
  %3876 = vmatprep.subr.bf16.mxu0 0
  %3877 = vmatpush1.bf16.xpose.msra.mxu0 %v3874
  %3878 = vmatprep.subr.bf16.mxu0 0
  %3879 = vmatpush1.bf16.xpose.msra.mxu0 0
  %3880 = vmatprep.subr.bf16.mxu0 0
  %3881 = vmatpush1.bf16.xpose.msra.mxu0 0
  %3882 = vmatprep.subr.bf16.mxu0 0
  %3883 = vmatpush1.bf16.xpose.msra.mxu0 0
  %3884 = vmatprep.subr.bf16.mxu0 0
  %3885 = vmatpush1.bf16.xpose.msra.mxu0 0
  %3886 = vmatprep.subr.bf16.mxu0 0
  %3887 = vmatpush1.bf16.xpose.msra.mxu0 0
  %3888 = vmatprep.subr.bf16.mxu0 0
  %3889 = vmatpush1.bf16.xpose.msra.mxu0 0
  %3890 = vmatprep.subr.bf16.mxu0 0
  %3891 = vmatpush1.bf16.xpose.msra.mxu0 0
  %3892 = vmatprep.subr.bf16.mxu0 0
  %3893 = vmatpush1.bf16.xpose.msra.mxu0 0
  %3894 = vmatprep.subr.bf16.mxu0 0
  %3895 = vmatpush1.bf16.xpose.msra.mxu0 0
  %3896 = vmatprep.subr.bf16.mxu0 0
  %3897 = vmatpush1.bf16.xpose.msra.mxu0 0
  %3898 = vmatprep.subr.bf16.mxu0 0
  %3899 = vmatpush1.bf16.xpose.msra.mxu0 0
  %3900 = vmatprep.subr.bf16.mxu0 0
  %3901 = vmatpush1.bf16.xpose.msra.mxu0 0
  %3902 = vmatprep.subr.bf16.mxu0 0
  %3903 = vmatpush1.bf16.xpose.msra.mxu0 0
  %3904 = vmatprep.subr.bf16.mxu0 0
  %3905 = vmatpush1.bf16.xpose.msra.mxu0 0
  %3906 = vmatprep.subr.bf16.mxu0 0
  %3907 = vmatpush1.bf16.xpose.msra.mxu0 0
  %3908 = vmatprep.mubr.bf16.mxu0 0
  %3909 = vmatmul.mubr.bf16.gmra.mrb[0].mxu0 %v3871
  %v3910 = vpop.f32.mrb[0].mxu0
  %v3911 = vadd.f32 0.0, %v3910
  %v3912 = vpop.f32.mrb[0].mxu0
  %v3913 = vpop.f32.mrb[0].mxu0
  %v3914 = vpop.f32.mrb[0].mxu0
  %3915 = vdwg.mxu0
  %3917 = vrot.lane.b32.xlu0 %v3818, 120
  %v3918 = vpop.permute.xlu0 %3917
  %3919 = vrot.lane.b32.xlu0 %v144, 56
  %v3920 = vpop.permute.xlu0 %3919
  %v3922 = vsel %vm266, %v3918, 0
  %v3925 = vsel %vm266, %v3920, 0
  %3927 = vmatprep.subr.bf16.mxu0 0
  %3928 = vmatpush1.bf16.xpose.msra.mxu0 %v3925
  %3929 = vmatprep.subr.bf16.mxu0 0
  %3930 = vmatpush1.bf16.xpose.msra.mxu0 0
  %3931 = vmatprep.subr.bf16.mxu0 0
  %3932 = vmatpush1.bf16.xpose.msra.mxu0 0
  %3933 = vmatprep.subr.bf16.mxu0 0
  %3934 = vmatpush1.bf16.xpose.msra.mxu0 0
  %3935 = vmatprep.subr.bf16.mxu0 0
  %3936 = vmatpush1.bf16.xpose.msra.mxu0 0
  %3937 = vmatprep.subr.bf16.mxu0 0
  %3938 = vmatpush1.bf16.xpose.msra.mxu0 0
  %3939 = vmatprep.subr.bf16.mxu0 0
  %3940 = vmatpush1.bf16.xpose.msra.mxu0 0
  %3941 = vmatprep.subr.bf16.mxu0 0
  %3942 = vmatpush1.bf16.xpose.msra.mxu0 0
  %3943 = vmatprep.subr.bf16.mxu0 0
  %3944 = vmatpush1.bf16.xpose.msra.mxu0 0
  %3945 = vmatprep.subr.bf16.mxu0 0
  %3946 = vmatpush1.bf16.xpose.msra.mxu0 0
  %3947 = vmatprep.subr.bf16.mxu0 0
  %3948 = vmatpush1.bf16.xpose.msra.mxu0 0
  %3949 = vmatprep.subr.bf16.mxu0 0
  %3950 = vmatpush1.bf16.xpose.msra.mxu0 0
  %3951 = vmatprep.subr.bf16.mxu0 0
  %3952 = vmatpush1.bf16.xpose.msra.mxu0 0
  %3953 = vmatprep.subr.bf16.mxu0 0
  %3954 = vmatpush1.bf16.xpose.msra.mxu0 0
  %3955 = vmatprep.subr.bf16.mxu0 0
  %3956 = vmatpush1.bf16.xpose.msra.mxu0 0
  %3957 = vmatprep.subr.bf16.mxu0 0
  %3958 = vmatpush1.bf16.xpose.msra.mxu0 0
  %3959 = vmatprep.mubr.bf16.mxu0 0
  %3960 = vmatmul.mubr.bf16.gmra.mrb[0].mxu0 %v3922
  %v3961 = vpop.f32.mrb[0].mxu0
  %v3962 = vadd.f32 0.0, %v3961
  %v3963 = vpop.f32.mrb[0].mxu0
  %v3964 = vpop.f32.mrb[0].mxu0
  %v3965 = vpop.f32.mrb[0].mxu0
  %3966 = vdwg.mxu0
  %3968 = vrot.lane.b32.xlu0 %v3819, 120
  %v3969 = vpop.permute.xlu0 %3968
  %3970 = vrot.lane.b32.xlu0 %v145, 56
  %v3971 = vpop.permute.xlu0 %3970
  %v3973 = vsel %vm266, %v3969, 0
  %v3976 = vsel %vm266, %v3971, 0
  %3978 = vmatprep.subr.bf16.mxu0 0
  %3979 = vmatpush1.bf16.xpose.msra.mxu0 %v3976
  %3980 = vmatprep.subr.bf16.mxu0 0
  %3981 = vmatpush1.bf16.xpose.msra.mxu0 0
  %3982 = vmatprep.subr.bf16.mxu0 0
  %3983 = vmatpush1.bf16.xpose.msra.mxu0 0
  %3984 = vmatprep.subr.bf16.mxu0 0
  %3985 = vmatpush1.bf16.xpose.msra.mxu0 0
  %3986 = vmatprep.subr.bf16.mxu0 0
  %3987 = vmatpush1.bf16.xpose.msra.mxu0 0
  %3988 = vmatprep.subr.bf16.mxu0 0
  %3989 = vmatpush1.bf16.xpose.msra.mxu0 0
  %3990 = vmatprep.subr.bf16.mxu0 0
  %3991 = vmatpush1.bf16.xpose.msra.mxu0 0
  %3992 = vmatprep.subr.bf16.mxu0 0
  %3993 = vmatpush1.bf16.xpose.msra.mxu0 0
  %3994 = vmatprep.subr.bf16.mxu0 0
  %3995 = vmatpush1.bf16.xpose.msra.mxu0 0
  %3996 = vmatprep.subr.bf16.mxu0 0
  %3997 = vmatpush1.bf16.xpose.msra.mxu0 0
  %3998 = vmatprep.subr.bf16.mxu0 0
  %3999 = vmatpush1.bf16.xpose.msra.mxu0 0
  %4000 = vmatprep.subr.bf16.mxu0 0
  %4001 = vmatpush1.bf16.xpose.msra.mxu0 0
  %4002 = vmatprep.subr.bf16.mxu0 0
  %4003 = vmatpush1.bf16.xpose.msra.mxu0 0
  %4004 = vmatprep.subr.bf16.mxu0 0
  %4005 = vmatpush1.bf16.xpose.msra.mxu0 0
  %4006 = vmatprep.subr.bf16.mxu0 0
  %4007 = vmatpush1.bf16.xpose.msra.mxu0 0
  %4008 = vmatprep.subr.bf16.mxu0 0
  %4009 = vmatpush1.bf16.xpose.msra.mxu0 0
  %4010 = vmatprep.mubr.bf16.mxu0 0
  %4011 = vmatmul.mubr.bf16.gmra.mrb[0].mxu0 %v3973
  %v4012 = vpop.f32.mrb[0].mxu0
  %v4013 = vadd.f32 0.0, %v4012
  %v4014 = vpop.f32.mrb[0].mxu0
  %v4015 = vpop.f32.mrb[0].mxu0
  %v4016 = vpop.f32.mrb[0].mxu0
  %4017 = vdwg.mxu0
  %4018 = vrot.lane.b32.xlu0 %v3818, 112
  %v4019 = vpop.permute.xlu0 %4018
  %4020 = vrot.lane.b32.xlu0 %v144, 48
  %v4021 = vpop.permute.xlu0 %4020
  %v4023 = vsel %vm266, %v4019, 0
  %v4026 = vsel %vm266, %v4021, 0
  %4028 = vmatprep.subr.bf16.mxu0 0
  %4029 = vmatpush1.bf16.xpose.msra.mxu0 %v4026
  %4030 = vmatprep.subr.bf16.mxu0 0
  %4031 = vmatpush1.bf16.xpose.msra.mxu0 0
  %4032 = vmatprep.subr.bf16.mxu0 0
  %4033 = vmatpush1.bf16.xpose.msra.mxu0 0
  %4034 = vmatprep.subr.bf16.mxu0 0
  %4035 = vmatpush1.bf16.xpose.msra.mxu0 0
  %4036 = vmatprep.subr.bf16.mxu0 0
  %4037 = vmatpush1.bf16.xpose.msra.mxu0 0
  %4038 = vmatprep.subr.bf16.mxu0 0
  %4039 = vmatpush1.bf16.xpose.msra.mxu0 0
  %4040 = vmatprep.subr.bf16.mxu0 0
  %4041 = vmatpush1.bf16.xpose.msra.mxu0 0
  %4042 = vmatprep.subr.bf16.mxu0 0
  %4043 = vmatpush1.bf16.xpose.msra.mxu0 0
  %4044 = vmatprep.subr.bf16.mxu0 0
  %4045 = vmatpush1.bf16.xpose.msra.mxu0 0
  %4046 = vmatprep.subr.bf16.mxu0 0
  %4047 = vmatpush1.bf16.xpose.msra.mxu0 0
  %4048 = vmatprep.subr.bf16.mxu0 0
  %4049 = vmatpush1.bf16.xpose.msra.mxu0 0
  %4050 = vmatprep.subr.bf16.mxu0 0
  %4051 = vmatpush1.bf16.xpose.msra.mxu0 0
  %4052 = vmatprep.subr.bf16.mxu0 0
  %4053 = vmatpush1.bf16.xpose.msra.mxu0 0
  %4054 = vmatprep.subr.bf16.mxu0 0
  %4055 = vmatpush1.bf16.xpose.msra.mxu0 0
  %4056 = vmatprep.subr.bf16.mxu0 0
  %4057 = vmatpush1.bf16.xpose.msra.mxu0 0
  %4058 = vmatprep.subr.bf16.mxu0 0
  %4059 = vmatpush1.bf16.xpose.msra.mxu0 0
  %4060 = vmatprep.mubr.bf16.mxu0 0
  %4061 = vmatmul.mubr.bf16.gmra.mrb[0].mxu0 %v4023
  %v4062 = vpop.f32.mrb[0].mxu0
  %v4063 = vadd.f32 0.0, %v4062
  %v4064 = vpop.f32.mrb[0].mxu0
  %v4065 = vpop.f32.mrb[0].mxu0
  %v4066 = vpop.f32.mrb[0].mxu0
  %4067 = vdwg.mxu0
  %4068 = vrot.lane.b32.xlu0 %v3819, 112
  %v4069 = vpop.permute.xlu0 %4068
  %4070 = vrot.lane.b32.xlu0 %v145, 48
  %v4071 = vpop.permute.xlu0 %4070
  %v4073 = vsel %vm266, %v4069, 0
  %v4076 = vsel %vm266, %v4071, 0
  %4078 = vmatprep.subr.bf16.mxu0 0
  %4079 = vmatpush1.bf16.xpose.msra.mxu0 %v4076
  %4080 = vmatprep.subr.bf16.mxu0 0
  %4081 = vmatpush1.bf16.xpose.msra.mxu0 0
  %4082 = vmatprep.subr.bf16.mxu0 0
  %4083 = vmatpush1.bf16.xpose.msra.mxu0 0
  %4084 = vmatprep.subr.bf16.mxu0 0
  %4085 = vmatpush1.bf16.xpose.msra.mxu0 0
  %4086 = vmatprep.subr.bf16.mxu0 0
  %4087 = vmatpush1.bf16.xpose.msra.mxu0 0
  %4088 = vmatprep.subr.bf16.mxu0 0
  %4089 = vmatpush1.bf16.xpose.msra.mxu0 0
  %4090 = vmatprep.subr.bf16.mxu0 0
  %4091 = vmatpush1.bf16.xpose.msra.mxu0 0
  %4092 = vmatprep.subr.bf16.mxu0 0
  %4093 = vmatpush1.bf16.xpose.msra.mxu0 0
  %4094 = vmatprep.subr.bf16.mxu0 0
  %4095 = vmatpush1.bf16.xpose.msra.mxu0 0
  %4096 = vmatprep.subr.bf16.mxu0 0
  %4097 = vmatpush1.bf16.xpose.msra.mxu0 0
  %4098 = vmatprep.subr.bf16.mxu0 0
  %4099 = vmatpush1.bf16.xpose.msra.mxu0 0
  %4100 = vmatprep.subr.bf16.mxu0 0
  %4101 = vmatpush1.bf16.xpose.msra.mxu0 0
  %4102 = vmatprep.subr.bf16.mxu0 0
  %4103 = vmatpush1.bf16.xpose.msra.mxu0 0
  %4104 = vmatprep.subr.bf16.mxu0 0
  %4105 = vmatpush1.bf16.xpose.msra.mxu0 0
  %4106 = vmatprep.subr.bf16.mxu0 0
  %4107 = vmatpush1.bf16.xpose.msra.mxu0 0
  %4108 = vmatprep.subr.bf16.mxu0 0
  %4109 = vmatpush1.bf16.xpose.msra.mxu0 0
  %4110 = vmatprep.mubr.bf16.mxu0 0
  %4111 = vmatmul.mubr.bf16.gmra.mrb[0].mxu0 %v4073
  %v4112 = vpop.f32.mrb[0].mxu0
  %v4113 = vadd.f32 0.0, %v4112
  %v4114 = vpop.f32.mrb[0].mxu0
  %v4115 = vpop.f32.mrb[0].mxu0
  %v4116 = vpop.f32.mrb[0].mxu0
  %4117 = vdwg.mxu0
  %4118 = vrot.lane.b32.xlu0 %v3818, 104
  %v4119 = vpop.permute.xlu0 %4118
  %4120 = vrot.lane.b32.xlu0 %v144, 40
  %v4121 = vpop.permute.xlu0 %4120
  %v4123 = vsel %vm266, %v4119, 0
  %v4126 = vsel %vm266, %v4121, 0
  %4128 = vmatprep.subr.bf16.mxu0 0
  %4129 = vmatpush1.bf16.xpose.msra.mxu0 %v4126
  %4130 = vmatprep.subr.bf16.mxu0 0
  %4131 = vmatpush1.bf16.xpose.msra.mxu0 0
  %4132 = vmatprep.subr.bf16.mxu0 0
  %4133 = vmatpush1.bf16.xpose.msra.mxu0 0
  %4134 = vmatprep.subr.bf16.mxu0 0
  %4135 = vmatpush1.bf16.xpose.msra.mxu0 0
  %4136 = vmatprep.subr.bf16.mxu0 0
  %4137 = vmatpush1.bf16.xpose.msra.mxu0 0
  %4138 = vmatprep.subr.bf16.mxu0 0
  %4139 = vmatpush1.bf16.xpose.msra.mxu0 0
  %4140 = vmatprep.subr.bf16.mxu0 0
  %4141 = vmatpush1.bf16.xpose.msra.mxu0 0
  %4142 = vmatprep.subr.bf16.mxu0 0
  %4143 = vmatpush1.bf16.xpose.msra.mxu0 0
  %4144 = vmatprep.subr.bf16.mxu0 0
  %4145 = vmatpush1.bf16.xpose.msra.mxu0 0
  %4146 = vmatprep.subr.bf16.mxu0 0
  %4147 = vmatpush1.bf16.xpose.msra.mxu0 0
  %4148 = vmatprep.subr.bf16.mxu0 0
  %4149 = vmatpush1.bf16.xpose.msra.mxu0 0
  %4150 = vmatprep.subr.bf16.mxu0 0
  %4151 = vmatpush1.bf16.xpose.msra.mxu0 0
  %4152 = vmatprep.subr.bf16.mxu0 0
  %4153 = vmatpush1.bf16.xpose.msra.mxu0 0
  %4154 = vmatprep.subr.bf16.mxu0 0
  %4155 = vmatpush1.bf16.xpose.msra.mxu0 0
  %4156 = vmatprep.subr.bf16.mxu0 0
  %4157 = vmatpush1.bf16.xpose.msra.mxu0 0
  %4158 = vmatprep.subr.bf16.mxu0 0
  %4159 = vmatpush1.bf16.xpose.msra.mxu0 0
  %4160 = vmatprep.mubr.bf16.mxu0 0
  %4161 = vmatmul.mubr.bf16.gmra.mrb[0].mxu0 %v4123
  %v4162 = vpop.f32.mrb[0].mxu0
  %v4163 = vadd.f32 0.0, %v4162
  %v4164 = vpop.f32.mrb[0].mxu0
  %v4165 = vpop.f32.mrb[0].mxu0
  %v4166 = vpop.f32.mrb[0].mxu0
  %4167 = vdwg.mxu0
  %4168 = vrot.lane.b32.xlu0 %v3819, 104
  %v4169 = vpop.permute.xlu0 %4168
  %4170 = vrot.lane.b32.xlu0 %v145, 40
  %v4171 = vpop.permute.xlu0 %4170
  %v4173 = vsel %vm266, %v4169, 0
  %v4176 = vsel %vm266, %v4171, 0
  %4178 = vmatprep.subr.bf16.mxu0 0
  %4179 = vmatpush1.bf16.xpose.msra.mxu0 %v4176
  %4180 = vmatprep.subr.bf16.mxu0 0
  %4181 = vmatpush1.bf16.xpose.msra.mxu0 0
  %4182 = vmatprep.subr.bf16.mxu0 0
  %4183 = vmatpush1.bf16.xpose.msra.mxu0 0
  %4184 = vmatprep.subr.bf16.mxu0 0
  %4185 = vmatpush1.bf16.xpose.msra.mxu0 0
  %4186 = vmatprep.subr.bf16.mxu0 0
  %4187 = vmatpush1.bf16.xpose.msra.mxu0 0
  %4188 = vmatprep.subr.bf16.mxu0 0
  %4189 = vmatpush1.bf16.xpose.msra.mxu0 0
  %4190 = vmatprep.subr.bf16.mxu0 0
  %4191 = vmatpush1.bf16.xpose.msra.mxu0 0
  %4192 = vmatprep.subr.bf16.mxu0 0
  %4193 = vmatpush1.bf16.xpose.msra.mxu0 0
  %4194 = vmatprep.subr.bf16.mxu0 0
  %4195 = vmatpush1.bf16.xpose.msra.mxu0 0
  %4196 = vmatprep.subr.bf16.mxu0 0
  %4197 = vmatpush1.bf16.xpose.msra.mxu0 0
  %4198 = vmatprep.subr.bf16.mxu0 0
  %4199 = vmatpush1.bf16.xpose.msra.mxu0 0
  %4200 = vmatprep.subr.bf16.mxu0 0
  %4201 = vmatpush1.bf16.xpose.msra.mxu0 0
  %4202 = vmatprep.subr.bf16.mxu0 0
  %4203 = vmatpush1.bf16.xpose.msra.mxu0 0
  %4204 = vmatprep.subr.bf16.mxu0 0
  %4205 = vmatpush1.bf16.xpose.msra.mxu0 0
  %4206 = vmatprep.subr.bf16.mxu0 0
  %4207 = vmatpush1.bf16.xpose.msra.mxu0 0
  %4208 = vmatprep.subr.bf16.mxu0 0
  %4209 = vmatpush1.bf16.xpose.msra.mxu0 0
  %4210 = vmatprep.mubr.bf16.mxu0 0
  %4211 = vmatmul.mubr.bf16.gmra.mrb[0].mxu0 %v4173
  %v4212 = vpop.f32.mrb[0].mxu0
  %v4213 = vadd.f32 0.0, %v4212
  %v4214 = vpop.f32.mrb[0].mxu0
  %v4215 = vpop.f32.mrb[0].mxu0
  %v4216 = vpop.f32.mrb[0].mxu0
  %4217 = vdwg.mxu0
  %v4218 = vadd.f32 %v3863, %v1772
  %v4219 = vadd.f32 %v3962, %v1772
  %v4220 = vadd.f32 %v4063, %v1772
  %v4221 = vadd.f32 %v4163, %v1772
  %v4222 = vadd.f32 %v3911, %v1774
  %v4223 = vadd.f32 %v4013, %v1774
  %v4224 = vadd.f32 %v4113, %v1774
  %v4225 = vadd.f32 %v4213, %v1774
  %v4226 = vsel %vm266, %v4218, -inf
  %4227 = vmax.xlane.f32.xlu0 %v4226
  %v4228 = vpop.xlane.xlu0 %4227
  %v4229 = vsel %vm266, %v4219, -inf
  %4230 = vmax.xlane.f32.xlu0 %v4229
  %v4231 = vpop.xlane.xlu0 %4230
  %v4232 = vsel %vm266, %v4220, -inf
  %4233 = vmax.xlane.f32.xlu0 %v4232
  %v4234 = vpop.xlane.xlu0 %4233
  %v4235 = vsel %vm266, %v4221, -inf
  %4236 = vmax.xlane.f32.xlu0 %v4235
  %v4237 = vpop.xlane.xlu0 %4236
  %v4238 = vsel %vm266, %v4222, -inf
  %4239 = vmax.xlane.f32.xlu0 %v4238
  %v4240 = vpop.xlane.xlu0 %4239
  %v4241 = vsel %vm266, %v4223, -inf
  %4242 = vmax.xlane.f32.xlu0 %v4241
  %v4243 = vpop.xlane.xlu0 %4242
  %v4244 = vsel %vm266, %v4224, -inf
  %4245 = vmax.xlane.f32.xlu0 %v4244
  %v4246 = vpop.xlane.xlu0 %4245
  %v4247 = vsel %vm266, %v4225, -inf
  %4248 = vmax.xlane.f32.xlu0 %v4247
  %v4249 = vpop.xlane.xlu0 %4248
  %v4250 = vsub.f32 %v4218, %v4228
  %v4251 = vsub.f32 %v4219, %v4231
  %v4252 = vsub.f32 %v4220, %v4234
  %v4253 = vsub.f32 %v4221, %v4237
  %v4254 = vsub.f32 %v4222, %v4240
  %v4255 = vsub.f32 %v4223, %v4243
  %v4256 = vsub.f32 %v4224, %v4246
  %v4257 = vsub.f32 %v4225, %v4249
  %v4258 = vmul.f32 %v4250, 1.442695
  %v4259 = vpow.pop %v4258
  %v4260 = vmul.f32 %v4251, 1.442695
  %v4261 = vpow.pop %v4260
  %v4262 = vmul.f32 %v4252, 1.442695
  %v4263 = vpow.pop %v4262
  %v4264 = vmul.f32 %v4253, 1.442695
  %v4265 = vpow.pop %v4264
  %v4266 = vmul.f32 %v4254, 1.442695
  %v4267 = vpow.pop %v4266
  %v4268 = vmul.f32 %v4255, 1.442695
  %v4269 = vpow.pop %v4268
  %v4270 = vmul.f32 %v4256, 1.442695
  %v4271 = vpow.pop %v4270
  %v4272 = vmul.f32 %v4257, 1.442695
  %v4273 = vpow.pop %v4272
  %v4274 = vsel %vm266, %v4259, 0.0
  %4275 = vadd.xlane.f32.xlu0 %v4274
  %v4276 = vpop.xlane.xlu0 %4275
  %v4277 = vsel %vm266, %v4261, 0.0
  %4278 = vadd.xlane.f32.xlu0 %v4277
  %v4279 = vpop.xlane.xlu0 %4278
  %v4280 = vsel %vm266, %v4263, 0.0
  %4281 = vadd.xlane.f32.xlu0 %v4280
  %v4282 = vpop.xlane.xlu0 %4281
  %v4283 = vsel %vm266, %v4265, 0.0
  %4284 = vadd.xlane.f32.xlu0 %v4283
  %v4285 = vpop.xlane.xlu0 %4284
  %v4286 = vsel %vm266, %v4267, 0.0
  %4287 = vadd.xlane.f32.xlu0 %v4286
  %v4288 = vpop.xlane.xlu0 %4287
  %v4289 = vsel %vm266, %v4269, 0.0
  %4290 = vadd.xlane.f32.xlu0 %v4289
  %v4291 = vpop.xlane.xlu0 %4290
  %v4292 = vsel %vm266, %v4271, 0.0
  %4293 = vadd.xlane.f32.xlu0 %v4292
  %v4294 = vpop.xlane.xlu0 %4293
  %v4295 = vsel %vm266, %v4273, 0.0
  %4296 = vadd.xlane.f32.xlu0 %v4295
  %v4297 = vpop.xlane.xlu0 %4296
  %v4298 = vrcp.pop %v4276
  %v4299 = vrcp.pop %v4279
  %v4300 = vrcp.pop %v4282
  %v4301 = vrcp.pop %v4285
  %v4302 = vrcp.pop %v4288
  %v4303 = vrcp.pop %v4291
  %v4304 = vrcp.pop %v4294
  %v4305 = vrcp.pop %v4297
  %v4306 = vmul.f32 %v4259, %v4298
  %v4307 = vmul.f32 %v4261, %v4299
  %v4308 = vmul.f32 %v4263, %v4300
  %v4309 = vmul.f32 %v4265, %v4301
  %v4310 = vmul.f32 %v4267, %v4302
  %v4311 = vmul.f32 %v4269, %v4303
  %v4312 = vmul.f32 %v4271, %v4304
  %v4313 = vmul.f32 %v4273, %v4305
  %v4314 = vpack.c.bf16 %v4306, %v4306
  %v4315 = vpack.c.bf16 %v4307, %v4307
  %v4316 = vpack.c.bf16 %v4308, %v4308
  %v4317 = vpack.c.bf16 %v4309, %v4309
  %v4318 = vpack.c.bf16 %v4310, %v4310
  %v4319 = vpack.c.bf16 %v4311, %v4311
  %v4320 = vpack.c.bf16 %v4312, %v4312
  %v4321 = vpack.c.bf16 %v4313, %v4313
  %4322 = vrot.lane.b32.xlu0 %v144, 32
  %v4323 = vpop.permute.xlu0 %4322
  %v4325 = vsel %vm266, %v4314, 0
  %v4328 = vsel %vm771, %v4323, 0
  %4330 = vmatprep.subr.bf16.mxu0 0
  %4331 = vmatpush1.bf16.msra.mxu0 %v4328
  %4332 = vmatprep.subr.bf16.mxu0 0
  %4333 = vmatpush1.bf16.msra.mxu0 0
  %4334 = vmatprep.subr.bf16.mxu0 0
  %4335 = vmatpush1.bf16.msra.mxu0 0
  %4336 = vmatprep.subr.bf16.mxu0 0
  %4337 = vmatpush1.bf16.msra.mxu0 0
  %4338 = vmatprep.subr.bf16.mxu0 0
  %4339 = vmatpush1.bf16.msra.mxu0 0
  %4340 = vmatprep.subr.bf16.mxu0 0
  %4341 = vmatpush1.bf16.msra.mxu0 0
  %4342 = vmatprep.subr.bf16.mxu0 0
  %4343 = vmatpush1.bf16.msra.mxu0 0
  %4344 = vmatprep.subr.bf16.mxu0 0
  %4345 = vmatpush1.bf16.msra.mxu0 0
  %4346 = vmatprep.subr.bf16.mxu0 0
  %4347 = vmatpush1.bf16.msra.mxu0 0
  %4348 = vmatprep.subr.bf16.mxu0 0
  %4349 = vmatpush1.bf16.msra.mxu0 0
  %4350 = vmatprep.subr.bf16.mxu0 0
  %4351 = vmatpush1.bf16.msra.mxu0 0
  %4352 = vmatprep.subr.bf16.mxu0 0
  %4353 = vmatpush1.bf16.msra.mxu0 0
  %4354 = vmatprep.subr.bf16.mxu0 0
  %4355 = vmatpush1.bf16.msra.mxu0 0
  %4356 = vmatprep.subr.bf16.mxu0 0
  %4357 = vmatpush1.bf16.msra.mxu0 0
  %4358 = vmatprep.subr.bf16.mxu0 0
  %4359 = vmatpush1.bf16.msra.mxu0 0
  %4360 = vmatprep.subr.bf16.mxu0 0
  %4361 = vmatpush1.bf16.msra.mxu0 0
  %4362 = vmatprep.mubr.bf16.mxu0 0
  %4363 = vmatmul.mubr.bf16.gmra.mrb[0].mxu0 %v4325
  %v4364 = vpop.f32.mrb[0].mxu0
  %v4365 = vadd.f32 0.0, %v4364
  %v4366 = vpop.f32.mrb[0].mxu0
  %v4367 = vpop.f32.mrb[0].mxu0
  %v4368 = vpop.f32.mrb[0].mxu0
  %4369 = vdwg.mxu0
  %4370 = vrot.lane.b32.xlu0 %v145, 32
  %v4371 = vpop.permute.xlu0 %4370
  %v4373 = vsel %vm266, %v4318, 0
  %v4376 = vsel %vm771, %v4371, 0
  %4378 = vmatprep.subr.bf16.mxu0 0
  %4379 = vmatpush1.bf16.msra.mxu0 %v4376
  %4380 = vmatprep.subr.bf16.mxu0 0
  %4381 = vmatpush1.bf16.msra.mxu0 0
  %4382 = vmatprep.subr.bf16.mxu0 0
  %4383 = vmatpush1.bf16.msra.mxu0 0
  %4384 = vmatprep.subr.bf16.mxu0 0
  %4385 = vmatpush1.bf16.msra.mxu0 0
  %4386 = vmatprep.subr.bf16.mxu0 0
  %4387 = vmatpush1.bf16.msra.mxu0 0
  %4388 = vmatprep.subr.bf16.mxu0 0
  %4389 = vmatpush1.bf16.msra.mxu0 0
  %4390 = vmatprep.subr.bf16.mxu0 0
  %4391 = vmatpush1.bf16.msra.mxu0 0
  %4392 = vmatprep.subr.bf16.mxu0 0
  %4393 = vmatpush1.bf16.msra.mxu0 0
  %4394 = vmatprep.subr.bf16.mxu0 0
  %4395 = vmatpush1.bf16.msra.mxu0 0
  %4396 = vmatprep.subr.bf16.mxu0 0
  %4397 = vmatpush1.bf16.msra.mxu0 0
  %4398 = vmatprep.subr.bf16.mxu0 0
  %4399 = vmatpush1.bf16.msra.mxu0 0
  %4400 = vmatprep.subr.bf16.mxu0 0
  %4401 = vmatpush1.bf16.msra.mxu0 0
  %4402 = vmatprep.subr.bf16.mxu0 0
  %4403 = vmatpush1.bf16.msra.mxu0 0
  %4404 = vmatprep.subr.bf16.mxu0 0
  %4405 = vmatpush1.bf16.msra.mxu0 0
  %4406 = vmatprep.subr.bf16.mxu0 0
  %4407 = vmatpush1.bf16.msra.mxu0 0
  %4408 = vmatprep.subr.bf16.mxu0 0
  %4409 = vmatpush1.bf16.msra.mxu0 0
  %4410 = vmatprep.mubr.bf16.mxu0 0
  %4411 = vmatmul.mubr.bf16.gmra.mrb[0].mxu0 %v4373
  %v4412 = vpop.f32.mrb[0].mxu0
  %v4413 = vadd.f32 0.0, %v4412
  %v4414 = vpop.f32.mrb[0].mxu0
  %v4415 = vpop.f32.mrb[0].mxu0
  %v4416 = vpop.f32.mrb[0].mxu0
  %4417 = vdwg.mxu0
  %4418 = vrot.lane.b32.xlu0 %v144, 24
  %v4419 = vpop.permute.xlu0 %4418
  %v4421 = vsel %vm266, %v4315, 0
  %v4424 = vsel %vm771, %v4419, 0
  %4426 = vmatprep.subr.bf16.mxu0 0
  %4427 = vmatpush1.bf16.msra.mxu0 %v4424
  %4428 = vmatprep.subr.bf16.mxu0 0
  %4429 = vmatpush1.bf16.msra.mxu0 0
  %4430 = vmatprep.subr.bf16.mxu0 0
  %4431 = vmatpush1.bf16.msra.mxu0 0
  %4432 = vmatprep.subr.bf16.mxu0 0
  %4433 = vmatpush1.bf16.msra.mxu0 0
  %4434 = vmatprep.subr.bf16.mxu0 0
  %4435 = vmatpush1.bf16.msra.mxu0 0
  %4436 = vmatprep.subr.bf16.mxu0 0
  %4437 = vmatpush1.bf16.msra.mxu0 0
  %4438 = vmatprep.subr.bf16.mxu0 0
  %4439 = vmatpush1.bf16.msra.mxu0 0
  %4440 = vmatprep.subr.bf16.mxu0 0
  %4441 = vmatpush1.bf16.msra.mxu0 0
  %4442 = vmatprep.subr.bf16.mxu0 0
  %4443 = vmatpush1.bf16.msra.mxu0 0
  %4444 = vmatprep.subr.bf16.mxu0 0
  %4445 = vmatpush1.bf16.msra.mxu0 0
  %4446 = vmatprep.subr.bf16.mxu0 0
  %4447 = vmatpush1.bf16.msra.mxu0 0
  %4448 = vmatprep.subr.bf16.mxu0 0
  %4449 = vmatpush1.bf16.msra.mxu0 0
  %4450 = vmatprep.subr.bf16.mxu0 0
  %4451 = vmatpush1.bf16.msra.mxu0 0
  %4452 = vmatprep.subr.bf16.mxu0 0
  %4453 = vmatpush1.bf16.msra.mxu0 0
  %4454 = vmatprep.subr.bf16.mxu0 0
  %4455 = vmatpush1.bf16.msra.mxu0 0
  %4456 = vmatprep.subr.bf16.mxu0 0
  %4457 = vmatpush1.bf16.msra.mxu0 0
  %4458 = vmatprep.mubr.bf16.mxu0 0
  %4459 = vmatmul.mubr.bf16.gmra.mrb[0].mxu0 %v4421
  %v4460 = vpop.f32.mrb[0].mxu0
  %v4461 = vadd.f32 0.0, %v4460
  %v4462 = vpop.f32.mrb[0].mxu0
  %v4463 = vpop.f32.mrb[0].mxu0
  %v4464 = vpop.f32.mrb[0].mxu0
  %4465 = vdwg.mxu0
  %4466 = vrot.lane.b32.xlu0 %v145, 24
  %v4467 = vpop.permute.xlu0 %4466
  %v4469 = vsel %vm266, %v4319, 0
  %v4472 = vsel %vm771, %v4467, 0
  %4474 = vmatprep.subr.bf16.mxu0 0
  %4475 = vmatpush1.bf16.msra.mxu0 %v4472
  %4476 = vmatprep.subr.bf16.mxu0 0
  %4477 = vmatpush1.bf16.msra.mxu0 0
  %4478 = vmatprep.subr.bf16.mxu0 0
  %4479 = vmatpush1.bf16.msra.mxu0 0
  %4480 = vmatprep.subr.bf16.mxu0 0
  %4481 = vmatpush1.bf16.msra.mxu0 0
  %4482 = vmatprep.subr.bf16.mxu0 0
  %4483 = vmatpush1.bf16.msra.mxu0 0
  %4484 = vmatprep.subr.bf16.mxu0 0
  %4485 = vmatpush1.bf16.msra.mxu0 0
  %4486 = vmatprep.subr.bf16.mxu0 0
  %4487 = vmatpush1.bf16.msra.mxu0 0
  %4488 = vmatprep.subr.bf16.mxu0 0
  %4489 = vmatpush1.bf16.msra.mxu0 0
  %4490 = vmatprep.subr.bf16.mxu0 0
  %4491 = vmatpush1.bf16.msra.mxu0 0
  %4492 = vmatprep.subr.bf16.mxu0 0
  %4493 = vmatpush1.bf16.msra.mxu0 0
  %4494 = vmatprep.subr.bf16.mxu0 0
  %4495 = vmatpush1.bf16.msra.mxu0 0
  %4496 = vmatprep.subr.bf16.mxu0 0
  %4497 = vmatpush1.bf16.msra.mxu0 0
  %4498 = vmatprep.subr.bf16.mxu0 0
  %4499 = vmatpush1.bf16.msra.mxu0 0
  %4500 = vmatprep.subr.bf16.mxu0 0
  %4501 = vmatpush1.bf16.msra.mxu0 0
  %4502 = vmatprep.subr.bf16.mxu0 0
  %4503 = vmatpush1.bf16.msra.mxu0 0
  %4504 = vmatprep.subr.bf16.mxu0 0
  %4505 = vmatpush1.bf16.msra.mxu0 0
  %4506 = vmatprep.mubr.bf16.mxu0 0
  %4507 = vmatmul.mubr.bf16.gmra.mrb[0].mxu0 %v4469
  %v4508 = vpop.f32.mrb[0].mxu0
  %v4509 = vadd.f32 0.0, %v4508
  %v4510 = vpop.f32.mrb[0].mxu0
  %v4511 = vpop.f32.mrb[0].mxu0
  %v4512 = vpop.f32.mrb[0].mxu0
  %4513 = vdwg.mxu0
  %4514 = vrot.lane.b32.xlu0 %v144, 16
  %v4515 = vpop.permute.xlu0 %4514
  %v4517 = vsel %vm266, %v4316, 0
  %v4520 = vsel %vm771, %v4515, 0
  %4522 = vmatprep.subr.bf16.mxu0 0
  %4523 = vmatpush1.bf16.msra.mxu0 %v4520
  %4524 = vmatprep.subr.bf16.mxu0 0
  %4525 = vmatpush1.bf16.msra.mxu0 0
  %4526 = vmatprep.subr.bf16.mxu0 0
  %4527 = vmatpush1.bf16.msra.mxu0 0
  %4528 = vmatprep.subr.bf16.mxu0 0
  %4529 = vmatpush1.bf16.msra.mxu0 0
  %4530 = vmatprep.subr.bf16.mxu0 0
  %4531 = vmatpush1.bf16.msra.mxu0 0
  %4532 = vmatprep.subr.bf16.mxu0 0
  %4533 = vmatpush1.bf16.msra.mxu0 0
  %4534 = vmatprep.subr.bf16.mxu0 0
  %4535 = vmatpush1.bf16.msra.mxu0 0
  %4536 = vmatprep.subr.bf16.mxu0 0
  %4537 = vmatpush1.bf16.msra.mxu0 0
  %4538 = vmatprep.subr.bf16.mxu0 0
  %4539 = vmatpush1.bf16.msra.mxu0 0
  %4540 = vmatprep.subr.bf16.mxu0 0
  %4541 = vmatpush1.bf16.msra.mxu0 0
  %4542 = vmatprep.subr.bf16.mxu0 0
  %4543 = vmatpush1.bf16.msra.mxu0 0
  %4544 = vmatprep.subr.bf16.mxu0 0
  %4545 = vmatpush1.bf16.msra.mxu0 0
  %4546 = vmatprep.subr.bf16.mxu0 0
  %4547 = vmatpush1.bf16.msra.mxu0 0
  %4548 = vmatprep.subr.bf16.mxu0 0
  %4549 = vmatpush1.bf16.msra.mxu0 0
  %4550 = vmatprep.subr.bf16.mxu0 0
  %4551 = vmatpush1.bf16.msra.mxu0 0
  %4552 = vmatprep.subr.bf16.mxu0 0
  %4553 = vmatpush1.bf16.msra.mxu0 0
  %4554 = vmatprep.mubr.bf16.mxu0 0
  %4555 = vmatmul.mubr.bf16.gmra.mrb[0].mxu0 %v4517
  %v4556 = vpop.f32.mrb[0].mxu0
  %v4557 = vadd.f32 0.0, %v4556
  %v4558 = vpop.f32.mrb[0].mxu0
  %v4559 = vpop.f32.mrb[0].mxu0
  %v4560 = vpop.f32.mrb[0].mxu0
  %4561 = vdwg.mxu0
  %4562 = vrot.lane.b32.xlu0 %v145, 16
  %v4563 = vpop.permute.xlu0 %4562
  %v4565 = vsel %vm266, %v4320, 0
  %v4568 = vsel %vm771, %v4563, 0
  %4570 = vmatprep.subr.bf16.mxu0 0
  %4571 = vmatpush1.bf16.msra.mxu0 %v4568
  %4572 = vmatprep.subr.bf16.mxu0 0
  %4573 = vmatpush1.bf16.msra.mxu0 0
  %4574 = vmatprep.subr.bf16.mxu0 0
  %4575 = vmatpush1.bf16.msra.mxu0 0
  %4576 = vmatprep.subr.bf16.mxu0 0
  %4577 = vmatpush1.bf16.msra.mxu0 0
  %4578 = vmatprep.subr.bf16.mxu0 0
  %4579 = vmatpush1.bf16.msra.mxu0 0
  %4580 = vmatprep.subr.bf16.mxu0 0
  %4581 = vmatpush1.bf16.msra.mxu0 0
  %4582 = vmatprep.subr.bf16.mxu0 0
  %4583 = vmatpush1.bf16.msra.mxu0 0
  %4584 = vmatprep.subr.bf16.mxu0 0
  %4585 = vmatpush1.bf16.msra.mxu0 0
  %4586 = vmatprep.subr.bf16.mxu0 0
  %4587 = vmatpush1.bf16.msra.mxu0 0
  %4588 = vmatprep.subr.bf16.mxu0 0
  %4589 = vmatpush1.bf16.msra.mxu0 0
  %4590 = vmatprep.subr.bf16.mxu0 0
  %4591 = vmatpush1.bf16.msra.mxu0 0
  %4592 = vmatprep.subr.bf16.mxu0 0
  %4593 = vmatpush1.bf16.msra.mxu0 0
  %4594 = vmatprep.subr.bf16.mxu0 0
  %4595 = vmatpush1.bf16.msra.mxu0 0
  %4596 = vmatprep.subr.bf16.mxu0 0
  %4597 = vmatpush1.bf16.msra.mxu0 0
  %4598 = vmatprep.subr.bf16.mxu0 0
  %4599 = vmatpush1.bf16.msra.mxu0 0
  %4600 = vmatprep.subr.bf16.mxu0 0
  %4601 = vmatpush1.bf16.msra.mxu0 0
  %4602 = vmatprep.mubr.bf16.mxu0 0
  %4603 = vmatmul.mubr.bf16.gmra.mrb[0].mxu0 %v4565
  %v4604 = vpop.f32.mrb[0].mxu0
  %v4605 = vadd.f32 0.0, %v4604
  %v4606 = vpop.f32.mrb[0].mxu0
  %v4607 = vpop.f32.mrb[0].mxu0
  %v4608 = vpop.f32.mrb[0].mxu0
  %4609 = vdwg.mxu0
  %4610 = vrot.lane.b32.xlu0 %v144, 8
  %v4611 = vpop.permute.xlu0 %4610
  %v4613 = vsel %vm266, %v4317, 0
  %v4616 = vsel %vm771, %v4611, 0
  %4618 = vmatprep.subr.bf16.mxu0 0
  %4619 = vmatpush1.bf16.msra.mxu0 %v4616
  %4620 = vmatprep.subr.bf16.mxu0 0
  %4621 = vmatpush1.bf16.msra.mxu0 0
  %4622 = vmatprep.subr.bf16.mxu0 0
  %4623 = vmatpush1.bf16.msra.mxu0 0
  %4624 = vmatprep.subr.bf16.mxu0 0
  %4625 = vmatpush1.bf16.msra.mxu0 0
  %4626 = vmatprep.subr.bf16.mxu0 0
  %4627 = vmatpush1.bf16.msra.mxu0 0
  %4628 = vmatprep.subr.bf16.mxu0 0
  %4629 = vmatpush1.bf16.msra.mxu0 0
  %4630 = vmatprep.subr.bf16.mxu0 0
  %4631 = vmatpush1.bf16.msra.mxu0 0
  %4632 = vmatprep.subr.bf16.mxu0 0
  %4633 = vmatpush1.bf16.msra.mxu0 0
  %4634 = vmatprep.subr.bf16.mxu0 0
  %4635 = vmatpush1.bf16.msra.mxu0 0
  %4636 = vmatprep.subr.bf16.mxu0 0
  %4637 = vmatpush1.bf16.msra.mxu0 0
  %4638 = vmatprep.subr.bf16.mxu0 0
  %4639 = vmatpush1.bf16.msra.mxu0 0
  %4640 = vmatprep.subr.bf16.mxu0 0
  %4641 = vmatpush1.bf16.msra.mxu0 0
  %4642 = vmatprep.subr.bf16.mxu0 0
  %4643 = vmatpush1.bf16.msra.mxu0 0
  %4644 = vmatprep.subr.bf16.mxu0 0
  %4645 = vmatpush1.bf16.msra.mxu0 0
  %4646 = vmatprep.subr.bf16.mxu0 0
  %4647 = vmatpush1.bf16.msra.mxu0 0
  %4648 = vmatprep.subr.bf16.mxu0 0
  %4649 = vmatpush1.bf16.msra.mxu0 0
  %4650 = vmatprep.mubr.bf16.mxu0 0
  %4651 = vmatmul.mubr.bf16.gmra.mrb[0].mxu0 %v4613
  %v4652 = vpop.f32.mrb[0].mxu0
  %v4653 = vadd.f32 0.0, %v4652
  %v4654 = vpop.f32.mrb[0].mxu0
  %v4655 = vpop.f32.mrb[0].mxu0
  %v4656 = vpop.f32.mrb[0].mxu0
  %4657 = vdwg.mxu0
  %4658 = vrot.lane.b32.xlu0 %v145, 8
  %v4659 = vpop.permute.xlu0 %4658
  %v4661 = vsel %vm266, %v4321, 0
  %v4664 = vsel %vm771, %v4659, 0
  %4666 = vmatprep.subr.bf16.mxu0 0
  %4667 = vmatpush1.bf16.msra.mxu0 %v4664
  %4668 = vmatprep.subr.bf16.mxu0 0
  %4669 = vmatpush1.bf16.msra.mxu0 0
  %4670 = vmatprep.subr.bf16.mxu0 0
  %4671 = vmatpush1.bf16.msra.mxu0 0
  %4672 = vmatprep.subr.bf16.mxu0 0
  %4673 = vmatpush1.bf16.msra.mxu0 0
  %4674 = vmatprep.subr.bf16.mxu0 0
  %4675 = vmatpush1.bf16.msra.mxu0 0
  %4676 = vmatprep.subr.bf16.mxu0 0
  %4677 = vmatpush1.bf16.msra.mxu0 0
  %4678 = vmatprep.subr.bf16.mxu0 0
  %4679 = vmatpush1.bf16.msra.mxu0 0
  %4680 = vmatprep.subr.bf16.mxu0 0
  %4681 = vmatpush1.bf16.msra.mxu0 0
  %4682 = vmatprep.subr.bf16.mxu0 0
  %4683 = vmatpush1.bf16.msra.mxu0 0
  %4684 = vmatprep.subr.bf16.mxu0 0
  %4685 = vmatpush1.bf16.msra.mxu0 0
  %4686 = vmatprep.subr.bf16.mxu0 0
  %4687 = vmatpush1.bf16.msra.mxu0 0
  %4688 = vmatprep.subr.bf16.mxu0 0
  %4689 = vmatpush1.bf16.msra.mxu0 0
  %4690 = vmatprep.subr.bf16.mxu0 0
  %4691 = vmatpush1.bf16.msra.mxu0 0
  %4692 = vmatprep.subr.bf16.mxu0 0
  %4693 = vmatpush1.bf16.msra.mxu0 0
  %4694 = vmatprep.subr.bf16.mxu0 0
  %4695 = vmatpush1.bf16.msra.mxu0 0
  %4696 = vmatprep.subr.bf16.mxu0 0
  %4697 = vmatpush1.bf16.msra.mxu0 0
  %4698 = vmatprep.mubr.bf16.mxu0 0
  %4699 = vmatmul.mubr.bf16.gmra.mrb[0].mxu0 %v4661
  %v4700 = vpop.f32.mrb[0].mxu0
  %v4701 = vadd.f32 0.0, %v4700
  %v4702 = vpop.f32.mrb[0].mxu0
  %v4703 = vpop.f32.mrb[0].mxu0
  %v4704 = vpop.f32.mrb[0].mxu0
  %4705 = vdwg.mxu0
  %4708 = vrot.lane.b32.xlu0 %v4461, 8
  %v4709 = vpop.permute.xlu0 %4708
  %4710 = vrot.lane.b32.xlu0 %v4509, 8
  %v4711 = vpop.permute.xlu0 %4710
  %4716 = vrot.lane.b32.xlu0 %v4557, 16
  %v4717 = vpop.permute.xlu0 %4716
  %4718 = vrot.lane.b32.xlu0 %v4605, 16
  %v4719 = vpop.permute.xlu0 %4718
  %4724 = vrot.lane.b32.xlu0 %v4653, 24
  %v4725 = vpop.permute.xlu0 %4724
  %4726 = vrot.lane.b32.xlu0 %v4701, 24
  %v4727 = vpop.permute.xlu0 %4726
  %v4730 = vsel %vm266, %v4365, %v4709
  %v4731 = vsel %vm266, %v4413, %v4711
  %v4732 = vsel %vm1177, %v4730, %v4717
  %v4733 = vsel %vm1177, %v4731, %v4719
  %v4734 = vsel %vm1180, %v4732, %v4725
  %v4735 = vsel %vm1180, %v4733, %v4727
  %v4736 = vpack.c.bf16 %v4734, %v4734
  %v4737 = vpack.c.bf16 %v4735, %v4735
  %v4738 = vld [vmem:[%s3 + $0xa0] sm:$0xf]
  %v4739 = vld [vmem:[%s3 + $0xa4] sm:$0xf]
  %v4740 = vld [vmem:[%s3 + $0xa8] sm:$0xf]
  %v4741 = vld [vmem:[%s3 + $0xac] sm:$0xf]
  %v4744 = vunpack.c.l.b16 %v4736
  %v4745 = vunpack.c.l.b16 %v4737
  %v4746 = vpack.c.b16 %v4745, %v4744
  %v4751 = vunpack.c.l.b16 %v4738
  %v4752 = vunpack.c.l.b16 %v4739
  %v4753 = vunpack.c.l.b16 %v4740
  %v4754 = vunpack.c.l.b16 %v4741
  %v4755 = vpack.c.b16 %v4752, %v4751
  %v4756 = vpack.c.b16 %v4754, %v4753
  %v4760 = vsel %vm92, %v4746, 0
  %4762 = vmatprep.subr.bf16.mxu0 0
  %4763 = vmatpush1.bf16.msra.mxu0 %v4755
  %4764 = vmatprep.subr.bf16.mxu0 0
  %4765 = vmatpush1.bf16.msra.mxu0 %v4756
  %4766 = vmatprep.subr.bf16.mxu0 0
  %4767 = vmatpush1.bf16.msra.mxu0 0
  %4768 = vmatprep.subr.bf16.mxu0 0
  %4769 = vmatpush1.bf16.msra.mxu0 0
  %4770 = vmatprep.subr.bf16.mxu0 0
  %4771 = vmatpush1.bf16.msra.mxu0 0
  %4772 = vmatprep.subr.bf16.mxu0 0
  %4773 = vmatpush1.bf16.msra.mxu0 0
  %4774 = vmatprep.subr.bf16.mxu0 0
  %4775 = vmatpush1.bf16.msra.mxu0 0
  %4776 = vmatprep.subr.bf16.mxu0 0
  %4777 = vmatpush1.bf16.msra.mxu0 0
  %4778 = vmatprep.subr.bf16.mxu0 0
  %4779 = vmatpush1.bf16.msra.mxu0 0
  %4780 = vmatprep.subr.bf16.mxu0 0
  %4781 = vmatpush1.bf16.msra.mxu0 0
  %4782 = vmatprep.subr.bf16.mxu0 0
  %4783 = vmatpush1.bf16.msra.mxu0 0
  %4784 = vmatprep.subr.bf16.mxu0 0
  %4785 = vmatpush1.bf16.msra.mxu0 0
  %4786 = vmatprep.subr.bf16.mxu0 0
  %4787 = vmatpush1.bf16.msra.mxu0 0
  %4788 = vmatprep.subr.bf16.mxu0 0
  %4789 = vmatpush1.bf16.msra.mxu0 0
  %4790 = vmatprep.subr.bf16.mxu0 0
  %4791 = vmatpush1.bf16.msra.mxu0 0
  %4792 = vmatprep.subr.bf16.mxu0 0
  %4793 = vmatpush1.bf16.msra.mxu0 0
  %4794 = vmatprep.mubr.bf16.mxu0 0
  %4795 = vmatmul.mubr.bf16.gmra.mrb[0].mxu0 %v4760
  %v4796 = vpop.f32.mrb[0].mxu0
  %v4797 = vadd.f32 0.0, %v4796
  %v4798 = vpop.f32.mrb[0].mxu0
  %v4799 = vpop.f32.mrb[0].mxu0
  %v4800 = vadd.f32 0.0, %v4799
  %v4801 = vpop.f32.mrb[0].mxu0
  %4802 = vdwg.mxu0
  %v4803 = vadd.f32 %v3702, %v4797
  %v4804 = vadd.f32 %v3703, %v4800
  %v4805 = vld [vmem:[%s4 + $0xf] sm:$0x1]
  %v4806 = vlaneseq
  %v4807 = vshrl.u32 %v4806, 7
  %v4808 = vsub.s32 0, %v4807
  %v4809 = vrot.slane %v4805, %v4808
  %v4810 = vadd.f32 %v4803, %v4809
  %v4811 = vadd.f32 %v4804, %v4809
  %v4812 = vld [vmem:[%s4 + $0x16] sm:$0x1]
  %v4813 = vld [vmem:[%s4 + $0x17] sm:$0x1]
  %v4814 = vsel %vm92, %v4810, 0.0
  %4815 = vadd.xlane.f32.xlu0 %v4814
  %v4816 = vpop.xlane.xlu0 %4815
  %v4817 = vsel %vm92, %v4811, 0.0
  %4818 = vadd.xlane.f32.xlu0 %v4817
  %v4819 = vpop.xlane.xlu0 %4818
  %v4820 = vmul.f32 %v4816, %v154
  %v4821 = vmul.f32 %v4819, %v154
  %v4822 = vsub.f32 %v4810, %v4820
  %v4823 = vsub.f32 %v4811, %v4821
  %v4824 = vmul.f32 %v4822, %v4822
  %v4825 = vmul.f32 %v4823, %v4823
  %v4826 = vsel %vm92, %v4824, 0.0
  %4827 = vadd.xlane.f32.xlu0 %v4826
  %v4828 = vpop.xlane.xlu0 %4827
  %v4829 = vsel %vm92, %v4825, 0.0
  %4830 = vadd.xlane.f32.xlu0 %v4829
  %v4831 = vpop.xlane.xlu0 %4830
  %v4832 = vmul.f32 %v4828, %v154
  %v4833 = vmul.f32 %v4831, %v154
  %v4834 = vadd.f32 %v4832, 1e-06
  %v4835 = vadd.f32 %v4833, 1e-06
  %v4836 = vrsqrt.pop %v4834
  %v4837 = vrsqrt.pop %v4835
  %v4838 = vmul.f32 %v4822, %v4836
  %v4839 = vmul.f32 %v4823, %v4837
  %v4840 = vlaneseq
  %v4841 = vshrl.u32 %v4840, 7
  %v4842 = vsub.s32 0, %v4841
  %v4843 = vrot.slane %v4812, %v4842
  %v4844 = vmul.f32 %v4838, %v4843
  %v4845 = vmul.f32 %v4839, %v4843
  %v4846 = vlaneseq
  %v4847 = vshrl.u32 %v4846, 7
  %v4848 = vsub.s32 0, %v4847
  %v4849 = vrot.slane %v4813, %v4848
  %v4850 = vadd.f32 %v4844, %v4849
  %v4851 = vadd.f32 %v4845, %v4849
  %v4852 = vpack.c.bf16 %v4850, %v4850
  %v4853 = vpack.c.bf16 %v4851, %v4851
  %v4854 = vld [vmem:[%s3 + $0xb0] sm:$0xf]
  %v4855 = vld [vmem:[%s3 + $0xb4] sm:$0xf]
  %v4856 = vld [vmem:[%s3 + $0xb8] sm:$0xf]
  %v4857 = vld [vmem:[%s3 + $0xbc] sm:$0xf]
  %v4860 = vunpack.c.l.b16 %v4852
  %v4861 = vunpack.c.l.b16 %v4853
  %v4862 = vpack.c.b16 %v4861, %v4860
  %v4867 = vunpack.c.l.b16 %v4854
  %v4868 = vunpack.c.l.b16 %v4855
  %v4869 = vunpack.c.l.b16 %v4856
  %v4870 = vunpack.c.l.b16 %v4857
  %v4871 = vpack.c.b16 %v4868, %v4867
  %v4872 = vpack.c.b16 %v4870, %v4869
  %v4876 = vsel %vm92, %v4862, 0
  %4878 = vmatprep.subr.bf16.mxu0 0
  %4879 = vmatpush1.bf16.msra.mxu0 %v4871
  %4880 = vmatprep.subr.bf16.mxu0 0
  %4881 = vmatpush1.bf16.msra.mxu0 %v4872
  %4882 = vmatprep.subr.bf16.mxu0 0
  %4883 = vmatpush1.bf16.msra.mxu0 0
  %4884 = vmatprep.subr.bf16.mxu0 0
  %4885 = vmatpush1.bf16.msra.mxu0 0
  %4886 = vmatprep.subr.bf16.mxu0 0
  %4887 = vmatpush1.bf16.msra.mxu0 0
  %4888 = vmatprep.subr.bf16.mxu0 0
  %4889 = vmatpush1.bf16.msra.mxu0 0
  %4890 = vmatprep.subr.bf16.mxu0 0
  %4891 = vmatpush1.bf16.msra.mxu0 0
  %4892 = vmatprep.subr.bf16.mxu0 0
  %4893 = vmatpush1.bf16.msra.mxu0 0
  %4894 = vmatprep.subr.bf16.mxu0 0
  %4895 = vmatpush1.bf16.msra.mxu0 0
  %4896 = vmatprep.subr.bf16.mxu0 0
  %4897 = vmatpush1.bf16.msra.mxu0 0
  %4898 = vmatprep.subr.bf16.mxu0 0
  %4899 = vmatpush1.bf16.msra.mxu0 0
  %4900 = vmatprep.subr.bf16.mxu0 0
  %4901 = vmatpush1.bf16.msra.mxu0 0
  %4902 = vmatprep.subr.bf16.mxu0 0
  %4903 = vmatpush1.bf16.msra.mxu0 0
  %4904 = vmatprep.subr.bf16.mxu0 0
  %4905 = vmatpush1.bf16.msra.mxu0 0
  %4906 = vmatprep.subr.bf16.mxu0 0
  %4907 = vmatpush1.bf16.msra.mxu0 0
  %4908 = vmatprep.subr.bf16.mxu0 0
  %4909 = vmatpush1.bf16.msra.mxu0 0
  %4910 = vmatprep.mubr.bf16.mxu0 0
  %4911 = vmatmul.mubr.bf16.gmra.mrb[0].mxu0 %v4876
  %v4912 = vpop.f32.mrb[0].mxu0
  %v4913 = vadd.f32 0.0, %v4912
  %v4914 = vpop.f32.mrb[0].mxu0
  %v4915 = vpop.f32.mrb[0].mxu0
  %v4916 = vadd.f32 0.0, %v4915
  %v4917 = vpop.f32.mrb[0].mxu0
  %4918 = vdwg.mxu0
  %v4919 = vld [vmem:[%s4 + $0x10] sm:$0x1]
  %v4920 = vlaneseq
  %v4921 = vshrl.u32 %v4920, 7
  %v4922 = vsub.s32 0, %v4921
  %v4923 = vrot.slane %v4919, %v4922
  %v4924 = vadd.f32 %v4913, %v4923
  %v4925 = vadd.f32 %v4916, %v4923
  %v4926 = vmul.f32 %v4924, 0.5
  %v4927 = vmul.f32 %v4925, 0.5
  %v4928 = vmul.f32 %v4924, 0.044715
  %v4929 = vmul.f32 %v4925, 0.044715
  %v4930 = vmul.f32 %v4928, %v4924
  %v4931 = vmul.f32 %v4929, %v4925
  %v4932 = vmul.f32 %v4930, %v4924
  %v4933 = vmul.f32 %v4931, %v4925
  %v4934 = vadd.f32 %v4924, %v4932
  %v4935 = vadd.f32 %v4925, %v4933
  %v4936 = vmul.f32 %v4934, 0.7978846
  %v4937 = vmul.f32 %v4935, 0.7978846
  %v4938 = vtanh.pop %v4936
  %v4939 = vtanh.pop %v4937
  %v4940 = vadd.f32 %v4938, 1.0
  %v4941 = vadd.f32 %v4939, 1.0
  %v4942 = vmul.f32 %v4926, %v4940
  %v4943 = vmul.f32 %v4927, %v4941
  %v4944 = vpack.c.bf16 %v4942, %v4942
  %v4945 = vpack.c.bf16 %v4943, %v4943
  %v4946 = vld [vmem:[%s3 + $0xc0] sm:$0xf]
  %v4947 = vld [vmem:[%s3 + $0xc4] sm:$0xf]
  %v4948 = vld [vmem:[%s3 + $0xc8] sm:$0xf]
  %v4949 = vld [vmem:[%s3 + $0xcc] sm:$0xf]
  %v4950 = vld [vmem:[%s3 + $0xd0] sm:$0xf]
  %v4951 = vld [vmem:[%s3 + $0xd4] sm:$0xf]
  %v4952 = vld [vmem:[%s3 + $0xd8] sm:$0xf]
  %v4953 = vld [vmem:[%s3 + $0xdc] sm:$0xf]
  %v4956 = vunpack.c.l.b16 %v4944
  %v4957 = vunpack.c.l.b16 %v4945
  %v4958 = vpack.c.b16 %v4957, %v4956
  %v4967 = vunpack.c.l.b16 %v4946
  %v4968 = vunpack.c.l.b16 %v4947
  %v4969 = vunpack.c.l.b16 %v4948
  %v4970 = vunpack.c.l.b16 %v4949
  %v4971 = vunpack.c.l.b16 %v4950
  %v4972 = vunpack.c.l.b16 %v4951
  %v4973 = vunpack.c.l.b16 %v4952
  %v4974 = vunpack.c.l.b16 %v4953
  %v4975 = vpack.c.b16 %v4968, %v4967
  %v4976 = vpack.c.b16 %v4970, %v4969
  %v4977 = vpack.c.b16 %v4972, %v4971
  %v4978 = vpack.c.b16 %v4974, %v4973
  %v4984 = vsel %vm2542, %v4958, 0
  %4986 = vmatprep.subr.bf16.mxu0 0
  %4987 = vmatpush1.bf16.msra.mxu0 %v4975
  %4988 = vmatprep.subr.bf16.mxu0 0
  %4989 = vmatpush1.bf16.msra.mxu0 %v4976
  %4990 = vmatprep.subr.bf16.mxu0 0
  %4991 = vmatpush1.bf16.msra.mxu0 %v4977
  %4992 = vmatprep.subr.bf16.mxu0 0
  %4993 = vmatpush1.bf16.msra.mxu0 %v4978
  %4994 = vmatprep.subr.bf16.mxu0 0
  %4995 = vmatpush1.bf16.msra.mxu0 0
  %4996 = vmatprep.subr.bf16.mxu0 0
  %4997 = vmatpush1.bf16.msra.mxu0 0
  %4998 = vmatprep.subr.bf16.mxu0 0
  %4999 = vmatpush1.bf16.msra.mxu0 0
  %5000 = vmatprep.subr.bf16.mxu0 0
  %5001 = vmatpush1.bf16.msra.mxu0 0
  %5002 = vmatprep.subr.bf16.mxu0 0
  %5003 = vmatpush1.bf16.msra.mxu0 0
  %5004 = vmatprep.subr.bf16.mxu0 0
  %5005 = vmatpush1.bf16.msra.mxu0 0
  %5006 = vmatprep.subr.bf16.mxu0 0
  %5007 = vmatpush1.bf16.msra.mxu0 0
  %5008 = vmatprep.subr.bf16.mxu0 0
  %5009 = vmatpush1.bf16.msra.mxu0 0
  %5010 = vmatprep.subr.bf16.mxu0 0
  %5011 = vmatpush1.bf16.msra.mxu0 0
  %5012 = vmatprep.subr.bf16.mxu0 0
  %5013 = vmatpush1.bf16.msra.mxu0 0
  %5014 = vmatprep.subr.bf16.mxu0 0
  %5015 = vmatpush1.bf16.msra.mxu0 0
  %5016 = vmatprep.subr.bf16.mxu0 0
  %5017 = vmatpush1.bf16.msra.mxu0 0
  %5018 = vmatprep.mubr.bf16.mxu0 0
  %5019 = vmatmul.mubr.bf16.gmra.mrb[0].mxu0 %v4984
  %v5020 = vpop.f32.mrb[0].mxu0
  %v5021 = vadd.f32 0.0, %v5020
  %v5022 = vpop.f32.mrb[0].mxu0
  %v5023 = vpop.f32.mrb[0].mxu0
  %v5024 = vadd.f32 0.0, %v5023
  %v5025 = vpop.f32.mrb[0].mxu0
  %5026 = vdwg.mxu0
  %v5027 = vadd.f32 %v4810, %v5021
  %v5028 = vadd.f32 %v4811, %v5024
  %v5029 = vld [vmem:[%s4 + $0x11] sm:$0x1]
  %v5030 = vlaneseq
  %v5031 = vshrl.u32 %v5030, 7
  %v5032 = vsub.s32 0, %v5031
  %v5033 = vrot.slane %v5029, %v5032
  %v5034 = vadd.f32 %v5027, %v5033
  %v5035 = vadd.f32 %v5028, %v5033
  %v5036 = vld [vmem:[%s4 + $0x19] sm:$0x1]
  %v5037 = vld [vmem:[%s4 + $0x1a] sm:$0x1]
  %v5038 = vsel %vm92, %v5034, 0.0
  %5039 = vadd.xlane.f32.xlu0 %v5038
  %v5040 = vpop.xlane.xlu0 %5039
  %v5041 = vsel %vm92, %v5035, 0.0
  %5042 = vadd.xlane.f32.xlu0 %v5041
  %v5043 = vpop.xlane.xlu0 %5042
  %v5044 = vmul.f32 %v5040, %v154
  %v5045 = vmul.f32 %v5043, %v154
  %v5046 = vsub.f32 %v5034, %v5044
  %v5047 = vsub.f32 %v5035, %v5045
  %v5048 = vmul.f32 %v5046, %v5046
  %v5049 = vmul.f32 %v5047, %v5047
  %v5050 = vsel %vm92, %v5048, 0.0
  %5051 = vadd.xlane.f32.xlu0 %v5050
  %v5052 = vpop.xlane.xlu0 %5051
  %v5053 = vsel %vm92, %v5049, 0.0
  %5054 = vadd.xlane.f32.xlu0 %v5053
  %v5055 = vpop.xlane.xlu0 %5054
  %v5056 = vmul.f32 %v5052, %v154
  %v5057 = vmul.f32 %v5055, %v154
  %v5058 = vadd.f32 %v5056, 1e-06
  %v5059 = vadd.f32 %v5057, 1e-06
  %v5060 = vrsqrt.pop %v5058
  %v5061 = vrsqrt.pop %v5059
  %v5062 = vmul.f32 %v5046, %v5060
  %v5063 = vmul.f32 %v5047, %v5061
  %v5064 = vlaneseq
  %v5065 = vshrl.u32 %v5064, 7
  %v5066 = vsub.s32 0, %v5065
  %v5067 = vrot.slane %v5036, %v5066
  %v5068 = vmul.f32 %v5062, %v5067
  %v5069 = vmul.f32 %v5063, %v5067
  %v5070 = vlaneseq
  %v5071 = vshrl.u32 %v5070, 7
  %v5072 = vsub.s32 0, %v5071
  %v5073 = vrot.slane %v5037, %v5072
  %v5074 = vadd.f32 %v5068, %v5073
  %v5075 = vadd.f32 %v5069, %v5073
  %v5076 = vsel %vm92, %v5074, 0.0
  %v5077 = vsel %vm92, %v5075, 0.0
  %5078 = vst [vmem:[%s6] sm:$0xff] %v5076
  %5079 = vst [vmem:[%s6 + $0x8] sm:$0xff] %v5077
  %v5080 = vpack.c.bf16 %v5074, %v5074
  %v5081 = vpack.c.bf16 %v5075, %v5075
  %v5082 = vld [vmem:[%s3 + $0xf0] sm:$0xf]
  %v5083 = vld [vmem:[%s3 + $0xf4] sm:$0xf]
  %v5084 = vld [vmem:[%s3 + $0xf8] sm:$0xf]
  %v5085 = vld [vmem:[%s3 + $0xfc] sm:$0xf]
  %v5088 = vunpack.c.l.b16 %v5080
  %v5089 = vunpack.c.l.b16 %v5081
  %v5090 = vpack.c.b16 %v5089, %v5088
  %v5095 = vunpack.c.l.b16 %v5082
  %v5096 = vunpack.c.l.b16 %v5083
  %v5097 = vunpack.c.l.b16 %v5084
  %v5098 = vunpack.c.l.b16 %v5085
  %v5099 = vpack.c.b16 %v5096, %v5095
  %v5100 = vpack.c.b16 %v5098, %v5097
  %v5104 = vsel %vm92, %v5090, 0
  %5106 = vmatprep.subr.bf16.mxu0 0
  %5107 = vmatpush1.bf16.msra.mxu0 %v5099
  %5108 = vmatprep.subr.bf16.mxu0 0
  %5109 = vmatpush1.bf16.msra.mxu0 %v5100
  %5110 = vmatprep.subr.bf16.mxu0 0
  %5111 = vmatpush1.bf16.msra.mxu0 0
  %5112 = vmatprep.subr.bf16.mxu0 0
  %5113 = vmatpush1.bf16.msra.mxu0 0
  %5114 = vmatprep.subr.bf16.mxu0 0
  %5115 = vmatpush1.bf16.msra.mxu0 0
  %5116 = vmatprep.subr.bf16.mxu0 0
  %5117 = vmatpush1.bf16.msra.mxu0 0
  %5118 = vmatprep.subr.bf16.mxu0 0
  %5119 = vmatpush1.bf16.msra.mxu0 0
  %5120 = vmatprep.subr.bf16.mxu0 0
  %5121 = vmatpush1.bf16.msra.mxu0 0
  %5122 = vmatprep.subr.bf16.mxu0 0
  %5123 = vmatpush1.bf16.msra.mxu0 0
  %5124 = vmatprep.subr.bf16.mxu0 0
  %5125 = vmatpush1.bf16.msra.mxu0 0
  %5126 = vmatprep.subr.bf16.mxu0 0
  %5127 = vmatpush1.bf16.msra.mxu0 0
  %5128 = vmatprep.subr.bf16.mxu0 0
  %5129 = vmatpush1.bf16.msra.mxu0 0
  %5130 = vmatprep.subr.bf16.mxu0 0
  %5131 = vmatpush1.bf16.msra.mxu0 0
  %5132 = vmatprep.subr.bf16.mxu0 0
  %5133 = vmatpush1.bf16.msra.mxu0 0
  %5134 = vmatprep.subr.bf16.mxu0 0
  %5135 = vmatpush1.bf16.msra.mxu0 0
  %5136 = vmatprep.subr.bf16.mxu0 0
  %5137 = vmatpush1.bf16.msra.mxu0 0
  %5138 = vmatprep.mubr.bf16.mxu0 0
  %5139 = vmatmul.mubr.bf16.gmra.mrb[0].mxu0 %v5104
  %v5140 = vpop.f32.mrb[0].mxu0
  %v5141 = vadd.f32 0.0, %v5140
  %v5142 = vpop.f32.mrb[0].mxu0
  %v5143 = vpop.f32.mrb[0].mxu0
  %v5144 = vadd.f32 0.0, %v5143
  %v5145 = vpop.f32.mrb[0].mxu0
  %5146 = vdwg.mxu0
  %v5147 = vld [vmem:[%s4 + $0x1b] sm:$0x1]
  %v5148 = vlaneseq
  %v5149 = vshrl.u32 %v5148, 7
  %v5150 = vsub.s32 0, %v5149
  %v5151 = vrot.slane %v5147, %v5150
  %v5152 = vadd.f32 %v5141, %v5151
  %v5153 = vadd.f32 %v5144, %v5151
  %5154 = vmax.xlane.f32.xlu0 %v5152
  %v5155 = vpop.xlane.xlu0 %5154
  %5156 = vmax.xlane.f32.xlu0 %v5153
  %v5157 = vpop.xlane.xlu0 %5156
  %v5158 = vsub.f32 %v5152, %v5155
  %v5159 = vsub.f32 %v5153, %v5157
  %v5160 = vmul.f32 %v5158, 1.442695
  %v5161 = vpow.pop %v5160
  %v5162 = vmul.f32 %v5159, 1.442695
  %v5163 = vpow.pop %v5162
  %5164 = vadd.xlane.f32.xlu0 %v5161
  %v5165 = vpop.xlane.xlu0 %5164
  %5166 = vadd.xlane.f32.xlu0 %v5163
  %v5167 = vpop.xlane.xlu0 %5166
  %v5168 = vlog2.pop %v5165
  %v5169 = vmul.f32 %v5168, 0.6931472
  %v5170 = vlog2.pop %v5167
  %v5171 = vmul.f32 %v5170, 0.6931472
  %v5172 = vsub.f32 %v5158, %v5169
  %v5173 = vsub.f32 %v5159, %v5171
  %5174 = vst [vmem:[%s5] sm:$0xff] %v5172
  %5175 = vst [vmem:[%s5 + $0x8] sm:$0xff] %v5173
  // Predicated region
  $region22: #{tf_decoder_forward.1} parent=0 // pred_check
    _
  $region23: #{tf_decoder_forward.1} parent=0 // pred_check_branch
    %5177 = sbr.rel (0) target = $region25
  $region24: #{tf_decoder_forward.1} parent=0 // pred_region
    _
  $region25: #{tf_decoder_forward.1} parent=0 // pred_fallthru
    _
  // Predicated region
  $region26: #{tf_decoder_forward.1} parent=0 // pred_check
    _
  $region27: #{tf_decoder_forward.1} parent=0 // pred_check_branch
    %5179 = sbr.rel (0) target = $region29
  $region28: #{tf_decoder_forward.1} parent=0 // pred_region
    _
  $region29: #{tf_decoder_forward.1} parent=0 // pred_fallthru
    _
  // Predicated region
  $region30: #{tf_decoder_forward.1} parent=0 // pred_check
    _
  $region31: #{tf_decoder_forward.1} parent=0 // pred_check_branch
    %5181 = sbr.rel (0) target = $region33
  $region32: #{tf_decoder_forward.1} parent=0 // pred_region
    _
  $region33: #{tf_decoder_forward.1} parent=0 // pred_fallthru
    _
  // Predicated region
  $region34: #{tf_decoder_forward.1} parent=0 // pred_check
    _
  $region35: #{tf_decoder_forward.1} parent=0 // pred_check_branch
    %5183 = sbr.rel (0) target = $region37
  $region36: #{tf_decoder_forward.1} parent=0 // pred_region
    _
  $region37: #{tf_decoder_forward.1} parent=0 // pred_fallthru
    _

</llo_original>
